<compile_context>
chip_gen: v6e
topology: v6e:2x2x1
jax: 0.10.0
libtpu: 0.0.40
codegen_flags: <defaults>
</compile_context>

<pallas_src>
import functools

import jax
import jax.numpy as jnp
from jax import lax
from jax.experimental import pallas as pl
from jax.experimental.pallas import tpu as pltpu


# ---------------------------------------------------------------------------
# Fused ASPP kernel
# ---------------------------------------------------------------------------
def _fused_aspp_kernel(rates, pad, W, TH,
                       xp_ref, w0_ref, wd_ref, wp_ref, b_ref, g_ref,
                       o_ref, acc_sc, proj_sc):
    """One grid step computes the final ASPP output for a (TH, W) tile.

    xp_ref : (1, H+2p, W+2p, Cin) bf16  whole padded image of batch n
    w0_ref : (Cin, Cout)          bf16  1x1 branch (BN scale folded in)
    wd_ref : (27, Cin, Cout)      bf16  3 dilated 3x3 branches, taps br*9+dy*3+dx
    wp_ref : (4, Cout, Cout)      bf16  projection weights for spatial branches
    b_ref  : (4, Cout)            f32   per-branch BN biases (branches 0..3)
    g_ref  : (1, 1, Cout)         f32   per-image constant: projected global
                                        branch + projection BN bias
    o_ref  : (1, TH, W, Cout)     f32
    """
    hi = pl.program_id(1)
    Cin = xp_ref.shape[-1]
    Cout = o_ref.shape[-1]
    M = TH * W
    h0 = pl.multiple_of(hi * TH, TH)

    def as_matrix(block4d):
        # (1, TH, W, Cin) -> (TH*W, Cin) bf16 for the MXU.
        if W % 16 == 0:
            # W aligned to the bf16 sublane pack: direct reshape, no casts.
            return block4d.reshape(M, Cin)
        # Fallback: go through f32 (well-supported relayout path).
        return block4d.astype(jnp.float32).reshape(M, Cin).astype(jnp.bfloat16)

    # ---- branch 0: 1x1 conv -> BN -> ReLU, projected into proj_sc.
    xt = as_matrix(xp_ref[:, pl.ds(h0 + pad, TH), pad:pad + W, :])
    f0 = jnp.dot(xt, w0_ref[...], preferred_element_type=jnp.float32)
    f0 = jnp.maximum(f0 + b_ref[0:1, :], 0.0)
    proj_sc[...] = jnp.dot(f0.astype(jnp.bfloat16), wp_ref[0],
                           preferred_element_type=jnp.float32)

    # ---- branches 1..3: dilated 3x3 conv -> BN -> ReLU, projected.
    for br, r in enumerate(rates):
        for dy in range(3):
            row0 = h0 + (pad - r) + dy * r            # dynamic (h0) + static offset
            for dx in range(3):
                col0 = (pad - r) + dx * r             # static
                patch = as_matrix(
                    xp_ref[:, pl.ds(row0, TH), pl.ds(col0, W), :])
                contrib = jnp.dot(patch, wd_ref[br * 9 + dy * 3 + dx],
                                  preferred_element_type=jnp.float32)
                if dy == 0 and dx == 0:
                    acc_sc[...] = contrib             # init with first tap
                else:
                    acc_sc[...] += contrib
        f = jnp.maximum(acc_sc[...] + b_ref[br + 1:br + 2, :], 0.0)
        proj_sc[...] += jnp.dot(f.astype(jnp.bfloat16), wp_ref[br + 1],
                                preferred_element_type=jnp.float32)

    # ---- projection epilogue: add per-image (global branch + bias) term,
    #      ReLU, store tile.
    y = proj_sc[...] + g_ref[0]
    o_ref[...] = jnp.maximum(y, 0.0).reshape(1, TH, W, Cout).astype(o_ref.dtype)


def _largest_divisor_leq(n, k):
    for d in range(min(n, k), 0, -1):
        if n % d == 0:
            return d
    return 1


# ---------------------------------------------------------------------------
# Forward wrapper (layout plumbing + BN folding in plain JAX)
# ---------------------------------------------------------------------------
def aspp_forward(x_nchw, p, rates=(6, 12, 18), tile_rows=8):
    x = jnp.transpose(x_nchw, (0, 2, 3, 1)).astype(jnp.float32)   # NHWC
    N, H, W, Cin = x.shape
    Cout = p["w0"].shape[-1]
    R = max(rates)
    TH = _largest_divisor_leq(H, tile_rows)                        # divides H
    Hp, Wp = H + 2 * R, W + 2 * R

    # Pad ONCE with the max rate; store activations as bf16 (halves HBM bytes).
    xp = jnp.pad(x, ((0, 0), (R, R), (R, R), (0, 0))).astype(jnp.bfloat16)

    # Fold inference-mode BN scale into the conv weights; cast to bf16.
    w0 = (p["w0"] * p["s0"]).astype(jnp.bfloat16)                          # (Cin,Cout)
    wd = jnp.stack([p["w1"] * p["s1"], p["w2"] * p["s2"],
                    p["w3"] * p["s3"]], axis=0)                            # (3,3,3,Cin,Cout)
    wd = wd.reshape(27, Cin, Cout).astype(jnp.bfloat16)
    wp_full = p["wp"] * p["sp"][None, :, :]                                # (5,Cout,Cout) f32
    wp = wp_full[:4].astype(jnp.bfloat16)                                  # spatial branches
    b = jnp.concatenate([p["b0"], p["b1"], p["b2"], p["b3"]],
                        axis=0).astype(jnp.float32)                        # (4,Cout)

    # Global-average-pool branch: after the 1x1 bilinear upsample (align_corners)
    # it is a per-image CONSTANT, so its whole chain (pool -> 1x1 conv -> BN ->
    # ReLU -> projection) plus the projection BN bias collapses to one additive
    # (N, Cout) term computed here in plain JAX and fed to the kernel.
    xm = jnp.mean(x, axis=(1, 2))                                          # (N,Cin)
    g = jnp.maximum(xm @ (p["w4"] * p["s4"]) + p["b4"], 0.0)               # (N,Cout)
    gbias = (g @ wp_full[4] + p["bp"]).astype(jnp.float32)                 # (N,Cout)
    gbias = gbias.reshape(N, 1, Cout)

    grid = (N, H // TH)
    kernel = functools.partial(_fused_aspp_kernel, tuple(rates), R, W, TH)

    flops = 2 * N * H * W * (28 * Cin * Cout + 4 * Cout * Cout)
    bytes_accessed = (xp.size * 2 + N * H * W * Cout * 4
                      + (w0.size + wd.size + wp.size) * 2
                      + (b.size + gbias.size) * 4)

    # NOTE: at the test's Cout=16 the output lanes are narrow (masked stores);
    # production Cout=256 is lane-dense.
    out_nhwc = pl.pallas_call(
        kernel,
        out_shape=jax.ShapeDtypeStruct((N, H, W, Cout), jnp.float32),
        grid_spec=pltpu.PrefetchScalarGridSpec(
            num_scalar_prefetch=0,
            grid=grid,
            in_specs=[
                # Whole padded image per batch n (block index changes only with n,
                # so it stays VMEM-resident across all H-tiles of that image).
                pl.BlockSpec((1, Hp, Wp, Cin), lambda n, hi: (n, 0, 0, 0)),
                pl.BlockSpec((Cin, Cout), lambda n, hi: (0, 0)),
                pl.BlockSpec((27, Cin, Cout), lambda n, hi: (0, 0, 0)),
                pl.BlockSpec((4, Cout, Cout), lambda n, hi: (0, 0, 0)),
                pl.BlockSpec((4, Cout), lambda n, hi: (0, 0)),
                pl.BlockSpec((1, 1, Cout), lambda n, hi: (n, 0, 0)),
            ],
            out_specs=pl.BlockSpec((1, TH, W, Cout),
                                   lambda n, hi: (n, hi, 0, 0)),
            scratch_shapes=[
                pltpu.VMEM((TH * W, Cout), jnp.float32),   # per-branch pre-act acc
                pltpu.VMEM((TH * W, Cout), jnp.float32),   # projection accumulator
            ]),
        compiler_params=pltpu.CompilerParams(
            # No cross-iteration scratch dependencies -> both axes parallel.
            dimension_semantics=("parallel", "parallel"),
            vmem_limit_bytes=32 * 1024 * 1024),
        cost_estimate=pl.CostEstimate(flops=flops, transcendentals=0,
                                      bytes_accessed=bytes_accessed),
    )(xp, w0, wd, wp, b, gbias)

    return jnp.transpose(out_nhwc, (0, 3, 1, 2))                  # NCHW


# ---------------------------------------------------------------------------
# Pure-JAX reference (NCHW, lax.conv, f32) for correctness checking
# ---------------------------------------------------------------------------
def aspp_reference(x, p, rates=(6, 12, 18)):
    def bnrelu(y, s, b):
        return jnp.maximum(y * s.reshape(1, -1, 1, 1) + b.reshape(1, -1, 1, 1), 0.0)

    def conv(inp, w_hwio, rate, pad):
        w = jnp.transpose(w_hwio, (3, 2, 0, 1))                   # OIHW
        return lax.conv_general_dilated(
            inp, w, window_strides=(1, 1),
            padding=[(pad, pad), (pad, pad)],
            rhs_dilation=(rate, rate),
            dimension_numbers=("NCHW", "OIHW", "NCHW"))

    N, Cin, H, W = x.shape
    Cout = p["w0"].shape[-1]

    f0 = bnrelu(conv(x, p["w0"][None, None], 1, 0), p["s0"], p["b0"])
    f = [f0]
    for i, r in enumerate(rates, start=1):
        f.append(bnrelu(conv(x, p[f"w{i}"], r, r), p[f"s{i}"], p[f"b{i}"]))

    xm = jnp.mean(x, axis=(2, 3), keepdims=True)
    f4 = bnrelu(conv(xm, p["w4"][None, None], 1, 0), p["s4"], p["b4"])
    f4 = jnp.broadcast_to(f4, (N, Cout, H, W))
    f.append(f4)

    cat = jnp.concatenate(f, axis=1)
    wp = p["wp"].reshape(5 * Cout, Cout)[None, None]              # (1,1,5C,Cout)
    return bnrelu(conv(cat, wp, 1, 0), p["sp"], p["bp"])


# ---------------------------------------------------------------------------
# Deterministic parameter construction
# ---------------------------------------------------------------------------
def make_params(key, cin, cout):
    ks = iter(jax.random.split(key, 32))

    def bn(c):
        gamma = jax.random.uniform(next(ks), (c,), minval=0.5, maxval=1.5)
        beta = 0.1 * jax.random.normal(next(ks), (c,))
        rmean = 0.1 * jax.random.normal(next(ks), (c,))
        rvar = jax.random.uniform(next(ks), (c,), minval=0.5, maxval=1.5)
        scale = gamma / jnp.sqrt(rvar + 1e-5)
        bias = beta - rmean * scale
        return (scale.reshape(1, c).astype(jnp.float32),
                bias.reshape(1, c).astype(jnp.float32))

    p = {}
    p["w0"] = (0.1 * jax.random.normal(next(ks), (cin, cout))).astype(jnp.float32)
    p["s0"], p["b0"] = bn(cout)
    for i in range(1, 4):
        p[f"w{i}"] = (0.1 * jax.random.normal(next(ks), (3, 3, cin, cout))).astype(jnp.float32)
        p[f"s{i}"], p[f"b{i}"] = bn(cout)
    p["w4"] = (0.1 * jax.random.normal(next(ks), (cin, cout))).astype(jnp.float32)
    p["s4"], p["b4"] = bn(cout)
    p["wp"] = (0.1 * jax.random.normal(next(ks), (5, cout, cout))).astype(jnp.float32)
    p["sp"], p["bp"] = bn(cout)
    return p


if __name__ == "__main__":
    N, CIN, COUT, H, W = 2, 32, 16, 16, 16
    key = jax.random.PRNGKey(0)
    kx, kp = jax.random.split(key)
    x = jax.random.normal(kx, (N, CIN, H, W), dtype=jnp.float32)
    params = make_params(kp, CIN, COUT)

    out = jax.jit(aspp_forward)(x, params)
    out = jax.block_until_ready(out)

    ref = aspp_reference(x, params)
    assert out.shape == (N, COUT, H, W)
    # bf16 MXU inputs (f32 accumulation) -> slightly looser tolerance than f32.
    assert bool(jnp.allclose(out, ref, atol=3e-2, rtol=3e-2)), "mismatch vs reference"

    print("KERNEL_OK")
</pallas_src>

<mosaic_0001>
module attributes {stable_mosaic.version = 11 : i64} {
  func.func @_fused_aspp_kernel(%arg0: i32, %arg1: i32, %arg2: memref<1x52x52x32xbf16, #tpu.memory_space<vmem>>, %arg3: memref<32x16xbf16, #tpu.memory_space<vmem>>, %arg4: memref<27x32x16xbf16, #tpu.memory_space<vmem>>, %arg5: memref<4x16x16xbf16, #tpu.memory_space<vmem>>, %arg6: memref<4x16xf32, #tpu.memory_space<vmem>>, %arg7: memref<1x1x16xf32, #tpu.memory_space<vmem>>, %arg8: memref<1x8x16x16xf32, #tpu.memory_space<vmem>>, %arg9: memref<128x16xf32, #tpu.memory_space<vmem>>, %arg10: memref<128x16xf32, #tpu.memory_space<vmem>>) attributes {dimension_semantics = [#tpu.dimension_semantics<parallel>, #tpu.dimension_semantics<parallel>], iteration_bounds = array<i64: 2, 2>, scalar_prefetch = 0 : i64, scratch_operands = 2 : i64, tpu.core_type = #tpu.core_type<tc>, window_params = [{transform_indices = @transform_0, window_bounds = array<i64: 1, 52, 52, 32>}, {pipeline_mode = #tpu.pipeline_mode<synchronous>, transform_indices = @transform_1, window_bounds = array<i64: 32, 16>}, {pipeline_mode = #tpu.pipeline_mode<synchronous>, transform_indices = @transform_2, window_bounds = array<i64: 27, 32, 16>}, {pipeline_mode = #tpu.pipeline_mode<synchronous>, transform_indices = @transform_3, window_bounds = array<i64: 4, 16, 16>}, {pipeline_mode = #tpu.pipeline_mode<synchronous>, transform_indices = @transform_4, window_bounds = array<i64: 4, 16>}, {transform_indices = @transform_5, window_bounds = array<i64: 1, 1, 16>}, {transform_indices = @transform_6, window_bounds = array<i64: 1, 8, 16, 16>}]} {
    %c8_i32 = arith.constant 8 : i32
    %0 = arith.muli %arg1, %c8_i32 : i32
    %1 = tpu.assume_multiple %0, 8 : i32
    %c18_i32 = arith.constant 18 : i32
    %2 = arith.addi %1, %c18_i32 : i32
    %c0 = arith.constant 0 : index
    %3 = arith.index_cast %2 : i32 to index
    %c18 = arith.constant 18 : index
    %c0_0 = arith.constant 0 : index
    %4 = vector.load %arg2[%c0, %3, %c18, %c0_0] : memref<1x52x52x32xbf16, #tpu.memory_space<vmem>>, vector<1x8x16x32xbf16>
    %5 = vector.shape_cast %4 : vector<1x8x16x32xbf16> to vector<128x32xbf16>
    %c0_1 = arith.constant 0 : index
    %c0_2 = arith.constant 0 : index
    %6 = vector.load %arg3[%c0_1, %c0_2] : memref<32x16xbf16, #tpu.memory_space<vmem>>, vector<32x16xbf16>
    %cst = arith.constant dense<0.000000e+00> : vector<128x16xf32>
    %7 = tpu.matmul %5, %6, %cst {dimension_numbers = #tpu.dot_dimension_numbers<[1], [0], [0], [1], [0, 0, 1, 1], [], []>} : vector<128x32xbf16>, vector<32x16xbf16>, vector<128x16xf32> -> vector<128x16xf32>
    %c0_3 = arith.constant 0 : index
    %c0_4 = arith.constant 0 : index
    %8 = vector.load %arg6[%c0_3, %c0_4] : memref<4x16xf32, #tpu.memory_space<vmem>>, vector<1x16xf32>
    %9 = vector.broadcast %8 : vector<1x16xf32> to vector<128x16xf32>
    %10 = arith.addf %7, %9 : vector<128x16xf32>
    %cst_5 = arith.constant 0.000000e+00 : f32
    %11 = vector.broadcast %cst_5 : f32 to vector<128x16xf32>
    %12 = arith.maximumf %10, %11 : vector<128x16xf32>
    %13 = arith.truncf %12 : vector<128x16xf32> to vector<128x16xbf16>
    %c0_6 = arith.constant 0 : index
    %c0_7 = arith.constant 0 : index
    %c0_8 = arith.constant 0 : index
    %14 = vector.load %arg5[%c0_6, %c0_7, %c0_8] : memref<4x16x16xbf16, #tpu.memory_space<vmem>>, vector<1x16x16xbf16>
    %15 = vector.shape_cast %14 : vector<1x16x16xbf16> to vector<16x16xbf16>
    %cst_9 = arith.constant dense<0.000000e+00> : vector<128x16xf32>
    %16 = tpu.matmul %13, %15, %cst_9 {dimension_numbers = #tpu.dot_dimension_numbers<[1], [0], [0], [1], [0, 0, 1, 1], [], []>} : vector<128x16xbf16>, vector<16x16xbf16>, vector<128x16xf32> -> vector<128x16xf32>
    %c0_10 = arith.constant 0 : index
    %c0_11 = arith.constant 0 : index
    %17 = vector.load %arg10[%c0_10, %c0_11] : memref<128x16xf32, #tpu.memory_space<vmem>>, vector<128x16xf32>
    tpu.vector_store %arg10[%c0_10, %c0_11], %16 {strides = array<i32>} : memref<128x16xf32, #tpu.memory_space<vmem>>, vector<128x16xf32>,
    %c12_i32 = arith.constant 12 : i32
    %18 = arith.addi %1, %c12_i32 : i32
    %c0_i32 = arith.constant 0 : i32
    %19 = arith.addi %18, %c0_i32 : i32
    %c0_12 = arith.constant 0 : index
    %20 = arith.index_cast %19 : i32 to index
    %c12 = arith.constant 12 : index
    %c0_13 = arith.constant 0 : index
    %21 = vector.load %arg2[%c0_12, %20, %c12, %c0_13] : memref<1x52x52x32xbf16, #tpu.memory_space<vmem>>, vector<1x8x16x32xbf16>
    %22 = vector.shape_cast %21 : vector<1x8x16x32xbf16> to vector<128x32xbf16>
    %c0_14 = arith.constant 0 : index
    %c0_15 = arith.constant 0 : index
    %c0_16 = arith.constant 0 : index
    %23 = vector.load %arg4[%c0_14, %c0_15, %c0_16] : memref<27x32x16xbf16, #tpu.memory_space<vmem>>, vector<1x32x16xbf16>
    %24 = vector.shape_cast %23 : vector<1x32x16xbf16> to vector<32x16xbf16>
    %cst_17 = arith.constant dense<0.000000e+00> : vector<128x16xf32>
    %25 = tpu.matmul %22, %24, %cst_17 {dimension_numbers = #tpu.dot_dimension_numbers<[1], [0], [0], [1], [0, 0, 1, 1], [], []>} : vector<128x32xbf16>, vector<32x16xbf16>, vector<128x16xf32> -> vector<128x16xf32>
    %c0_18 = arith.constant 0 : index
    %c0_19 = arith.constant 0 : index
    %26 = vector.load %arg9[%c0_18, %c0_19] : memref<128x16xf32, #tpu.memory_space<vmem>>, vector<128x16xf32>
    tpu.vector_store %arg9[%c0_18, %c0_19], %25 {strides = array<i32>} : memref<128x16xf32, #tpu.memory_space<vmem>>, vector<128x16xf32>,
    %c0_20 = arith.constant 0 : index
    %27 = arith.index_cast %19 : i32 to index
    %c18_21 = arith.constant 18 : index
    %c0_22 = arith.constant 0 : index
    %28 = vector.load %arg2[%c0_20, %27, %c18_21, %c0_22] : memref<1x52x52x32xbf16, #tpu.memory_space<vmem>>, vector<1x8x16x32xbf16>
    %29 = vector.shape_cast %28 : vector<1x8x16x32xbf16> to vector<128x32xbf16>
    %c1 = arith.constant 1 : index
    %c0_23 = arith.constant 0 : index
    %c0_24 = arith.constant 0 : index
    %30 = vector.load %arg4[%c1, %c0_23, %c0_24] : memref<27x32x16xbf16, #tpu.memory_space<vmem>>, vector<1x32x16xbf16>
    %31 = vector.shape_cast %30 : vector<1x32x16xbf16> to vector<32x16xbf16>
    %cst_25 = arith.constant dense<0.000000e+00> : vector<128x16xf32>
    %32 = tpu.matmul %29, %31, %cst_25 {dimension_numbers = #tpu.dot_dimension_numbers<[1], [0], [0], [1], [0, 0, 1, 1], [], []>} : vector<128x32xbf16>, vector<32x16xbf16>, vector<128x16xf32> -> vector<128x16xf32>
    %c0_26 = arith.constant 0 : index
    %c0_27 = arith.constant 0 : index
    %33 = vector.load %arg9[%c0_26, %c0_27] : memref<128x16xf32, #tpu.memory_space<vmem>>, vector<128x16xf32>
    %34 = arith.addf %33, %32 : vector<128x16xf32>
    %c0_28 = arith.constant 0 : index
    %c0_29 = arith.constant 0 : index
    %35 = vector.load %arg9[%c0_28, %c0_29] : memref<128x16xf32, #tpu.memory_space<vmem>>, vector<128x16xf32>
    tpu.vector_store %arg9[%c0_28, %c0_29], %34 {strides = array<i32>} : memref<128x16xf32, #tpu.memory_space<vmem>>, vector<128x16xf32>,
    %c0_30 = arith.constant 0 : index
    %36 = arith.index_cast %19 : i32 to index
    %c24 = arith.constant 24 : index
    %c0_31 = arith.constant 0 : index
    %37 = vector.load %arg2[%c0_30, %36, %c24, %c0_31] : memref<1x52x52x32xbf16, #tpu.memory_space<vmem>>, vector<1x8x16x32xbf16>
    %38 = vector.shape_cast %37 : vector<1x8x16x32xbf16> to vector<128x32xbf16>
    %c2 = arith.constant 2 : index
    %c0_32 = arith.constant 0 : index
    %c0_33 = arith.constant 0 : index
    %39 = vector.load %arg4[%c2, %c0_32, %c0_33] : memref<27x32x16xbf16, #tpu.memory_space<vmem>>, vector<1x32x16xbf16>
    %40 = vector.shape_cast %39 : vector<1x32x16xbf16> to vector<32x16xbf16>
    %cst_34 = arith.constant dense<0.000000e+00> : vector<128x16xf32>
    %41 = tpu.matmul %38, %40, %cst_34 {dimension_numbers = #tpu.dot_dimension_numbers<[1], [0], [0], [1], [0, 0, 1, 1], [], []>} : vector<128x32xbf16>, vector<32x16xbf16>, vector<128x16xf32> -> vector<128x16xf32>
    %c0_35 = arith.constant 0 : index
    %c0_36 = arith.constant 0 : index
    %42 = vector.load %arg9[%c0_35, %c0_36] : memref<128x16xf32, #tpu.memory_space<vmem>>, vector<128x16xf32>
    %43 = arith.addf %42, %41 : vector<128x16xf32>
    %c0_37 = arith.constant 0 : index
    %c0_38 = arith.constant 0 : index
    %44 = vector.load %arg9[%c0_37, %c0_38] : memref<128x16xf32, #tpu.memory_space<vmem>>, vector<128x16xf32>
    tpu.vector_store %arg9[%c0_37, %c0_38], %43 {strides = array<i32>} : memref<128x16xf32, #tpu.memory_space<vmem>>, vector<128x16xf32>,
    %c12_i32_39 = arith.constant 12 : i32
    %45 = arith.addi %1, %c12_i32_39 : i32
    %c6_i32 = arith.constant 6 : i32
    %46 = arith.addi %45, %c6_i32 : i32
    %c0_40 = arith.constant 0 : index
    %47 = arith.index_cast %46 : i32 to index
    %c12_41 = arith.constant 12 : index
    %c0_42 = arith.constant 0 : index
    %48 = vector.load %arg2[%c0_40, %47, %c12_41, %c0_42] : memref<1x52x52x32xbf16, #tpu.memory_space<vmem>>, vector<1x8x16x32xbf16>
    %49 = vector.shape_cast %48 : vector<1x8x16x32xbf16> to vector<128x32xbf16>
    %c3 = arith.constant 3 : index
    %c0_43 = arith.constant 0 : index
    %c0_44 = arith.constant 0 : index
    %50 = vector.load %arg4[%c3, %c0_43, %c0_44] : memref<27x32x16xbf16, #tpu.memory_space<vmem>>, vector<1x32x16xbf16>
    %51 = vector.shape_cast %50 : vector<1x32x16xbf16> to vector<32x16xbf16>
    %cst_45 = arith.constant dense<0.000000e+00> : vector<128x16xf32>
    %52 = tpu.matmul %49, %51, %cst_45 {dimension_numbers = #tpu.dot_dimension_numbers<[1], [0], [0], [1], [0, 0, 1, 1], [], []>} : vector<128x32xbf16>, vector<32x16xbf16>, vector<128x16xf32> -> vector<128x16xf32>
    %c0_46 = arith.constant 0 : index
    %c0_47 = arith.constant 0 : index
    %53 = vector.load %arg9[%c0_46, %c0_47] : memref<128x16xf32, #tpu.memory_space<vmem>>, vector<128x16xf32>
    %54 = arith.addf %53, %52 : vector<128x16xf32>
    %c0_48 = arith.constant 0 : index
    %c0_49 = arith.constant 0 : index
    %55 = vector.load %arg9[%c0_48, %c0_49] : memref<128x16xf32, #tpu.memory_space<vmem>>, vector<128x16xf32>
    tpu.vector_store %arg9[%c0_48, %c0_49], %54 {strides = array<i32>} : memref<128x16xf32, #tpu.memory_space<vmem>>, vector<128x16xf32>,
    %c0_50 = arith.constant 0 : index
    %56 = arith.index_cast %46 : i32 to index
    %c18_51 = arith.constant 18 : index
    %c0_52 = arith.constant 0 : index
    %57 = vector.load %arg2[%c0_50, %56, %c18_51, %c0_52] : memref<1x52x52x32xbf16, #tpu.memory_space<vmem>>, vector<1x8x16x32xbf16>
    %58 = vector.shape_cast %57 : vector<1x8x16x32xbf16> to vector<128x32xbf16>
    %c4 = arith.constant 4 : index
    %c0_53 = arith.constant 0 : index
    %c0_54 = arith.constant 0 : index
    %59 = vector.load %arg4[%c4, %c0_53, %c0_54] : memref<27x32x16xbf16, #tpu.memory_space<vmem>>, vector<1x32x16xbf16>
    %60 = vector.shape_cast %59 : vector<1x32x16xbf16> to vector<32x16xbf16>
    %cst_55 = arith.constant dense<0.000000e+00> : vector<128x16xf32>
    %61 = tpu.matmul %58, %60, %cst_55 {dimension_numbers = #tpu.dot_dimension_numbers<[1], [0], [0], [1], [0, 0, 1, 1], [], []>} : vector<128x32xbf16>, vector<32x16xbf16>, vector<128x16xf32> -> vector<128x16xf32>
    %c0_56 = arith.constant 0 : index
    %c0_57 = arith.constant 0 : index
    %62 = vector.load %arg9[%c0_56, %c0_57] : memref<128x16xf32, #tpu.memory_space<vmem>>, vector<128x16xf32>
    %63 = arith.addf %62, %61 : vector<128x16xf32>
    %c0_58 = arith.constant 0 : index
    %c0_59 = arith.constant 0 : index
    %64 = vector.load %arg9[%c0_58, %c0_59] : memref<128x16xf32, #tpu.memory_space<vmem>>, vector<128x16xf32>
    tpu.vector_store %arg9[%c0_58, %c0_59], %63 {strides = array<i32>} : memref<128x16xf32, #tpu.memory_space<vmem>>, vector<128x16xf32>,
    %c0_60 = arith.constant 0 : index
    %65 = arith.index_cast %46 : i32 to index
    %c24_61 = arith.constant 24 : index
    %c0_62 = arith.constant 0 : index
    %66 = vector.load %arg2[%c0_60, %65, %c24_61, %c0_62] : memref<1x52x52x32xbf16, #tpu.memory_space<vmem>>, vector<1x8x16x32xbf16>
    %67 = vector.shape_cast %66 : vector<1x8x16x32xbf16> to vector<128x32xbf16>
    %c5 = arith.constant 5 : index
    %c0_63 = arith.constant 0 : index
    %c0_64 = arith.constant 0 : index
    %68 = vector.load %arg4[%c5, %c0_63, %c0_64] : memref<27x32x16xbf16, #tpu.memory_space<vmem>>, vector<1x32x16xbf16>
    %69 = vector.shape_cast %68 : vector<1x32x16xbf16> to vector<32x16xbf16>
    %cst_65 = arith.constant dense<0.000000e+00> : vector<128x16xf32>
    %70 = tpu.matmul %67, %69, %cst_65 {dimension_numbers = #tpu.dot_dimension_numbers<[1], [0], [0], [1], [0, 0, 1, 1], [], []>} : vector<128x32xbf16>, vector<32x16xbf16>, vector<128x16xf32> -> vector<128x16xf32>
    %c0_66 = arith.constant 0 : index
    %c0_67 = arith.constant 0 : index
    %71 = vector.load %arg9[%c0_66, %c0_67] : memref<128x16xf32, #tpu.memory_space<vmem>>, vector<128x16xf32>
    %72 = arith.addf %71, %70 : vector<128x16xf32>
    %c0_68 = arith.constant 0 : index
    %c0_69 = arith.constant 0 : index
    %73 = vector.load %arg9[%c0_68, %c0_69] : memref<128x16xf32, #tpu.memory_space<vmem>>, vector<128x16xf32>
    tpu.vector_store %arg9[%c0_68, %c0_69], %72 {strides = array<i32>} : memref<128x16xf32, #tpu.memory_space<vmem>>, vector<128x16xf32>,
    %c12_i32_70 = arith.constant 12 : i32
    %74 = arith.addi %1, %c12_i32_70 : i32
    %c12_i32_71 = arith.constant 12 : i32
    %75 = arith.addi %74, %c12_i32_71 : i32
    %c0_72 = arith.constant 0 : index
    %76 = arith.index_cast %75 : i32 to index
    %c12_73 = arith.constant 12 : index
    %c0_74 = arith.constant 0 : index
    %77 = vector.load %arg2[%c0_72, %76, %c12_73, %c0_74] : memref<1x52x52x32xbf16, #tpu.memory_space<vmem>>, vector<1x8x16x32xbf16>
    %78 = vector.shape_cast %77 : vector<1x8x16x32xbf16> to vector<128x32xbf16>
    %c6 = arith.constant 6 : index
    %c0_75 = arith.constant 0 : index
    %c0_76 = arith.constant 0 : index
    %79 = vector.load %arg4[%c6, %c0_75, %c0_76] : memref<27x32x16xbf16, #tpu.memory_space<vmem>>, vector<1x32x16xbf16>
    %80 = vector.shape_cast %79 : vector<1x32x16xbf16> to vector<32x16xbf16>
    %cst_77 = arith.constant dense<0.000000e+00> : vector<128x16xf32>
    %81 = tpu.matmul %78, %80, %cst_77 {dimension_numbers = #tpu.dot_dimension_numbers<[1], [0], [0], [1], [0, 0, 1, 1], [], []>} : vector<128x32xbf16>, vector<32x16xbf16>, vector<128x16xf32> -> vector<128x16xf32>
    %c0_78 = arith.constant 0 : index
    %c0_79 = arith.constant 0 : index
    %82 = vector.load %arg9[%c0_78, %c0_79] : memref<128x16xf32, #tpu.memory_space<vmem>>, vector<128x16xf32>
    %83 = arith.addf %82, %81 : vector<128x16xf32>
    %c0_80 = arith.constant 0 : index
    %c0_81 = arith.constant 0 : index
    %84 = vector.load %arg9[%c0_80, %c0_81] : memref<128x16xf32, #tpu.memory_space<vmem>>, vector<128x16xf32>
    tpu.vector_store %arg9[%c0_80, %c0_81], %83 {strides = array<i32>} : memref<128x16xf32, #tpu.memory_space<vmem>>, vector<128x16xf32>,
    %c0_82 = arith.constant 0 : index
    %85 = arith.index_cast %75 : i32 to index
    %c18_83 = arith.constant 18 : index
    %c0_84 = arith.constant 0 : index
    %86 = vector.load %arg2[%c0_82, %85, %c18_83, %c0_84] : memref<1x52x52x32xbf16, #tpu.memory_space<vmem>>, vector<1x8x16x32xbf16>
    %87 = vector.shape_cast %86 : vector<1x8x16x32xbf16> to vector<128x32xbf16>
    %c7 = arith.constant 7 : index
    %c0_85 = arith.constant 0 : index
    %c0_86 = arith.constant 0 : index
    %88 = vector.load %arg4[%c7, %c0_85, %c0_86] : memref<27x32x16xbf16, #tpu.memory_space<vmem>>, vector<1x32x16xbf16>
    %89 = vector.shape_cast %88 : vector<1x32x16xbf16> to vector<32x16xbf16>
    %cst_87 = arith.constant dense<0.000000e+00> : vector<128x16xf32>
    %90 = tpu.matmul %87, %89, %cst_87 {dimension_numbers = #tpu.dot_dimension_numbers<[1], [0], [0], [1], [0, 0, 1, 1], [], []>} : vector<128x32xbf16>, vector<32x16xbf16>, vector<128x16xf32> -> vector<128x16xf32>
    %c0_88 = arith.constant 0 : index
    %c0_89 = arith.constant 0 : index
    %91 = vector.load %arg9[%c0_88, %c0_89] : memref<128x16xf32, #tpu.memory_space<vmem>>, vector<128x16xf32>
    %92 = arith.addf %91, %90 : vector<128x16xf32>
    %c0_90 = arith.constant 0 : index
    %c0_91 = arith.constant 0 : index
    %93 = vector.load %arg9[%c0_90, %c0_91] : memref<128x16xf32, #tpu.memory_space<vmem>>, vector<128x16xf32>
    tpu.vector_store %arg9[%c0_90, %c0_91], %92 {strides = array<i32>} : memref<128x16xf32, #tpu.memory_space<vmem>>, vector<128x16xf32>,
    %c0_92 = arith.constant 0 : index
    %94 = arith.index_cast %75 : i32 to index
    %c24_93 = arith.constant 24 : index
    %c0_94 = arith.constant 0 : index
    %95 = vector.load %arg2[%c0_92, %94, %c24_93, %c0_94] : memref<1x52x52x32xbf16, #tpu.memory_space<vmem>>, vector<1x8x16x32xbf16>
    %96 = vector.shape_cast %95 : vector<1x8x16x32xbf16> to vector<128x32xbf16>
    %c8 = arith.constant 8 : index
    %c0_95 = arith.constant 0 : index
    %c0_96 = arith.constant 0 : index
    %97 = vector.load %arg4[%c8, %c0_95, %c0_96] : memref<27x32x16xbf16, #tpu.memory_space<vmem>>, vector<1x32x16xbf16>
    %98 = vector.shape_cast %97 : vector<1x32x16xbf16> to vector<32x16xbf16>
    %cst_97 = arith.constant dense<0.000000e+00> : vector<128x16xf32>
    %99 = tpu.matmul %96, %98, %cst_97 {dimension_numbers = #tpu.dot_dimension_numbers<[1], [0], [0], [1], [0, 0, 1, 1], [], []>} : vector<128x32xbf16>, vector<32x16xbf16>, vector<128x16xf32> -> vector<128x16xf32>
    %c0_98 = arith.constant 0 : index
    %c0_99 = arith.constant 0 : index
    %100 = vector.load %arg9[%c0_98, %c0_99] : memref<128x16xf32, #tpu.memory_space<vmem>>, vector<128x16xf32>
    %101 = arith.addf %100, %99 : vector<128x16xf32>
    %c0_100 = arith.constant 0 : index
    %c0_101 = arith.constant 0 : index
    %102 = vector.load %arg9[%c0_100, %c0_101] : memref<128x16xf32, #tpu.memory_space<vmem>>, vector<128x16xf32>
    tpu.vector_store %arg9[%c0_100, %c0_101], %101 {strides = array<i32>} : memref<128x16xf32, #tpu.memory_space<vmem>>, vector<128x16xf32>,
    %c0_102 = arith.constant 0 : index
    %c0_103 = arith.constant 0 : index
    %103 = vector.load %arg9[%c0_102, %c0_103] : memref<128x16xf32, #tpu.memory_space<vmem>>, vector<128x16xf32>
    %c1_104 = arith.constant 1 : index
    %c0_105 = arith.constant 0 : index
    %104 = vector.load %arg6[%c1_104, %c0_105] : memref<4x16xf32, #tpu.memory_space<vmem>>, vector<1x16xf32>
    %105 = vector.broadcast %104 : vector<1x16xf32> to vector<128x16xf32>
    %106 = arith.addf %103, %105 : vector<128x16xf32>
    %cst_106 = arith.constant 0.000000e+00 : f32
    %107 = vector.broadcast %cst_106 : f32 to vector<128x16xf32>
    %108 = arith.maximumf %106, %107 : vector<128x16xf32>
    %c0_107 = arith.constant 0 : index
    %c0_108 = arith.constant 0 : index
    %109 = vector.load %arg10[%c0_107, %c0_108] : memref<128x16xf32, #tpu.memory_space<vmem>>, vector<128x16xf32>
    %110 = arith.truncf %108 : vector<128x16xf32> to vector<128x16xbf16>
    %c1_109 = arith.constant 1 : index
    %c0_110 = arith.constant 0 : index
    %c0_111 = arith.constant 0 : index
    %111 = vector.load %arg5[%c1_109, %c0_110, %c0_111] : memref<4x16x16xbf16, #tpu.memory_space<vmem>>, vector<1x16x16xbf16>
    %112 = vector.shape_cast %111 : vector<1x16x16xbf16> to vector<16x16xbf16>
    %cst_112 = arith.constant dense<0.000000e+00> : vector<128x16xf32>
    %113 = tpu.matmul %110, %112, %cst_112 {dimension_numbers = #tpu.dot_dimension_numbers<[1], [0], [0], [1], [0, 0, 1, 1], [], []>} : vector<128x16xbf16>, vector<16x16xbf16>, vector<128x16xf32> -> vector<128x16xf32>
    %114 = arith.addf %109, %113 : vector<128x16xf32>
    %c0_113 = arith.constant 0 : index
    %c0_114 = arith.constant 0 : index
    %115 = vector.load %arg10[%c0_113, %c0_114] : memref<128x16xf32, #tpu.memory_space<vmem>>, vector<128x16xf32>
    tpu.vector_store %arg10[%c0_113, %c0_114], %114 {strides = array<i32>} : memref<128x16xf32, #tpu.memory_space<vmem>>, vector<128x16xf32>,
    %c6_i32_115 = arith.constant 6 : i32
    %116 = arith.addi %1, %c6_i32_115 : i32
    %c0_i32_116 = arith.constant 0 : i32
    %117 = arith.addi %116, %c0_i32_116 : i32
    %c0_117 = arith.constant 0 : index
    %118 = arith.index_cast %117 : i32 to index
    %c6_118 = arith.constant 6 : index
    %c0_119 = arith.constant 0 : index
    %119 = vector.load %arg2[%c0_117, %118, %c6_118, %c0_119] : memref<1x52x52x32xbf16, #tpu.memory_space<vmem>>, vector<1x8x16x32xbf16>
    %120 = vector.shape_cast %119 : vector<1x8x16x32xbf16> to vector<128x32xbf16>
    %c9 = arith.constant 9 : index
    %c0_120 = arith.constant 0 : index
    %c0_121 = arith.constant 0 : index
    %121 = vector.load %arg4[%c9, %c0_120, %c0_121] : memref<27x32x16xbf16, #tpu.memory_space<vmem>>, vector<1x32x16xbf16>
    %122 = vector.shape_cast %121 : vector<1x32x16xbf16> to vector<32x16xbf16>
    %cst_122 = arith.constant dense<0.000000e+00> : vector<128x16xf32>
    %123 = tpu.matmul %120, %122, %cst_122 {dimension_numbers = #tpu.dot_dimension_numbers<[1], [0], [0], [1], [0, 0, 1, 1], [], []>} : vector<128x32xbf16>, vector<32x16xbf16>, vector<128x16xf32> -> vector<128x16xf32>
    %c0_123 = arith.constant 0 : index
    %c0_124 = arith.constant 0 : index
    %124 = vector.load %arg9[%c0_123, %c0_124] : memref<128x16xf32, #tpu.memory_space<vmem>>, vector<128x16xf32>
    tpu.vector_store %arg9[%c0_123, %c0_124], %123 {strides = array<i32>} : memref<128x16xf32, #tpu.memory_space<vmem>>, vector<128x16xf32>,
    %c0_125 = arith.constant 0 : index
    %125 = arith.index_cast %117 : i32 to index
    %c18_126 = arith.constant 18 : index
    %c0_127 = arith.constant 0 : index
    %126 = vector.load %arg2[%c0_125, %125, %c18_126, %c0_127] : memref<1x52x52x32xbf16, #tpu.memory_space<vmem>>, vector<1x8x16x32xbf16>
    %127 = vector.shape_cast %126 : vector<1x8x16x32xbf16> to vector<128x32xbf16>
    %c10 = arith.constant 10 : index
    %c0_128 = arith.constant 0 : index
    %c0_129 = arith.constant 0 : index
    %128 = vector.load %arg4[%c10, %c0_128, %c0_129] : memref<27x32x16xbf16, #tpu.memory_space<vmem>>, vector<1x32x16xbf16>
    %129 = vector.shape_cast %128 : vector<1x32x16xbf16> to vector<32x16xbf16>
    %cst_130 = arith.constant dense<0.000000e+00> : vector<128x16xf32>
    %130 = tpu.matmul %127, %129, %cst_130 {dimension_numbers = #tpu.dot_dimension_numbers<[1], [0], [0], [1], [0, 0, 1, 1], [], []>} : vector<128x32xbf16>, vector<32x16xbf16>, vector<128x16xf32> -> vector<128x16xf32>
    %c0_131 = arith.constant 0 : index
    %c0_132 = arith.constant 0 : index
    %131 = vector.load %arg9[%c0_131, %c0_132] : memref<128x16xf32, #tpu.memory_space<vmem>>, vector<128x16xf32>
    %132 = arith.addf %131, %130 : vector<128x16xf32>
    %c0_133 = arith.constant 0 : index
    %c0_134 = arith.constant 0 : index
    %133 = vector.load %arg9[%c0_133, %c0_134] : memref<128x16xf32, #tpu.memory_space<vmem>>, vector<128x16xf32>
    tpu.vector_store %arg9[%c0_133, %c0_134], %132 {strides = array<i32>} : memref<128x16xf32, #tpu.memory_space<vmem>>, vector<128x16xf32>,
    %c0_135 = arith.constant 0 : index
    %134 = arith.index_cast %117 : i32 to index
    %c30 = arith.constant 30 : index
    %c0_136 = arith.constant 0 : index
    %135 = vector.load %arg2[%c0_135, %134, %c30, %c0_136] : memref<1x52x52x32xbf16, #tpu.memory_space<vmem>>, vector<1x8x16x32xbf16>
    %136 = vector.shape_cast %135 : vector<1x8x16x32xbf16> to vector<128x32xbf16>
    %c11 = arith.constant 11 : index
    %c0_137 = arith.constant 0 : index
    %c0_138 = arith.constant 0 : index
    %137 = vector.load %arg4[%c11, %c0_137, %c0_138] : memref<27x32x16xbf16, #tpu.memory_space<vmem>>, vector<1x32x16xbf16>
    %138 = vector.shape_cast %137 : vector<1x32x16xbf16> to vector<32x16xbf16>
    %cst_139 = arith.constant dense<0.000000e+00> : vector<128x16xf32>
    %139 = tpu.matmul %136, %138, %cst_139 {dimension_numbers = #tpu.dot_dimension_numbers<[1], [0], [0], [1], [0, 0, 1, 1], [], []>} : vector<128x32xbf16>, vector<32x16xbf16>, vector<128x16xf32> -> vector<128x16xf32>
    %c0_140 = arith.constant 0 : index
    %c0_141 = arith.constant 0 : index
    %140 = vector.load %arg9[%c0_140, %c0_141] : memref<128x16xf32, #tpu.memory_space<vmem>>, vector<128x16xf32>
    %141 = arith.addf %140, %139 : vector<128x16xf32>
    %c0_142 = arith.constant 0 : index
    %c0_143 = arith.constant 0 : index
    %142 = vector.load %arg9[%c0_142, %c0_143] : memref<128x16xf32, #tpu.memory_space<vmem>>, vector<128x16xf32>
    tpu.vector_store %arg9[%c0_142, %c0_143], %141 {strides = array<i32>} : memref<128x16xf32, #tpu.memory_space<vmem>>, vector<128x16xf32>,
    %c6_i32_144 = arith.constant 6 : i32
    %143 = arith.addi %1, %c6_i32_144 : i32
    %c12_i32_145 = arith.constant 12 : i32
    %144 = arith.addi %143, %c12_i32_145 : i32
    %c0_146 = arith.constant 0 : index
    %145 = arith.index_cast %144 : i32 to index
    %c6_147 = arith.constant 6 : index
    %c0_148 = arith.constant 0 : index
    %146 = vector.load %arg2[%c0_146, %145, %c6_147, %c0_148] : memref<1x52x52x32xbf16, #tpu.memory_space<vmem>>, vector<1x8x16x32xbf16>
    %147 = vector.shape_cast %146 : vector<1x8x16x32xbf16> to vector<128x32xbf16>
    %c12_149 = arith.constant 12 : index
    %c0_150 = arith.constant 0 : index
    %c0_151 = arith.constant 0 : index
    %148 = vector.load %arg4[%c12_149, %c0_150, %c0_151] : memref<27x32x16xbf16, #tpu.memory_space<vmem>>, vector<1x32x16xbf16>
    %149 = vector.shape_cast %148 : vector<1x32x16xbf16> to vector<32x16xbf16>
    %cst_152 = arith.constant dense<0.000000e+00> : vector<128x16xf32>
    %150 = tpu.matmul %147, %149, %cst_152 {dimension_numbers = #tpu.dot_dimension_numbers<[1], [0], [0], [1], [0, 0, 1, 1], [], []>} : vector<128x32xbf16>, vector<32x16xbf16>, vector<128x16xf32> -> vector<128x16xf32>
    %c0_153 = arith.constant 0 : index
    %c0_154 = arith.constant 0 : index
    %151 = vector.load %arg9[%c0_153, %c0_154] : memref<128x16xf32, #tpu.memory_space<vmem>>, vector<128x16xf32>
    %152 = arith.addf %151, %150 : vector<128x16xf32>
    %c0_155 = arith.constant 0 : index
    %c0_156 = arith.constant 0 : index
    %153 = vector.load %arg9[%c0_155, %c0_156] : memref<128x16xf32, #tpu.memory_space<vmem>>, vector<128x16xf32>
    tpu.vector_store %arg9[%c0_155, %c0_156], %152 {strides = array<i32>} : memref<128x16xf32, #tpu.memory_space<vmem>>, vector<128x16xf32>,
    %c0_157 = arith.constant 0 : index
    %154 = arith.index_cast %144 : i32 to index
    %c18_158 = arith.constant 18 : index
    %c0_159 = arith.constant 0 : index
    %155 = vector.load %arg2[%c0_157, %154, %c18_158, %c0_159] : memref<1x52x52x32xbf16, #tpu.memory_space<vmem>>, vector<1x8x16x32xbf16>
    %156 = vector.shape_cast %155 : vector<1x8x16x32xbf16> to vector<128x32xbf16>
    %c13 = arith.constant 13 : index
    %c0_160 = arith.constant 0 : index
    %c0_161 = arith.constant 0 : index
    %157 = vector.load %arg4[%c13, %c0_160, %c0_161] : memref<27x32x16xbf16, #tpu.memory_space<vmem>>, vector<1x32x16xbf16>
    %158 = vector.shape_cast %157 : vector<1x32x16xbf16> to vector<32x16xbf16>
    %cst_162 = arith.constant dense<0.000000e+00> : vector<128x16xf32>
    %159 = tpu.matmul %156, %158, %cst_162 {dimension_numbers = #tpu.dot_dimension_numbers<[1], [0], [0], [1], [0, 0, 1, 1], [], []>} : vector<128x32xbf16>, vector<32x16xbf16>, vector<128x16xf32> -> vector<128x16xf32>
    %c0_163 = arith.constant 0 : index
    %c0_164 = arith.constant 0 : index
    %160 = vector.load %arg9[%c0_163, %c0_164] : memref<128x16xf32, #tpu.memory_space<vmem>>, vector<128x16xf32>
    %161 = arith.addf %160, %159 : vector<128x16xf32>
    %c0_165 = arith.constant 0 : index
    %c0_166 = arith.constant 0 : index
    %162 = vector.load %arg9[%c0_165, %c0_166] : memref<128x16xf32, #tpu.memory_space<vmem>>, vector<128x16xf32>
    tpu.vector_store %arg9[%c0_165, %c0_166], %161 {strides = array<i32>} : memref<128x16xf32, #tpu.memory_space<vmem>>, vector<128x16xf32>,
    %c0_167 = arith.constant 0 : index
    %163 = arith.index_cast %144 : i32 to index
    %c30_168 = arith.constant 30 : index
    %c0_169 = arith.constant 0 : index
    %164 = vector.load %arg2[%c0_167, %163, %c30_168, %c0_169] : memref<1x52x52x32xbf16, #tpu.memory_space<vmem>>, vector<1x8x16x32xbf16>
    %165 = vector.shape_cast %164 : vector<1x8x16x32xbf16> to vector<128x32xbf16>
    %c14 = arith.constant 14 : index
    %c0_170 = arith.constant 0 : index
    %c0_171 = arith.constant 0 : index
    %166 = vector.load %arg4[%c14, %c0_170, %c0_171] : memref<27x32x16xbf16, #tpu.memory_space<vmem>>, vector<1x32x16xbf16>
    %167 = vector.shape_cast %166 : vector<1x32x16xbf16> to vector<32x16xbf16>
    %cst_172 = arith.constant dense<0.000000e+00> : vector<128x16xf32>
    %168 = tpu.matmul %165, %167, %cst_172 {dimension_numbers = #tpu.dot_dimension_numbers<[1], [0], [0], [1], [0, 0, 1, 1], [], []>} : vector<128x32xbf16>, vector<32x16xbf16>, vector<128x16xf32> -> vector<128x16xf32>
    %c0_173 = arith.constant 0 : index
    %c0_174 = arith.constant 0 : index
    %169 = vector.load %arg9[%c0_173, %c0_174] : memref<128x16xf32, #tpu.memory_space<vmem>>, vector<128x16xf32>
    %170 = arith.addf %169, %168 : vector<128x16xf32>
    %c0_175 = arith.constant 0 : index
    %c0_176 = arith.constant 0 : index
    %171 = vector.load %arg9[%c0_175, %c0_176] : memref<128x16xf32, #tpu.memory_space<vmem>>, vector<128x16xf32>
    tpu.vector_store %arg9[%c0_175, %c0_176], %170 {strides = array<i32>} : memref<128x16xf32, #tpu.memory_space<vmem>>, vector<128x16xf32>,
    %c6_i32_177 = arith.constant 6 : i32
    %172 = arith.addi %1, %c6_i32_177 : i32
    %c24_i32 = arith.constant 24 : i32
    %173 = arith.addi %172, %c24_i32 : i32
    %c0_178 = arith.constant 0 : index
    %174 = arith.index_cast %173 : i32 to index
    %c6_179 = arith.constant 6 : index
    %c0_180 = arith.constant 0 : index
    %175 = vector.load %arg2[%c0_178, %174, %c6_179, %c0_180] : memref<1x52x52x32xbf16, #tpu.memory_space<vmem>>, vector<1x8x16x32xbf16>
    %176 = vector.shape_cast %175 : vector<1x8x16x32xbf16> to vector<128x32xbf16>
    %c15 = arith.constant 15 : index
    %c0_181 = arith.constant 0 : index
    %c0_182 = arith.constant 0 : index
    %177 = vector.load %arg4[%c15, %c0_181, %c0_182] : memref<27x32x16xbf16, #tpu.memory_space<vmem>>, vector<1x32x16xbf16>
    %178 = vector.shape_cast %177 : vector<1x32x16xbf16> to vector<32x16xbf16>
    %cst_183 = arith.constant dense<0.000000e+00> : vector<128x16xf32>
    %179 = tpu.matmul %176, %178, %cst_183 {dimension_numbers = #tpu.dot_dimension_numbers<[1], [0], [0], [1], [0, 0, 1, 1], [], []>} : vector<128x32xbf16>, vector<32x16xbf16>, vector<128x16xf32> -> vector<128x16xf32>
    %c0_184 = arith.constant 0 : index
    %c0_185 = arith.constant 0 : index
    %180 = vector.load %arg9[%c0_184, %c0_185] : memref<128x16xf32, #tpu.memory_space<vmem>>, vector<128x16xf32>
    %181 = arith.addf %180, %179 : vector<128x16xf32>
    %c0_186 = arith.constant 0 : index
    %c0_187 = arith.constant 0 : index
    %182 = vector.load %arg9[%c0_186, %c0_187] : memref<128x16xf32, #tpu.memory_space<vmem>>, vector<128x16xf32>
    tpu.vector_store %arg9[%c0_186, %c0_187], %181 {strides = array<i32>} : memref<128x16xf32, #tpu.memory_space<vmem>>, vector<128x16xf32>,
    %c0_188 = arith.constant 0 : index
    %183 = arith.index_cast %173 : i32 to index
    %c18_189 = arith.constant 18 : index
    %c0_190 = arith.constant 0 : index
    %184 = vector.load %arg2[%c0_188, %183, %c18_189, %c0_190] : memref<1x52x52x32xbf16, #tpu.memory_space<vmem>>, vector<1x8x16x32xbf16>
    %185 = vector.shape_cast %184 : vector<1x8x16x32xbf16> to vector<128x32xbf16>
    %c16 = arith.constant 16 : index
    %c0_191 = arith.constant 0 : index
    %c0_192 = arith.constant 0 : index
    %186 = vector.load %arg4[%c16, %c0_191, %c0_192] : memref<27x32x16xbf16, #tpu.memory_space<vmem>>, vector<1x32x16xbf16>
    %187 = vector.shape_cast %186 : vector<1x32x16xbf16> to vector<32x16xbf16>
    %cst_193 = arith.constant dense<0.000000e+00> : vector<128x16xf32>
    %188 = tpu.matmul %185, %187, %cst_193 {dimension_numbers = #tpu.dot_dimension_numbers<[1], [0], [0], [1], [0, 0, 1, 1], [], []>} : vector<128x32xbf16>, vector<32x16xbf16>, vector<128x16xf32> -> vector<128x16xf32>
    %c0_194 = arith.constant 0 : index
    %c0_195 = arith.constant 0 : index
    %189 = vector.load %arg9[%c0_194, %c0_195] : memref<128x16xf32, #tpu.memory_space<vmem>>, vector<128x16xf32>
    %190 = arith.addf %189, %188 : vector<128x16xf32>
    %c0_196 = arith.constant 0 : index
    %c0_197 = arith.constant 0 : index
    %191 = vector.load %arg9[%c0_196, %c0_197] : memref<128x16xf32, #tpu.memory_space<vmem>>, vector<128x16xf32>
    tpu.vector_store %arg9[%c0_196, %c0_197], %190 {strides = array<i32>} : memref<128x16xf32, #tpu.memory_space<vmem>>, vector<128x16xf32>,
    %c0_198 = arith.constant 0 : index
    %192 = arith.index_cast %173 : i32 to index
    %c30_199 = arith.constant 30 : index
    %c0_200 = arith.constant 0 : index
    %193 = vector.load %arg2[%c0_198, %192, %c30_199, %c0_200] : memref<1x52x52x32xbf16, #tpu.memory_space<vmem>>, vector<1x8x16x32xbf16>
    %194 = vector.shape_cast %193 : vector<1x8x16x32xbf16> to vector<128x32xbf16>
    %c17 = arith.constant 17 : index
    %c0_201 = arith.constant 0 : index
    %c0_202 = arith.constant 0 : index
    %195 = vector.load %arg4[%c17, %c0_201, %c0_202] : memref<27x32x16xbf16, #tpu.memory_space<vmem>>, vector<1x32x16xbf16>
    %196 = vector.shape_cast %195 : vector<1x32x16xbf16> to vector<32x16xbf16>
    %cst_203 = arith.constant dense<0.000000e+00> : vector<128x16xf32>
    %197 = tpu.matmul %194, %196, %cst_203 {dimension_numbers = #tpu.dot_dimension_numbers<[1], [0], [0], [1], [0, 0, 1, 1], [], []>} : vector<128x32xbf16>, vector<32x16xbf16>, vector<128x16xf32> -> vector<128x16xf32>
    %c0_204 = arith.constant 0 : index
    %c0_205 = arith.constant 0 : index
    %198 = vector.load %arg9[%c0_204, %c0_205] : memref<128x16xf32, #tpu.memory_space<vmem>>, vector<128x16xf32>
    %199 = arith.addf %198, %197 : vector<128x16xf32>
    %c0_206 = arith.constant 0 : index
    %c0_207 = arith.constant 0 : index
    %200 = vector.load %arg9[%c0_206, %c0_207] : memref<128x16xf32, #tpu.memory_space<vmem>>, vector<128x16xf32>
    tpu.vector_store %arg9[%c0_206, %c0_207], %199 {strides = array<i32>} : memref<128x16xf32, #tpu.memory_space<vmem>>, vector<128x16xf32>,
    %c0_208 = arith.constant 0 : index
    %c0_209 = arith.constant 0 : index
    %201 = vector.load %arg9[%c0_208, %c0_209] : memref<128x16xf32, #tpu.memory_space<vmem>>, vector<128x16xf32>
    %c2_210 = arith.constant 2 : index
    %c0_211 = arith.constant 0 : index
    %202 = vector.load %arg6[%c2_210, %c0_211] : memref<4x16xf32, #tpu.memory_space<vmem>>, vector<1x16xf32>
    %203 = vector.broadcast %202 : vector<1x16xf32> to vector<128x16xf32>
    %204 = arith.addf %201, %203 : vector<128x16xf32>
    %cst_212 = arith.constant 0.000000e+00 : f32
    %205 = vector.broadcast %cst_212 : f32 to vector<128x16xf32>
    %206 = arith.maximumf %204, %205 : vector<128x16xf32>
    %c0_213 = arith.constant 0 : index
    %c0_214 = arith.constant 0 : index
    %207 = vector.load %arg10[%c0_213, %c0_214] : memref<128x16xf32, #tpu.memory_space<vmem>>, vector<128x16xf32>
    %208 = arith.truncf %206 : vector<128x16xf32> to vector<128x16xbf16>
    %c2_215 = arith.constant 2 : index
    %c0_216 = arith.constant 0 : index
    %c0_217 = arith.constant 0 : index
    %209 = vector.load %arg5[%c2_215, %c0_216, %c0_217] : memref<4x16x16xbf16, #tpu.memory_space<vmem>>, vector<1x16x16xbf16>
    %210 = vector.shape_cast %209 : vector<1x16x16xbf16> to vector<16x16xbf16>
    %cst_218 = arith.constant dense<0.000000e+00> : vector<128x16xf32>
    %211 = tpu.matmul %208, %210, %cst_218 {dimension_numbers = #tpu.dot_dimension_numbers<[1], [0], [0], [1], [0, 0, 1, 1], [], []>} : vector<128x16xbf16>, vector<16x16xbf16>, vector<128x16xf32> -> vector<128x16xf32>
    %212 = arith.addf %207, %211 : vector<128x16xf32>
    %c0_219 = arith.constant 0 : index
    %c0_220 = arith.constant 0 : index
    %213 = vector.load %arg10[%c0_219, %c0_220] : memref<128x16xf32, #tpu.memory_space<vmem>>, vector<128x16xf32>
    tpu.vector_store %arg10[%c0_219, %c0_220], %212 {strides = array<i32>} : memref<128x16xf32, #tpu.memory_space<vmem>>, vector<128x16xf32>,
    %c0_i32_221 = arith.constant 0 : i32
    %214 = arith.addi %1, %c0_i32_221 : i32
    %c0_i32_222 = arith.constant 0 : i32
    %215 = arith.addi %214, %c0_i32_222 : i32
    %c0_223 = arith.constant 0 : index
    %216 = arith.index_cast %215 : i32 to index
    %c0_224 = arith.constant 0 : index
    %c0_225 = arith.constant 0 : index
    %217 = vector.load %arg2[%c0_223, %216, %c0_224, %c0_225] : memref<1x52x52x32xbf16, #tpu.memory_space<vmem>>, vector<1x8x16x32xbf16>
    %218 = vector.shape_cast %217 : vector<1x8x16x32xbf16> to vector<128x32xbf16>
    %c18_226 = arith.constant 18 : index
    %c0_227 = arith.constant 0 : index
    %c0_228 = arith.constant 0 : index
    %219 = vector.load %arg4[%c18_226, %c0_227, %c0_228] : memref<27x32x16xbf16, #tpu.memory_space<vmem>>, vector<1x32x16xbf16>
    %220 = vector.shape_cast %219 : vector<1x32x16xbf16> to vector<32x16xbf16>
    %cst_229 = arith.constant dense<0.000000e+00> : vector<128x16xf32>
    %221 = tpu.matmul %218, %220, %cst_229 {dimension_numbers = #tpu.dot_dimension_numbers<[1], [0], [0], [1], [0, 0, 1, 1], [], []>} : vector<128x32xbf16>, vector<32x16xbf16>, vector<128x16xf32> -> vector<128x16xf32>
    %c0_230 = arith.constant 0 : index
    %c0_231 = arith.constant 0 : index
    %222 = vector.load %arg9[%c0_230, %c0_231] : memref<128x16xf32, #tpu.memory_space<vmem>>, vector<128x16xf32>
    tpu.vector_store %arg9[%c0_230, %c0_231], %221 {strides = array<i32>} : memref<128x16xf32, #tpu.memory_space<vmem>>, vector<128x16xf32>,
    %c0_232 = arith.constant 0 : index
    %223 = arith.index_cast %215 : i32 to index
    %c18_233 = arith.constant 18 : index
    %c0_234 = arith.constant 0 : index
    %224 = vector.load %arg2[%c0_232, %223, %c18_233, %c0_234] : memref<1x52x52x32xbf16, #tpu.memory_space<vmem>>, vector<1x8x16x32xbf16>
    %225 = vector.shape_cast %224 : vector<1x8x16x32xbf16> to vector<128x32xbf16>
    %c19 = arith.constant 19 : index
    %c0_235 = arith.constant 0 : index
    %c0_236 = arith.constant 0 : index
    %226 = vector.load %arg4[%c19, %c0_235, %c0_236] : memref<27x32x16xbf16, #tpu.memory_space<vmem>>, vector<1x32x16xbf16>
    %227 = vector.shape_cast %226 : vector<1x32x16xbf16> to vector<32x16xbf16>
    %cst_237 = arith.constant dense<0.000000e+00> : vector<128x16xf32>
    %228 = tpu.matmul %225, %227, %cst_237 {dimension_numbers = #tpu.dot_dimension_numbers<[1], [0], [0], [1], [0, 0, 1, 1], [], []>} : vector<128x32xbf16>, vector<32x16xbf16>, vector<128x16xf32> -> vector<128x16xf32>
    %c0_238 = arith.constant 0 : index
    %c0_239 = arith.constant 0 : index
    %229 = vector.load %arg9[%c0_238, %c0_239] : memref<128x16xf32, #tpu.memory_space<vmem>>, vector<128x16xf32>
    %230 = arith.addf %229, %228 : vector<128x16xf32>
    %c0_240 = arith.constant 0 : index
    %c0_241 = arith.constant 0 : index
    %231 = vector.load %arg9[%c0_240, %c0_241] : memref<128x16xf32, #tpu.memory_space<vmem>>, vector<128x16xf32>
    tpu.vector_store %arg9[%c0_240, %c0_241], %230 {strides = array<i32>} : memref<128x16xf32, #tpu.memory_space<vmem>>, vector<128x16xf32>,
    %c0_242 = arith.constant 0 : index
    %232 = arith.index_cast %215 : i32 to index
    %c36 = arith.constant 36 : index
    %c0_243 = arith.constant 0 : index
    %233 = vector.load %arg2[%c0_242, %232, %c36, %c0_243] : memref<1x52x52x32xbf16, #tpu.memory_space<vmem>>, vector<1x8x16x32xbf16>
    %234 = vector.shape_cast %233 : vector<1x8x16x32xbf16> to vector<128x32xbf16>
    %c20 = arith.constant 20 : index
    %c0_244 = arith.constant 0 : index
    %c0_245 = arith.constant 0 : index
    %235 = vector.load %arg4[%c20, %c0_244, %c0_245] : memref<27x32x16xbf16, #tpu.memory_space<vmem>>, vector<1x32x16xbf16>
    %236 = vector.shape_cast %235 : vector<1x32x16xbf16> to vector<32x16xbf16>
    %cst_246 = arith.constant dense<0.000000e+00> : vector<128x16xf32>
    %237 = tpu.matmul %234, %236, %cst_246 {dimension_numbers = #tpu.dot_dimension_numbers<[1], [0], [0], [1], [0, 0, 1, 1], [], []>} : vector<128x32xbf16>, vector<32x16xbf16>, vector<128x16xf32> -> vector<128x16xf32>
    %c0_247 = arith.constant 0 : index
    %c0_248 = arith.constant 0 : index
    %238 = vector.load %arg9[%c0_247, %c0_248] : memref<128x16xf32, #tpu.memory_space<vmem>>, vector<128x16xf32>
    %239 = arith.addf %238, %237 : vector<128x16xf32>
    %c0_249 = arith.constant 0 : index
    %c0_250 = arith.constant 0 : index
    %240 = vector.load %arg9[%c0_249, %c0_250] : memref<128x16xf32, #tpu.memory_space<vmem>>, vector<128x16xf32>
    tpu.vector_store %arg9[%c0_249, %c0_250], %239 {strides = array<i32>} : memref<128x16xf32, #tpu.memory_space<vmem>>, vector<128x16xf32>,
    %c0_i32_251 = arith.constant 0 : i32
    %241 = arith.addi %1, %c0_i32_251 : i32
    %c18_i32_252 = arith.constant 18 : i32
    %242 = arith.addi %241, %c18_i32_252 : i32
    %c0_253 = arith.constant 0 : index
    %243 = arith.index_cast %242 : i32 to index
    %c0_254 = arith.constant 0 : index
    %c0_255 = arith.constant 0 : index
    %244 = vector.load %arg2[%c0_253, %243, %c0_254, %c0_255] : memref<1x52x52x32xbf16, #tpu.memory_space<vmem>>, vector<1x8x16x32xbf16>
    %245 = vector.shape_cast %244 : vector<1x8x16x32xbf16> to vector<128x32xbf16>
    %c21 = arith.constant 21 : index
    %c0_256 = arith.constant 0 : index
    %c0_257 = arith.constant 0 : index
    %246 = vector.load %arg4[%c21, %c0_256, %c0_257] : memref<27x32x16xbf16, #tpu.memory_space<vmem>>, vector<1x32x16xbf16>
    %247 = vector.shape_cast %246 : vector<1x32x16xbf16> to vector<32x16xbf16>
    %cst_258 = arith.constant dense<0.000000e+00> : vector<128x16xf32>
    %248 = tpu.matmul %245, %247, %cst_258 {dimension_numbers = #tpu.dot_dimension_numbers<[1], [0], [0], [1], [0, 0, 1, 1], [], []>} : vector<128x32xbf16>, vector<32x16xbf16>, vector<128x16xf32> -> vector<128x16xf32>
    %c0_259 = arith.constant 0 : index
    %c0_260 = arith.constant 0 : index
    %249 = vector.load %arg9[%c0_259, %c0_260] : memref<128x16xf32, #tpu.memory_space<vmem>>, vector<128x16xf32>
    %250 = arith.addf %249, %248 : vector<128x16xf32>
    %c0_261 = arith.constant 0 : index
    %c0_262 = arith.constant 0 : index
    %251 = vector.load %arg9[%c0_261, %c0_262] : memref<128x16xf32, #tpu.memory_space<vmem>>, vector<128x16xf32>
    tpu.vector_store %arg9[%c0_261, %c0_262], %250 {strides = array<i32>} : memref<128x16xf32, #tpu.memory_space<vmem>>, vector<128x16xf32>,
    %c0_263 = arith.constant 0 : index
    %252 = arith.index_cast %242 : i32 to index
    %c18_264 = arith.constant 18 : index
    %c0_265 = arith.constant 0 : index
    %253 = vector.load %arg2[%c0_263, %252, %c18_264, %c0_265] : memref<1x52x52x32xbf16, #tpu.memory_space<vmem>>, vector<1x8x16x32xbf16>
    %254 = vector.shape_cast %253 : vector<1x8x16x32xbf16> to vector<128x32xbf16>
    %c22 = arith.constant 22 : index
    %c0_266 = arith.constant 0 : index
    %c0_267 = arith.constant 0 : index
    %255 = vector.load %arg4[%c22, %c0_266, %c0_267] : memref<27x32x16xbf16, #tpu.memory_space<vmem>>, vector<1x32x16xbf16>
    %256 = vector.shape_cast %255 : vector<1x32x16xbf16> to vector<32x16xbf16>
    %cst_268 = arith.constant dense<0.000000e+00> : vector<128x16xf32>
    %257 = tpu.matmul %254, %256, %cst_268 {dimension_numbers = #tpu.dot_dimension_numbers<[1], [0], [0], [1], [0, 0, 1, 1], [], []>} : vector<128x32xbf16>, vector<32x16xbf16>, vector<128x16xf32> -> vector<128x16xf32>
    %c0_269 = arith.constant 0 : index
    %c0_270 = arith.constant 0 : index
    %258 = vector.load %arg9[%c0_269, %c0_270] : memref<128x16xf32, #tpu.memory_space<vmem>>, vector<128x16xf32>
    %259 = arith.addf %258, %257 : vector<128x16xf32>
    %c0_271 = arith.constant 0 : index
    %c0_272 = arith.constant 0 : index
    %260 = vector.load %arg9[%c0_271, %c0_272] : memref<128x16xf32, #tpu.memory_space<vmem>>, vector<128x16xf32>
    tpu.vector_store %arg9[%c0_271, %c0_272], %259 {strides = array<i32>} : memref<128x16xf32, #tpu.memory_space<vmem>>, vector<128x16xf32>,
    %c0_273 = arith.constant 0 : index
    %261 = arith.index_cast %242 : i32 to index
    %c36_274 = arith.constant 36 : index
    %c0_275 = arith.constant 0 : index
    %262 = vector.load %arg2[%c0_273, %261, %c36_274, %c0_275] : memref<1x52x52x32xbf16, #tpu.memory_space<vmem>>, vector<1x8x16x32xbf16>
    %263 = vector.shape_cast %262 : vector<1x8x16x32xbf16> to vector<128x32xbf16>
    %c23 = arith.constant 23 : index
    %c0_276 = arith.constant 0 : index
    %c0_277 = arith.constant 0 : index
    %264 = vector.load %arg4[%c23, %c0_276, %c0_277] : memref<27x32x16xbf16, #tpu.memory_space<vmem>>, vector<1x32x16xbf16>
    %265 = vector.shape_cast %264 : vector<1x32x16xbf16> to vector<32x16xbf16>
    %cst_278 = arith.constant dense<0.000000e+00> : vector<128x16xf32>
    %266 = tpu.matmul %263, %265, %cst_278 {dimension_numbers = #tpu.dot_dimension_numbers<[1], [0], [0], [1], [0, 0, 1, 1], [], []>} : vector<128x32xbf16>, vector<32x16xbf16>, vector<128x16xf32> -> vector<128x16xf32>
    %c0_279 = arith.constant 0 : index
    %c0_280 = arith.constant 0 : index
    %267 = vector.load %arg9[%c0_279, %c0_280] : memref<128x16xf32, #tpu.memory_space<vmem>>, vector<128x16xf32>
    %268 = arith.addf %267, %266 : vector<128x16xf32>
    %c0_281 = arith.constant 0 : index
    %c0_282 = arith.constant 0 : index
    %269 = vector.load %arg9[%c0_281, %c0_282] : memref<128x16xf32, #tpu.memory_space<vmem>>, vector<128x16xf32>
    tpu.vector_store %arg9[%c0_281, %c0_282], %268 {strides = array<i32>} : memref<128x16xf32, #tpu.memory_space<vmem>>, vector<128x16xf32>,
    %c0_i32_283 = arith.constant 0 : i32
    %270 = arith.addi %1, %c0_i32_283 : i32
    %c36_i32 = arith.constant 36 : i32
    %271 = arith.addi %270, %c36_i32 : i32
    %c0_284 = arith.constant 0 : index
    %272 = arith.index_cast %271 : i32 to index
    %c0_285 = arith.constant 0 : index
    %c0_286 = arith.constant 0 : index
    %273 = vector.load %arg2[%c0_284, %272, %c0_285, %c0_286] : memref<1x52x52x32xbf16, #tpu.memory_space<vmem>>, vector<1x8x16x32xbf16>
    %274 = vector.shape_cast %273 : vector<1x8x16x32xbf16> to vector<128x32xbf16>
    %c24_287 = arith.constant 24 : index
    %c0_288 = arith.constant 0 : index
    %c0_289 = arith.constant 0 : index
    %275 = vector.load %arg4[%c24_287, %c0_288, %c0_289] : memref<27x32x16xbf16, #tpu.memory_space<vmem>>, vector<1x32x16xbf16>
    %276 = vector.shape_cast %275 : vector<1x32x16xbf16> to vector<32x16xbf16>
    %cst_290 = arith.constant dense<0.000000e+00> : vector<128x16xf32>
    %277 = tpu.matmul %274, %276, %cst_290 {dimension_numbers = #tpu.dot_dimension_numbers<[1], [0], [0], [1], [0, 0, 1, 1], [], []>} : vector<128x32xbf16>, vector<32x16xbf16>, vector<128x16xf32> -> vector<128x16xf32>
    %c0_291 = arith.constant 0 : index
    %c0_292 = arith.constant 0 : index
    %278 = vector.load %arg9[%c0_291, %c0_292] : memref<128x16xf32, #tpu.memory_space<vmem>>, vector<128x16xf32>
    %279 = arith.addf %278, %277 : vector<128x16xf32>
    %c0_293 = arith.constant 0 : index
    %c0_294 = arith.constant 0 : index
    %280 = vector.load %arg9[%c0_293, %c0_294] : memref<128x16xf32, #tpu.memory_space<vmem>>, vector<128x16xf32>
    tpu.vector_store %arg9[%c0_293, %c0_294], %279 {strides = array<i32>} : memref<128x16xf32, #tpu.memory_space<vmem>>, vector<128x16xf32>,
    %c0_295 = arith.constant 0 : index
    %281 = arith.index_cast %271 : i32 to index
    %c18_296 = arith.constant 18 : index
    %c0_297 = arith.constant 0 : index
    %282 = vector.load %arg2[%c0_295, %281, %c18_296, %c0_297] : memref<1x52x52x32xbf16, #tpu.memory_space<vmem>>, vector<1x8x16x32xbf16>
    %283 = vector.shape_cast %282 : vector<1x8x16x32xbf16> to vector<128x32xbf16>
    %c25 = arith.constant 25 : index
    %c0_298 = arith.constant 0 : index
    %c0_299 = arith.constant 0 : index
    %284 = vector.load %arg4[%c25, %c0_298, %c0_299] : memref<27x32x16xbf16, #tpu.memory_space<vmem>>, vector<1x32x16xbf16>
    %285 = vector.shape_cast %284 : vector<1x32x16xbf16> to vector<32x16xbf16>
    %cst_300 = arith.constant dense<0.000000e+00> : vector<128x16xf32>
    %286 = tpu.matmul %283, %285, %cst_300 {dimension_numbers = #tpu.dot_dimension_numbers<[1], [0], [0], [1], [0, 0, 1, 1], [], []>} : vector<128x32xbf16>, vector<32x16xbf16>, vector<128x16xf32> -> vector<128x16xf32>
    %c0_301 = arith.constant 0 : index
    %c0_302 = arith.constant 0 : index
    %287 = vector.load %arg9[%c0_301, %c0_302] : memref<128x16xf32, #tpu.memory_space<vmem>>, vector<128x16xf32>
    %288 = arith.addf %287, %286 : vector<128x16xf32>
    %c0_303 = arith.constant 0 : index
    %c0_304 = arith.constant 0 : index
    %289 = vector.load %arg9[%c0_303, %c0_304] : memref<128x16xf32, #tpu.memory_space<vmem>>, vector<128x16xf32>
    tpu.vector_store %arg9[%c0_303, %c0_304], %288 {strides = array<i32>} : memref<128x16xf32, #tpu.memory_space<vmem>>, vector<128x16xf32>,
    %c0_305 = arith.constant 0 : index
    %290 = arith.index_cast %271 : i32 to index
    %c36_306 = arith.constant 36 : index
    %c0_307 = arith.constant 0 : index
    %291 = vector.load %arg2[%c0_305, %290, %c36_306, %c0_307] : memref<1x52x52x32xbf16, #tpu.memory_space<vmem>>, vector<1x8x16x32xbf16>
    %292 = vector.shape_cast %291 : vector<1x8x16x32xbf16> to vector<128x32xbf16>
    %c26 = arith.constant 26 : index
    %c0_308 = arith.constant 0 : index
    %c0_309 = arith.constant 0 : index
    %293 = vector.load %arg4[%c26, %c0_308, %c0_309] : memref<27x32x16xbf16, #tpu.memory_space<vmem>>, vector<1x32x16xbf16>
    %294 = vector.shape_cast %293 : vector<1x32x16xbf16> to vector<32x16xbf16>
    %cst_310 = arith.constant dense<0.000000e+00> : vector<128x16xf32>
    %295 = tpu.matmul %292, %294, %cst_310 {dimension_numbers = #tpu.dot_dimension_numbers<[1], [0], [0], [1], [0, 0, 1, 1], [], []>} : vector<128x32xbf16>, vector<32x16xbf16>, vector<128x16xf32> -> vector<128x16xf32>
    %c0_311 = arith.constant 0 : index
    %c0_312 = arith.constant 0 : index
    %296 = vector.load %arg9[%c0_311, %c0_312] : memref<128x16xf32, #tpu.memory_space<vmem>>, vector<128x16xf32>
    %297 = arith.addf %296, %295 : vector<128x16xf32>
    %c0_313 = arith.constant 0 : index
    %c0_314 = arith.constant 0 : index
    %298 = vector.load %arg9[%c0_313, %c0_314] : memref<128x16xf32, #tpu.memory_space<vmem>>, vector<128x16xf32>
    tpu.vector_store %arg9[%c0_313, %c0_314], %297 {strides = array<i32>} : memref<128x16xf32, #tpu.memory_space<vmem>>, vector<128x16xf32>,
    %c0_315 = arith.constant 0 : index
    %c0_316 = arith.constant 0 : index
    %299 = vector.load %arg9[%c0_315, %c0_316] : memref<128x16xf32, #tpu.memory_space<vmem>>, vector<128x16xf32>
    %c3_317 = arith.constant 3 : index
    %c0_318 = arith.constant 0 : index
    %300 = vector.load %arg6[%c3_317, %c0_318] : memref<4x16xf32, #tpu.memory_space<vmem>>, vector<1x16xf32>
    %301 = vector.broadcast %300 : vector<1x16xf32> to vector<128x16xf32>
    %302 = arith.addf %299, %301 : vector<128x16xf32>
    %cst_319 = arith.constant 0.000000e+00 : f32
    %303 = vector.broadcast %cst_319 : f32 to vector<128x16xf32>
    %304 = arith.maximumf %302, %303 : vector<128x16xf32>
    %c0_320 = arith.constant 0 : index
    %c0_321 = arith.constant 0 : index
    %305 = vector.load %arg10[%c0_320, %c0_321] : memref<128x16xf32, #tpu.memory_space<vmem>>, vector<128x16xf32>
    %306 = arith.truncf %304 : vector<128x16xf32> to vector<128x16xbf16>
    %c3_322 = arith.constant 3 : index
    %c0_323 = arith.constant 0 : index
    %c0_324 = arith.constant 0 : index
    %307 = vector.load %arg5[%c3_322, %c0_323, %c0_324] : memref<4x16x16xbf16, #tpu.memory_space<vmem>>, vector<1x16x16xbf16>
    %308 = vector.shape_cast %307 : vector<1x16x16xbf16> to vector<16x16xbf16>
    %cst_325 = arith.constant dense<0.000000e+00> : vector<128x16xf32>
    %309 = tpu.matmul %306, %308, %cst_325 {dimension_numbers = #tpu.dot_dimension_numbers<[1], [0], [0], [1], [0, 0, 1, 1], [], []>} : vector<128x16xbf16>, vector<16x16xbf16>, vector<128x16xf32> -> vector<128x16xf32>
    %310 = arith.addf %305, %309 : vector<128x16xf32>
    %c0_326 = arith.constant 0 : index
    %c0_327 = arith.constant 0 : index
    %311 = vector.load %arg10[%c0_326, %c0_327] : memref<128x16xf32, #tpu.memory_space<vmem>>, vector<128x16xf32>
    tpu.vector_store %arg10[%c0_326, %c0_327], %310 {strides = array<i32>} : memref<128x16xf32, #tpu.memory_space<vmem>>, vector<128x16xf32>,
    %c0_328 = arith.constant 0 : index
    %c0_329 = arith.constant 0 : index
    %312 = vector.load %arg10[%c0_328, %c0_329] : memref<128x16xf32, #tpu.memory_space<vmem>>, vector<128x16xf32>
    %c0_330 = arith.constant 0 : index
    %c0_331 = arith.constant 0 : index
    %c0_332 = arith.constant 0 : index
    %313 = vector.load %arg7[%c0_330, %c0_331, %c0_332] : memref<1x1x16xf32, #tpu.memory_space<vmem>>, vector<1x1x16xf32>
    %314 = vector.shape_cast %313 : vector<1x1x16xf32> to vector<1x16xf32>
    %315 = vector.broadcast %314 : vector<1x16xf32> to vector<128x16xf32>
    %316 = arith.addf %312, %315 : vector<128x16xf32>
    %cst_333 = arith.constant 0.000000e+00 : f32
    %317 = vector.broadcast %cst_333 : f32 to vector<128x16xf32>
    %318 = arith.maximumf %316, %317 : vector<128x16xf32>
    %319 = vector.shape_cast %318 : vector<128x16xf32> to vector<1x8x16x16xf32>
    %c0_334 = arith.constant 0 : index
    %c0_335 = arith.constant 0 : index
    %c0_336 = arith.constant 0 : index
    %c0_337 = arith.constant 0 : index
    %320 = vector.load %arg8[%c0_334, %c0_335, %c0_336, %c0_337] : memref<1x8x16x16xf32, #tpu.memory_space<vmem>>, vector<1x8x16x16xf32>
    tpu.vector_store %arg8[%c0_334, %c0_335, %c0_336, %c0_337], %319 {strides = array<i32>} : memref<1x8x16x16xf32, #tpu.memory_space<vmem>>, vector<1x8x16x16xf32>,
    return
  }
  func.func @transform_0(%arg0: i32, %arg1: i32) -> (i32, i32, i32, i32) {
    %c0_i32 = arith.constant 0 : i32
    %c0_i32_0 = arith.constant 0 : i32
    %c0_i32_1 = arith.constant 0 : i32
    %c0_i32_2 = arith.constant 0 : i32
    return %arg0, %c0_i32, %c0_i32_0, %c0_i32_1 : i32, i32, i32, i32
  }
  func.func @transform_1(%arg0: i32, %arg1: i32) -> (i32, i32) {
    %c0_i32 = arith.constant 0 : i32
    %c0_i32_0 = arith.constant 0 : i32
    %c0_i32_1 = arith.constant 0 : i32
    return %c0_i32, %c0_i32_0 : i32, i32
  }
  func.func @transform_2(%arg0: i32, %arg1: i32) -> (i32, i32, i32) {
    %c0_i32 = arith.constant 0 : i32
    %c0_i32_0 = arith.constant 0 : i32
    %c0_i32_1 = arith.constant 0 : i32
    %c0_i32_2 = arith.constant 0 : i32
    return %c0_i32, %c0_i32_0, %c0_i32_1 : i32, i32, i32
  }
  func.func @transform_3(%arg0: i32, %arg1: i32) -> (i32, i32, i32) {
    %c0_i32 = arith.constant 0 : i32
    %c0_i32_0 = arith.constant 0 : i32
    %c0_i32_1 = arith.constant 0 : i32
    %c0_i32_2 = arith.constant 0 : i32
    return %c0_i32, %c0_i32_0, %c0_i32_1 : i32, i32, i32
  }
  func.func @transform_4(%arg0: i32, %arg1: i32) -> (i32, i32) {
    %c0_i32 = arith.constant 0 : i32
    %c0_i32_0 = arith.constant 0 : i32
    %c0_i32_1 = arith.constant 0 : i32
    return %c0_i32, %c0_i32_0 : i32, i32
  }
  func.func @transform_5(%arg0: i32, %arg1: i32) -> (i32, i32, i32) {
    %c0_i32 = arith.constant 0 : i32
    %c0_i32_0 = arith.constant 0 : i32
    %c0_i32_1 = arith.constant 0 : i32
    return %arg0, %c0_i32, %c0_i32_0 : i32, i32, i32
  }
  func.func @transform_6(%arg0: i32, %arg1: i32) -> (i32, i32, i32, i32) {
    %c0_i32 = arith.constant 0 : i32
    %c0_i32_0 = arith.constant 0 : i32
    %c0_i32_1 = arith.constant 0 : i32
    return %arg0, %arg1, %c0_i32, %c0_i32_0 : i32, i32, i32, i32
  }
}

</mosaic_0001>

<llo_original>
// kernel: aspp_forward.1
$region0: #{aspp_forward.1}
  #allocation0 [shape = 'u32[]', space=smem, size = 0x4, offset = 0x4, fixed_abs, tag = 'smem constant byte address 0x4 - core index']
  #allocation1 [shape = 'u32[144,128]{1,0:T(1,128)}', space=vmem, size = 0x12000, scoped, tag = 'internal scratch']
  #allocation2 [shape = 'f32[128,16]{1,0:T(8,128)}', space=vmem, size = 0x10000, scoped, tag = 'scratch operand']
  #allocation3 [shape = 'f32[128,16]{1,0:T(8,128)}', space=vmem, size = 0x10000, scoped, tag = 'scratch operand']
  %s0 = inlined_call_operand.vmem [shape: bf16[2,52,52,32], index: 0, kind: input, shape index: {}]
  %s1 = inlined_call_operand.vmem [shape: bf16[32,16], index: 1, kind: input, shape index: {}]
  %s2 = inlined_call_operand.vmem [shape: bf16[27,32,16], index: 2, kind: input, shape index: {}]
  %s3 = inlined_call_operand.vmem [shape: bf16[4,16,16], index: 3, kind: input, shape index: {}]
  %s4 = inlined_call_operand.vmem [shape: f32[4,16], index: 4, kind: input, shape index: {}]
  %s5 = inlined_call_operand.vmem [shape: f32[2,1,16], index: 5, kind: input, shape index: {}]
  %s6 = inlined_call_operand.vmem [shape: f32[2,16,16,16], index: 6, kind: output, shape index: {}]
  %s7 = sld [smem:[#allocation0]]
  $region57: #{aspp_forward.1} parent=0
    _
  %s9 = ssub.s32 1, %s7
  %s10 = scalar_select 0, %s9, %s7
  loop: start=0, step=1, limit=6
  $region2: #{aspp_forward.1} parent=0 // loop_pre_header
    _
  $region3: #{aspp_forward.1} parent=0 // loop_header
    %s12 = sphi 0, %s16
    %p13 = scmp.ge.s32.totalorder %s12, 6
    %s19 = sphi 0, %s31
    %s20 = sphi 0, %s27
    %s21 = sphi 0, %s19
    %s22 = sphi 0, %s20
    %s23 = sphi 0, %s21
    %s24 = sphi 0, %s22
    %s34 = sphi 0, %s36
    %s37 = sphi 0, %s34
    %s38 = sphi 0, %s37
    %s54 = sphi 0, %s38
    %s58 = sphi 0, %s58
    %s60 = sphi 0, %s58
    %s61 = sphi 0, %s60
    %s75 = sphi 0, %s61
    %s79 = sphi 0, %s79
    %s81 = sphi 0, %s79
    %s82 = sphi 0, %s81
    %s96 = sphi 0, %s82
    %s100 = sphi 0, %s100
    %s102 = sphi 0, %s100
    %s103 = sphi 0, %s102
    %s117 = sphi 0, %s103
    %s121 = sphi 0, %s121
    %s123 = sphi 0, %s121
    %s124 = sphi 0, %s123
    %s138 = sphi 0, %s124
    %s144 = sphi 0, %s146
    %s147 = sphi 0, %s144
    %s148 = sphi 0, %s147
    %s164 = sphi 0, %s148
    %s172 = sphi 0, %s174
    %s175 = sphi 0, %s172
    %s176 = sphi 0, %s175
    %s192 = sphi 0, %s176
  $region4: #{aspp_forward.1} parent=0 // loop_header_branch
    %15 = sbr.rel (%p13) target = $region8
  $region5: #{aspp_forward.1} parent=0 // loop_body
    %s17 = ssub.s32 %s12, 1
    %s18 = ssub.s32 %s12, 2
    %s25 = sadd.s32 1, %s20
    %p26 = scmp.ge.s32.totalorder %s25, 2
    %s27 = scalar_select %p26, 0, %s25
    %s28 = sadd.s32 1, %s19
    %s29 = scalar_select %p26, %s28, %s19
    %p30 = scmp.ge.s32.totalorder %s29, 2
    %s31 = scalar_select %p30, 0, %s29
    %s32 = ssub.s32 %s19, %s31
    %p33 = scmp.eq.s32.totalorder %s32, 0
    %s35 = sadd.s32 %s34, 1
    %s36 = scalar_select %p33, %s34, %s35
    %p39 = pneg %p33
    %p40 = scmp.eq.s32.totalorder %s12, 3
    %p41 = por %p39, %p40
    %p42 = scmp.ne.s32.totalorder %s34, %s37
    %p43 = scmp.eq.s32.totalorder %s12, 0
    %p44 = por %p42, %p43
    %p45 = scmp.ne.s32.totalorder %s34, %s37
    %p46 = scmp.eq.s32.totalorder %s17, 3
    %p47 = por %p45, %p46
    %p48 = scmp.ne.s32.totalorder %s37, %s38
    %p49 = scmp.eq.s32.totalorder %s17, 0
    %p50 = por %p48, %p49
    %p51 = scmp.ne.s32.totalorder %s37, %s38
    %p52 = scmp.eq.s32.totalorder %s18, 3
    %p53 = por %p51, %p52
    %p55 = scmp.ne.s32.totalorder %s38, %s54
    %p56 = scmp.eq.s32.totalorder %s18, 0
    %p57 = por %p55, %p56
    %s59 = sadd.s32 %s58, 1
    %p62 = scmp.eq.s32.totalorder %s12, 3
    %p63 = scmp.ne.s32.totalorder %s58, %s60
    %p64 = scmp.eq.s32.totalorder %s12, 0
    %p65 = por %p63, %p64
    %p66 = scmp.ne.s32.totalorder %s58, %s60
    %p67 = scmp.eq.s32.totalorder %s17, 3
    %p68 = por %p66, %p67
    %p69 = scmp.ne.s32.totalorder %s60, %s61
    %p70 = scmp.eq.s32.totalorder %s17, 0
    %p71 = por %p69, %p70
    %p72 = scmp.ne.s32.totalorder %s60, %s61
    %p73 = scmp.eq.s32.totalorder %s18, 3
    %p74 = por %p72, %p73
    %p76 = scmp.ne.s32.totalorder %s61, %s75
    %p77 = scmp.eq.s32.totalorder %s18, 0
    %p78 = por %p76, %p77
    %s80 = sadd.s32 %s79, 1
    %p83 = scmp.eq.s32.totalorder %s12, 3
    %p84 = scmp.ne.s32.totalorder %s79, %s81
    %p85 = scmp.eq.s32.totalorder %s12, 0
    %p86 = por %p84, %p85
    %p87 = scmp.ne.s32.totalorder %s79, %s81
    %p88 = scmp.eq.s32.totalorder %s17, 3
    %p89 = por %p87, %p88
    %p90 = scmp.ne.s32.totalorder %s81, %s82
    %p91 = scmp.eq.s32.totalorder %s17, 0
    %p92 = por %p90, %p91
    %p93 = scmp.ne.s32.totalorder %s81, %s82
    %p94 = scmp.eq.s32.totalorder %s18, 3
    %p95 = por %p93, %p94
    %p97 = scmp.ne.s32.totalorder %s82, %s96
    %p98 = scmp.eq.s32.totalorder %s18, 0
    %p99 = por %p97, %p98
    %s101 = sadd.s32 %s100, 1
    %p104 = scmp.eq.s32.totalorder %s12, 3
    %p105 = scmp.ne.s32.totalorder %s100, %s102
    %p106 = scmp.eq.s32.totalorder %s12, 0
    %p107 = por %p105, %p106
    %p108 = scmp.ne.s32.totalorder %s100, %s102
    %p109 = scmp.eq.s32.totalorder %s17, 3
    %p110 = por %p108, %p109
    %p111 = scmp.ne.s32.totalorder %s102, %s103
    %p112 = scmp.eq.s32.totalorder %s17, 0
    %p113 = por %p111, %p112
    %p114 = scmp.ne.s32.totalorder %s102, %s103
    %p115 = scmp.eq.s32.totalorder %s18, 3
    %p116 = por %p114, %p115
    %p118 = scmp.ne.s32.totalorder %s103, %s117
    %p119 = scmp.eq.s32.totalorder %s18, 0
    %p120 = por %p118, %p119
    %s122 = sadd.s32 %s121, 1
    %p125 = scmp.eq.s32.totalorder %s12, 3
    %p126 = scmp.ne.s32.totalorder %s121, %s123
    %p127 = scmp.eq.s32.totalorder %s12, 0
    %p128 = por %p126, %p127
    %p129 = scmp.ne.s32.totalorder %s121, %s123
    %p130 = scmp.eq.s32.totalorder %s17, 3
    %p131 = por %p129, %p130
    %p132 = scmp.ne.s32.totalorder %s123, %s124
    %p133 = scmp.eq.s32.totalorder %s17, 0
    %p134 = por %p132, %p133
    %p135 = scmp.ne.s32.totalorder %s123, %s124
    %p136 = scmp.eq.s32.totalorder %s18, 3
    %p137 = por %p135, %p136
    %p139 = scmp.ne.s32.totalorder %s124, %s138
    %p140 = scmp.eq.s32.totalorder %s18, 0
    %p141 = por %p139, %p140
    %s142 = ssub.s32 %s19, %s31
    %p143 = scmp.eq.s32.totalorder %s142, 0
    %s145 = sadd.s32 %s144, 1
    %s146 = scalar_select %p143, %s144, %s145
    %p149 = pneg %p143
    %p150 = scmp.eq.s32.totalorder %s12, 3
    %p151 = por %p149, %p150
    %p152 = scmp.ne.s32.totalorder %s144, %s147
    %p153 = scmp.eq.s32.totalorder %s12, 0
    %p154 = por %p152, %p153
    %p155 = scmp.ne.s32.totalorder %s144, %s147
    %p156 = scmp.eq.s32.totalorder %s17, 3
    %p157 = por %p155, %p156
    %p158 = scmp.ne.s32.totalorder %s147, %s148
    %p159 = scmp.eq.s32.totalorder %s17, 0
    %p160 = por %p158, %p159
    %p161 = scmp.ne.s32.totalorder %s147, %s148
    %p162 = scmp.eq.s32.totalorder %s18, 3
    %p163 = por %p161, %p162
    %p165 = scmp.ne.s32.totalorder %s148, %s164
    %p166 = scmp.eq.s32.totalorder %s18, 0
    %p167 = por %p165, %p166
    %s168 = ssub.s32 %s19, %s31
    %s169 = ssub.s32 %s20, %s27
    %s170 = sor.u32 %s168, %s169
    %p171 = scmp.eq.s32.totalorder %s170, 0
    %s173 = sadd.s32 %s172, 1
    %s174 = scalar_select %p171, %s172, %s173
    %p177 = pneg %p171
    %p178 = scmp.eq.s32.totalorder %s12, 3
    %p179 = por %p177, %p178
    %p180 = scmp.ne.s32.totalorder %s172, %s175
    %p181 = scmp.eq.s32.totalorder %s12, 0
    %p182 = por %p180, %p181
    %p183 = scmp.ne.s32.totalorder %s172, %s175
    %p184 = scmp.eq.s32.totalorder %s17, 3
    %p185 = por %p183, %p184
    %p186 = scmp.ne.s32.totalorder %s175, %s176
    %p187 = scmp.eq.s32.totalorder %s17, 0
    %p188 = por %p186, %p187
    %p189 = scmp.ne.s32.totalorder %s175, %s176
    %p190 = scmp.eq.s32.totalorder %s18, 3
    %p191 = por %p189, %p190
    %p193 = scmp.ne.s32.totalorder %s176, %s192
    %p194 = scmp.eq.s32.totalorder %s18, 0
    %p195 = por %p193, %p194
    %p196 = scmp.le.s32.totalorder 1, %s12
    %p197 = scmp.lt.s32.totalorder %s12, 5
    %p198 = pnand %p196, %p197
    %p199 = pneg %p198
    // Predicated region
    $region9: #{aspp_forward.1} parent=5 // pred_check
      _
    $region10: #{aspp_forward.1} parent=5 // pred_check_branch
      %201 = sbr.rel (%p198) target = $region12
    $region11: #{aspp_forward.1} parent=5 // pred_region
      %s202 = ssub.s32 %s12, 1
      // Predicated region
      $region13: #{aspp_forward.1} parent=11 // pred_check
        %p203 = pneg %p71
      $region14: #{aspp_forward.1} parent=11 // pred_check_branch
        %205 = sbr.rel (%p203) target = $region16
      $region15: #{aspp_forward.1} parent=11 // pred_region
        _
      $region16: #{aspp_forward.1} parent=11 // pred_fallthru
        _
      // Predicated region
      $region17: #{aspp_forward.1} parent=11 // pred_check
        %p206 = pneg %p92
      $region18: #{aspp_forward.1} parent=11 // pred_check_branch
        %208 = sbr.rel (%p206) target = $region20
      $region19: #{aspp_forward.1} parent=11 // pred_region
        _
      $region20: #{aspp_forward.1} parent=11 // pred_fallthru
        _
      // Predicated region
      $region21: #{aspp_forward.1} parent=11 // pred_check
        %p209 = pneg %p113
      $region22: #{aspp_forward.1} parent=11 // pred_check_branch
        %211 = sbr.rel (%p209) target = $region24
      $region23: #{aspp_forward.1} parent=11 // pred_region
        _
      $region24: #{aspp_forward.1} parent=11 // pred_fallthru
        _
      // Predicated region
      $region25: #{aspp_forward.1} parent=11 // pred_check
        %p212 = pneg %p134
      $region26: #{aspp_forward.1} parent=11 // pred_check_branch
        %214 = sbr.rel (%p212) target = $region28
      $region27: #{aspp_forward.1} parent=11 // pred_region
        _
      $region28: #{aspp_forward.1} parent=11 // pred_fallthru
        _
    $region12: #{aspp_forward.1} parent=5 // pred_fallthru
      _
    %p215 = scmp.lt.s32.totalorder %s12, 4
    // Predicated region
    $region29: #{aspp_forward.1} parent=5 // pred_check
      %p216 = pneg %p215
    $region30: #{aspp_forward.1} parent=5 // pred_check_branch
      %218 = sbr.rel (%p216) target = $region32
    $region31: #{aspp_forward.1} parent=5 // pred_region
      // Predicated region
      $region33: #{aspp_forward.1} parent=31 // pred_check
        %p219 = pneg %p44
      $region34: #{aspp_forward.1} parent=31 // pred_check_branch
        %221 = sbr.rel (%p219) target = $region36
      $region35: #{aspp_forward.1} parent=31 // pred_region
        %p222 = scmp.lt.s32.totalorder %s19, 1
        %s223 = scalar_select %p222, %s19, 1
        %s224 = smul.addr %s223, 364
        %s225 = smul.addr %s224, 4
        %s226 = scalar_lea.vmem %s0, %s225
      $region36: #{aspp_forward.1} parent=31 // pred_fallthru
        _
      // Predicated region
      $region37: #{aspp_forward.1} parent=31 // pred_check
        %p227 = pneg %p154
      $region38: #{aspp_forward.1} parent=31 // pred_check_branch
        %229 = sbr.rel (%p227) target = $region40
      $region39: #{aspp_forward.1} parent=31 // pred_region
        %p230 = scmp.lt.s32.totalorder %s19, 1
        %s231 = scalar_select %p230, %s19, 1
        %s232 = scalar_lea.vmem %s5, %s231
      $region40: #{aspp_forward.1} parent=31 // pred_fallthru
        _
    $region32: #{aspp_forward.1} parent=5 // pred_fallthru
      _
    %p233 = scmp.le.s32.totalorder 1, %s12
    %p234 = scmp.lt.s32.totalorder %s12, 5
    %p235 = pnand %p233, %p234
    %p236 = pneg %p235
    // Predicated region
    $region41: #{aspp_forward.1} parent=5 // pred_check
      _
    $region42: #{aspp_forward.1} parent=5 // pred_check_branch
      %238 = sbr.rel (%p235) target = $region44
    $region43: #{aspp_forward.1} parent=5 // pred_region
      %s239 = ssub.s32 %s12, 1
      %p240 = scmp.lt.s32.totalorder %s21, 1
      %s241 = scalar_select %p240, %s21, 1
      %s242 = smul.addr %s241, 364
      %s243 = smul.addr %s242, 4
      %s244 = scalar_lea.vmem %s0, %s243
      %p245 = pneg %p50
      %p246 = pneg %p47
      %p247 = pneg %p71
      %p248 = pneg %p68
      %p249 = pneg %p92
      %p250 = pneg %p89
      %p251 = pneg %p113
      %p252 = pneg %p110
      %p253 = pneg %p134
      %p254 = pneg %p131
      %p255 = scmp.lt.s32.totalorder %s21, 1
      %s256 = scalar_select %p255, %s21, 1
      %s257 = scalar_lea.vmem %s5, %s256
      %p258 = pneg %p160
      %p259 = pneg %p157
      %p260 = pneg %p188
      %p261 = pneg %p185
      %s262 = smul.u32 8, %s22
      %p263 = scmp.lt.s32.totalorder %s21, 1
      %s264 = scalar_select %p263, %s21, 1
      %p265 = scmp.lt.s32.totalorder %s262, 15
      %s266 = scalar_select %p265, %s262, 15
      %s267 = smul.addr %s266, 2
      %s268 = smul.addr %s264, 32
      %s269 = sadd.s32 %s267, %s268
      %s270 = smul.addr %s269, 8
      %s271 = scalar_lea.vmem %s6, %s270
      %p272 = scmp.lt.s32.totalorder %s21, 1
      %s273 = scalar_select %p272, %s21, 1
      %s274 = smul.addr %s273, 364
      %s275 = smul.addr %s274, 4
      %s276 = scalar_lea.vmem %s0, %s275
      %p277 = scmp.lt.s32.totalorder %s21, 1
      %s278 = scalar_select %p277, %s21, 1
      %s279 = scalar_lea.vmem %s5, %s278
      %s280 = smul.u32 8, %s22
      %p281 = scmp.lt.s32.totalorder %s21, 1
      %s282 = scalar_select %p281, %s21, 1
      %p283 = scmp.lt.s32.totalorder %s280, 15
      %s284 = scalar_select %p283, %s280, 15
      %s285 = smul.addr %s284, 2
      %s286 = smul.addr %s282, 32
      %s287 = sadd.s32 %s285, %s286
      %s288 = smul.addr %s287, 8
      %s289 = scalar_lea.vmem %s6, %s288
      %s290 = smul.u32 8, %s22
      %s292 = smul.u32 %s22, 8
      %s293 = sadd.s32 %s292, 18
      %s294 = smul.u32 %s293, 7
      %s295 = smul.addr %s294, 4
      %s296 = scalar_lea.vmem %s276, %s295
      %v297 = vld [vmem:[%s296 + $0x8] sm:$0xe]
      %v298 = vld [vmem:[%s296 + $0xc] sm:$0xf]
      %v299 = vld [vmem:[%s296 + $0x10] sm:$0x1]
      %v300 = vld [vmem:[%s296 + $0x24] sm:$0xe]
      %v301 = vld [vmem:[%s296 + $0x28] sm:$0xf]
      %v302 = vld [vmem:[%s296 + $0x2c] sm:$0x1]
      %v303 = vld [vmem:[%s296 + $0x40] sm:$0xe]
      %v304 = vld [vmem:[%s296 + $0x44] sm:$0xf]
      %v305 = vld [vmem:[%s296 + $0x48] sm:$0x1]
      %v306 = vld [vmem:[%s296 + $0x5c] sm:$0xe]
      %v307 = vld [vmem:[%s296 + $0x60] sm:$0xf]
      %v308 = vld [vmem:[%s296 + $0x64] sm:$0x1]
      %v309 = vld [vmem:[%s296 + $0x78] sm:$0xe]
      %v310 = vld [vmem:[%s296 + $0x7c] sm:$0xf]
      %v311 = vld [vmem:[%s296 + $0x80] sm:$0x1]
      %v312 = vld [vmem:[%s296 + $0x94] sm:$0xe]
      %v313 = vld [vmem:[%s296 + $0x98] sm:$0xf]
      %v314 = vld [vmem:[%s296 + $0x9c] sm:$0x1]
      %v315 = vld [vmem:[%s296 + $0xb0] sm:$0xe]
      %v316 = vld [vmem:[%s296 + $0xb4] sm:$0xf]
      %v317 = vld [vmem:[%s296 + $0xb8] sm:$0x1]
      %v318 = vld [vmem:[%s296 + $0xcc] sm:$0xe]
      %v319 = vld [vmem:[%s296 + $0xd0] sm:$0xf]
      %v320 = vld [vmem:[%s296 + $0xd4] sm:$0x1]
      %vm345 = vcmask 1042432
      %vm346 = vcmask 1046532
      %vm347 = vmor %vm345, %vm346
      %v348 = vrot.slane %v297, 5
      %v349 = vrot.slane %v348, 4
      %v350 = vrot.slane %v298, 5
      %v351 = vsel %vm347, %v349, %v350
      %v352 = vrot.slane %v350, 4
      %v353 = vrot.slane %v299, 5
      %v354 = vsel %vm347, %v352, %v353
      %v355 = vrot.slane %v300, 5
      %v356 = vrot.slane %v355, 4
      %v357 = vrot.slane %v301, 5
      %v358 = vsel %vm347, %v356, %v357
      %v359 = vrot.slane %v357, 4
      %v360 = vrot.slane %v302, 5
      %v361 = vsel %vm347, %v359, %v360
      %v362 = vrot.slane %v303, 5
      %v363 = vrot.slane %v362, 4
      %v364 = vrot.slane %v304, 5
      %v365 = vsel %vm347, %v363, %v364
      %v366 = vrot.slane %v364, 4
      %v367 = vrot.slane %v305, 5
      %v368 = vsel %vm347, %v366, %v367
      %v369 = vrot.slane %v306, 5
      %v370 = vrot.slane %v369, 4
      %v371 = vrot.slane %v307, 5
      %v372 = vsel %vm347, %v370, %v371
      %v373 = vrot.slane %v371, 4
      %v374 = vrot.slane %v308, 5
      %v375 = vsel %vm347, %v373, %v374
      %v376 = vrot.slane %v309, 5
      %v377 = vrot.slane %v376, 4
      %v378 = vrot.slane %v310, 5
      %v379 = vsel %vm347, %v377, %v378
      %v380 = vrot.slane %v378, 4
      %v381 = vrot.slane %v311, 5
      %v382 = vsel %vm347, %v380, %v381
      %v383 = vrot.slane %v312, 5
      %v384 = vrot.slane %v383, 4
      %v385 = vrot.slane %v313, 5
      %v386 = vsel %vm347, %v384, %v385
      %v387 = vrot.slane %v385, 4
      %v388 = vrot.slane %v314, 5
      %v389 = vsel %vm347, %v387, %v388
      %v390 = vrot.slane %v315, 5
      %v391 = vrot.slane %v390, 4
      %v392 = vrot.slane %v316, 5
      %v393 = vsel %vm347, %v391, %v392
      %v394 = vrot.slane %v392, 4
      %v395 = vrot.slane %v317, 5
      %v396 = vsel %vm347, %v394, %v395
      %v397 = vrot.slane %v318, 5
      %v398 = vrot.slane %v397, 4
      %v399 = vrot.slane %v319, 5
      %v400 = vsel %vm347, %v398, %v399
      %v401 = vrot.slane %v399, 4
      %v402 = vrot.slane %v320, 5
      %v403 = vsel %vm347, %v401, %v402
      %v404 = vld [vmem:[%s1] sm:$0xf]
      %v405 = vld [vmem:[%s1 + $0x4] sm:$0xf]
      %v406 = vld [vmem:[%s1 + $0x8] sm:$0xf]
      %v407 = vld [vmem:[%s1 + $0xc] sm:$0xf]
      %v408 = vld [vmem:[%s4] sm:$0x1]
      %v409 = vlaneseq
      %v410 = vshrl.u32 %v409, 7
      %v411 = vsub.s32 0, %v410
      %v412 = vrot.slane %v408, %v411
      %v413 = vunpack.c.l.b16 %v351
      %v414 = vunpack.c.l.b16 %v354
      %v415 = vunpack.c.l.b16 %v358
      %v416 = vunpack.c.l.b16 %v361
      %v417 = vunpack.c.l.b16 %v365
      %v418 = vunpack.c.l.b16 %v368
      %v419 = vunpack.c.l.b16 %v372
      %v420 = vunpack.c.l.b16 %v375
      %v421 = vunpack.c.l.b16 %v379
      %v422 = vunpack.c.l.b16 %v382
      %v423 = vunpack.c.l.b16 %v386
      %v424 = vunpack.c.l.b16 %v389
      %v425 = vunpack.c.l.b16 %v393
      %v426 = vunpack.c.l.b16 %v396
      %v427 = vunpack.c.l.b16 %v400
      %v428 = vunpack.c.l.b16 %v403
      %v429 = vpack.c.b16 %v414, %v413
      %v430 = vpack.c.b16 %v416, %v415
      %v431 = vpack.c.b16 %v418, %v417
      %v432 = vpack.c.b16 %v420, %v419
      %v433 = vpack.c.b16 %v422, %v421
      %v434 = vpack.c.b16 %v424, %v423
      %v435 = vpack.c.b16 %v426, %v425
      %v436 = vpack.c.b16 %v428, %v427
      %v441 = vunpack.c.l.b16 %v404
      %v442 = vunpack.c.l.b16 %v405
      %v443 = vunpack.c.l.b16 %v406
      %v444 = vunpack.c.l.b16 %v407
      %v445 = vpack.c.b16 %v442, %v441
      %v446 = vpack.c.b16 %v444, %v443
      %vm449 = vcmask 261120
      %v451 = vsel %vm449, %v429, 0
      %v454 = vsel %vm449, %v430, 0
      %v457 = vsel %vm449, %v431, 0
      %v460 = vsel %vm449, %v432, 0
      %v463 = vsel %vm449, %v433, 0
      %v466 = vsel %vm449, %v434, 0
      %v469 = vsel %vm449, %v435, 0
      %v472 = vsel %vm449, %v436, 0
      %474 = vmatprep.subr.bf16.mxu0 0
      %475 = vmatpush1.bf16.msra.mxu0 0
      %476 = vmatprep.subr.bf16.mxu0 0
      %477 = vmatpush1.bf16.msra.mxu0 0
      %478 = vmatprep.subr.bf16.mxu0 0
      %479 = vmatpush1.bf16.msra.mxu0 0
      %480 = vmatprep.subr.bf16.mxu0 0
      %481 = vmatpush1.bf16.msra.mxu0 0
      %482 = vmatprep.subr.bf16.mxu0 0
      %483 = vmatpush1.bf16.msra.mxu0 0
      %484 = vmatprep.subr.bf16.mxu0 0
      %485 = vmatpush1.bf16.msra.mxu0 0
      %486 = vmatprep.subr.bf16.mxu0 0
      %487 = vmatpush1.bf16.msra.mxu0 %v446
      %488 = vmatprep.subr.bf16.mxu0 0
      %489 = vmatpush1.bf16.msra.mxu0 %v445
      %490 = vmatprep.subr.bf16.mxu0 0
      %491 = vmatpush2.bf16.msra.mxu0 0
      %492 = vmatprep.subr.bf16.mxu0 0
      %493 = vmatpush2.bf16.msra.mxu0 0
      %494 = vmatprep.subr.bf16.mxu0 0
      %495 = vmatpush2.bf16.msra.mxu0 0
      %496 = vmatprep.subr.bf16.mxu0 0
      %497 = vmatpush2.bf16.msra.mxu0 0
      %498 = vmatprep.subr.bf16.mxu0 0
      %499 = vmatpush2.bf16.msra.mxu0 0
      %500 = vmatprep.subr.bf16.mxu0 0
      %501 = vmatpush2.bf16.msra.mxu0 0
      %502 = vmatprep.subr.bf16.mxu0 0
      %503 = vmatpush2.bf16.msra.mxu0 0
      %504 = vmatprep.subr.bf16.mxu0 0
      %505 = vmatpush2.bf16.msra.mxu0 0
      %506 = vmatprep.mubr.bf16.mxu0 0
      %507 = vmatmul.mubr.bf16.gmra.mxu0 %v451
      %v508 = vpop.f32.mrf.mxu0
      %v509 = vadd.f32 %v412, %v508
      %v510 = vpop.f32.mrf.mxu0
      %v511 = vpop.f32.mrf.mxu0
      %v512 = vadd.f32 %v412, %v511
      %v513 = vpop.f32.mrf.mxu0
      %514 = vmatprep.mubr.bf16.mxu0 0
      %515 = vmatmul.mubr.bf16.gmra.mxu0 %v454
      %v516 = vpop.f32.mrf.mxu0
      %v517 = vadd.f32 %v412, %v516
      %v518 = vpop.f32.mrf.mxu0
      %v519 = vpop.f32.mrf.mxu0
      %v520 = vadd.f32 %v412, %v519
      %v521 = vpop.f32.mrf.mxu0
      %522 = vmatprep.mubr.bf16.mxu0 0
      %523 = vmatmul.mubr.bf16.gmra.mxu0 %v457
      %v524 = vpop.f32.mrf.mxu0
      %v525 = vadd.f32 %v412, %v524
      %v526 = vpop.f32.mrf.mxu0
      %v527 = vpop.f32.mrf.mxu0
      %v528 = vadd.f32 %v412, %v527
      %v529 = vpop.f32.mrf.mxu0
      %530 = vmatprep.mubr.bf16.mxu0 0
      %531 = vmatmul.mubr.bf16.gmra.mxu0 %v460
      %v532 = vpop.f32.mrf.mxu0
      %v533 = vadd.f32 %v412, %v532
      %v534 = vpop.f32.mrf.mxu0
      %v535 = vpop.f32.mrf.mxu0
      %v536 = vadd.f32 %v412, %v535
      %v537 = vpop.f32.mrf.mxu0
      %538 = vmatprep.mubr.bf16.mxu0 0
      %539 = vmatmul.mubr.bf16.gmra.mxu0 %v463
      %v540 = vpop.f32.mrf.mxu0
      %v541 = vadd.f32 %v412, %v540
      %v542 = vpop.f32.mrf.mxu0
      %v543 = vpop.f32.mrf.mxu0
      %v544 = vadd.f32 %v412, %v543
      %v545 = vpop.f32.mrf.mxu0
      %546 = vmatprep.mubr.bf16.mxu0 0
      %547 = vmatmul.mubr.bf16.gmra.mxu0 %v466
      %v548 = vpop.f32.mrf.mxu0
      %v549 = vadd.f32 %v412, %v548
      %v550 = vpop.f32.mrf.mxu0
      %v551 = vpop.f32.mrf.mxu0
      %v552 = vadd.f32 %v412, %v551
      %v553 = vpop.f32.mrf.mxu0
      %554 = vmatprep.mubr.bf16.mxu0 0
      %555 = vmatmul.mubr.bf16.gmra.mxu0 %v469
      %v556 = vpop.f32.mrf.mxu0
      %v557 = vadd.f32 %v412, %v556
      %v558 = vpop.f32.mrf.mxu0
      %v559 = vpop.f32.mrf.mxu0
      %v560 = vadd.f32 %v412, %v559
      %v561 = vpop.f32.mrf.mxu0
      %562 = vmatprep.mubr.bf16.mxu0 0
      %563 = vmatmul.mubr.bf16.gmra.mxu0 %v472
      %v564 = vpop.f32.mrf.mxu0
      %v565 = vadd.f32 %v412, %v564
      %v566 = vpop.f32.mrf.mxu0
      %v567 = vpop.f32.mrf.mxu0
      %v568 = vadd.f32 %v412, %v567
      %v569 = vpop.f32.mrf.mxu0
      %570 = vdwg.mxu0
      %v571 = vmax.f32 %v509, 0.0
      %v572 = vmax.f32 %v512, 0.0
      %v573 = vmax.f32 %v517, 0.0
      %v574 = vmax.f32 %v520, 0.0
      %v575 = vmax.f32 %v525, 0.0
      %v576 = vmax.f32 %v528, 0.0
      %v577 = vmax.f32 %v533, 0.0
      %v578 = vmax.f32 %v536, 0.0
      %v579 = vmax.f32 %v541, 0.0
      %v580 = vmax.f32 %v544, 0.0
      %v581 = vmax.f32 %v549, 0.0
      %v582 = vmax.f32 %v552, 0.0
      %v583 = vmax.f32 %v557, 0.0
      %v584 = vmax.f32 %v560, 0.0
      %v585 = vmax.f32 %v565, 0.0
      %v586 = vmax.f32 %v568, 0.0
      %v587 = vpack.c.bf16 %v572, %v571
      %v588 = vpack.c.bf16 %v574, %v573
      %v589 = vpack.c.bf16 %v576, %v575
      %v590 = vpack.c.bf16 %v578, %v577
      %v591 = vpack.c.bf16 %v580, %v579
      %v592 = vpack.c.bf16 %v582, %v581
      %v593 = vpack.c.bf16 %v584, %v583
      %v594 = vpack.c.bf16 %v586, %v585
      %v595 = vld [vmem:[%s3] sm:$0xf]
      %v596 = vld [vmem:[%s3 + $0x4] sm:$0xf]
      %v599 = vunpack.c.l.b16 %v595
      %v600 = vunpack.c.l.b16 %v596
      %v601 = vpack.c.b16 %v600, %v599
      %vm603 = vcmask 130048
      %v605 = vsel %vm603, %v587, 0
      %v608 = vsel %vm603, %v588, 0
      %v611 = vsel %vm603, %v589, 0
      %v614 = vsel %vm603, %v590, 0
      %v617 = vsel %vm603, %v591, 0
      %v620 = vsel %vm603, %v592, 0
      %v623 = vsel %vm603, %v593, 0
      %v626 = vsel %vm603, %v594, 0
      %628 = vmatprep.subr.bf16.mxu0 0
      %629 = vmatpush1.bf16.msra.mxu0 0
      %630 = vmatprep.subr.bf16.mxu0 0
      %631 = vmatpush1.bf16.msra.mxu0 0
      %632 = vmatprep.subr.bf16.mxu0 0
      %633 = vmatpush1.bf16.msra.mxu0 0
      %634 = vmatprep.subr.bf16.mxu0 0
      %635 = vmatpush1.bf16.msra.mxu0 0
      %636 = vmatprep.subr.bf16.mxu0 0
      %637 = vmatpush1.bf16.msra.mxu0 0
      %638 = vmatprep.subr.bf16.mxu0 0
      %639 = vmatpush1.bf16.msra.mxu0 0
      %640 = vmatprep.subr.bf16.mxu0 0
      %641 = vmatpush1.bf16.msra.mxu0 0
      %642 = vmatprep.subr.bf16.mxu0 0
      %643 = vmatpush1.bf16.msra.mxu0 %v601
      %644 = vmatprep.subr.bf16.mxu0 0
      %645 = vmatpush2.bf16.msra.mxu0 0
      %646 = vmatprep.subr.bf16.mxu0 0
      %647 = vmatpush2.bf16.msra.mxu0 0
      %648 = vmatprep.subr.bf16.mxu0 0
      %649 = vmatpush2.bf16.msra.mxu0 0
      %650 = vmatprep.subr.bf16.mxu0 0
      %651 = vmatpush2.bf16.msra.mxu0 0
      %652 = vmatprep.subr.bf16.mxu0 0
      %653 = vmatpush2.bf16.msra.mxu0 0
      %654 = vmatprep.subr.bf16.mxu0 0
      %655 = vmatpush2.bf16.msra.mxu0 0
      %656 = vmatprep.subr.bf16.mxu0 0
      %657 = vmatpush2.bf16.msra.mxu0 0
      %658 = vmatprep.subr.bf16.mxu0 0
      %659 = vmatpush2.bf16.msra.mxu0 0
      %660 = vmatprep.mubr.bf16.mxu0 0
      %661 = vmatmul.mubr.bf16.gmra.mxu0 %v605
      %v662 = vpop.f32.mrf.mxu0
      %v663 = vadd.f32 0.0, %v662
      %v664 = vpop.f32.mrf.mxu0
      %v665 = vpop.f32.mrf.mxu0
      %v666 = vadd.f32 0.0, %v665
      %v667 = vpop.f32.mrf.mxu0
      %668 = vmatprep.mubr.bf16.mxu0 0
      %669 = vmatmul.mubr.bf16.gmra.mxu0 %v608
      %v670 = vpop.f32.mrf.mxu0
      %v671 = vadd.f32 0.0, %v670
      %v672 = vpop.f32.mrf.mxu0
      %v673 = vpop.f32.mrf.mxu0
      %v674 = vadd.f32 0.0, %v673
      %v675 = vpop.f32.mrf.mxu0
      %676 = vmatprep.mubr.bf16.mxu0 0
      %677 = vmatmul.mubr.bf16.gmra.mxu0 %v611
      %v678 = vpop.f32.mrf.mxu0
      %v679 = vadd.f32 0.0, %v678
      %v680 = vpop.f32.mrf.mxu0
      %v681 = vpop.f32.mrf.mxu0
      %v682 = vadd.f32 0.0, %v681
      %v683 = vpop.f32.mrf.mxu0
      %684 = vmatprep.mubr.bf16.mxu0 0
      %685 = vmatmul.mubr.bf16.gmra.mxu0 %v614
      %v686 = vpop.f32.mrf.mxu0
      %v687 = vadd.f32 0.0, %v686
      %v688 = vpop.f32.mrf.mxu0
      %v689 = vpop.f32.mrf.mxu0
      %v690 = vadd.f32 0.0, %v689
      %v691 = vpop.f32.mrf.mxu0
      %692 = vmatprep.mubr.bf16.mxu0 0
      %693 = vmatmul.mubr.bf16.gmra.mxu0 %v617
      %v694 = vpop.f32.mrf.mxu0
      %v695 = vadd.f32 0.0, %v694
      %v696 = vpop.f32.mrf.mxu0
      %v697 = vpop.f32.mrf.mxu0
      %v698 = vadd.f32 0.0, %v697
      %v699 = vpop.f32.mrf.mxu0
      %700 = vmatprep.mubr.bf16.mxu0 0
      %701 = vmatmul.mubr.bf16.gmra.mxu0 %v620
      %v702 = vpop.f32.mrf.mxu0
      %v703 = vadd.f32 0.0, %v702
      %v704 = vpop.f32.mrf.mxu0
      %v705 = vpop.f32.mrf.mxu0
      %v706 = vadd.f32 0.0, %v705
      %v707 = vpop.f32.mrf.mxu0
      %708 = vmatprep.mubr.bf16.mxu0 0
      %709 = vmatmul.mubr.bf16.gmra.mxu0 %v623
      %v710 = vpop.f32.mrf.mxu0
      %v711 = vadd.f32 0.0, %v710
      %v712 = vpop.f32.mrf.mxu0
      %v713 = vpop.f32.mrf.mxu0
      %v714 = vadd.f32 0.0, %v713
      %v715 = vpop.f32.mrf.mxu0
      %716 = vmatprep.mubr.bf16.mxu0 0
      %717 = vmatmul.mubr.bf16.gmra.mxu0 %v626
      %v718 = vpop.f32.mrf.mxu0
      %v719 = vadd.f32 0.0, %v718
      %v720 = vpop.f32.mrf.mxu0
      %v721 = vpop.f32.mrf.mxu0
      %v722 = vadd.f32 0.0, %v721
      %v723 = vpop.f32.mrf.mxu0
      %724 = vdwg.mxu0
      %725 = vst.msk [vmem:[#allocation3] sm:$0xff] %vm603, %v663
      %726 = vst.msk [vmem:[#allocation3 + $0x8] sm:$0xff] %vm603, %v666
      %727 = vst.msk [vmem:[#allocation3 + $0x10] sm:$0xff] %vm603, %v671
      %728 = vst.msk [vmem:[#allocation3 + $0x18] sm:$0xff] %vm603, %v674
      %729 = vst.msk [vmem:[#allocation3 + $0x20] sm:$0xff] %vm603, %v679
      %730 = vst.msk [vmem:[#allocation3 + $0x28] sm:$0xff] %vm603, %v682
      %731 = vst.msk [vmem:[#allocation3 + $0x30] sm:$0xff] %vm603, %v687
      %732 = vst.msk [vmem:[#allocation3 + $0x38] sm:$0xff] %vm603, %v690
      %733 = vst.msk [vmem:[#allocation3 + $0x40] sm:$0xff] %vm603, %v695
      %734 = vst.msk [vmem:[#allocation3 + $0x48] sm:$0xff] %vm603, %v698
      %735 = vst.msk [vmem:[#allocation3 + $0x50] sm:$0xff] %vm603, %v703
      %736 = vst.msk [vmem:[#allocation3 + $0x58] sm:$0xff] %vm603, %v706
      %737 = vst.msk [vmem:[#allocation3 + $0x60] sm:$0xff] %vm603, %v711
      %738 = vst.msk [vmem:[#allocation3 + $0x68] sm:$0xff] %vm603, %v714
      %739 = vst.msk [vmem:[#allocation3 + $0x70] sm:$0xff] %vm603, %v719
      %740 = vst.msk [vmem:[#allocation3 + $0x78] sm:$0xff] %vm603, %v722
      %s741 = sadd.s32 %s292, 12
      %s742 = smul.u32 %s741, 7
      %s743 = smul.addr %s742, 4
      %s744 = scalar_lea.vmem %s276, %s743
      %v745 = vld [vmem:[%s744 + $0x4] sm:$0xc]
      %v746 = vld [vmem:[%s744 + $0x8] sm:$0xf]
      %v747 = vld [vmem:[%s744 + $0xc] sm:$0x3]
      %v748 = vld [vmem:[%s744 + $0x20] sm:$0xc]
      %v749 = vld [vmem:[%s744 + $0x24] sm:$0xf]
      %v750 = vld [vmem:[%s744 + $0x28] sm:$0x3]
      %v751 = vld [vmem:[%s744 + $0x3c] sm:$0xc]
      %v752 = vld [vmem:[%s744 + $0x40] sm:$0xf]
      %v753 = vld [vmem:[%s744 + $0x44] sm:$0x3]
      %v754 = vld [vmem:[%s744 + $0x58] sm:$0xc]
      %v755 = vld [vmem:[%s744 + $0x5c] sm:$0xf]
      %v756 = vld [vmem:[%s744 + $0x60] sm:$0x3]
      %v757 = vld [vmem:[%s744 + $0x74] sm:$0xc]
      %v758 = vld [vmem:[%s744 + $0x78] sm:$0xf]
      %v759 = vld [vmem:[%s744 + $0x7c] sm:$0x3]
      %v760 = vld [vmem:[%s744 + $0x90] sm:$0xc]
      %v761 = vld [vmem:[%s744 + $0x94] sm:$0xf]
      %v762 = vld [vmem:[%s744 + $0x98] sm:$0x3]
      %v763 = vld [vmem:[%s744 + $0xac] sm:$0xc]
      %v764 = vld [vmem:[%s744 + $0xb0] sm:$0xf]
      %v765 = vld [vmem:[%s744 + $0xb4] sm:$0x3]
      %v766 = vld [vmem:[%s744 + $0xc8] sm:$0xc]
      %v767 = vld [vmem:[%s744 + $0xcc] sm:$0xf]
      %v768 = vld [vmem:[%s744 + $0xd0] sm:$0x3]
      %vm793 = vcmask 1041408
      %vm794 = vcmask 1045508
      %vm795 = vmor %vm793, %vm794
      %v796 = vrot.slane %v745, 6
      %v797 = vrot.slane %v796, 4
      %v798 = vrot.slane %v746, 6
      %v799 = vsel %vm795, %v797, %v798
      %v800 = vrot.slane %v798, 4
      %v801 = vrot.slane %v747, 6
      %v802 = vsel %vm795, %v800, %v801
      %v803 = vrot.slane %v748, 6
      %v804 = vrot.slane %v803, 4
      %v805 = vrot.slane %v749, 6
      %v806 = vsel %vm795, %v804, %v805
      %v807 = vrot.slane %v805, 4
      %v808 = vrot.slane %v750, 6
      %v809 = vsel %vm795, %v807, %v808
      %v810 = vrot.slane %v751, 6
      %v811 = vrot.slane %v810, 4
      %v812 = vrot.slane %v752, 6
      %v813 = vsel %vm795, %v811, %v812
      %v814 = vrot.slane %v812, 4
      %v815 = vrot.slane %v753, 6
      %v816 = vsel %vm795, %v814, %v815
      %v817 = vrot.slane %v754, 6
      %v818 = vrot.slane %v817, 4
      %v819 = vrot.slane %v755, 6
      %v820 = vsel %vm795, %v818, %v819
      %v821 = vrot.slane %v819, 4
      %v822 = vrot.slane %v756, 6
      %v823 = vsel %vm795, %v821, %v822
      %v824 = vrot.slane %v757, 6
      %v825 = vrot.slane %v824, 4
      %v826 = vrot.slane %v758, 6
      %v827 = vsel %vm795, %v825, %v826
      %v828 = vrot.slane %v826, 4
      %v829 = vrot.slane %v759, 6
      %v830 = vsel %vm795, %v828, %v829
      %v831 = vrot.slane %v760, 6
      %v832 = vrot.slane %v831, 4
      %v833 = vrot.slane %v761, 6
      %v834 = vsel %vm795, %v832, %v833
      %v835 = vrot.slane %v833, 4
      %v836 = vrot.slane %v762, 6
      %v837 = vsel %vm795, %v835, %v836
      %v838 = vrot.slane %v763, 6
      %v839 = vrot.slane %v838, 4
      %v840 = vrot.slane %v764, 6
      %v841 = vsel %vm795, %v839, %v840
      %v842 = vrot.slane %v840, 4
      %v843 = vrot.slane %v765, 6
      %v844 = vsel %vm795, %v842, %v843
      %v845 = vrot.slane %v766, 6
      %v846 = vrot.slane %v845, 4
      %v847 = vrot.slane %v767, 6
      %v848 = vsel %vm795, %v846, %v847
      %v849 = vrot.slane %v847, 4
      %v850 = vrot.slane %v768, 6
      %v851 = vsel %vm795, %v849, %v850
      %v852 = vld [vmem:[%s2] sm:$0xf]
      %v853 = vld [vmem:[%s2 + $0x4] sm:$0xf]
      %v854 = vld [vmem:[%s2 + $0x8] sm:$0xf]
      %v855 = vld [vmem:[%s2 + $0xc] sm:$0xf]
      %v856 = vunpack.c.l.b16 %v799
      %v857 = vunpack.c.l.b16 %v802
      %v858 = vunpack.c.l.b16 %v806
      %v859 = vunpack.c.l.b16 %v809
      %v860 = vunpack.c.l.b16 %v813
      %v861 = vunpack.c.l.b16 %v816
      %v862 = vunpack.c.l.b16 %v820
      %v863 = vunpack.c.l.b16 %v823
      %v864 = vunpack.c.l.b16 %v827
      %v865 = vunpack.c.l.b16 %v830
      %v866 = vunpack.c.l.b16 %v834
      %v867 = vunpack.c.l.b16 %v837
      %v868 = vunpack.c.l.b16 %v841
      %v869 = vunpack.c.l.b16 %v844
      %v870 = vunpack.c.l.b16 %v848
      %v871 = vunpack.c.l.b16 %v851
      %v872 = vpack.c.b16 %v857, %v856
      %v873 = vpack.c.b16 %v859, %v858
      %v874 = vpack.c.b16 %v861, %v860
      %v875 = vpack.c.b16 %v863, %v862
      %v876 = vpack.c.b16 %v865, %v864
      %v877 = vpack.c.b16 %v867, %v866
      %v878 = vpack.c.b16 %v869, %v868
      %v879 = vpack.c.b16 %v871, %v870
      %v884 = vunpack.c.l.b16 %v852
      %v885 = vunpack.c.l.b16 %v853
      %v886 = vunpack.c.l.b16 %v854
      %v887 = vunpack.c.l.b16 %v855
      %v888 = vpack.c.b16 %v885, %v884
      %v889 = vpack.c.b16 %v887, %v886
      %v893 = vsel %vm449, %v872, 0
      %v896 = vsel %vm449, %v873, 0
      %v899 = vsel %vm449, %v874, 0
      %v902 = vsel %vm449, %v875, 0
      %v905 = vsel %vm449, %v876, 0
      %v908 = vsel %vm449, %v877, 0
      %v911 = vsel %vm449, %v878, 0
      %v914 = vsel %vm449, %v879, 0
      %916 = vmatprep.subr.bf16.mxu0 0
      %917 = vmatpush1.bf16.msra.mxu0 0
      %918 = vmatprep.subr.bf16.mxu0 0
      %919 = vmatpush1.bf16.msra.mxu0 0
      %920 = vmatprep.subr.bf16.mxu0 0
      %921 = vmatpush1.bf16.msra.mxu0 0
      %922 = vmatprep.subr.bf16.mxu0 0
      %923 = vmatpush1.bf16.msra.mxu0 0
      %924 = vmatprep.subr.bf16.mxu0 0
      %925 = vmatpush1.bf16.msra.mxu0 0
      %926 = vmatprep.subr.bf16.mxu0 0
      %927 = vmatpush1.bf16.msra.mxu0 0
      %928 = vmatprep.subr.bf16.mxu0 0
      %929 = vmatpush1.bf16.msra.mxu0 %v889
      %930 = vmatprep.subr.bf16.mxu0 0
      %931 = vmatpush1.bf16.msra.mxu0 %v888
      %932 = vmatprep.subr.bf16.mxu0 0
      %933 = vmatpush2.bf16.msra.mxu0 0
      %934 = vmatprep.subr.bf16.mxu0 0
      %935 = vmatpush2.bf16.msra.mxu0 0
      %936 = vmatprep.subr.bf16.mxu0 0
      %937 = vmatpush2.bf16.msra.mxu0 0
      %938 = vmatprep.subr.bf16.mxu0 0
      %939 = vmatpush2.bf16.msra.mxu0 0
      %940 = vmatprep.subr.bf16.mxu0 0
      %941 = vmatpush2.bf16.msra.mxu0 0
      %942 = vmatprep.subr.bf16.mxu0 0
      %943 = vmatpush2.bf16.msra.mxu0 0
      %944 = vmatprep.subr.bf16.mxu0 0
      %945 = vmatpush2.bf16.msra.mxu0 0
      %946 = vmatprep.subr.bf16.mxu0 0
      %947 = vmatpush2.bf16.msra.mxu0 0
      %948 = vmatprep.mubr.bf16.mxu0 0
      %949 = vmatmul.mubr.bf16.gmra.mxu0 %v893
      %v950 = vpop.f32.mrf.mxu0
      %v951 = vadd.f32 0.0, %v950
      %v952 = vpop.f32.mrf.mxu0
      %v953 = vpop.f32.mrf.mxu0
      %v954 = vadd.f32 0.0, %v953
      %v955 = vpop.f32.mrf.mxu0
      %956 = vmatprep.mubr.bf16.mxu0 0
      %957 = vmatmul.mubr.bf16.gmra.mxu0 %v896
      %v958 = vpop.f32.mrf.mxu0
      %v959 = vadd.f32 0.0, %v958
      %v960 = vpop.f32.mrf.mxu0
      %v961 = vpop.f32.mrf.mxu0
      %v962 = vadd.f32 0.0, %v961
      %v963 = vpop.f32.mrf.mxu0
      %964 = vmatprep.mubr.bf16.mxu0 0
      %965 = vmatmul.mubr.bf16.gmra.mxu0 %v899
      %v966 = vpop.f32.mrf.mxu0
      %v967 = vadd.f32 0.0, %v966
      %v968 = vpop.f32.mrf.mxu0
      %v969 = vpop.f32.mrf.mxu0
      %v970 = vadd.f32 0.0, %v969
      %v971 = vpop.f32.mrf.mxu0
      %972 = vmatprep.mubr.bf16.mxu0 0
      %973 = vmatmul.mubr.bf16.gmra.mxu0 %v902
      %v974 = vpop.f32.mrf.mxu0
      %v975 = vadd.f32 0.0, %v974
      %v976 = vpop.f32.mrf.mxu0
      %v977 = vpop.f32.mrf.mxu0
      %v978 = vadd.f32 0.0, %v977
      %v979 = vpop.f32.mrf.mxu0
      %980 = vmatprep.mubr.bf16.mxu0 0
      %981 = vmatmul.mubr.bf16.gmra.mxu0 %v905
      %v982 = vpop.f32.mrf.mxu0
      %v983 = vadd.f32 0.0, %v982
      %v984 = vpop.f32.mrf.mxu0
      %v985 = vpop.f32.mrf.mxu0
      %v986 = vadd.f32 0.0, %v985
      %v987 = vpop.f32.mrf.mxu0
      %988 = vmatprep.mubr.bf16.mxu0 0
      %989 = vmatmul.mubr.bf16.gmra.mxu0 %v908
      %v990 = vpop.f32.mrf.mxu0
      %v991 = vadd.f32 0.0, %v990
      %v992 = vpop.f32.mrf.mxu0
      %v993 = vpop.f32.mrf.mxu0
      %v994 = vadd.f32 0.0, %v993
      %v995 = vpop.f32.mrf.mxu0
      %996 = vmatprep.mubr.bf16.mxu0 0
      %997 = vmatmul.mubr.bf16.gmra.mxu0 %v911
      %v998 = vpop.f32.mrf.mxu0
      %v999 = vadd.f32 0.0, %v998
      %v1000 = vpop.f32.mrf.mxu0
      %v1001 = vpop.f32.mrf.mxu0
      %v1002 = vadd.f32 0.0, %v1001
      %v1003 = vpop.f32.mrf.mxu0
      %1004 = vmatprep.mubr.bf16.mxu0 0
      %1005 = vmatmul.mubr.bf16.gmra.mxu0 %v914
      %v1006 = vpop.f32.mrf.mxu0
      %v1007 = vadd.f32 0.0, %v1006
      %v1008 = vpop.f32.mrf.mxu0
      %v1009 = vpop.f32.mrf.mxu0
      %v1010 = vadd.f32 0.0, %v1009
      %v1011 = vpop.f32.mrf.mxu0
      %1012 = vdwg.mxu0
      %1013 = vst.msk [vmem:[#allocation2] sm:$0xff] %vm603, %v951
      %1014 = vst.msk [vmem:[#allocation2 + $0x8] sm:$0xff] %vm603, %v954
      %1015 = vst.msk [vmem:[#allocation2 + $0x10] sm:$0xff] %vm603, %v959
      %1016 = vst.msk [vmem:[#allocation2 + $0x18] sm:$0xff] %vm603, %v962
      %1017 = vst.msk [vmem:[#allocation2 + $0x20] sm:$0xff] %vm603, %v967
      %1018 = vst.msk [vmem:[#allocation2 + $0x28] sm:$0xff] %vm603, %v970
      %1019 = vst.msk [vmem:[#allocation2 + $0x30] sm:$0xff] %vm603, %v975
      %1020 = vst.msk [vmem:[#allocation2 + $0x38] sm:$0xff] %vm603, %v978
      %1021 = vst.msk [vmem:[#allocation2 + $0x40] sm:$0xff] %vm603, %v983
      %1022 = vst.msk [vmem:[#allocation2 + $0x48] sm:$0xff] %vm603, %v986
      %1023 = vst.msk [vmem:[#allocation2 + $0x50] sm:$0xff] %vm603, %v991
      %1024 = vst.msk [vmem:[#allocation2 + $0x58] sm:$0xff] %vm603, %v994
      %1025 = vst.msk [vmem:[#allocation2 + $0x60] sm:$0xff] %vm603, %v999
      %1026 = vst.msk [vmem:[#allocation2 + $0x68] sm:$0xff] %vm603, %v1002
      %1027 = vst.msk [vmem:[#allocation2 + $0x70] sm:$0xff] %vm603, %v1007
      %1028 = vst.msk [vmem:[#allocation2 + $0x78] sm:$0xff] %vm603, %v1010
      %v1029 = vld [vmem:[%s744 + $0x8] sm:$0xe]
      %v1030 = vld [vmem:[%s744 + $0xc] sm:$0xf]
      %v1031 = vld [vmem:[%s744 + $0x10] sm:$0x1]
      %v1032 = vld [vmem:[%s744 + $0x24] sm:$0xe]
      %v1033 = vld [vmem:[%s744 + $0x28] sm:$0xf]
      %v1034 = vld [vmem:[%s744 + $0x2c] sm:$0x1]
      %v1035 = vld [vmem:[%s744 + $0x40] sm:$0xe]
      %v1036 = vld [vmem:[%s744 + $0x44] sm:$0xf]
      %v1037 = vld [vmem:[%s744 + $0x48] sm:$0x1]
      %v1038 = vld [vmem:[%s744 + $0x5c] sm:$0xe]
      %v1039 = vld [vmem:[%s744 + $0x60] sm:$0xf]
      %v1040 = vld [vmem:[%s744 + $0x64] sm:$0x1]
      %v1041 = vld [vmem:[%s744 + $0x78] sm:$0xe]
      %v1042 = vld [vmem:[%s744 + $0x7c] sm:$0xf]
      %v1043 = vld [vmem:[%s744 + $0x80] sm:$0x1]
      %v1044 = vld [vmem:[%s744 + $0x94] sm:$0xe]
      %v1045 = vld [vmem:[%s744 + $0x98] sm:$0xf]
      %v1046 = vld [vmem:[%s744 + $0x9c] sm:$0x1]
      %v1047 = vld [vmem:[%s744 + $0xb0] sm:$0xe]
      %v1048 = vld [vmem:[%s744 + $0xb4] sm:$0xf]
      %v1049 = vld [vmem:[%s744 + $0xb8] sm:$0x1]
      %v1050 = vld [vmem:[%s744 + $0xcc] sm:$0xe]
      %v1051 = vld [vmem:[%s744 + $0xd0] sm:$0xf]
      %v1052 = vld [vmem:[%s744 + $0xd4] sm:$0x1]
      %v1077 = vrot.slane %v1029, 5
      %v1078 = vrot.slane %v1077, 4
      %v1079 = vrot.slane %v1030, 5
      %v1080 = vsel %vm347, %v1078, %v1079
      %v1081 = vrot.slane %v1079, 4
      %v1082 = vrot.slane %v1031, 5
      %v1083 = vsel %vm347, %v1081, %v1082
      %v1084 = vrot.slane %v1032, 5
      %v1085 = vrot.slane %v1084, 4
      %v1086 = vrot.slane %v1033, 5
      %v1087 = vsel %vm347, %v1085, %v1086
      %v1088 = vrot.slane %v1086, 4
      %v1089 = vrot.slane %v1034, 5
      %v1090 = vsel %vm347, %v1088, %v1089
      %v1091 = vrot.slane %v1035, 5
      %v1092 = vrot.slane %v1091, 4
      %v1093 = vrot.slane %v1036, 5
      %v1094 = vsel %vm347, %v1092, %v1093
      %v1095 = vrot.slane %v1093, 4
      %v1096 = vrot.slane %v1037, 5
      %v1097 = vsel %vm347, %v1095, %v1096
      %v1098 = vrot.slane %v1038, 5
      %v1099 = vrot.slane %v1098, 4
      %v1100 = vrot.slane %v1039, 5
      %v1101 = vsel %vm347, %v1099, %v1100
      %v1102 = vrot.slane %v1100, 4
      %v1103 = vrot.slane %v1040, 5
      %v1104 = vsel %vm347, %v1102, %v1103
      %v1105 = vrot.slane %v1041, 5
      %v1106 = vrot.slane %v1105, 4
      %v1107 = vrot.slane %v1042, 5
      %v1108 = vsel %vm347, %v1106, %v1107
      %v1109 = vrot.slane %v1107, 4
      %v1110 = vrot.slane %v1043, 5
      %v1111 = vsel %vm347, %v1109, %v1110
      %v1112 = vrot.slane %v1044, 5
      %v1113 = vrot.slane %v1112, 4
      %v1114 = vrot.slane %v1045, 5
      %v1115 = vsel %vm347, %v1113, %v1114
      %v1116 = vrot.slane %v1114, 4
      %v1117 = vrot.slane %v1046, 5
      %v1118 = vsel %vm347, %v1116, %v1117
      %v1119 = vrot.slane %v1047, 5
      %v1120 = vrot.slane %v1119, 4
      %v1121 = vrot.slane %v1048, 5
      %v1122 = vsel %vm347, %v1120, %v1121
      %v1123 = vrot.slane %v1121, 4
      %v1124 = vrot.slane %v1049, 5
      %v1125 = vsel %vm347, %v1123, %v1124
      %v1126 = vrot.slane %v1050, 5
      %v1127 = vrot.slane %v1126, 4
      %v1128 = vrot.slane %v1051, 5
      %v1129 = vsel %vm347, %v1127, %v1128
      %v1130 = vrot.slane %v1128, 4
      %v1131 = vrot.slane %v1052, 5
      %v1132 = vsel %vm347, %v1130, %v1131
      %s1133 = scalar_lea.vmem %s2, 16
      %v1134 = vld [vmem:[%s1133] sm:$0xf]
      %v1135 = vld [vmem:[%s1133 + $0x4] sm:$0xf]
      %v1136 = vld [vmem:[%s1133 + $0x8] sm:$0xf]
      %v1137 = vld [vmem:[%s1133 + $0xc] sm:$0xf]
      %v1138 = vunpack.c.l.b16 %v1080
      %v1139 = vunpack.c.l.b16 %v1083
      %v1140 = vunpack.c.l.b16 %v1087
      %v1141 = vunpack.c.l.b16 %v1090
      %v1142 = vunpack.c.l.b16 %v1094
      %v1143 = vunpack.c.l.b16 %v1097
      %v1144 = vunpack.c.l.b16 %v1101
      %v1145 = vunpack.c.l.b16 %v1104
      %v1146 = vunpack.c.l.b16 %v1108
      %v1147 = vunpack.c.l.b16 %v1111
      %v1148 = vunpack.c.l.b16 %v1115
      %v1149 = vunpack.c.l.b16 %v1118
      %v1150 = vunpack.c.l.b16 %v1122
      %v1151 = vunpack.c.l.b16 %v1125
      %v1152 = vunpack.c.l.b16 %v1129
      %v1153 = vunpack.c.l.b16 %v1132
      %v1154 = vpack.c.b16 %v1139, %v1138
      %v1155 = vpack.c.b16 %v1141, %v1140
      %v1156 = vpack.c.b16 %v1143, %v1142
      %v1157 = vpack.c.b16 %v1145, %v1144
      %v1158 = vpack.c.b16 %v1147, %v1146
      %v1159 = vpack.c.b16 %v1149, %v1148
      %v1160 = vpack.c.b16 %v1151, %v1150
      %v1161 = vpack.c.b16 %v1153, %v1152
      %v1166 = vunpack.c.l.b16 %v1134
      %v1167 = vunpack.c.l.b16 %v1135
      %v1168 = vunpack.c.l.b16 %v1136
      %v1169 = vunpack.c.l.b16 %v1137
      %v1170 = vpack.c.b16 %v1167, %v1166
      %v1171 = vpack.c.b16 %v1169, %v1168
      %v1175 = vsel %vm449, %v1154, 0
      %v1178 = vsel %vm449, %v1155, 0
      %v1181 = vsel %vm449, %v1156, 0
      %v1184 = vsel %vm449, %v1157, 0
      %v1187 = vsel %vm449, %v1158, 0
      %v1190 = vsel %vm449, %v1159, 0
      %v1193 = vsel %vm449, %v1160, 0
      %v1196 = vsel %vm449, %v1161, 0
      %1198 = vmatprep.subr.bf16.mxu0 0
      %1199 = vmatpush1.bf16.msra.mxu0 0
      %1200 = vmatprep.subr.bf16.mxu0 0
      %1201 = vmatpush1.bf16.msra.mxu0 0
      %1202 = vmatprep.subr.bf16.mxu0 0
      %1203 = vmatpush1.bf16.msra.mxu0 0
      %1204 = vmatprep.subr.bf16.mxu0 0
      %1205 = vmatpush1.bf16.msra.mxu0 0
      %1206 = vmatprep.subr.bf16.mxu0 0
      %1207 = vmatpush1.bf16.msra.mxu0 0
      %1208 = vmatprep.subr.bf16.mxu0 0
      %1209 = vmatpush1.bf16.msra.mxu0 0
      %1210 = vmatprep.subr.bf16.mxu0 0
      %1211 = vmatpush1.bf16.msra.mxu0 %v1171
      %1212 = vmatprep.subr.bf16.mxu0 0
      %1213 = vmatpush1.bf16.msra.mxu0 %v1170
      %1214 = vmatprep.subr.bf16.mxu0 0
      %1215 = vmatpush2.bf16.msra.mxu0 0
      %1216 = vmatprep.subr.bf16.mxu0 0
      %1217 = vmatpush2.bf16.msra.mxu0 0
      %1218 = vmatprep.subr.bf16.mxu0 0
      %1219 = vmatpush2.bf16.msra.mxu0 0
      %1220 = vmatprep.subr.bf16.mxu0 0
      %1221 = vmatpush2.bf16.msra.mxu0 0
      %1222 = vmatprep.subr.bf16.mxu0 0
      %1223 = vmatpush2.bf16.msra.mxu0 0
      %1224 = vmatprep.subr.bf16.mxu0 0
      %1225 = vmatpush2.bf16.msra.mxu0 0
      %1226 = vmatprep.subr.bf16.mxu0 0
      %1227 = vmatpush2.bf16.msra.mxu0 0
      %1228 = vmatprep.subr.bf16.mxu0 0
      %1229 = vmatpush2.bf16.msra.mxu0 0
      %1230 = vmatprep.mubr.bf16.mxu0 0
      %1231 = vmatmul.mubr.bf16.gmra.mxu0 %v1175
      %v1232 = vpop.f32.mrf.mxu0
      %v1233 = vadd.f32 0.0, %v1232
      %v1234 = vpop.f32.mrf.mxu0
      %v1235 = vpop.f32.mrf.mxu0
      %v1236 = vadd.f32 0.0, %v1235
      %v1237 = vpop.f32.mrf.mxu0
      %1238 = vmatprep.mubr.bf16.mxu0 0
      %1239 = vmatmul.mubr.bf16.gmra.mxu0 %v1178
      %v1240 = vpop.f32.mrf.mxu0
      %v1241 = vadd.f32 0.0, %v1240
      %v1242 = vpop.f32.mrf.mxu0
      %v1243 = vpop.f32.mrf.mxu0
      %v1244 = vadd.f32 0.0, %v1243
      %v1245 = vpop.f32.mrf.mxu0
      %1246 = vmatprep.mubr.bf16.mxu0 0
      %1247 = vmatmul.mubr.bf16.gmra.mxu0 %v1181
      %v1248 = vpop.f32.mrf.mxu0
      %v1249 = vadd.f32 0.0, %v1248
      %v1250 = vpop.f32.mrf.mxu0
      %v1251 = vpop.f32.mrf.mxu0
      %v1252 = vadd.f32 0.0, %v1251
      %v1253 = vpop.f32.mrf.mxu0
      %1254 = vmatprep.mubr.bf16.mxu0 0
      %1255 = vmatmul.mubr.bf16.gmra.mxu0 %v1184
      %v1256 = vpop.f32.mrf.mxu0
      %v1257 = vadd.f32 0.0, %v1256
      %v1258 = vpop.f32.mrf.mxu0
      %v1259 = vpop.f32.mrf.mxu0
      %v1260 = vadd.f32 0.0, %v1259
      %v1261 = vpop.f32.mrf.mxu0
      %1262 = vmatprep.mubr.bf16.mxu0 0
      %1263 = vmatmul.mubr.bf16.gmra.mxu0 %v1187
      %v1264 = vpop.f32.mrf.mxu0
      %v1265 = vadd.f32 0.0, %v1264
      %v1266 = vpop.f32.mrf.mxu0
      %v1267 = vpop.f32.mrf.mxu0
      %v1268 = vadd.f32 0.0, %v1267
      %v1269 = vpop.f32.mrf.mxu0
      %1270 = vmatprep.mubr.bf16.mxu0 0
      %1271 = vmatmul.mubr.bf16.gmra.mxu0 %v1190
      %v1272 = vpop.f32.mrf.mxu0
      %v1273 = vadd.f32 0.0, %v1272
      %v1274 = vpop.f32.mrf.mxu0
      %v1275 = vpop.f32.mrf.mxu0
      %v1276 = vadd.f32 0.0, %v1275
      %v1277 = vpop.f32.mrf.mxu0
      %1278 = vmatprep.mubr.bf16.mxu0 0
      %1279 = vmatmul.mubr.bf16.gmra.mxu0 %v1193
      %v1280 = vpop.f32.mrf.mxu0
      %v1281 = vadd.f32 0.0, %v1280
      %v1282 = vpop.f32.mrf.mxu0
      %v1283 = vpop.f32.mrf.mxu0
      %v1284 = vadd.f32 0.0, %v1283
      %v1285 = vpop.f32.mrf.mxu0
      %1286 = vmatprep.mubr.bf16.mxu0 0
      %1287 = vmatmul.mubr.bf16.gmra.mxu0 %v1196
      %v1288 = vpop.f32.mrf.mxu0
      %v1289 = vadd.f32 0.0, %v1288
      %v1290 = vpop.f32.mrf.mxu0
      %v1291 = vpop.f32.mrf.mxu0
      %v1292 = vadd.f32 0.0, %v1291
      %v1293 = vpop.f32.mrf.mxu0
      %1294 = vdwg.mxu0
      %v1295 = vld [vmem:[#allocation2] sm:$0xff]
      %v1296 = vld [vmem:[#allocation2 + $0x8] sm:$0xff]
      %v1297 = vld [vmem:[#allocation2 + $0x10] sm:$0xff]
      %v1298 = vld [vmem:[#allocation2 + $0x18] sm:$0xff]
      %v1299 = vld [vmem:[#allocation2 + $0x20] sm:$0xff]
      %v1300 = vld [vmem:[#allocation2 + $0x28] sm:$0xff]
      %v1301 = vld [vmem:[#allocation2 + $0x30] sm:$0xff]
      %v1302 = vld [vmem:[#allocation2 + $0x38] sm:$0xff]
      %v1303 = vld [vmem:[#allocation2 + $0x40] sm:$0xff]
      %v1304 = vld [vmem:[#allocation2 + $0x48] sm:$0xff]
      %v1305 = vld [vmem:[#allocation2 + $0x50] sm:$0xff]
      %v1306 = vld [vmem:[#allocation2 + $0x58] sm:$0xff]
      %v1307 = vld [vmem:[#allocation2 + $0x60] sm:$0xff]
      %v1308 = vld [vmem:[#allocation2 + $0x68] sm:$0xff]
      %v1309 = vld [vmem:[#allocation2 + $0x70] sm:$0xff]
      %v1310 = vld [vmem:[#allocation2 + $0x78] sm:$0xff]
      %v1311 = vadd.f32 %v1295, %v1233
      %v1312 = vadd.f32 %v1296, %v1236
      %v1313 = vadd.f32 %v1297, %v1241
      %v1314 = vadd.f32 %v1298, %v1244
      %v1315 = vadd.f32 %v1299, %v1249
      %v1316 = vadd.f32 %v1300, %v1252
      %v1317 = vadd.f32 %v1301, %v1257
      %v1318 = vadd.f32 %v1302, %v1260
      %v1319 = vadd.f32 %v1303, %v1265
      %v1320 = vadd.f32 %v1304, %v1268
      %v1321 = vadd.f32 %v1305, %v1273
      %v1322 = vadd.f32 %v1306, %v1276
      %v1323 = vadd.f32 %v1307, %v1281
      %v1324 = vadd.f32 %v1308, %v1284
      %v1325 = vadd.f32 %v1309, %v1289
      %v1326 = vadd.f32 %v1310, %v1292
      %1327 = vst.msk [vmem:[#allocation2] sm:$0xff] %vm603, %v1311
      %1328 = vst.msk [vmem:[#allocation2 + $0x8] sm:$0xff] %vm603, %v1312
      %1329 = vst.msk [vmem:[#allocation2 + $0x10] sm:$0xff] %vm603, %v1313
      %1330 = vst.msk [vmem:[#allocation2 + $0x18] sm:$0xff] %vm603, %v1314
      %1331 = vst.msk [vmem:[#allocation2 + $0x20] sm:$0xff] %vm603, %v1315
      %1332 = vst.msk [vmem:[#allocation2 + $0x28] sm:$0xff] %vm603, %v1316
      %1333 = vst.msk [vmem:[#allocation2 + $0x30] sm:$0xff] %vm603, %v1317
      %1334 = vst.msk [vmem:[#allocation2 + $0x38] sm:$0xff] %vm603, %v1318
      %1335 = vst.msk [vmem:[#allocation2 + $0x40] sm:$0xff] %vm603, %v1319
      %1336 = vst.msk [vmem:[#allocation2 + $0x48] sm:$0xff] %vm603, %v1320
      %1337 = vst.msk [vmem:[#allocation2 + $0x50] sm:$0xff] %vm603, %v1321
      %1338 = vst.msk [vmem:[#allocation2 + $0x58] sm:$0xff] %vm603, %v1322
      %1339 = vst.msk [vmem:[#allocation2 + $0x60] sm:$0xff] %vm603, %v1323
      %1340 = vst.msk [vmem:[#allocation2 + $0x68] sm:$0xff] %vm603, %v1324
      %1341 = vst.msk [vmem:[#allocation2 + $0x70] sm:$0xff] %vm603, %v1325
      %1342 = vst.msk [vmem:[#allocation2 + $0x78] sm:$0xff] %vm603, %v1326
      %v1343 = vld [vmem:[%s744 + $0xc] sm:$0xf]
      %v1344 = vld [vmem:[%s744 + $0x10] sm:$0xf]
      %v1345 = vld [vmem:[%s744 + $0x28] sm:$0xf]
      %v1346 = vld [vmem:[%s744 + $0x2c] sm:$0xf]
      %v1347 = vld [vmem:[%s744 + $0x44] sm:$0xf]
      %v1348 = vld [vmem:[%s744 + $0x48] sm:$0xf]
      %v1349 = vld [vmem:[%s744 + $0x60] sm:$0xf]
      %v1350 = vld [vmem:[%s744 + $0x64] sm:$0xf]
      %v1351 = vld [vmem:[%s744 + $0x7c] sm:$0xf]
      %v1352 = vld [vmem:[%s744 + $0x80] sm:$0xf]
      %v1353 = vld [vmem:[%s744 + $0x98] sm:$0xf]
      %v1354 = vld [vmem:[%s744 + $0x9c] sm:$0xf]
      %v1355 = vld [vmem:[%s744 + $0xb4] sm:$0xf]
      %v1356 = vld [vmem:[%s744 + $0xb8] sm:$0xf]
      %v1357 = vld [vmem:[%s744 + $0xd0] sm:$0xf]
      %v1358 = vld [vmem:[%s744 + $0xd4] sm:$0xf]
      %s1359 = scalar_lea.vmem %s2, 32
      %v1360 = vld [vmem:[%s1359] sm:$0xf]
      %v1361 = vld [vmem:[%s1359 + $0x4] sm:$0xf]
      %v1362 = vld [vmem:[%s1359 + $0x8] sm:$0xf]
      %v1363 = vld [vmem:[%s1359 + $0xc] sm:$0xf]
      %v1380 = vunpack.c.l.b16 %v1343
      %v1381 = vunpack.c.l.b16 %v1344
      %v1382 = vunpack.c.l.b16 %v1345
      %v1383 = vunpack.c.l.b16 %v1346
      %v1384 = vunpack.c.l.b16 %v1347
      %v1385 = vunpack.c.l.b16 %v1348
      %v1386 = vunpack.c.l.b16 %v1349
      %v1387 = vunpack.c.l.b16 %v1350
      %v1388 = vunpack.c.l.b16 %v1351
      %v1389 = vunpack.c.l.b16 %v1352
      %v1390 = vunpack.c.l.b16 %v1353
      %v1391 = vunpack.c.l.b16 %v1354
      %v1392 = vunpack.c.l.b16 %v1355
      %v1393 = vunpack.c.l.b16 %v1356
      %v1394 = vunpack.c.l.b16 %v1357
      %v1395 = vunpack.c.l.b16 %v1358
      %v1396 = vpack.c.b16 %v1381, %v1380
      %v1397 = vpack.c.b16 %v1383, %v1382
      %v1398 = vpack.c.b16 %v1385, %v1384
      %v1399 = vpack.c.b16 %v1387, %v1386
      %v1400 = vpack.c.b16 %v1389, %v1388
      %v1401 = vpack.c.b16 %v1391, %v1390
      %v1402 = vpack.c.b16 %v1393, %v1392
      %v1403 = vpack.c.b16 %v1395, %v1394
      %v1408 = vunpack.c.l.b16 %v1360
      %v1409 = vunpack.c.l.b16 %v1361
      %v1410 = vunpack.c.l.b16 %v1362
      %v1411 = vunpack.c.l.b16 %v1363
      %v1412 = vpack.c.b16 %v1409, %v1408
      %v1413 = vpack.c.b16 %v1411, %v1410
      %v1417 = vsel %vm449, %v1396, 0
      %v1420 = vsel %vm449, %v1397, 0
      %v1423 = vsel %vm449, %v1398, 0
      %v1426 = vsel %vm449, %v1399, 0
      %v1429 = vsel %vm449, %v1400, 0
      %v1432 = vsel %vm449, %v1401, 0
      %v1435 = vsel %vm449, %v1402, 0
      %v1438 = vsel %vm449, %v1403, 0
      %1440 = vmatprep.subr.bf16.mxu0 0
      %1441 = vmatpush1.bf16.msra.mxu0 0
      %1442 = vmatprep.subr.bf16.mxu0 0
      %1443 = vmatpush1.bf16.msra.mxu0 0
      %1444 = vmatprep.subr.bf16.mxu0 0
      %1445 = vmatpush1.bf16.msra.mxu0 0
      %1446 = vmatprep.subr.bf16.mxu0 0
      %1447 = vmatpush1.bf16.msra.mxu0 0
      %1448 = vmatprep.subr.bf16.mxu0 0
      %1449 = vmatpush1.bf16.msra.mxu0 0
      %1450 = vmatprep.subr.bf16.mxu0 0
      %1451 = vmatpush1.bf16.msra.mxu0 0
      %1452 = vmatprep.subr.bf16.mxu0 0
      %1453 = vmatpush1.bf16.msra.mxu0 %v1413
      %1454 = vmatprep.subr.bf16.mxu0 0
      %1455 = vmatpush1.bf16.msra.mxu0 %v1412
      %1456 = vmatprep.subr.bf16.mxu0 0
      %1457 = vmatpush2.bf16.msra.mxu0 0
      %1458 = vmatprep.subr.bf16.mxu0 0
      %1459 = vmatpush2.bf16.msra.mxu0 0
      %1460 = vmatprep.subr.bf16.mxu0 0
      %1461 = vmatpush2.bf16.msra.mxu0 0
      %1462 = vmatprep.subr.bf16.mxu0 0
      %1463 = vmatpush2.bf16.msra.mxu0 0
      %1464 = vmatprep.subr.bf16.mxu0 0
      %1465 = vmatpush2.bf16.msra.mxu0 0
      %1466 = vmatprep.subr.bf16.mxu0 0
      %1467 = vmatpush2.bf16.msra.mxu0 0
      %1468 = vmatprep.subr.bf16.mxu0 0
      %1469 = vmatpush2.bf16.msra.mxu0 0
      %1470 = vmatprep.subr.bf16.mxu0 0
      %1471 = vmatpush2.bf16.msra.mxu0 0
      %1472 = vmatprep.mubr.bf16.mxu0 0
      %1473 = vmatmul.mubr.bf16.gmra.mxu0 %v1417
      %v1474 = vpop.f32.mrf.mxu0
      %v1475 = vadd.f32 0.0, %v1474
      %v1476 = vpop.f32.mrf.mxu0
      %v1477 = vpop.f32.mrf.mxu0
      %v1478 = vadd.f32 0.0, %v1477
      %v1479 = vpop.f32.mrf.mxu0
      %1480 = vmatprep.mubr.bf16.mxu0 0
      %1481 = vmatmul.mubr.bf16.gmra.mxu0 %v1420
      %v1482 = vpop.f32.mrf.mxu0
      %v1483 = vadd.f32 0.0, %v1482
      %v1484 = vpop.f32.mrf.mxu0
      %v1485 = vpop.f32.mrf.mxu0
      %v1486 = vadd.f32 0.0, %v1485
      %v1487 = vpop.f32.mrf.mxu0
      %1488 = vmatprep.mubr.bf16.mxu0 0
      %1489 = vmatmul.mubr.bf16.gmra.mxu0 %v1423
      %v1490 = vpop.f32.mrf.mxu0
      %v1491 = vadd.f32 0.0, %v1490
      %v1492 = vpop.f32.mrf.mxu0
      %v1493 = vpop.f32.mrf.mxu0
      %v1494 = vadd.f32 0.0, %v1493
      %v1495 = vpop.f32.mrf.mxu0
      %1496 = vmatprep.mubr.bf16.mxu0 0
      %1497 = vmatmul.mubr.bf16.gmra.mxu0 %v1426
      %v1498 = vpop.f32.mrf.mxu0
      %v1499 = vadd.f32 0.0, %v1498
      %v1500 = vpop.f32.mrf.mxu0
      %v1501 = vpop.f32.mrf.mxu0
      %v1502 = vadd.f32 0.0, %v1501
      %v1503 = vpop.f32.mrf.mxu0
      %1504 = vmatprep.mubr.bf16.mxu0 0
      %1505 = vmatmul.mubr.bf16.gmra.mxu0 %v1429
      %v1506 = vpop.f32.mrf.mxu0
      %v1507 = vadd.f32 0.0, %v1506
      %v1508 = vpop.f32.mrf.mxu0
      %v1509 = vpop.f32.mrf.mxu0
      %v1510 = vadd.f32 0.0, %v1509
      %v1511 = vpop.f32.mrf.mxu0
      %1512 = vmatprep.mubr.bf16.mxu0 0
      %1513 = vmatmul.mubr.bf16.gmra.mxu0 %v1432
      %v1514 = vpop.f32.mrf.mxu0
      %v1515 = vadd.f32 0.0, %v1514
      %v1516 = vpop.f32.mrf.mxu0
      %v1517 = vpop.f32.mrf.mxu0
      %v1518 = vadd.f32 0.0, %v1517
      %v1519 = vpop.f32.mrf.mxu0
      %1520 = vmatprep.mubr.bf16.mxu0 0
      %1521 = vmatmul.mubr.bf16.gmra.mxu0 %v1435
      %v1522 = vpop.f32.mrf.mxu0
      %v1523 = vadd.f32 0.0, %v1522
      %v1524 = vpop.f32.mrf.mxu0
      %v1525 = vpop.f32.mrf.mxu0
      %v1526 = vadd.f32 0.0, %v1525
      %v1527 = vpop.f32.mrf.mxu0
      %1528 = vmatprep.mubr.bf16.mxu0 0
      %1529 = vmatmul.mubr.bf16.gmra.mxu0 %v1438
      %v1530 = vpop.f32.mrf.mxu0
      %v1531 = vadd.f32 0.0, %v1530
      %v1532 = vpop.f32.mrf.mxu0
      %v1533 = vpop.f32.mrf.mxu0
      %v1534 = vadd.f32 0.0, %v1533
      %v1535 = vpop.f32.mrf.mxu0
      %1536 = vdwg.mxu0
      %v1537 = vld [vmem:[#allocation2] sm:$0xff]
      %v1538 = vld [vmem:[#allocation2 + $0x8] sm:$0xff]
      %v1539 = vld [vmem:[#allocation2 + $0x10] sm:$0xff]
      %v1540 = vld [vmem:[#allocation2 + $0x18] sm:$0xff]
      %v1541 = vld [vmem:[#allocation2 + $0x20] sm:$0xff]
      %v1542 = vld [vmem:[#allocation2 + $0x28] sm:$0xff]
      %v1543 = vld [vmem:[#allocation2 + $0x30] sm:$0xff]
      %v1544 = vld [vmem:[#allocation2 + $0x38] sm:$0xff]
      %v1545 = vld [vmem:[#allocation2 + $0x40] sm:$0xff]
      %v1546 = vld [vmem:[#allocation2 + $0x48] sm:$0xff]
      %v1547 = vld [vmem:[#allocation2 + $0x50] sm:$0xff]
      %v1548 = vld [vmem:[#allocation2 + $0x58] sm:$0xff]
      %v1549 = vld [vmem:[#allocation2 + $0x60] sm:$0xff]
      %v1550 = vld [vmem:[#allocation2 + $0x68] sm:$0xff]
      %v1551 = vld [vmem:[#allocation2 + $0x70] sm:$0xff]
      %v1552 = vld [vmem:[#allocation2 + $0x78] sm:$0xff]
      %v1553 = vadd.f32 %v1537, %v1475
      %v1554 = vadd.f32 %v1538, %v1478
      %v1555 = vadd.f32 %v1539, %v1483
      %v1556 = vadd.f32 %v1540, %v1486
      %v1557 = vadd.f32 %v1541, %v1491
      %v1558 = vadd.f32 %v1542, %v1494
      %v1559 = vadd.f32 %v1543, %v1499
      %v1560 = vadd.f32 %v1544, %v1502
      %v1561 = vadd.f32 %v1545, %v1507
      %v1562 = vadd.f32 %v1546, %v1510
      %v1563 = vadd.f32 %v1547, %v1515
      %v1564 = vadd.f32 %v1548, %v1518
      %v1565 = vadd.f32 %v1549, %v1523
      %v1566 = vadd.f32 %v1550, %v1526
      %v1567 = vadd.f32 %v1551, %v1531
      %v1568 = vadd.f32 %v1552, %v1534
      %1569 = vst.msk [vmem:[#allocation2] sm:$0xff] %vm603, %v1553
      %1570 = vst.msk [vmem:[#allocation2 + $0x8] sm:$0xff] %vm603, %v1554
      %1571 = vst.msk [vmem:[#allocation2 + $0x10] sm:$0xff] %vm603, %v1555
      %1572 = vst.msk [vmem:[#allocation2 + $0x18] sm:$0xff] %vm603, %v1556
      %1573 = vst.msk [vmem:[#allocation2 + $0x20] sm:$0xff] %vm603, %v1557
      %1574 = vst.msk [vmem:[#allocation2 + $0x28] sm:$0xff] %vm603, %v1558
      %1575 = vst.msk [vmem:[#allocation2 + $0x30] sm:$0xff] %vm603, %v1559
      %1576 = vst.msk [vmem:[#allocation2 + $0x38] sm:$0xff] %vm603, %v1560
      %1577 = vst.msk [vmem:[#allocation2 + $0x40] sm:$0xff] %vm603, %v1561
      %1578 = vst.msk [vmem:[#allocation2 + $0x48] sm:$0xff] %vm603, %v1562
      %1579 = vst.msk [vmem:[#allocation2 + $0x50] sm:$0xff] %vm603, %v1563
      %1580 = vst.msk [vmem:[#allocation2 + $0x58] sm:$0xff] %vm603, %v1564
      %1581 = vst.msk [vmem:[#allocation2 + $0x60] sm:$0xff] %vm603, %v1565
      %1582 = vst.msk [vmem:[#allocation2 + $0x68] sm:$0xff] %vm603, %v1566
      %1583 = vst.msk [vmem:[#allocation2 + $0x70] sm:$0xff] %vm603, %v1567
      %1584 = vst.msk [vmem:[#allocation2 + $0x78] sm:$0xff] %vm603, %v1568
      %v1585 = vld [vmem:[%s296 + $0x4] sm:$0xc]
      %v1586 = vld [vmem:[%s296 + $0x8] sm:$0xf]
      %v1587 = vld [vmem:[%s296 + $0xc] sm:$0x3]
      %v1588 = vld [vmem:[%s296 + $0x20] sm:$0xc]
      %v1589 = vld [vmem:[%s296 + $0x24] sm:$0xf]
      %v1590 = vld [vmem:[%s296 + $0x28] sm:$0x3]
      %v1591 = vld [vmem:[%s296 + $0x3c] sm:$0xc]
      %v1592 = vld [vmem:[%s296 + $0x40] sm:$0xf]
      %v1593 = vld [vmem:[%s296 + $0x44] sm:$0x3]
      %v1594 = vld [vmem:[%s296 + $0x58] sm:$0xc]
      %v1595 = vld [vmem:[%s296 + $0x5c] sm:$0xf]
      %v1596 = vld [vmem:[%s296 + $0x60] sm:$0x3]
      %v1597 = vld [vmem:[%s296 + $0x74] sm:$0xc]
      %v1598 = vld [vmem:[%s296 + $0x78] sm:$0xf]
      %v1599 = vld [vmem:[%s296 + $0x7c] sm:$0x3]
      %v1600 = vld [vmem:[%s296 + $0x90] sm:$0xc]
      %v1601 = vld [vmem:[%s296 + $0x94] sm:$0xf]
      %v1602 = vld [vmem:[%s296 + $0x98] sm:$0x3]
      %v1603 = vld [vmem:[%s296 + $0xac] sm:$0xc]
      %v1604 = vld [vmem:[%s296 + $0xb0] sm:$0xf]
      %v1605 = vld [vmem:[%s296 + $0xb4] sm:$0x3]
      %v1606 = vld [vmem:[%s296 + $0xc8] sm:$0xc]
      %v1607 = vld [vmem:[%s296 + $0xcc] sm:$0xf]
      %v1608 = vld [vmem:[%s296 + $0xd0] sm:$0x3]
      %v1633 = vrot.slane %v1585, 6
      %v1634 = vrot.slane %v1633, 4
      %v1635 = vrot.slane %v1586, 6
      %v1636 = vsel %vm795, %v1634, %v1635
      %v1637 = vrot.slane %v1635, 4
      %v1638 = vrot.slane %v1587, 6
      %v1639 = vsel %vm795, %v1637, %v1638
      %v1640 = vrot.slane %v1588, 6
      %v1641 = vrot.slane %v1640, 4
      %v1642 = vrot.slane %v1589, 6
      %v1643 = vsel %vm795, %v1641, %v1642
      %v1644 = vrot.slane %v1642, 4
      %v1645 = vrot.slane %v1590, 6
      %v1646 = vsel %vm795, %v1644, %v1645
      %v1647 = vrot.slane %v1591, 6
      %v1648 = vrot.slane %v1647, 4
      %v1649 = vrot.slane %v1592, 6
      %v1650 = vsel %vm795, %v1648, %v1649
      %v1651 = vrot.slane %v1649, 4
      %v1652 = vrot.slane %v1593, 6
      %v1653 = vsel %vm795, %v1651, %v1652
      %v1654 = vrot.slane %v1594, 6
      %v1655 = vrot.slane %v1654, 4
      %v1656 = vrot.slane %v1595, 6
      %v1657 = vsel %vm795, %v1655, %v1656
      %v1658 = vrot.slane %v1656, 4
      %v1659 = vrot.slane %v1596, 6
      %v1660 = vsel %vm795, %v1658, %v1659
      %v1661 = vrot.slane %v1597, 6
      %v1662 = vrot.slane %v1661, 4
      %v1663 = vrot.slane %v1598, 6
      %v1664 = vsel %vm795, %v1662, %v1663
      %v1665 = vrot.slane %v1663, 4
      %v1666 = vrot.slane %v1599, 6
      %v1667 = vsel %vm795, %v1665, %v1666
      %v1668 = vrot.slane %v1600, 6
      %v1669 = vrot.slane %v1668, 4
      %v1670 = vrot.slane %v1601, 6
      %v1671 = vsel %vm795, %v1669, %v1670
      %v1672 = vrot.slane %v1670, 4
      %v1673 = vrot.slane %v1602, 6
      %v1674 = vsel %vm795, %v1672, %v1673
      %v1675 = vrot.slane %v1603, 6
      %v1676 = vrot.slane %v1675, 4
      %v1677 = vrot.slane %v1604, 6
      %v1678 = vsel %vm795, %v1676, %v1677
      %v1679 = vrot.slane %v1677, 4
      %v1680 = vrot.slane %v1605, 6
      %v1681 = vsel %vm795, %v1679, %v1680
      %v1682 = vrot.slane %v1606, 6
      %v1683 = vrot.slane %v1682, 4
      %v1684 = vrot.slane %v1607, 6
      %v1685 = vsel %vm795, %v1683, %v1684
      %v1686 = vrot.slane %v1684, 4
      %v1687 = vrot.slane %v1608, 6
      %v1688 = vsel %vm795, %v1686, %v1687
      %s1689 = scalar_lea.vmem %s2, 48
      %v1690 = vld [vmem:[%s1689] sm:$0xf]
      %v1691 = vld [vmem:[%s1689 + $0x4] sm:$0xf]
      %v1692 = vld [vmem:[%s1689 + $0x8] sm:$0xf]
      %v1693 = vld [vmem:[%s1689 + $0xc] sm:$0xf]
      %v1694 = vunpack.c.l.b16 %v1636
      %v1695 = vunpack.c.l.b16 %v1639
      %v1696 = vunpack.c.l.b16 %v1643
      %v1697 = vunpack.c.l.b16 %v1646
      %v1698 = vunpack.c.l.b16 %v1650
      %v1699 = vunpack.c.l.b16 %v1653
      %v1700 = vunpack.c.l.b16 %v1657
      %v1701 = vunpack.c.l.b16 %v1660
      %v1702 = vunpack.c.l.b16 %v1664
      %v1703 = vunpack.c.l.b16 %v1667
      %v1704 = vunpack.c.l.b16 %v1671
      %v1705 = vunpack.c.l.b16 %v1674
      %v1706 = vunpack.c.l.b16 %v1678
      %v1707 = vunpack.c.l.b16 %v1681
      %v1708 = vunpack.c.l.b16 %v1685
      %v1709 = vunpack.c.l.b16 %v1688
      %v1710 = vpack.c.b16 %v1695, %v1694
      %v1711 = vpack.c.b16 %v1697, %v1696
      %v1712 = vpack.c.b16 %v1699, %v1698
      %v1713 = vpack.c.b16 %v1701, %v1700
      %v1714 = vpack.c.b16 %v1703, %v1702
      %v1715 = vpack.c.b16 %v1705, %v1704
      %v1716 = vpack.c.b16 %v1707, %v1706
      %v1717 = vpack.c.b16 %v1709, %v1708
      %v1722 = vunpack.c.l.b16 %v1690
      %v1723 = vunpack.c.l.b16 %v1691
      %v1724 = vunpack.c.l.b16 %v1692
      %v1725 = vunpack.c.l.b16 %v1693
      %v1726 = vpack.c.b16 %v1723, %v1722
      %v1727 = vpack.c.b16 %v1725, %v1724
      %v1731 = vsel %vm449, %v1710, 0
      %v1734 = vsel %vm449, %v1711, 0
      %v1737 = vsel %vm449, %v1712, 0
      %v1740 = vsel %vm449, %v1713, 0
      %v1743 = vsel %vm449, %v1714, 0
      %v1746 = vsel %vm449, %v1715, 0
      %v1749 = vsel %vm449, %v1716, 0
      %v1752 = vsel %vm449, %v1717, 0
      %1754 = vmatprep.subr.bf16.mxu0 0
      %1755 = vmatpush1.bf16.msra.mxu0 0
      %1756 = vmatprep.subr.bf16.mxu0 0
      %1757 = vmatpush1.bf16.msra.mxu0 0
      %1758 = vmatprep.subr.bf16.mxu0 0
      %1759 = vmatpush1.bf16.msra.mxu0 0
      %1760 = vmatprep.subr.bf16.mxu0 0
      %1761 = vmatpush1.bf16.msra.mxu0 0
      %1762 = vmatprep.subr.bf16.mxu0 0
      %1763 = vmatpush1.bf16.msra.mxu0 0
      %1764 = vmatprep.subr.bf16.mxu0 0
      %1765 = vmatpush1.bf16.msra.mxu0 0
      %1766 = vmatprep.subr.bf16.mxu0 0
      %1767 = vmatpush1.bf16.msra.mxu0 %v1727
      %1768 = vmatprep.subr.bf16.mxu0 0
      %1769 = vmatpush1.bf16.msra.mxu0 %v1726
      %1770 = vmatprep.subr.bf16.mxu0 0
      %1771 = vmatpush2.bf16.msra.mxu0 0
      %1772 = vmatprep.subr.bf16.mxu0 0
      %1773 = vmatpush2.bf16.msra.mxu0 0
      %1774 = vmatprep.subr.bf16.mxu0 0
      %1775 = vmatpush2.bf16.msra.mxu0 0
      %1776 = vmatprep.subr.bf16.mxu0 0
      %1777 = vmatpush2.bf16.msra.mxu0 0
      %1778 = vmatprep.subr.bf16.mxu0 0
      %1779 = vmatpush2.bf16.msra.mxu0 0
      %1780 = vmatprep.subr.bf16.mxu0 0
      %1781 = vmatpush2.bf16.msra.mxu0 0
      %1782 = vmatprep.subr.bf16.mxu0 0
      %1783 = vmatpush2.bf16.msra.mxu0 0
      %1784 = vmatprep.subr.bf16.mxu0 0
      %1785 = vmatpush2.bf16.msra.mxu0 0
      %1786 = vmatprep.mubr.bf16.mxu0 0
      %1787 = vmatmul.mubr.bf16.gmra.mxu0 %v1731
      %v1788 = vpop.f32.mrf.mxu0
      %v1789 = vadd.f32 0.0, %v1788
      %v1790 = vpop.f32.mrf.mxu0
      %v1791 = vpop.f32.mrf.mxu0
      %v1792 = vadd.f32 0.0, %v1791
      %v1793 = vpop.f32.mrf.mxu0
      %1794 = vmatprep.mubr.bf16.mxu0 0
      %1795 = vmatmul.mubr.bf16.gmra.mxu0 %v1734
      %v1796 = vpop.f32.mrf.mxu0
      %v1797 = vadd.f32 0.0, %v1796
      %v1798 = vpop.f32.mrf.mxu0
      %v1799 = vpop.f32.mrf.mxu0
      %v1800 = vadd.f32 0.0, %v1799
      %v1801 = vpop.f32.mrf.mxu0
      %1802 = vmatprep.mubr.bf16.mxu0 0
      %1803 = vmatmul.mubr.bf16.gmra.mxu0 %v1737
      %v1804 = vpop.f32.mrf.mxu0
      %v1805 = vadd.f32 0.0, %v1804
      %v1806 = vpop.f32.mrf.mxu0
      %v1807 = vpop.f32.mrf.mxu0
      %v1808 = vadd.f32 0.0, %v1807
      %v1809 = vpop.f32.mrf.mxu0
      %1810 = vmatprep.mubr.bf16.mxu0 0
      %1811 = vmatmul.mubr.bf16.gmra.mxu0 %v1740
      %v1812 = vpop.f32.mrf.mxu0
      %v1813 = vadd.f32 0.0, %v1812
      %v1814 = vpop.f32.mrf.mxu0
      %v1815 = vpop.f32.mrf.mxu0
      %v1816 = vadd.f32 0.0, %v1815
      %v1817 = vpop.f32.mrf.mxu0
      %1818 = vmatprep.mubr.bf16.mxu0 0
      %1819 = vmatmul.mubr.bf16.gmra.mxu0 %v1743
      %v1820 = vpop.f32.mrf.mxu0
      %v1821 = vadd.f32 0.0, %v1820
      %v1822 = vpop.f32.mrf.mxu0
      %v1823 = vpop.f32.mrf.mxu0
      %v1824 = vadd.f32 0.0, %v1823
      %v1825 = vpop.f32.mrf.mxu0
      %1826 = vmatprep.mubr.bf16.mxu0 0
      %1827 = vmatmul.mubr.bf16.gmra.mxu0 %v1746
      %v1828 = vpop.f32.mrf.mxu0
      %v1829 = vadd.f32 0.0, %v1828
      %v1830 = vpop.f32.mrf.mxu0
      %v1831 = vpop.f32.mrf.mxu0
      %v1832 = vadd.f32 0.0, %v1831
      %v1833 = vpop.f32.mrf.mxu0
      %1834 = vmatprep.mubr.bf16.mxu0 0
      %1835 = vmatmul.mubr.bf16.gmra.mxu0 %v1749
      %v1836 = vpop.f32.mrf.mxu0
      %v1837 = vadd.f32 0.0, %v1836
      %v1838 = vpop.f32.mrf.mxu0
      %v1839 = vpop.f32.mrf.mxu0
      %v1840 = vadd.f32 0.0, %v1839
      %v1841 = vpop.f32.mrf.mxu0
      %1842 = vmatprep.mubr.bf16.mxu0 0
      %1843 = vmatmul.mubr.bf16.gmra.mxu0 %v1752
      %v1844 = vpop.f32.mrf.mxu0
      %v1845 = vadd.f32 0.0, %v1844
      %v1846 = vpop.f32.mrf.mxu0
      %v1847 = vpop.f32.mrf.mxu0
      %v1848 = vadd.f32 0.0, %v1847
      %v1849 = vpop.f32.mrf.mxu0
      %1850 = vdwg.mxu0
      %v1851 = vld [vmem:[#allocation2] sm:$0xff]
      %v1852 = vld [vmem:[#allocation2 + $0x8] sm:$0xff]
      %v1853 = vld [vmem:[#allocation2 + $0x10] sm:$0xff]
      %v1854 = vld [vmem:[#allocation2 + $0x18] sm:$0xff]
      %v1855 = vld [vmem:[#allocation2 + $0x20] sm:$0xff]
      %v1856 = vld [vmem:[#allocation2 + $0x28] sm:$0xff]
      %v1857 = vld [vmem:[#allocation2 + $0x30] sm:$0xff]
      %v1858 = vld [vmem:[#allocation2 + $0x38] sm:$0xff]
      %v1859 = vld [vmem:[#allocation2 + $0x40] sm:$0xff]
      %v1860 = vld [vmem:[#allocation2 + $0x48] sm:$0xff]
      %v1861 = vld [vmem:[#allocation2 + $0x50] sm:$0xff]
      %v1862 = vld [vmem:[#allocation2 + $0x58] sm:$0xff]
      %v1863 = vld [vmem:[#allocation2 + $0x60] sm:$0xff]
      %v1864 = vld [vmem:[#allocation2 + $0x68] sm:$0xff]
      %v1865 = vld [vmem:[#allocation2 + $0x70] sm:$0xff]
      %v1866 = vld [vmem:[#allocation2 + $0x78] sm:$0xff]
      %v1867 = vadd.f32 %v1851, %v1789
      %v1868 = vadd.f32 %v1852, %v1792
      %v1869 = vadd.f32 %v1853, %v1797
      %v1870 = vadd.f32 %v1854, %v1800
      %v1871 = vadd.f32 %v1855, %v1805
      %v1872 = vadd.f32 %v1856, %v1808
      %v1873 = vadd.f32 %v1857, %v1813
      %v1874 = vadd.f32 %v1858, %v1816
      %v1875 = vadd.f32 %v1859, %v1821
      %v1876 = vadd.f32 %v1860, %v1824
      %v1877 = vadd.f32 %v1861, %v1829
      %v1878 = vadd.f32 %v1862, %v1832
      %v1879 = vadd.f32 %v1863, %v1837
      %v1880 = vadd.f32 %v1864, %v1840
      %v1881 = vadd.f32 %v1865, %v1845
      %v1882 = vadd.f32 %v1866, %v1848
      %1883 = vst.msk [vmem:[#allocation2] sm:$0xff] %vm603, %v1867
      %1884 = vst.msk [vmem:[#allocation2 + $0x8] sm:$0xff] %vm603, %v1868
      %1885 = vst.msk [vmem:[#allocation2 + $0x10] sm:$0xff] %vm603, %v1869
      %1886 = vst.msk [vmem:[#allocation2 + $0x18] sm:$0xff] %vm603, %v1870
      %1887 = vst.msk [vmem:[#allocation2 + $0x20] sm:$0xff] %vm603, %v1871
      %1888 = vst.msk [vmem:[#allocation2 + $0x28] sm:$0xff] %vm603, %v1872
      %1889 = vst.msk [vmem:[#allocation2 + $0x30] sm:$0xff] %vm603, %v1873
      %1890 = vst.msk [vmem:[#allocation2 + $0x38] sm:$0xff] %vm603, %v1874
      %1891 = vst.msk [vmem:[#allocation2 + $0x40] sm:$0xff] %vm603, %v1875
      %1892 = vst.msk [vmem:[#allocation2 + $0x48] sm:$0xff] %vm603, %v1876
      %1893 = vst.msk [vmem:[#allocation2 + $0x50] sm:$0xff] %vm603, %v1877
      %1894 = vst.msk [vmem:[#allocation2 + $0x58] sm:$0xff] %vm603, %v1878
      %1895 = vst.msk [vmem:[#allocation2 + $0x60] sm:$0xff] %vm603, %v1879
      %1896 = vst.msk [vmem:[#allocation2 + $0x68] sm:$0xff] %vm603, %v1880
      %1897 = vst.msk [vmem:[#allocation2 + $0x70] sm:$0xff] %vm603, %v1881
      %1898 = vst.msk [vmem:[#allocation2 + $0x78] sm:$0xff] %vm603, %v1882
      %v1899 = vld [vmem:[%s296 + $0x8] sm:$0xe]
      %v1900 = vld [vmem:[%s296 + $0xc] sm:$0xf]
      %v1901 = vld [vmem:[%s296 + $0x10] sm:$0x1]
      %v1902 = vld [vmem:[%s296 + $0x24] sm:$0xe]
      %v1903 = vld [vmem:[%s296 + $0x28] sm:$0xf]
      %v1904 = vld [vmem:[%s296 + $0x2c] sm:$0x1]
      %v1905 = vld [vmem:[%s296 + $0x40] sm:$0xe]
      %v1906 = vld [vmem:[%s296 + $0x44] sm:$0xf]
      %v1907 = vld [vmem:[%s296 + $0x48] sm:$0x1]
      %v1908 = vld [vmem:[%s296 + $0x5c] sm:$0xe]
      %v1909 = vld [vmem:[%s296 + $0x60] sm:$0xf]
      %v1910 = vld [vmem:[%s296 + $0x64] sm:$0x1]
      %v1911 = vld [vmem:[%s296 + $0x78] sm:$0xe]
      %v1912 = vld [vmem:[%s296 + $0x7c] sm:$0xf]
      %v1913 = vld [vmem:[%s296 + $0x80] sm:$0x1]
      %v1914 = vld [vmem:[%s296 + $0x94] sm:$0xe]
      %v1915 = vld [vmem:[%s296 + $0x98] sm:$0xf]
      %v1916 = vld [vmem:[%s296 + $0x9c] sm:$0x1]
      %v1917 = vld [vmem:[%s296 + $0xb0] sm:$0xe]
      %v1918 = vld [vmem:[%s296 + $0xb4] sm:$0xf]
      %v1919 = vld [vmem:[%s296 + $0xb8] sm:$0x1]
      %v1920 = vld [vmem:[%s296 + $0xcc] sm:$0xe]
      %v1921 = vld [vmem:[%s296 + $0xd0] sm:$0xf]
      %v1922 = vld [vmem:[%s296 + $0xd4] sm:$0x1]
      %v1947 = vrot.slane %v1899, 5
      %v1948 = vrot.slane %v1947, 4
      %v1949 = vrot.slane %v1900, 5
      %v1950 = vsel %vm347, %v1948, %v1949
      %v1951 = vrot.slane %v1949, 4
      %v1952 = vrot.slane %v1901, 5
      %v1953 = vsel %vm347, %v1951, %v1952
      %v1954 = vrot.slane %v1902, 5
      %v1955 = vrot.slane %v1954, 4
      %v1956 = vrot.slane %v1903, 5
      %v1957 = vsel %vm347, %v1955, %v1956
      %v1958 = vrot.slane %v1956, 4
      %v1959 = vrot.slane %v1904, 5
      %v1960 = vsel %vm347, %v1958, %v1959
      %v1961 = vrot.slane %v1905, 5
      %v1962 = vrot.slane %v1961, 4
      %v1963 = vrot.slane %v1906, 5
      %v1964 = vsel %vm347, %v1962, %v1963
      %v1965 = vrot.slane %v1963, 4
      %v1966 = vrot.slane %v1907, 5
      %v1967 = vsel %vm347, %v1965, %v1966
      %v1968 = vrot.slane %v1908, 5
      %v1969 = vrot.slane %v1968, 4
      %v1970 = vrot.slane %v1909, 5
      %v1971 = vsel %vm347, %v1969, %v1970
      %v1972 = vrot.slane %v1970, 4
      %v1973 = vrot.slane %v1910, 5
      %v1974 = vsel %vm347, %v1972, %v1973
      %v1975 = vrot.slane %v1911, 5
      %v1976 = vrot.slane %v1975, 4
      %v1977 = vrot.slane %v1912, 5
      %v1978 = vsel %vm347, %v1976, %v1977
      %v1979 = vrot.slane %v1977, 4
      %v1980 = vrot.slane %v1913, 5
      %v1981 = vsel %vm347, %v1979, %v1980
      %v1982 = vrot.slane %v1914, 5
      %v1983 = vrot.slane %v1982, 4
      %v1984 = vrot.slane %v1915, 5
      %v1985 = vsel %vm347, %v1983, %v1984
      %v1986 = vrot.slane %v1984, 4
      %v1987 = vrot.slane %v1916, 5
      %v1988 = vsel %vm347, %v1986, %v1987
      %v1989 = vrot.slane %v1917, 5
      %v1990 = vrot.slane %v1989, 4
      %v1991 = vrot.slane %v1918, 5
      %v1992 = vsel %vm347, %v1990, %v1991
      %v1993 = vrot.slane %v1991, 4
      %v1994 = vrot.slane %v1919, 5
      %v1995 = vsel %vm347, %v1993, %v1994
      %v1996 = vrot.slane %v1920, 5
      %v1997 = vrot.slane %v1996, 4
      %v1998 = vrot.slane %v1921, 5
      %v1999 = vsel %vm347, %v1997, %v1998
      %v2000 = vrot.slane %v1998, 4
      %v2001 = vrot.slane %v1922, 5
      %v2002 = vsel %vm347, %v2000, %v2001
      %s2003 = scalar_lea.vmem %s2, 64
      %v2004 = vld [vmem:[%s2003] sm:$0xf]
      %v2005 = vld [vmem:[%s2003 + $0x4] sm:$0xf]
      %v2006 = vld [vmem:[%s2003 + $0x8] sm:$0xf]
      %v2007 = vld [vmem:[%s2003 + $0xc] sm:$0xf]
      %v2008 = vunpack.c.l.b16 %v1950
      %v2009 = vunpack.c.l.b16 %v1953
      %v2010 = vunpack.c.l.b16 %v1957
      %v2011 = vunpack.c.l.b16 %v1960
      %v2012 = vunpack.c.l.b16 %v1964
      %v2013 = vunpack.c.l.b16 %v1967
      %v2014 = vunpack.c.l.b16 %v1971
      %v2015 = vunpack.c.l.b16 %v1974
      %v2016 = vunpack.c.l.b16 %v1978
      %v2017 = vunpack.c.l.b16 %v1981
      %v2018 = vunpack.c.l.b16 %v1985
      %v2019 = vunpack.c.l.b16 %v1988
      %v2020 = vunpack.c.l.b16 %v1992
      %v2021 = vunpack.c.l.b16 %v1995
      %v2022 = vunpack.c.l.b16 %v1999
      %v2023 = vunpack.c.l.b16 %v2002
      %v2024 = vpack.c.b16 %v2009, %v2008
      %v2025 = vpack.c.b16 %v2011, %v2010
      %v2026 = vpack.c.b16 %v2013, %v2012
      %v2027 = vpack.c.b16 %v2015, %v2014
      %v2028 = vpack.c.b16 %v2017, %v2016
      %v2029 = vpack.c.b16 %v2019, %v2018
      %v2030 = vpack.c.b16 %v2021, %v2020
      %v2031 = vpack.c.b16 %v2023, %v2022
      %v2036 = vunpack.c.l.b16 %v2004
      %v2037 = vunpack.c.l.b16 %v2005
      %v2038 = vunpack.c.l.b16 %v2006
      %v2039 = vunpack.c.l.b16 %v2007
      %v2040 = vpack.c.b16 %v2037, %v2036
      %v2041 = vpack.c.b16 %v2039, %v2038
      %v2045 = vsel %vm449, %v2024, 0
      %v2048 = vsel %vm449, %v2025, 0
      %v2051 = vsel %vm449, %v2026, 0
      %v2054 = vsel %vm449, %v2027, 0
      %v2057 = vsel %vm449, %v2028, 0
      %v2060 = vsel %vm449, %v2029, 0
      %v2063 = vsel %vm449, %v2030, 0
      %v2066 = vsel %vm449, %v2031, 0
      %2068 = vmatprep.subr.bf16.mxu0 0
      %2069 = vmatpush1.bf16.msra.mxu0 0
      %2070 = vmatprep.subr.bf16.mxu0 0
      %2071 = vmatpush1.bf16.msra.mxu0 0
      %2072 = vmatprep.subr.bf16.mxu0 0
      %2073 = vmatpush1.bf16.msra.mxu0 0
      %2074 = vmatprep.subr.bf16.mxu0 0
      %2075 = vmatpush1.bf16.msra.mxu0 0
      %2076 = vmatprep.subr.bf16.mxu0 0
      %2077 = vmatpush1.bf16.msra.mxu0 0
      %2078 = vmatprep.subr.bf16.mxu0 0
      %2079 = vmatpush1.bf16.msra.mxu0 0
      %2080 = vmatprep.subr.bf16.mxu0 0
      %2081 = vmatpush1.bf16.msra.mxu0 %v2041
      %2082 = vmatprep.subr.bf16.mxu0 0
      %2083 = vmatpush1.bf16.msra.mxu0 %v2040
      %2084 = vmatprep.subr.bf16.mxu0 0
      %2085 = vmatpush2.bf16.msra.mxu0 0
      %2086 = vmatprep.subr.bf16.mxu0 0
      %2087 = vmatpush2.bf16.msra.mxu0 0
      %2088 = vmatprep.subr.bf16.mxu0 0
      %2089 = vmatpush2.bf16.msra.mxu0 0
      %2090 = vmatprep.subr.bf16.mxu0 0
      %2091 = vmatpush2.bf16.msra.mxu0 0
      %2092 = vmatprep.subr.bf16.mxu0 0
      %2093 = vmatpush2.bf16.msra.mxu0 0
      %2094 = vmatprep.subr.bf16.mxu0 0
      %2095 = vmatpush2.bf16.msra.mxu0 0
      %2096 = vmatprep.subr.bf16.mxu0 0
      %2097 = vmatpush2.bf16.msra.mxu0 0
      %2098 = vmatprep.subr.bf16.mxu0 0
      %2099 = vmatpush2.bf16.msra.mxu0 0
      %2100 = vmatprep.mubr.bf16.mxu0 0
      %2101 = vmatmul.mubr.bf16.gmra.mxu0 %v2045
      %v2102 = vpop.f32.mrf.mxu0
      %v2103 = vadd.f32 0.0, %v2102
      %v2104 = vpop.f32.mrf.mxu0
      %v2105 = vpop.f32.mrf.mxu0
      %v2106 = vadd.f32 0.0, %v2105
      %v2107 = vpop.f32.mrf.mxu0
      %2108 = vmatprep.mubr.bf16.mxu0 0
      %2109 = vmatmul.mubr.bf16.gmra.mxu0 %v2048
      %v2110 = vpop.f32.mrf.mxu0
      %v2111 = vadd.f32 0.0, %v2110
      %v2112 = vpop.f32.mrf.mxu0
      %v2113 = vpop.f32.mrf.mxu0
      %v2114 = vadd.f32 0.0, %v2113
      %v2115 = vpop.f32.mrf.mxu0
      %2116 = vmatprep.mubr.bf16.mxu0 0
      %2117 = vmatmul.mubr.bf16.gmra.mxu0 %v2051
      %v2118 = vpop.f32.mrf.mxu0
      %v2119 = vadd.f32 0.0, %v2118
      %v2120 = vpop.f32.mrf.mxu0
      %v2121 = vpop.f32.mrf.mxu0
      %v2122 = vadd.f32 0.0, %v2121
      %v2123 = vpop.f32.mrf.mxu0
      %2124 = vmatprep.mubr.bf16.mxu0 0
      %2125 = vmatmul.mubr.bf16.gmra.mxu0 %v2054
      %v2126 = vpop.f32.mrf.mxu0
      %v2127 = vadd.f32 0.0, %v2126
      %v2128 = vpop.f32.mrf.mxu0
      %v2129 = vpop.f32.mrf.mxu0
      %v2130 = vadd.f32 0.0, %v2129
      %v2131 = vpop.f32.mrf.mxu0
      %2132 = vmatprep.mubr.bf16.mxu0 0
      %2133 = vmatmul.mubr.bf16.gmra.mxu0 %v2057
      %v2134 = vpop.f32.mrf.mxu0
      %v2135 = vadd.f32 0.0, %v2134
      %v2136 = vpop.f32.mrf.mxu0
      %v2137 = vpop.f32.mrf.mxu0
      %v2138 = vadd.f32 0.0, %v2137
      %v2139 = vpop.f32.mrf.mxu0
      %2140 = vmatprep.mubr.bf16.mxu0 0
      %2141 = vmatmul.mubr.bf16.gmra.mxu0 %v2060
      %v2142 = vpop.f32.mrf.mxu0
      %v2143 = vadd.f32 0.0, %v2142
      %v2144 = vpop.f32.mrf.mxu0
      %v2145 = vpop.f32.mrf.mxu0
      %v2146 = vadd.f32 0.0, %v2145
      %v2147 = vpop.f32.mrf.mxu0
      %2148 = vmatprep.mubr.bf16.mxu0 0
      %2149 = vmatmul.mubr.bf16.gmra.mxu0 %v2063
      %v2150 = vpop.f32.mrf.mxu0
      %v2151 = vadd.f32 0.0, %v2150
      %v2152 = vpop.f32.mrf.mxu0
      %v2153 = vpop.f32.mrf.mxu0
      %v2154 = vadd.f32 0.0, %v2153
      %v2155 = vpop.f32.mrf.mxu0
      %2156 = vmatprep.mubr.bf16.mxu0 0
      %2157 = vmatmul.mubr.bf16.gmra.mxu0 %v2066
      %v2158 = vpop.f32.mrf.mxu0
      %v2159 = vadd.f32 0.0, %v2158
      %v2160 = vpop.f32.mrf.mxu0
      %v2161 = vpop.f32.mrf.mxu0
      %v2162 = vadd.f32 0.0, %v2161
      %v2163 = vpop.f32.mrf.mxu0
      %2164 = vdwg.mxu0
      %v2165 = vld [vmem:[#allocation2] sm:$0xff]
      %v2166 = vld [vmem:[#allocation2 + $0x8] sm:$0xff]
      %v2167 = vld [vmem:[#allocation2 + $0x10] sm:$0xff]
      %v2168 = vld [vmem:[#allocation2 + $0x18] sm:$0xff]
      %v2169 = vld [vmem:[#allocation2 + $0x20] sm:$0xff]
      %v2170 = vld [vmem:[#allocation2 + $0x28] sm:$0xff]
      %v2171 = vld [vmem:[#allocation2 + $0x30] sm:$0xff]
      %v2172 = vld [vmem:[#allocation2 + $0x38] sm:$0xff]
      %v2173 = vld [vmem:[#allocation2 + $0x40] sm:$0xff]
      %v2174 = vld [vmem:[#allocation2 + $0x48] sm:$0xff]
      %v2175 = vld [vmem:[#allocation2 + $0x50] sm:$0xff]
      %v2176 = vld [vmem:[#allocation2 + $0x58] sm:$0xff]
      %v2177 = vld [vmem:[#allocation2 + $0x60] sm:$0xff]
      %v2178 = vld [vmem:[#allocation2 + $0x68] sm:$0xff]
      %v2179 = vld [vmem:[#allocation2 + $0x70] sm:$0xff]
      %v2180 = vld [vmem:[#allocation2 + $0x78] sm:$0xff]
      %v2181 = vadd.f32 %v2165, %v2103
      %v2182 = vadd.f32 %v2166, %v2106
      %v2183 = vadd.f32 %v2167, %v2111
      %v2184 = vadd.f32 %v2168, %v2114
      %v2185 = vadd.f32 %v2169, %v2119
      %v2186 = vadd.f32 %v2170, %v2122
      %v2187 = vadd.f32 %v2171, %v2127
      %v2188 = vadd.f32 %v2172, %v2130
      %v2189 = vadd.f32 %v2173, %v2135
      %v2190 = vadd.f32 %v2174, %v2138
      %v2191 = vadd.f32 %v2175, %v2143
      %v2192 = vadd.f32 %v2176, %v2146
      %v2193 = vadd.f32 %v2177, %v2151
      %v2194 = vadd.f32 %v2178, %v2154
      %v2195 = vadd.f32 %v2179, %v2159
      %v2196 = vadd.f32 %v2180, %v2162
      %2197 = vst.msk [vmem:[#allocation2] sm:$0xff] %vm603, %v2181
      %2198 = vst.msk [vmem:[#allocation2 + $0x8] sm:$0xff] %vm603, %v2182
      %2199 = vst.msk [vmem:[#allocation2 + $0x10] sm:$0xff] %vm603, %v2183
      %2200 = vst.msk [vmem:[#allocation2 + $0x18] sm:$0xff] %vm603, %v2184
      %2201 = vst.msk [vmem:[#allocation2 + $0x20] sm:$0xff] %vm603, %v2185
      %2202 = vst.msk [vmem:[#allocation2 + $0x28] sm:$0xff] %vm603, %v2186
      %2203 = vst.msk [vmem:[#allocation2 + $0x30] sm:$0xff] %vm603, %v2187
      %2204 = vst.msk [vmem:[#allocation2 + $0x38] sm:$0xff] %vm603, %v2188
      %2205 = vst.msk [vmem:[#allocation2 + $0x40] sm:$0xff] %vm603, %v2189
      %2206 = vst.msk [vmem:[#allocation2 + $0x48] sm:$0xff] %vm603, %v2190
      %2207 = vst.msk [vmem:[#allocation2 + $0x50] sm:$0xff] %vm603, %v2191
      %2208 = vst.msk [vmem:[#allocation2 + $0x58] sm:$0xff] %vm603, %v2192
      %2209 = vst.msk [vmem:[#allocation2 + $0x60] sm:$0xff] %vm603, %v2193
      %2210 = vst.msk [vmem:[#allocation2 + $0x68] sm:$0xff] %vm603, %v2194
      %2211 = vst.msk [vmem:[#allocation2 + $0x70] sm:$0xff] %vm603, %v2195
      %2212 = vst.msk [vmem:[#allocation2 + $0x78] sm:$0xff] %vm603, %v2196
      %v2213 = vld [vmem:[%s296 + $0xc] sm:$0xf]
      %v2214 = vld [vmem:[%s296 + $0x10] sm:$0xf]
      %v2215 = vld [vmem:[%s296 + $0x28] sm:$0xf]
      %v2216 = vld [vmem:[%s296 + $0x2c] sm:$0xf]
      %v2217 = vld [vmem:[%s296 + $0x44] sm:$0xf]
      %v2218 = vld [vmem:[%s296 + $0x48] sm:$0xf]
      %v2219 = vld [vmem:[%s296 + $0x60] sm:$0xf]
      %v2220 = vld [vmem:[%s296 + $0x64] sm:$0xf]
      %v2221 = vld [vmem:[%s296 + $0x7c] sm:$0xf]
      %v2222 = vld [vmem:[%s296 + $0x80] sm:$0xf]
      %v2223 = vld [vmem:[%s296 + $0x98] sm:$0xf]
      %v2224 = vld [vmem:[%s296 + $0x9c] sm:$0xf]
      %v2225 = vld [vmem:[%s296 + $0xb4] sm:$0xf]
      %v2226 = vld [vmem:[%s296 + $0xb8] sm:$0xf]
      %v2227 = vld [vmem:[%s296 + $0xd0] sm:$0xf]
      %v2228 = vld [vmem:[%s296 + $0xd4] sm:$0xf]
      %s2229 = scalar_lea.vmem %s2, 80
      %v2230 = vld [vmem:[%s2229] sm:$0xf]
      %v2231 = vld [vmem:[%s2229 + $0x4] sm:$0xf]
      %v2232 = vld [vmem:[%s2229 + $0x8] sm:$0xf]
      %v2233 = vld [vmem:[%s2229 + $0xc] sm:$0xf]
      %v2250 = vunpack.c.l.b16 %v2213
      %v2251 = vunpack.c.l.b16 %v2214
      %v2252 = vunpack.c.l.b16 %v2215
      %v2253 = vunpack.c.l.b16 %v2216
      %v2254 = vunpack.c.l.b16 %v2217
      %v2255 = vunpack.c.l.b16 %v2218
      %v2256 = vunpack.c.l.b16 %v2219
      %v2257 = vunpack.c.l.b16 %v2220
      %v2258 = vunpack.c.l.b16 %v2221
      %v2259 = vunpack.c.l.b16 %v2222
      %v2260 = vunpack.c.l.b16 %v2223
      %v2261 = vunpack.c.l.b16 %v2224
      %v2262 = vunpack.c.l.b16 %v2225
      %v2263 = vunpack.c.l.b16 %v2226
      %v2264 = vunpack.c.l.b16 %v2227
      %v2265 = vunpack.c.l.b16 %v2228
      %v2266 = vpack.c.b16 %v2251, %v2250
      %v2267 = vpack.c.b16 %v2253, %v2252
      %v2268 = vpack.c.b16 %v2255, %v2254
      %v2269 = vpack.c.b16 %v2257, %v2256
      %v2270 = vpack.c.b16 %v2259, %v2258
      %v2271 = vpack.c.b16 %v2261, %v2260
      %v2272 = vpack.c.b16 %v2263, %v2262
      %v2273 = vpack.c.b16 %v2265, %v2264
      %v2278 = vunpack.c.l.b16 %v2230
      %v2279 = vunpack.c.l.b16 %v2231
      %v2280 = vunpack.c.l.b16 %v2232
      %v2281 = vunpack.c.l.b16 %v2233
      %v2282 = vpack.c.b16 %v2279, %v2278
      %v2283 = vpack.c.b16 %v2281, %v2280
      %v2287 = vsel %vm449, %v2266, 0
      %v2290 = vsel %vm449, %v2267, 0
      %v2293 = vsel %vm449, %v2268, 0
      %v2296 = vsel %vm449, %v2269, 0
      %v2299 = vsel %vm449, %v2270, 0
      %v2302 = vsel %vm449, %v2271, 0
      %v2305 = vsel %vm449, %v2272, 0
      %v2308 = vsel %vm449, %v2273, 0
      %2310 = vmatprep.subr.bf16.mxu0 0
      %2311 = vmatpush1.bf16.msra.mxu0 0
      %2312 = vmatprep.subr.bf16.mxu0 0
      %2313 = vmatpush1.bf16.msra.mxu0 0
      %2314 = vmatprep.subr.bf16.mxu0 0
      %2315 = vmatpush1.bf16.msra.mxu0 0
      %2316 = vmatprep.subr.bf16.mxu0 0
      %2317 = vmatpush1.bf16.msra.mxu0 0
      %2318 = vmatprep.subr.bf16.mxu0 0
      %2319 = vmatpush1.bf16.msra.mxu0 0
      %2320 = vmatprep.subr.bf16.mxu0 0
      %2321 = vmatpush1.bf16.msra.mxu0 0
      %2322 = vmatprep.subr.bf16.mxu0 0
      %2323 = vmatpush1.bf16.msra.mxu0 %v2283
      %2324 = vmatprep.subr.bf16.mxu0 0
      %2325 = vmatpush1.bf16.msra.mxu0 %v2282
      %2326 = vmatprep.subr.bf16.mxu0 0
      %2327 = vmatpush2.bf16.msra.mxu0 0
      %2328 = vmatprep.subr.bf16.mxu0 0
      %2329 = vmatpush2.bf16.msra.mxu0 0
      %2330 = vmatprep.subr.bf16.mxu0 0
      %2331 = vmatpush2.bf16.msra.mxu0 0
      %2332 = vmatprep.subr.bf16.mxu0 0
      %2333 = vmatpush2.bf16.msra.mxu0 0
      %2334 = vmatprep.subr.bf16.mxu0 0
      %2335 = vmatpush2.bf16.msra.mxu0 0
      %2336 = vmatprep.subr.bf16.mxu0 0
      %2337 = vmatpush2.bf16.msra.mxu0 0
      %2338 = vmatprep.subr.bf16.mxu0 0
      %2339 = vmatpush2.bf16.msra.mxu0 0
      %2340 = vmatprep.subr.bf16.mxu0 0
      %2341 = vmatpush2.bf16.msra.mxu0 0
      %2342 = vmatprep.mubr.bf16.mxu0 0
      %2343 = vmatmul.mubr.bf16.gmra.mxu0 %v2287
      %v2344 = vpop.f32.mrf.mxu0
      %v2345 = vadd.f32 0.0, %v2344
      %v2346 = vpop.f32.mrf.mxu0
      %v2347 = vpop.f32.mrf.mxu0
      %v2348 = vadd.f32 0.0, %v2347
      %v2349 = vpop.f32.mrf.mxu0
      %2350 = vmatprep.mubr.bf16.mxu0 0
      %2351 = vmatmul.mubr.bf16.gmra.mxu0 %v2290
      %v2352 = vpop.f32.mrf.mxu0
      %v2353 = vadd.f32 0.0, %v2352
      %v2354 = vpop.f32.mrf.mxu0
      %v2355 = vpop.f32.mrf.mxu0
      %v2356 = vadd.f32 0.0, %v2355
      %v2357 = vpop.f32.mrf.mxu0
      %2358 = vmatprep.mubr.bf16.mxu0 0
      %2359 = vmatmul.mubr.bf16.gmra.mxu0 %v2293
      %v2360 = vpop.f32.mrf.mxu0
      %v2361 = vadd.f32 0.0, %v2360
      %v2362 = vpop.f32.mrf.mxu0
      %v2363 = vpop.f32.mrf.mxu0
      %v2364 = vadd.f32 0.0, %v2363
      %v2365 = vpop.f32.mrf.mxu0
      %2366 = vmatprep.mubr.bf16.mxu0 0
      %2367 = vmatmul.mubr.bf16.gmra.mxu0 %v2296
      %v2368 = vpop.f32.mrf.mxu0
      %v2369 = vadd.f32 0.0, %v2368
      %v2370 = vpop.f32.mrf.mxu0
      %v2371 = vpop.f32.mrf.mxu0
      %v2372 = vadd.f32 0.0, %v2371
      %v2373 = vpop.f32.mrf.mxu0
      %2374 = vmatprep.mubr.bf16.mxu0 0
      %2375 = vmatmul.mubr.bf16.gmra.mxu0 %v2299
      %v2376 = vpop.f32.mrf.mxu0
      %v2377 = vadd.f32 0.0, %v2376
      %v2378 = vpop.f32.mrf.mxu0
      %v2379 = vpop.f32.mrf.mxu0
      %v2380 = vadd.f32 0.0, %v2379
      %v2381 = vpop.f32.mrf.mxu0
      %2382 = vmatprep.mubr.bf16.mxu0 0
      %2383 = vmatmul.mubr.bf16.gmra.mxu0 %v2302
      %v2384 = vpop.f32.mrf.mxu0
      %v2385 = vadd.f32 0.0, %v2384
      %v2386 = vpop.f32.mrf.mxu0
      %v2387 = vpop.f32.mrf.mxu0
      %v2388 = vadd.f32 0.0, %v2387
      %v2389 = vpop.f32.mrf.mxu0
      %2390 = vmatprep.mubr.bf16.mxu0 0
      %2391 = vmatmul.mubr.bf16.gmra.mxu0 %v2305
      %v2392 = vpop.f32.mrf.mxu0
      %v2393 = vadd.f32 0.0, %v2392
      %v2394 = vpop.f32.mrf.mxu0
      %v2395 = vpop.f32.mrf.mxu0
      %v2396 = vadd.f32 0.0, %v2395
      %v2397 = vpop.f32.mrf.mxu0
      %2398 = vmatprep.mubr.bf16.mxu0 0
      %2399 = vmatmul.mubr.bf16.gmra.mxu0 %v2308
      %v2400 = vpop.f32.mrf.mxu0
      %v2401 = vadd.f32 0.0, %v2400
      %v2402 = vpop.f32.mrf.mxu0
      %v2403 = vpop.f32.mrf.mxu0
      %v2404 = vadd.f32 0.0, %v2403
      %v2405 = vpop.f32.mrf.mxu0
      %2406 = vdwg.mxu0
      %v2407 = vld [vmem:[#allocation2] sm:$0xff]
      %v2408 = vld [vmem:[#allocation2 + $0x8] sm:$0xff]
      %v2409 = vld [vmem:[#allocation2 + $0x10] sm:$0xff]
      %v2410 = vld [vmem:[#allocation2 + $0x18] sm:$0xff]
      %v2411 = vld [vmem:[#allocation2 + $0x20] sm:$0xff]
      %v2412 = vld [vmem:[#allocation2 + $0x28] sm:$0xff]
      %v2413 = vld [vmem:[#allocation2 + $0x30] sm:$0xff]
      %v2414 = vld [vmem:[#allocation2 + $0x38] sm:$0xff]
      %v2415 = vld [vmem:[#allocation2 + $0x40] sm:$0xff]
      %v2416 = vld [vmem:[#allocation2 + $0x48] sm:$0xff]
      %v2417 = vld [vmem:[#allocation2 + $0x50] sm:$0xff]
      %v2418 = vld [vmem:[#allocation2 + $0x58] sm:$0xff]
      %v2419 = vld [vmem:[#allocation2 + $0x60] sm:$0xff]
      %v2420 = vld [vmem:[#allocation2 + $0x68] sm:$0xff]
      %v2421 = vld [vmem:[#allocation2 + $0x70] sm:$0xff]
      %v2422 = vld [vmem:[#allocation2 + $0x78] sm:$0xff]
      %v2423 = vadd.f32 %v2407, %v2345
      %v2424 = vadd.f32 %v2408, %v2348
      %v2425 = vadd.f32 %v2409, %v2353
      %v2426 = vadd.f32 %v2410, %v2356
      %v2427 = vadd.f32 %v2411, %v2361
      %v2428 = vadd.f32 %v2412, %v2364
      %v2429 = vadd.f32 %v2413, %v2369
      %v2430 = vadd.f32 %v2414, %v2372
      %v2431 = vadd.f32 %v2415, %v2377
      %v2432 = vadd.f32 %v2416, %v2380
      %v2433 = vadd.f32 %v2417, %v2385
      %v2434 = vadd.f32 %v2418, %v2388
      %v2435 = vadd.f32 %v2419, %v2393
      %v2436 = vadd.f32 %v2420, %v2396
      %v2437 = vadd.f32 %v2421, %v2401
      %v2438 = vadd.f32 %v2422, %v2404
      %2439 = vst.msk [vmem:[#allocation2] sm:$0xff] %vm603, %v2423
      %2440 = vst.msk [vmem:[#allocation2 + $0x8] sm:$0xff] %vm603, %v2424
      %2441 = vst.msk [vmem:[#allocation2 + $0x10] sm:$0xff] %vm603, %v2425
      %2442 = vst.msk [vmem:[#allocation2 + $0x18] sm:$0xff] %vm603, %v2426
      %2443 = vst.msk [vmem:[#allocation2 + $0x20] sm:$0xff] %vm603, %v2427
      %2444 = vst.msk [vmem:[#allocation2 + $0x28] sm:$0xff] %vm603, %v2428
      %2445 = vst.msk [vmem:[#allocation2 + $0x30] sm:$0xff] %vm603, %v2429
      %2446 = vst.msk [vmem:[#allocation2 + $0x38] sm:$0xff] %vm603, %v2430
      %2447 = vst.msk [vmem:[#allocation2 + $0x40] sm:$0xff] %vm603, %v2431
      %2448 = vst.msk [vmem:[#allocation2 + $0x48] sm:$0xff] %vm603, %v2432
      %2449 = vst.msk [vmem:[#allocation2 + $0x50] sm:$0xff] %vm603, %v2433
      %2450 = vst.msk [vmem:[#allocation2 + $0x58] sm:$0xff] %vm603, %v2434
      %2451 = vst.msk [vmem:[#allocation2 + $0x60] sm:$0xff] %vm603, %v2435
      %2452 = vst.msk [vmem:[#allocation2 + $0x68] sm:$0xff] %vm603, %v2436
      %2453 = vst.msk [vmem:[#allocation2 + $0x70] sm:$0xff] %vm603, %v2437
      %2454 = vst.msk [vmem:[#allocation2 + $0x78] sm:$0xff] %vm603, %v2438
      %s2455 = sadd.s32 %s292, 24
      %s2456 = smul.u32 %s2455, 7
      %s2457 = smul.addr %s2456, 4
      %s2458 = scalar_lea.vmem %s276, %s2457
      %v2459 = vld [vmem:[%s2458 + $0x4] sm:$0xc]
      %v2460 = vld [vmem:[%s2458 + $0x8] sm:$0xf]
      %v2461 = vld [vmem:[%s2458 + $0xc] sm:$0x3]
      %v2462 = vld [vmem:[%s2458 + $0x20] sm:$0xc]
      %v2463 = vld [vmem:[%s2458 + $0x24] sm:$0xf]
      %v2464 = vld [vmem:[%s2458 + $0x28] sm:$0x3]
      %v2465 = vld [vmem:[%s2458 + $0x3c] sm:$0xc]
      %v2466 = vld [vmem:[%s2458 + $0x40] sm:$0xf]
      %v2467 = vld [vmem:[%s2458 + $0x44] sm:$0x3]
      %v2468 = vld [vmem:[%s2458 + $0x58] sm:$0xc]
      %v2469 = vld [vmem:[%s2458 + $0x5c] sm:$0xf]
      %v2470 = vld [vmem:[%s2458 + $0x60] sm:$0x3]
      %v2471 = vld [vmem:[%s2458 + $0x74] sm:$0xc]
      %v2472 = vld [vmem:[%s2458 + $0x78] sm:$0xf]
      %v2473 = vld [vmem:[%s2458 + $0x7c] sm:$0x3]
      %v2474 = vld [vmem:[%s2458 + $0x90] sm:$0xc]
      %v2475 = vld [vmem:[%s2458 + $0x94] sm:$0xf]
      %v2476 = vld [vmem:[%s2458 + $0x98] sm:$0x3]
      %v2477 = vld [vmem:[%s2458 + $0xac] sm:$0xc]
      %v2478 = vld [vmem:[%s2458 + $0xb0] sm:$0xf]
      %v2479 = vld [vmem:[%s2458 + $0xb4] sm:$0x3]
      %v2480 = vld [vmem:[%s2458 + $0xc8] sm:$0xc]
      %v2481 = vld [vmem:[%s2458 + $0xcc] sm:$0xf]
      %v2482 = vld [vmem:[%s2458 + $0xd0] sm:$0x3]
      %v2507 = vrot.slane %v2459, 6
      %v2508 = vrot.slane %v2507, 4
      %v2509 = vrot.slane %v2460, 6
      %v2510 = vsel %vm795, %v2508, %v2509
      %v2511 = vrot.slane %v2509, 4
      %v2512 = vrot.slane %v2461, 6
      %v2513 = vsel %vm795, %v2511, %v2512
      %v2514 = vrot.slane %v2462, 6
      %v2515 = vrot.slane %v2514, 4
      %v2516 = vrot.slane %v2463, 6
      %v2517 = vsel %vm795, %v2515, %v2516
      %v2518 = vrot.slane %v2516, 4
      %v2519 = vrot.slane %v2464, 6
      %v2520 = vsel %vm795, %v2518, %v2519
      %v2521 = vrot.slane %v2465, 6
      %v2522 = vrot.slane %v2521, 4
      %v2523 = vrot.slane %v2466, 6
      %v2524 = vsel %vm795, %v2522, %v2523
      %v2525 = vrot.slane %v2523, 4
      %v2526 = vrot.slane %v2467, 6
      %v2527 = vsel %vm795, %v2525, %v2526
      %v2528 = vrot.slane %v2468, 6
      %v2529 = vrot.slane %v2528, 4
      %v2530 = vrot.slane %v2469, 6
      %v2531 = vsel %vm795, %v2529, %v2530
      %v2532 = vrot.slane %v2530, 4
      %v2533 = vrot.slane %v2470, 6
      %v2534 = vsel %vm795, %v2532, %v2533
      %v2535 = vrot.slane %v2471, 6
      %v2536 = vrot.slane %v2535, 4
      %v2537 = vrot.slane %v2472, 6
      %v2538 = vsel %vm795, %v2536, %v2537
      %v2539 = vrot.slane %v2537, 4
      %v2540 = vrot.slane %v2473, 6
      %v2541 = vsel %vm795, %v2539, %v2540
      %v2542 = vrot.slane %v2474, 6
      %v2543 = vrot.slane %v2542, 4
      %v2544 = vrot.slane %v2475, 6
      %v2545 = vsel %vm795, %v2543, %v2544
      %v2546 = vrot.slane %v2544, 4
      %v2547 = vrot.slane %v2476, 6
      %v2548 = vsel %vm795, %v2546, %v2547
      %v2549 = vrot.slane %v2477, 6
      %v2550 = vrot.slane %v2549, 4
      %v2551 = vrot.slane %v2478, 6
      %v2552 = vsel %vm795, %v2550, %v2551
      %v2553 = vrot.slane %v2551, 4
      %v2554 = vrot.slane %v2479, 6
      %v2555 = vsel %vm795, %v2553, %v2554
      %v2556 = vrot.slane %v2480, 6
      %v2557 = vrot.slane %v2556, 4
      %v2558 = vrot.slane %v2481, 6
      %v2559 = vsel %vm795, %v2557, %v2558
      %v2560 = vrot.slane %v2558, 4
      %v2561 = vrot.slane %v2482, 6
      %v2562 = vsel %vm795, %v2560, %v2561
      %s2563 = scalar_lea.vmem %s2, 96
      %v2564 = vld [vmem:[%s2563] sm:$0xf]
      %v2565 = vld [vmem:[%s2563 + $0x4] sm:$0xf]
      %v2566 = vld [vmem:[%s2563 + $0x8] sm:$0xf]
      %v2567 = vld [vmem:[%s2563 + $0xc] sm:$0xf]
      %v2568 = vunpack.c.l.b16 %v2510
      %v2569 = vunpack.c.l.b16 %v2513
      %v2570 = vunpack.c.l.b16 %v2517
      %v2571 = vunpack.c.l.b16 %v2520
      %v2572 = vunpack.c.l.b16 %v2524
      %v2573 = vunpack.c.l.b16 %v2527
      %v2574 = vunpack.c.l.b16 %v2531
      %v2575 = vunpack.c.l.b16 %v2534
      %v2576 = vunpack.c.l.b16 %v2538
      %v2577 = vunpack.c.l.b16 %v2541
      %v2578 = vunpack.c.l.b16 %v2545
      %v2579 = vunpack.c.l.b16 %v2548
      %v2580 = vunpack.c.l.b16 %v2552
      %v2581 = vunpack.c.l.b16 %v2555
      %v2582 = vunpack.c.l.b16 %v2559
      %v2583 = vunpack.c.l.b16 %v2562
      %v2584 = vpack.c.b16 %v2569, %v2568
      %v2585 = vpack.c.b16 %v2571, %v2570
      %v2586 = vpack.c.b16 %v2573, %v2572
      %v2587 = vpack.c.b16 %v2575, %v2574
      %v2588 = vpack.c.b16 %v2577, %v2576
      %v2589 = vpack.c.b16 %v2579, %v2578
      %v2590 = vpack.c.b16 %v2581, %v2580
      %v2591 = vpack.c.b16 %v2583, %v2582
      %v2596 = vunpack.c.l.b16 %v2564
      %v2597 = vunpack.c.l.b16 %v2565
      %v2598 = vunpack.c.l.b16 %v2566
      %v2599 = vunpack.c.l.b16 %v2567
      %v2600 = vpack.c.b16 %v2597, %v2596
      %v2601 = vpack.c.b16 %v2599, %v2598
      %v2605 = vsel %vm449, %v2584, 0
      %v2608 = vsel %vm449, %v2585, 0
      %v2611 = vsel %vm449, %v2586, 0
      %v2614 = vsel %vm449, %v2587, 0
      %v2617 = vsel %vm449, %v2588, 0
      %v2620 = vsel %vm449, %v2589, 0
      %v2623 = vsel %vm449, %v2590, 0
      %v2626 = vsel %vm449, %v2591, 0
      %2628 = vmatprep.subr.bf16.mxu0 0
      %2629 = vmatpush1.bf16.msra.mxu0 0
      %2630 = vmatprep.subr.bf16.mxu0 0
      %2631 = vmatpush1.bf16.msra.mxu0 0
      %2632 = vmatprep.subr.bf16.mxu0 0
      %2633 = vmatpush1.bf16.msra.mxu0 0
      %2634 = vmatprep.subr.bf16.mxu0 0
      %2635 = vmatpush1.bf16.msra.mxu0 0
      %2636 = vmatprep.subr.bf16.mxu0 0
      %2637 = vmatpush1.bf16.msra.mxu0 0
      %2638 = vmatprep.subr.bf16.mxu0 0
      %2639 = vmatpush1.bf16.msra.mxu0 0
      %2640 = vmatprep.subr.bf16.mxu0 0
      %2641 = vmatpush1.bf16.msra.mxu0 %v2601
      %2642 = vmatprep.subr.bf16.mxu0 0
      %2643 = vmatpush1.bf16.msra.mxu0 %v2600
      %2644 = vmatprep.subr.bf16.mxu0 0
      %2645 = vmatpush2.bf16.msra.mxu0 0
      %2646 = vmatprep.subr.bf16.mxu0 0
      %2647 = vmatpush2.bf16.msra.mxu0 0
      %2648 = vmatprep.subr.bf16.mxu0 0
      %2649 = vmatpush2.bf16.msra.mxu0 0
      %2650 = vmatprep.subr.bf16.mxu0 0
      %2651 = vmatpush2.bf16.msra.mxu0 0
      %2652 = vmatprep.subr.bf16.mxu0 0
      %2653 = vmatpush2.bf16.msra.mxu0 0
      %2654 = vmatprep.subr.bf16.mxu0 0
      %2655 = vmatpush2.bf16.msra.mxu0 0
      %2656 = vmatprep.subr.bf16.mxu0 0
      %2657 = vmatpush2.bf16.msra.mxu0 0
      %2658 = vmatprep.subr.bf16.mxu0 0
      %2659 = vmatpush2.bf16.msra.mxu0 0
      %2660 = vmatprep.mubr.bf16.mxu0 0
      %2661 = vmatmul.mubr.bf16.gmra.mxu0 %v2605
      %v2662 = vpop.f32.mrf.mxu0
      %v2663 = vadd.f32 0.0, %v2662
      %v2664 = vpop.f32.mrf.mxu0
      %v2665 = vpop.f32.mrf.mxu0
      %v2666 = vadd.f32 0.0, %v2665
      %v2667 = vpop.f32.mrf.mxu0
      %2668 = vmatprep.mubr.bf16.mxu0 0
      %2669 = vmatmul.mubr.bf16.gmra.mxu0 %v2608
      %v2670 = vpop.f32.mrf.mxu0
      %v2671 = vadd.f32 0.0, %v2670
      %v2672 = vpop.f32.mrf.mxu0
      %v2673 = vpop.f32.mrf.mxu0
      %v2674 = vadd.f32 0.0, %v2673
      %v2675 = vpop.f32.mrf.mxu0
      %2676 = vmatprep.mubr.bf16.mxu0 0
      %2677 = vmatmul.mubr.bf16.gmra.mxu0 %v2611
      %v2678 = vpop.f32.mrf.mxu0
      %v2679 = vadd.f32 0.0, %v2678
      %v2680 = vpop.f32.mrf.mxu0
      %v2681 = vpop.f32.mrf.mxu0
      %v2682 = vadd.f32 0.0, %v2681
      %v2683 = vpop.f32.mrf.mxu0
      %2684 = vmatprep.mubr.bf16.mxu0 0
      %2685 = vmatmul.mubr.bf16.gmra.mxu0 %v2614
      %v2686 = vpop.f32.mrf.mxu0
      %v2687 = vadd.f32 0.0, %v2686
      %v2688 = vpop.f32.mrf.mxu0
      %v2689 = vpop.f32.mrf.mxu0
      %v2690 = vadd.f32 0.0, %v2689
      %v2691 = vpop.f32.mrf.mxu0
      %2692 = vmatprep.mubr.bf16.mxu0 0
      %2693 = vmatmul.mubr.bf16.gmra.mxu0 %v2617
      %v2694 = vpop.f32.mrf.mxu0
      %v2695 = vadd.f32 0.0, %v2694
      %v2696 = vpop.f32.mrf.mxu0
      %v2697 = vpop.f32.mrf.mxu0
      %v2698 = vadd.f32 0.0, %v2697
      %v2699 = vpop.f32.mrf.mxu0
      %2700 = vmatprep.mubr.bf16.mxu0 0
      %2701 = vmatmul.mubr.bf16.gmra.mxu0 %v2620
      %v2702 = vpop.f32.mrf.mxu0
      %v2703 = vadd.f32 0.0, %v2702
      %v2704 = vpop.f32.mrf.mxu0
      %v2705 = vpop.f32.mrf.mxu0
      %v2706 = vadd.f32 0.0, %v2705
      %v2707 = vpop.f32.mrf.mxu0
      %2708 = vmatprep.mubr.bf16.mxu0 0
      %2709 = vmatmul.mubr.bf16.gmra.mxu0 %v2623
      %v2710 = vpop.f32.mrf.mxu0
      %v2711 = vadd.f32 0.0, %v2710
      %v2712 = vpop.f32.mrf.mxu0
      %v2713 = vpop.f32.mrf.mxu0
      %v2714 = vadd.f32 0.0, %v2713
      %v2715 = vpop.f32.mrf.mxu0
      %2716 = vmatprep.mubr.bf16.mxu0 0
      %2717 = vmatmul.mubr.bf16.gmra.mxu0 %v2626
      %v2718 = vpop.f32.mrf.mxu0
      %v2719 = vadd.f32 0.0, %v2718
      %v2720 = vpop.f32.mrf.mxu0
      %v2721 = vpop.f32.mrf.mxu0
      %v2722 = vadd.f32 0.0, %v2721
      %v2723 = vpop.f32.mrf.mxu0
      %2724 = vdwg.mxu0
      %v2725 = vld [vmem:[#allocation2] sm:$0xff]
      %v2726 = vld [vmem:[#allocation2 + $0x8] sm:$0xff]
      %v2727 = vld [vmem:[#allocation2 + $0x10] sm:$0xff]
      %v2728 = vld [vmem:[#allocation2 + $0x18] sm:$0xff]
      %v2729 = vld [vmem:[#allocation2 + $0x20] sm:$0xff]
      %v2730 = vld [vmem:[#allocation2 + $0x28] sm:$0xff]
      %v2731 = vld [vmem:[#allocation2 + $0x30] sm:$0xff]
      %v2732 = vld [vmem:[#allocation2 + $0x38] sm:$0xff]
      %v2733 = vld [vmem:[#allocation2 + $0x40] sm:$0xff]
      %v2734 = vld [vmem:[#allocation2 + $0x48] sm:$0xff]
      %v2735 = vld [vmem:[#allocation2 + $0x50] sm:$0xff]
      %v2736 = vld [vmem:[#allocation2 + $0x58] sm:$0xff]
      %v2737 = vld [vmem:[#allocation2 + $0x60] sm:$0xff]
      %v2738 = vld [vmem:[#allocation2 + $0x68] sm:$0xff]
      %v2739 = vld [vmem:[#allocation2 + $0x70] sm:$0xff]
      %v2740 = vld [vmem:[#allocation2 + $0x78] sm:$0xff]
      %v2741 = vadd.f32 %v2725, %v2663
      %v2742 = vadd.f32 %v2726, %v2666
      %v2743 = vadd.f32 %v2727, %v2671
      %v2744 = vadd.f32 %v2728, %v2674
      %v2745 = vadd.f32 %v2729, %v2679
      %v2746 = vadd.f32 %v2730, %v2682
      %v2747 = vadd.f32 %v2731, %v2687
      %v2748 = vadd.f32 %v2732, %v2690
      %v2749 = vadd.f32 %v2733, %v2695
      %v2750 = vadd.f32 %v2734, %v2698
      %v2751 = vadd.f32 %v2735, %v2703
      %v2752 = vadd.f32 %v2736, %v2706
      %v2753 = vadd.f32 %v2737, %v2711
      %v2754 = vadd.f32 %v2738, %v2714
      %v2755 = vadd.f32 %v2739, %v2719
      %v2756 = vadd.f32 %v2740, %v2722
      %2757 = vst.msk [vmem:[#allocation2] sm:$0xff] %vm603, %v2741
      %2758 = vst.msk [vmem:[#allocation2 + $0x8] sm:$0xff] %vm603, %v2742
      %2759 = vst.msk [vmem:[#allocation2 + $0x10] sm:$0xff] %vm603, %v2743
      %2760 = vst.msk [vmem:[#allocation2 + $0x18] sm:$0xff] %vm603, %v2744
      %2761 = vst.msk [vmem:[#allocation2 + $0x20] sm:$0xff] %vm603, %v2745
      %2762 = vst.msk [vmem:[#allocation2 + $0x28] sm:$0xff] %vm603, %v2746
      %2763 = vst.msk [vmem:[#allocation2 + $0x30] sm:$0xff] %vm603, %v2747
      %2764 = vst.msk [vmem:[#allocation2 + $0x38] sm:$0xff] %vm603, %v2748
      %2765 = vst.msk [vmem:[#allocation2 + $0x40] sm:$0xff] %vm603, %v2749
      %2766 = vst.msk [vmem:[#allocation2 + $0x48] sm:$0xff] %vm603, %v2750
      %2767 = vst.msk [vmem:[#allocation2 + $0x50] sm:$0xff] %vm603, %v2751
      %2768 = vst.msk [vmem:[#allocation2 + $0x58] sm:$0xff] %vm603, %v2752
      %2769 = vst.msk [vmem:[#allocation2 + $0x60] sm:$0xff] %vm603, %v2753
      %2770 = vst.msk [vmem:[#allocation2 + $0x68] sm:$0xff] %vm603, %v2754
      %2771 = vst.msk [vmem:[#allocation2 + $0x70] sm:$0xff] %vm603, %v2755
      %2772 = vst.msk [vmem:[#allocation2 + $0x78] sm:$0xff] %vm603, %v2756
      %v2773 = vld [vmem:[%s2458 + $0x8] sm:$0xe]
      %v2774 = vld [vmem:[%s2458 + $0xc] sm:$0xf]
      %v2775 = vld [vmem:[%s2458 + $0x10] sm:$0x1]
      %v2776 = vld [vmem:[%s2458 + $0x24] sm:$0xe]
      %v2777 = vld [vmem:[%s2458 + $0x28] sm:$0xf]
      %v2778 = vld [vmem:[%s2458 + $0x2c] sm:$0x1]
      %v2779 = vld [vmem:[%s2458 + $0x40] sm:$0xe]
      %v2780 = vld [vmem:[%s2458 + $0x44] sm:$0xf]
      %v2781 = vld [vmem:[%s2458 + $0x48] sm:$0x1]
      %v2782 = vld [vmem:[%s2458 + $0x5c] sm:$0xe]
      %v2783 = vld [vmem:[%s2458 + $0x60] sm:$0xf]
      %v2784 = vld [vmem:[%s2458 + $0x64] sm:$0x1]
      %v2785 = vld [vmem:[%s2458 + $0x78] sm:$0xe]
      %v2786 = vld [vmem:[%s2458 + $0x7c] sm:$0xf]
      %v2787 = vld [vmem:[%s2458 + $0x80] sm:$0x1]
      %v2788 = vld [vmem:[%s2458 + $0x94] sm:$0xe]
      %v2789 = vld [vmem:[%s2458 + $0x98] sm:$0xf]
      %v2790 = vld [vmem:[%s2458 + $0x9c] sm:$0x1]
      %v2791 = vld [vmem:[%s2458 + $0xb0] sm:$0xe]
      %v2792 = vld [vmem:[%s2458 + $0xb4] sm:$0xf]
      %v2793 = vld [vmem:[%s2458 + $0xb8] sm:$0x1]
      %v2794 = vld [vmem:[%s2458 + $0xcc] sm:$0xe]
      %v2795 = vld [vmem:[%s2458 + $0xd0] sm:$0xf]
      %v2796 = vld [vmem:[%s2458 + $0xd4] sm:$0x1]
      %v2821 = vrot.slane %v2773, 5
      %v2822 = vrot.slane %v2821, 4
      %v2823 = vrot.slane %v2774, 5
      %v2824 = vsel %vm347, %v2822, %v2823
      %v2825 = vrot.slane %v2823, 4
      %v2826 = vrot.slane %v2775, 5
      %v2827 = vsel %vm347, %v2825, %v2826
      %v2828 = vrot.slane %v2776, 5
      %v2829 = vrot.slane %v2828, 4
      %v2830 = vrot.slane %v2777, 5
      %v2831 = vsel %vm347, %v2829, %v2830
      %v2832 = vrot.slane %v2830, 4
      %v2833 = vrot.slane %v2778, 5
      %v2834 = vsel %vm347, %v2832, %v2833
      %v2835 = vrot.slane %v2779, 5
      %v2836 = vrot.slane %v2835, 4
      %v2837 = vrot.slane %v2780, 5
      %v2838 = vsel %vm347, %v2836, %v2837
      %v2839 = vrot.slane %v2837, 4
      %v2840 = vrot.slane %v2781, 5
      %v2841 = vsel %vm347, %v2839, %v2840
      %v2842 = vrot.slane %v2782, 5
      %v2843 = vrot.slane %v2842, 4
      %v2844 = vrot.slane %v2783, 5
      %v2845 = vsel %vm347, %v2843, %v2844
      %v2846 = vrot.slane %v2844, 4
      %v2847 = vrot.slane %v2784, 5
      %v2848 = vsel %vm347, %v2846, %v2847
      %v2849 = vrot.slane %v2785, 5
      %v2850 = vrot.slane %v2849, 4
      %v2851 = vrot.slane %v2786, 5
      %v2852 = vsel %vm347, %v2850, %v2851
      %v2853 = vrot.slane %v2851, 4
      %v2854 = vrot.slane %v2787, 5
      %v2855 = vsel %vm347, %v2853, %v2854
      %v2856 = vrot.slane %v2788, 5
      %v2857 = vrot.slane %v2856, 4
      %v2858 = vrot.slane %v2789, 5
      %v2859 = vsel %vm347, %v2857, %v2858
      %v2860 = vrot.slane %v2858, 4
      %v2861 = vrot.slane %v2790, 5
      %v2862 = vsel %vm347, %v2860, %v2861
      %v2863 = vrot.slane %v2791, 5
      %v2864 = vrot.slane %v2863, 4
      %v2865 = vrot.slane %v2792, 5
      %v2866 = vsel %vm347, %v2864, %v2865
      %v2867 = vrot.slane %v2865, 4
      %v2868 = vrot.slane %v2793, 5
      %v2869 = vsel %vm347, %v2867, %v2868
      %v2870 = vrot.slane %v2794, 5
      %v2871 = vrot.slane %v2870, 4
      %v2872 = vrot.slane %v2795, 5
      %v2873 = vsel %vm347, %v2871, %v2872
      %v2874 = vrot.slane %v2872, 4
      %v2875 = vrot.slane %v2796, 5
      %v2876 = vsel %vm347, %v2874, %v2875
      %s2877 = scalar_lea.vmem %s2, 112
      %v2878 = vld [vmem:[%s2877] sm:$0xf]
      %v2879 = vld [vmem:[%s2877 + $0x4] sm:$0xf]
      %v2880 = vld [vmem:[%s2877 + $0x8] sm:$0xf]
      %v2881 = vld [vmem:[%s2877 + $0xc] sm:$0xf]
      %v2882 = vunpack.c.l.b16 %v2824
      %v2883 = vunpack.c.l.b16 %v2827
      %v2884 = vunpack.c.l.b16 %v2831
      %v2885 = vunpack.c.l.b16 %v2834
      %v2886 = vunpack.c.l.b16 %v2838
      %v2887 = vunpack.c.l.b16 %v2841
      %v2888 = vunpack.c.l.b16 %v2845
      %v2889 = vunpack.c.l.b16 %v2848
      %v2890 = vunpack.c.l.b16 %v2852
      %v2891 = vunpack.c.l.b16 %v2855
      %v2892 = vunpack.c.l.b16 %v2859
      %v2893 = vunpack.c.l.b16 %v2862
      %v2894 = vunpack.c.l.b16 %v2866
      %v2895 = vunpack.c.l.b16 %v2869
      %v2896 = vunpack.c.l.b16 %v2873
      %v2897 = vunpack.c.l.b16 %v2876
      %v2898 = vpack.c.b16 %v2883, %v2882
      %v2899 = vpack.c.b16 %v2885, %v2884
      %v2900 = vpack.c.b16 %v2887, %v2886
      %v2901 = vpack.c.b16 %v2889, %v2888
      %v2902 = vpack.c.b16 %v2891, %v2890
      %v2903 = vpack.c.b16 %v2893, %v2892
      %v2904 = vpack.c.b16 %v2895, %v2894
      %v2905 = vpack.c.b16 %v2897, %v2896
      %v2910 = vunpack.c.l.b16 %v2878
      %v2911 = vunpack.c.l.b16 %v2879
      %v2912 = vunpack.c.l.b16 %v2880
      %v2913 = vunpack.c.l.b16 %v2881
      %v2914 = vpack.c.b16 %v2911, %v2910
      %v2915 = vpack.c.b16 %v2913, %v2912
      %v2919 = vsel %vm449, %v2898, 0
      %v2922 = vsel %vm449, %v2899, 0
      %v2925 = vsel %vm449, %v2900, 0
      %v2928 = vsel %vm449, %v2901, 0
      %v2931 = vsel %vm449, %v2902, 0
      %v2934 = vsel %vm449, %v2903, 0
      %v2937 = vsel %vm449, %v2904, 0
      %v2940 = vsel %vm449, %v2905, 0
      %2942 = vmatprep.subr.bf16.mxu0 0
      %2943 = vmatpush1.bf16.msra.mxu0 0
      %2944 = vmatprep.subr.bf16.mxu0 0
      %2945 = vmatpush1.bf16.msra.mxu0 0
      %2946 = vmatprep.subr.bf16.mxu0 0
      %2947 = vmatpush1.bf16.msra.mxu0 0
      %2948 = vmatprep.subr.bf16.mxu0 0
      %2949 = vmatpush1.bf16.msra.mxu0 0
      %2950 = vmatprep.subr.bf16.mxu0 0
      %2951 = vmatpush1.bf16.msra.mxu0 0
      %2952 = vmatprep.subr.bf16.mxu0 0
      %2953 = vmatpush1.bf16.msra.mxu0 0
      %2954 = vmatprep.subr.bf16.mxu0 0
      %2955 = vmatpush1.bf16.msra.mxu0 %v2915
      %2956 = vmatprep.subr.bf16.mxu0 0
      %2957 = vmatpush1.bf16.msra.mxu0 %v2914
      %2958 = vmatprep.subr.bf16.mxu0 0
      %2959 = vmatpush2.bf16.msra.mxu0 0
      %2960 = vmatprep.subr.bf16.mxu0 0
      %2961 = vmatpush2.bf16.msra.mxu0 0
      %2962 = vmatprep.subr.bf16.mxu0 0
      %2963 = vmatpush2.bf16.msra.mxu0 0
      %2964 = vmatprep.subr.bf16.mxu0 0
      %2965 = vmatpush2.bf16.msra.mxu0 0
      %2966 = vmatprep.subr.bf16.mxu0 0
      %2967 = vmatpush2.bf16.msra.mxu0 0
      %2968 = vmatprep.subr.bf16.mxu0 0
      %2969 = vmatpush2.bf16.msra.mxu0 0
      %2970 = vmatprep.subr.bf16.mxu0 0
      %2971 = vmatpush2.bf16.msra.mxu0 0
      %2972 = vmatprep.subr.bf16.mxu0 0
      %2973 = vmatpush2.bf16.msra.mxu0 0
      %2974 = vmatprep.mubr.bf16.mxu0 0
      %2975 = vmatmul.mubr.bf16.gmra.mxu0 %v2919
      %v2976 = vpop.f32.mrf.mxu0
      %v2977 = vadd.f32 0.0, %v2976
      %v2978 = vpop.f32.mrf.mxu0
      %v2979 = vpop.f32.mrf.mxu0
      %v2980 = vadd.f32 0.0, %v2979
      %v2981 = vpop.f32.mrf.mxu0
      %2982 = vmatprep.mubr.bf16.mxu0 0
      %2983 = vmatmul.mubr.bf16.gmra.mxu0 %v2922
      %v2984 = vpop.f32.mrf.mxu0
      %v2985 = vadd.f32 0.0, %v2984
      %v2986 = vpop.f32.mrf.mxu0
      %v2987 = vpop.f32.mrf.mxu0
      %v2988 = vadd.f32 0.0, %v2987
      %v2989 = vpop.f32.mrf.mxu0
      %2990 = vmatprep.mubr.bf16.mxu0 0
      %2991 = vmatmul.mubr.bf16.gmra.mxu0 %v2925
      %v2992 = vpop.f32.mrf.mxu0
      %v2993 = vadd.f32 0.0, %v2992
      %v2994 = vpop.f32.mrf.mxu0
      %v2995 = vpop.f32.mrf.mxu0
      %v2996 = vadd.f32 0.0, %v2995
      %v2997 = vpop.f32.mrf.mxu0
      %2998 = vmatprep.mubr.bf16.mxu0 0
      %2999 = vmatmul.mubr.bf16.gmra.mxu0 %v2928
      %v3000 = vpop.f32.mrf.mxu0
      %v3001 = vadd.f32 0.0, %v3000
      %v3002 = vpop.f32.mrf.mxu0
      %v3003 = vpop.f32.mrf.mxu0
      %v3004 = vadd.f32 0.0, %v3003
      %v3005 = vpop.f32.mrf.mxu0
      %3006 = vmatprep.mubr.bf16.mxu0 0
      %3007 = vmatmul.mubr.bf16.gmra.mxu0 %v2931
      %v3008 = vpop.f32.mrf.mxu0
      %v3009 = vadd.f32 0.0, %v3008
      %v3010 = vpop.f32.mrf.mxu0
      %v3011 = vpop.f32.mrf.mxu0
      %v3012 = vadd.f32 0.0, %v3011
      %v3013 = vpop.f32.mrf.mxu0
      %3014 = vmatprep.mubr.bf16.mxu0 0
      %3015 = vmatmul.mubr.bf16.gmra.mxu0 %v2934
      %v3016 = vpop.f32.mrf.mxu0
      %v3017 = vadd.f32 0.0, %v3016
      %v3018 = vpop.f32.mrf.mxu0
      %v3019 = vpop.f32.mrf.mxu0
      %v3020 = vadd.f32 0.0, %v3019
      %v3021 = vpop.f32.mrf.mxu0
      %3022 = vmatprep.mubr.bf16.mxu0 0
      %3023 = vmatmul.mubr.bf16.gmra.mxu0 %v2937
      %v3024 = vpop.f32.mrf.mxu0
      %v3025 = vadd.f32 0.0, %v3024
      %v3026 = vpop.f32.mrf.mxu0
      %v3027 = vpop.f32.mrf.mxu0
      %v3028 = vadd.f32 0.0, %v3027
      %v3029 = vpop.f32.mrf.mxu0
      %3030 = vmatprep.mubr.bf16.mxu0 0
      %3031 = vmatmul.mubr.bf16.gmra.mxu0 %v2940
      %v3032 = vpop.f32.mrf.mxu0
      %v3033 = vadd.f32 0.0, %v3032
      %v3034 = vpop.f32.mrf.mxu0
      %v3035 = vpop.f32.mrf.mxu0
      %v3036 = vadd.f32 0.0, %v3035
      %v3037 = vpop.f32.mrf.mxu0
      %3038 = vdwg.mxu0
      %v3039 = vld [vmem:[#allocation2] sm:$0xff]
      %v3040 = vld [vmem:[#allocation2 + $0x8] sm:$0xff]
      %v3041 = vld [vmem:[#allocation2 + $0x10] sm:$0xff]
      %v3042 = vld [vmem:[#allocation2 + $0x18] sm:$0xff]
      %v3043 = vld [vmem:[#allocation2 + $0x20] sm:$0xff]
      %v3044 = vld [vmem:[#allocation2 + $0x28] sm:$0xff]
      %v3045 = vld [vmem:[#allocation2 + $0x30] sm:$0xff]
      %v3046 = vld [vmem:[#allocation2 + $0x38] sm:$0xff]
      %v3047 = vld [vmem:[#allocation2 + $0x40] sm:$0xff]
      %v3048 = vld [vmem:[#allocation2 + $0x48] sm:$0xff]
      %v3049 = vld [vmem:[#allocation2 + $0x50] sm:$0xff]
      %v3050 = vld [vmem:[#allocation2 + $0x58] sm:$0xff]
      %v3051 = vld [vmem:[#allocation2 + $0x60] sm:$0xff]
      %v3052 = vld [vmem:[#allocation2 + $0x68] sm:$0xff]
      %v3053 = vld [vmem:[#allocation2 + $0x70] sm:$0xff]
      %v3054 = vld [vmem:[#allocation2 + $0x78] sm:$0xff]
      %v3055 = vadd.f32 %v3039, %v2977
      %v3056 = vadd.f32 %v3040, %v2980
      %v3057 = vadd.f32 %v3041, %v2985
      %v3058 = vadd.f32 %v3042, %v2988
      %v3059 = vadd.f32 %v3043, %v2993
      %v3060 = vadd.f32 %v3044, %v2996
      %v3061 = vadd.f32 %v3045, %v3001
      %v3062 = vadd.f32 %v3046, %v3004
      %v3063 = vadd.f32 %v3047, %v3009
      %v3064 = vadd.f32 %v3048, %v3012
      %v3065 = vadd.f32 %v3049, %v3017
      %v3066 = vadd.f32 %v3050, %v3020
      %v3067 = vadd.f32 %v3051, %v3025
      %v3068 = vadd.f32 %v3052, %v3028
      %v3069 = vadd.f32 %v3053, %v3033
      %v3070 = vadd.f32 %v3054, %v3036
      %3071 = vst.msk [vmem:[#allocation2] sm:$0xff] %vm603, %v3055
      %3072 = vst.msk [vmem:[#allocation2 + $0x8] sm:$0xff] %vm603, %v3056
      %3073 = vst.msk [vmem:[#allocation2 + $0x10] sm:$0xff] %vm603, %v3057
      %3074 = vst.msk [vmem:[#allocation2 + $0x18] sm:$0xff] %vm603, %v3058
      %3075 = vst.msk [vmem:[#allocation2 + $0x20] sm:$0xff] %vm603, %v3059
      %3076 = vst.msk [vmem:[#allocation2 + $0x28] sm:$0xff] %vm603, %v3060
      %3077 = vst.msk [vmem:[#allocation2 + $0x30] sm:$0xff] %vm603, %v3061
      %3078 = vst.msk [vmem:[#allocation2 + $0x38] sm:$0xff] %vm603, %v3062
      %3079 = vst.msk [vmem:[#allocation2 + $0x40] sm:$0xff] %vm603, %v3063
      %3080 = vst.msk [vmem:[#allocation2 + $0x48] sm:$0xff] %vm603, %v3064
      %3081 = vst.msk [vmem:[#allocation2 + $0x50] sm:$0xff] %vm603, %v3065
      %3082 = vst.msk [vmem:[#allocation2 + $0x58] sm:$0xff] %vm603, %v3066
      %3083 = vst.msk [vmem:[#allocation2 + $0x60] sm:$0xff] %vm603, %v3067
      %3084 = vst.msk [vmem:[#allocation2 + $0x68] sm:$0xff] %vm603, %v3068
      %3085 = vst.msk [vmem:[#allocation2 + $0x70] sm:$0xff] %vm603, %v3069
      %3086 = vst.msk [vmem:[#allocation2 + $0x78] sm:$0xff] %vm603, %v3070
      %v3087 = vld [vmem:[%s2458 + $0xc] sm:$0xf]
      %v3088 = vld [vmem:[%s2458 + $0x10] sm:$0xf]
      %v3089 = vld [vmem:[%s2458 + $0x28] sm:$0xf]
      %v3090 = vld [vmem:[%s2458 + $0x2c] sm:$0xf]
      %v3091 = vld [vmem:[%s2458 + $0x44] sm:$0xf]
      %v3092 = vld [vmem:[%s2458 + $0x48] sm:$0xf]
      %v3093 = vld [vmem:[%s2458 + $0x60] sm:$0xf]
      %v3094 = vld [vmem:[%s2458 + $0x64] sm:$0xf]
      %v3095 = vld [vmem:[%s2458 + $0x7c] sm:$0xf]
      %v3096 = vld [vmem:[%s2458 + $0x80] sm:$0xf]
      %v3097 = vld [vmem:[%s2458 + $0x98] sm:$0xf]
      %v3098 = vld [vmem:[%s2458 + $0x9c] sm:$0xf]
      %v3099 = vld [vmem:[%s2458 + $0xb4] sm:$0xf]
      %v3100 = vld [vmem:[%s2458 + $0xb8] sm:$0xf]
      %v3101 = vld [vmem:[%s2458 + $0xd0] sm:$0xf]
      %v3102 = vld [vmem:[%s2458 + $0xd4] sm:$0xf]
      %s3103 = scalar_lea.vmem %s2, 128
      %v3104 = vld [vmem:[%s3103] sm:$0xf]
      %v3105 = vld [vmem:[%s3103 + $0x4] sm:$0xf]
      %v3106 = vld [vmem:[%s3103 + $0x8] sm:$0xf]
      %v3107 = vld [vmem:[%s3103 + $0xc] sm:$0xf]
      %v3124 = vunpack.c.l.b16 %v3087
      %v3125 = vunpack.c.l.b16 %v3088
      %v3126 = vunpack.c.l.b16 %v3089
      %v3127 = vunpack.c.l.b16 %v3090
      %v3128 = vunpack.c.l.b16 %v3091
      %v3129 = vunpack.c.l.b16 %v3092
      %v3130 = vunpack.c.l.b16 %v3093
      %v3131 = vunpack.c.l.b16 %v3094
      %v3132 = vunpack.c.l.b16 %v3095
      %v3133 = vunpack.c.l.b16 %v3096
      %v3134 = vunpack.c.l.b16 %v3097
      %v3135 = vunpack.c.l.b16 %v3098
      %v3136 = vunpack.c.l.b16 %v3099
      %v3137 = vunpack.c.l.b16 %v3100
      %v3138 = vunpack.c.l.b16 %v3101
      %v3139 = vunpack.c.l.b16 %v3102
      %v3140 = vpack.c.b16 %v3125, %v3124
      %v3141 = vpack.c.b16 %v3127, %v3126
      %v3142 = vpack.c.b16 %v3129, %v3128
      %v3143 = vpack.c.b16 %v3131, %v3130
      %v3144 = vpack.c.b16 %v3133, %v3132
      %v3145 = vpack.c.b16 %v3135, %v3134
      %v3146 = vpack.c.b16 %v3137, %v3136
      %v3147 = vpack.c.b16 %v3139, %v3138
      %v3152 = vunpack.c.l.b16 %v3104
      %v3153 = vunpack.c.l.b16 %v3105
      %v3154 = vunpack.c.l.b16 %v3106
      %v3155 = vunpack.c.l.b16 %v3107
      %v3156 = vpack.c.b16 %v3153, %v3152
      %v3157 = vpack.c.b16 %v3155, %v3154
      %v3161 = vsel %vm449, %v3140, 0
      %v3164 = vsel %vm449, %v3141, 0
      %v3167 = vsel %vm449, %v3142, 0
      %v3170 = vsel %vm449, %v3143, 0
      %v3173 = vsel %vm449, %v3144, 0
      %v3176 = vsel %vm449, %v3145, 0
      %v3179 = vsel %vm449, %v3146, 0
      %v3182 = vsel %vm449, %v3147, 0
      %3184 = vmatprep.subr.bf16.mxu0 0
      %3185 = vmatpush1.bf16.msra.mxu0 0
      %3186 = vmatprep.subr.bf16.mxu0 0
      %3187 = vmatpush1.bf16.msra.mxu0 0
      %3188 = vmatprep.subr.bf16.mxu0 0
      %3189 = vmatpush1.bf16.msra.mxu0 0
      %3190 = vmatprep.subr.bf16.mxu0 0
      %3191 = vmatpush1.bf16.msra.mxu0 0
      %3192 = vmatprep.subr.bf16.mxu0 0
      %3193 = vmatpush1.bf16.msra.mxu0 0
      %3194 = vmatprep.subr.bf16.mxu0 0
      %3195 = vmatpush1.bf16.msra.mxu0 0
      %3196 = vmatprep.subr.bf16.mxu0 0
      %3197 = vmatpush1.bf16.msra.mxu0 %v3157
      %3198 = vmatprep.subr.bf16.mxu0 0
      %3199 = vmatpush1.bf16.msra.mxu0 %v3156
      %3200 = vmatprep.subr.bf16.mxu0 0
      %3201 = vmatpush2.bf16.msra.mxu0 0
      %3202 = vmatprep.subr.bf16.mxu0 0
      %3203 = vmatpush2.bf16.msra.mxu0 0
      %3204 = vmatprep.subr.bf16.mxu0 0
      %3205 = vmatpush2.bf16.msra.mxu0 0
      %3206 = vmatprep.subr.bf16.mxu0 0
      %3207 = vmatpush2.bf16.msra.mxu0 0
      %3208 = vmatprep.subr.bf16.mxu0 0
      %3209 = vmatpush2.bf16.msra.mxu0 0
      %3210 = vmatprep.subr.bf16.mxu0 0
      %3211 = vmatpush2.bf16.msra.mxu0 0
      %3212 = vmatprep.subr.bf16.mxu0 0
      %3213 = vmatpush2.bf16.msra.mxu0 0
      %3214 = vmatprep.subr.bf16.mxu0 0
      %3215 = vmatpush2.bf16.msra.mxu0 0
      %3216 = vmatprep.mubr.bf16.mxu0 0
      %3217 = vmatmul.mubr.bf16.gmra.mxu0 %v3161
      %v3218 = vpop.f32.mrf.mxu0
      %v3219 = vadd.f32 0.0, %v3218
      %v3220 = vpop.f32.mrf.mxu0
      %v3221 = vpop.f32.mrf.mxu0
      %v3222 = vadd.f32 0.0, %v3221
      %v3223 = vpop.f32.mrf.mxu0
      %3224 = vmatprep.mubr.bf16.mxu0 0
      %3225 = vmatmul.mubr.bf16.gmra.mxu0 %v3164
      %v3226 = vpop.f32.mrf.mxu0
      %v3227 = vadd.f32 0.0, %v3226
      %v3228 = vpop.f32.mrf.mxu0
      %v3229 = vpop.f32.mrf.mxu0
      %v3230 = vadd.f32 0.0, %v3229
      %v3231 = vpop.f32.mrf.mxu0
      %3232 = vmatprep.mubr.bf16.mxu0 0
      %3233 = vmatmul.mubr.bf16.gmra.mxu0 %v3167
      %v3234 = vpop.f32.mrf.mxu0
      %v3235 = vadd.f32 0.0, %v3234
      %v3236 = vpop.f32.mrf.mxu0
      %v3237 = vpop.f32.mrf.mxu0
      %v3238 = vadd.f32 0.0, %v3237
      %v3239 = vpop.f32.mrf.mxu0
      %3240 = vmatprep.mubr.bf16.mxu0 0
      %3241 = vmatmul.mubr.bf16.gmra.mxu0 %v3170
      %v3242 = vpop.f32.mrf.mxu0
      %v3243 = vadd.f32 0.0, %v3242
      %v3244 = vpop.f32.mrf.mxu0
      %v3245 = vpop.f32.mrf.mxu0
      %v3246 = vadd.f32 0.0, %v3245
      %v3247 = vpop.f32.mrf.mxu0
      %3248 = vmatprep.mubr.bf16.mxu0 0
      %3249 = vmatmul.mubr.bf16.gmra.mxu0 %v3173
      %v3250 = vpop.f32.mrf.mxu0
      %v3251 = vadd.f32 0.0, %v3250
      %v3252 = vpop.f32.mrf.mxu0
      %v3253 = vpop.f32.mrf.mxu0
      %v3254 = vadd.f32 0.0, %v3253
      %v3255 = vpop.f32.mrf.mxu0
      %3256 = vmatprep.mubr.bf16.mxu0 0
      %3257 = vmatmul.mubr.bf16.gmra.mxu0 %v3176
      %v3258 = vpop.f32.mrf.mxu0
      %v3259 = vadd.f32 0.0, %v3258
      %v3260 = vpop.f32.mrf.mxu0
      %v3261 = vpop.f32.mrf.mxu0
      %v3262 = vadd.f32 0.0, %v3261
      %v3263 = vpop.f32.mrf.mxu0
      %3264 = vmatprep.mubr.bf16.mxu0 0
      %3265 = vmatmul.mubr.bf16.gmra.mxu0 %v3179
      %v3266 = vpop.f32.mrf.mxu0
      %v3267 = vadd.f32 0.0, %v3266
      %v3268 = vpop.f32.mrf.mxu0
      %v3269 = vpop.f32.mrf.mxu0
      %v3270 = vadd.f32 0.0, %v3269
      %v3271 = vpop.f32.mrf.mxu0
      %3272 = vmatprep.mubr.bf16.mxu0 0
      %3273 = vmatmul.mubr.bf16.gmra.mxu0 %v3182
      %v3274 = vpop.f32.mrf.mxu0
      %v3275 = vadd.f32 0.0, %v3274
      %v3276 = vpop.f32.mrf.mxu0
      %v3277 = vpop.f32.mrf.mxu0
      %v3278 = vadd.f32 0.0, %v3277
      %v3279 = vpop.f32.mrf.mxu0
      %3280 = vdwg.mxu0
      %v3281 = vld [vmem:[#allocation2] sm:$0xff]
      %v3282 = vld [vmem:[#allocation2 + $0x8] sm:$0xff]
      %v3283 = vld [vmem:[#allocation2 + $0x10] sm:$0xff]
      %v3284 = vld [vmem:[#allocation2 + $0x18] sm:$0xff]
      %v3285 = vld [vmem:[#allocation2 + $0x20] sm:$0xff]
      %v3286 = vld [vmem:[#allocation2 + $0x28] sm:$0xff]
      %v3287 = vld [vmem:[#allocation2 + $0x30] sm:$0xff]
      %v3288 = vld [vmem:[#allocation2 + $0x38] sm:$0xff]
      %v3289 = vld [vmem:[#allocation2 + $0x40] sm:$0xff]
      %v3290 = vld [vmem:[#allocation2 + $0x48] sm:$0xff]
      %v3291 = vld [vmem:[#allocation2 + $0x50] sm:$0xff]
      %v3292 = vld [vmem:[#allocation2 + $0x58] sm:$0xff]
      %v3293 = vld [vmem:[#allocation2 + $0x60] sm:$0xff]
      %v3294 = vld [vmem:[#allocation2 + $0x68] sm:$0xff]
      %v3295 = vld [vmem:[#allocation2 + $0x70] sm:$0xff]
      %v3296 = vld [vmem:[#allocation2 + $0x78] sm:$0xff]
      %v3297 = vadd.f32 %v3281, %v3219
      %v3298 = vadd.f32 %v3282, %v3222
      %v3299 = vadd.f32 %v3283, %v3227
      %v3300 = vadd.f32 %v3284, %v3230
      %v3301 = vadd.f32 %v3285, %v3235
      %v3302 = vadd.f32 %v3286, %v3238
      %v3303 = vadd.f32 %v3287, %v3243
      %v3304 = vadd.f32 %v3288, %v3246
      %v3305 = vadd.f32 %v3289, %v3251
      %v3306 = vadd.f32 %v3290, %v3254
      %v3307 = vadd.f32 %v3291, %v3259
      %v3308 = vadd.f32 %v3292, %v3262
      %v3309 = vadd.f32 %v3293, %v3267
      %v3310 = vadd.f32 %v3294, %v3270
      %v3311 = vadd.f32 %v3295, %v3275
      %v3312 = vadd.f32 %v3296, %v3278
      %3313 = vst.msk [vmem:[#allocation2] sm:$0xff] %vm603, %v3297
      %3314 = vst.msk [vmem:[#allocation2 + $0x8] sm:$0xff] %vm603, %v3298
      %3315 = vst.msk [vmem:[#allocation2 + $0x10] sm:$0xff] %vm603, %v3299
      %3316 = vst.msk [vmem:[#allocation2 + $0x18] sm:$0xff] %vm603, %v3300
      %3317 = vst.msk [vmem:[#allocation2 + $0x20] sm:$0xff] %vm603, %v3301
      %3318 = vst.msk [vmem:[#allocation2 + $0x28] sm:$0xff] %vm603, %v3302
      %3319 = vst.msk [vmem:[#allocation2 + $0x30] sm:$0xff] %vm603, %v3303
      %3320 = vst.msk [vmem:[#allocation2 + $0x38] sm:$0xff] %vm603, %v3304
      %3321 = vst.msk [vmem:[#allocation2 + $0x40] sm:$0xff] %vm603, %v3305
      %3322 = vst.msk [vmem:[#allocation2 + $0x48] sm:$0xff] %vm603, %v3306
      %3323 = vst.msk [vmem:[#allocation2 + $0x50] sm:$0xff] %vm603, %v3307
      %3324 = vst.msk [vmem:[#allocation2 + $0x58] sm:$0xff] %vm603, %v3308
      %3325 = vst.msk [vmem:[#allocation2 + $0x60] sm:$0xff] %vm603, %v3309
      %3326 = vst.msk [vmem:[#allocation2 + $0x68] sm:$0xff] %vm603, %v3310
      %3327 = vst.msk [vmem:[#allocation2 + $0x70] sm:$0xff] %vm603, %v3311
      %3328 = vst.msk [vmem:[#allocation2 + $0x78] sm:$0xff] %vm603, %v3312
      %v3329 = vld [vmem:[#allocation2] sm:$0xff]
      %v3330 = vld [vmem:[#allocation2 + $0x8] sm:$0xff]
      %v3331 = vld [vmem:[#allocation2 + $0x10] sm:$0xff]
      %v3332 = vld [vmem:[#allocation2 + $0x18] sm:$0xff]
      %v3333 = vld [vmem:[#allocation2 + $0x20] sm:$0xff]
      %v3334 = vld [vmem:[#allocation2 + $0x28] sm:$0xff]
      %v3335 = vld [vmem:[#allocation2 + $0x30] sm:$0xff]
      %v3336 = vld [vmem:[#allocation2 + $0x38] sm:$0xff]
      %v3337 = vld [vmem:[#allocation2 + $0x40] sm:$0xff]
      %v3338 = vld [vmem:[#allocation2 + $0x48] sm:$0xff]
      %v3339 = vld [vmem:[#allocation2 + $0x50] sm:$0xff]
      %v3340 = vld [vmem:[#allocation2 + $0x58] sm:$0xff]
      %v3341 = vld [vmem:[#allocation2 + $0x60] sm:$0xff]
      %v3342 = vld [vmem:[#allocation2 + $0x68] sm:$0xff]
      %v3343 = vld [vmem:[#allocation2 + $0x70] sm:$0xff]
      %v3344 = vld [vmem:[#allocation2 + $0x78] sm:$0xff]
      %v3345 = vld [vmem:[%s4 + $0x1] sm:$0x1]
      %v3346 = vlaneseq
      %v3347 = vshrl.u32 %v3346, 7
      %v3348 = vsub.s32 0, %v3347
      %v3349 = vrot.slane %v3345, %v3348
      %v3350 = vadd.f32 %v3329, %v3349
      %v3351 = vadd.f32 %v3330, %v3349
      %v3352 = vadd.f32 %v3331, %v3349
      %v3353 = vadd.f32 %v3332, %v3349
      %v3354 = vadd.f32 %v3333, %v3349
      %v3355 = vadd.f32 %v3334, %v3349
      %v3356 = vadd.f32 %v3335, %v3349
      %v3357 = vadd.f32 %v3336, %v3349
      %v3358 = vadd.f32 %v3337, %v3349
      %v3359 = vadd.f32 %v3338, %v3349
      %v3360 = vadd.f32 %v3339, %v3349
      %v3361 = vadd.f32 %v3340, %v3349
      %v3362 = vadd.f32 %v3341, %v3349
      %v3363 = vadd.f32 %v3342, %v3349
      %v3364 = vadd.f32 %v3343, %v3349
      %v3365 = vadd.f32 %v3344, %v3349
      %v3366 = vmax.f32 %v3350, 0.0
      %v3367 = vmax.f32 %v3351, 0.0
      %v3368 = vmax.f32 %v3352, 0.0
      %v3369 = vmax.f32 %v3353, 0.0
      %v3370 = vmax.f32 %v3354, 0.0
      %v3371 = vmax.f32 %v3355, 0.0
      %v3372 = vmax.f32 %v3356, 0.0
      %v3373 = vmax.f32 %v3357, 0.0
      %v3374 = vmax.f32 %v3358, 0.0
      %v3375 = vmax.f32 %v3359, 0.0
      %v3376 = vmax.f32 %v3360, 0.0
      %v3377 = vmax.f32 %v3361, 0.0
      %v3378 = vmax.f32 %v3362, 0.0
      %v3379 = vmax.f32 %v3363, 0.0
      %v3380 = vmax.f32 %v3364, 0.0
      %v3381 = vmax.f32 %v3365, 0.0
      %v3382 = vld [vmem:[#allocation3] sm:$0xff]
      %v3383 = vld [vmem:[#allocation3 + $0x8] sm:$0xff]
      %v3384 = vld [vmem:[#allocation3 + $0x10] sm:$0xff]
      %v3385 = vld [vmem:[#allocation3 + $0x18] sm:$0xff]
      %v3386 = vld [vmem:[#allocation3 + $0x20] sm:$0xff]
      %v3387 = vld [vmem:[#allocation3 + $0x28] sm:$0xff]
      %v3388 = vld [vmem:[#allocation3 + $0x30] sm:$0xff]
      %v3389 = vld [vmem:[#allocation3 + $0x38] sm:$0xff]
      %v3390 = vld [vmem:[#allocation3 + $0x40] sm:$0xff]
      %v3391 = vld [vmem:[#allocation3 + $0x48] sm:$0xff]
      %v3392 = vld [vmem:[#allocation3 + $0x50] sm:$0xff]
      %v3393 = vld [vmem:[#allocation3 + $0x58] sm:$0xff]
      %v3394 = vld [vmem:[#allocation3 + $0x60] sm:$0xff]
      %v3395 = vld [vmem:[#allocation3 + $0x68] sm:$0xff]
      %v3396 = vld [vmem:[#allocation3 + $0x70] sm:$0xff]
      %v3397 = vld [vmem:[#allocation3 + $0x78] sm:$0xff]
      %v3398 = vpack.c.bf16 %v3367, %v3366
      %v3399 = vpack.c.bf16 %v3369, %v3368
      %v3400 = vpack.c.bf16 %v3371, %v3370
      %v3401 = vpack.c.bf16 %v3373, %v3372
      %v3402 = vpack.c.bf16 %v3375, %v3374
      %v3403 = vpack.c.bf16 %v3377, %v3376
      %v3404 = vpack.c.bf16 %v3379, %v3378
      %v3405 = vpack.c.bf16 %v3381, %v3380
      %s3406 = scalar_lea.vmem %s3, 8
      %v3407 = vld [vmem:[%s3406] sm:$0xf]
      %v3408 = vld [vmem:[%s3406 + $0x4] sm:$0xf]
      %v3411 = vunpack.c.l.b16 %v3407
      %v3412 = vunpack.c.l.b16 %v3408
      %v3413 = vpack.c.b16 %v3412, %v3411
      %v3416 = vsel %vm603, %v3398, 0
      %v3419 = vsel %vm603, %v3399, 0
      %v3422 = vsel %vm603, %v3400, 0
      %v3425 = vsel %vm603, %v3401, 0
      %v3428 = vsel %vm603, %v3402, 0
      %v3431 = vsel %vm603, %v3403, 0
      %v3434 = vsel %vm603, %v3404, 0
      %v3437 = vsel %vm603, %v3405, 0
      %3439 = vmatprep.subr.bf16.mxu0 0
      %3440 = vmatpush1.bf16.msra.mxu0 0
      %3441 = vmatprep.subr.bf16.mxu0 0
      %3442 = vmatpush1.bf16.msra.mxu0 0
      %3443 = vmatprep.subr.bf16.mxu0 0
      %3444 = vmatpush1.bf16.msra.mxu0 0
      %3445 = vmatprep.subr.bf16.mxu0 0
      %3446 = vmatpush1.bf16.msra.mxu0 0
      %3447 = vmatprep.subr.bf16.mxu0 0
      %3448 = vmatpush1.bf16.msra.mxu0 0
      %3449 = vmatprep.subr.bf16.mxu0 0
      %3450 = vmatpush1.bf16.msra.mxu0 0
      %3451 = vmatprep.subr.bf16.mxu0 0
      %3452 = vmatpush1.bf16.msra.mxu0 0
      %3453 = vmatprep.subr.bf16.mxu0 0
      %3454 = vmatpush1.bf16.msra.mxu0 %v3413
      %3455 = vmatprep.subr.bf16.mxu0 0
      %3456 = vmatpush2.bf16.msra.mxu0 0
      %3457 = vmatprep.subr.bf16.mxu0 0
      %3458 = vmatpush2.bf16.msra.mxu0 0
      %3459 = vmatprep.subr.bf16.mxu0 0
      %3460 = vmatpush2.bf16.msra.mxu0 0
      %3461 = vmatprep.subr.bf16.mxu0 0
      %3462 = vmatpush2.bf16.msra.mxu0 0
      %3463 = vmatprep.subr.bf16.mxu0 0
      %3464 = vmatpush2.bf16.msra.mxu0 0
      %3465 = vmatprep.subr.bf16.mxu0 0
      %3466 = vmatpush2.bf16.msra.mxu0 0
      %3467 = vmatprep.subr.bf16.mxu0 0
      %3468 = vmatpush2.bf16.msra.mxu0 0
      %3469 = vmatprep.subr.bf16.mxu0 0
      %3470 = vmatpush2.bf16.msra.mxu0 0
      %3471 = vmatprep.mubr.bf16.mxu0 0
      %3472 = vmatmul.mubr.bf16.gmra.mxu0 %v3416
      %v3473 = vpop.f32.mrf.mxu0
      %v3474 = vadd.f32 0.0, %v3473
      %v3475 = vpop.f32.mrf.mxu0
      %v3476 = vpop.f32.mrf.mxu0
      %v3477 = vadd.f32 0.0, %v3476
      %v3478 = vpop.f32.mrf.mxu0
      %3479 = vmatprep.mubr.bf16.mxu0 0
      %3480 = vmatmul.mubr.bf16.gmra.mxu0 %v3419
      %v3481 = vpop.f32.mrf.mxu0
      %v3482 = vadd.f32 0.0, %v3481
      %v3483 = vpop.f32.mrf.mxu0
      %v3484 = vpop.f32.mrf.mxu0
      %v3485 = vadd.f32 0.0, %v3484
      %v3486 = vpop.f32.mrf.mxu0
      %3487 = vmatprep.mubr.bf16.mxu0 0
      %3488 = vmatmul.mubr.bf16.gmra.mxu0 %v3422
      %v3489 = vpop.f32.mrf.mxu0
      %v3490 = vadd.f32 0.0, %v3489
      %v3491 = vpop.f32.mrf.mxu0
      %v3492 = vpop.f32.mrf.mxu0
      %v3493 = vadd.f32 0.0, %v3492
      %v3494 = vpop.f32.mrf.mxu0
      %3495 = vmatprep.mubr.bf16.mxu0 0
      %3496 = vmatmul.mubr.bf16.gmra.mxu0 %v3425
      %v3497 = vpop.f32.mrf.mxu0
      %v3498 = vadd.f32 0.0, %v3497
      %v3499 = vpop.f32.mrf.mxu0
      %v3500 = vpop.f32.mrf.mxu0
      %v3501 = vadd.f32 0.0, %v3500
      %v3502 = vpop.f32.mrf.mxu0
      %3503 = vmatprep.mubr.bf16.mxu0 0
      %3504 = vmatmul.mubr.bf16.gmra.mxu0 %v3428
      %v3505 = vpop.f32.mrf.mxu0
      %v3506 = vadd.f32 0.0, %v3505
      %v3507 = vpop.f32.mrf.mxu0
      %v3508 = vpop.f32.mrf.mxu0
      %v3509 = vadd.f32 0.0, %v3508
      %v3510 = vpop.f32.mrf.mxu0
      %3511 = vmatprep.mubr.bf16.mxu0 0
      %3512 = vmatmul.mubr.bf16.gmra.mxu0 %v3431
      %v3513 = vpop.f32.mrf.mxu0
      %v3514 = vadd.f32 0.0, %v3513
      %v3515 = vpop.f32.mrf.mxu0
      %v3516 = vpop.f32.mrf.mxu0
      %v3517 = vadd.f32 0.0, %v3516
      %v3518 = vpop.f32.mrf.mxu0
      %3519 = vmatprep.mubr.bf16.mxu0 0
      %3520 = vmatmul.mubr.bf16.gmra.mxu0 %v3434
      %v3521 = vpop.f32.mrf.mxu0
      %v3522 = vadd.f32 0.0, %v3521
      %v3523 = vpop.f32.mrf.mxu0
      %v3524 = vpop.f32.mrf.mxu0
      %v3525 = vadd.f32 0.0, %v3524
      %v3526 = vpop.f32.mrf.mxu0
      %3527 = vmatprep.mubr.bf16.mxu0 0
      %3528 = vmatmul.mubr.bf16.gmra.mxu0 %v3437
      %v3529 = vpop.f32.mrf.mxu0
      %v3530 = vadd.f32 0.0, %v3529
      %v3531 = vpop.f32.mrf.mxu0
      %v3532 = vpop.f32.mrf.mxu0
      %v3533 = vadd.f32 0.0, %v3532
      %v3534 = vpop.f32.mrf.mxu0
      %3535 = vdwg.mxu0
      %v3536 = vadd.f32 %v3382, %v3474
      %v3537 = vadd.f32 %v3383, %v3477
      %v3538 = vadd.f32 %v3384, %v3482
      %v3539 = vadd.f32 %v3385, %v3485
      %v3540 = vadd.f32 %v3386, %v3490
      %v3541 = vadd.f32 %v3387, %v3493
      %v3542 = vadd.f32 %v3388, %v3498
      %v3543 = vadd.f32 %v3389, %v3501
      %v3544 = vadd.f32 %v3390, %v3506
      %v3545 = vadd.f32 %v3391, %v3509
      %v3546 = vadd.f32 %v3392, %v3514
      %v3547 = vadd.f32 %v3393, %v3517
      %v3548 = vadd.f32 %v3394, %v3522
      %v3549 = vadd.f32 %v3395, %v3525
      %v3550 = vadd.f32 %v3396, %v3530
      %v3551 = vadd.f32 %v3397, %v3533
      %3552 = vst.msk [vmem:[#allocation3] sm:$0xff] %vm603, %v3536
      %3553 = vst.msk [vmem:[#allocation3 + $0x8] sm:$0xff] %vm603, %v3537
      %3554 = vst.msk [vmem:[#allocation3 + $0x10] sm:$0xff] %vm603, %v3538
      %3555 = vst.msk [vmem:[#allocation3 + $0x18] sm:$0xff] %vm603, %v3539
      %3556 = vst.msk [vmem:[#allocation3 + $0x20] sm:$0xff] %vm603, %v3540
      %3557 = vst.msk [vmem:[#allocation3 + $0x28] sm:$0xff] %vm603, %v3541
      %3558 = vst.msk [vmem:[#allocation3 + $0x30] sm:$0xff] %vm603, %v3542
      %3559 = vst.msk [vmem:[#allocation3 + $0x38] sm:$0xff] %vm603, %v3543
      %3560 = vst.msk [vmem:[#allocation3 + $0x40] sm:$0xff] %vm603, %v3544
      %3561 = vst.msk [vmem:[#allocation3 + $0x48] sm:$0xff] %vm603, %v3545
      %3562 = vst.msk [vmem:[#allocation3 + $0x50] sm:$0xff] %vm603, %v3546
      %3563 = vst.msk [vmem:[#allocation3 + $0x58] sm:$0xff] %vm603, %v3547
      %3564 = vst.msk [vmem:[#allocation3 + $0x60] sm:$0xff] %vm603, %v3548
      %3565 = vst.msk [vmem:[#allocation3 + $0x68] sm:$0xff] %vm603, %v3549
      %3566 = vst.msk [vmem:[#allocation3 + $0x70] sm:$0xff] %vm603, %v3550
      %3567 = vst.msk [vmem:[#allocation3 + $0x78] sm:$0xff] %vm603, %v3551
      %s3568 = sadd.s32 %s292, 6
      %s3569 = smul.u32 %s3568, 7
      %s3570 = smul.addr %s3569, 4
      %s3571 = scalar_lea.vmem %s276, %s3570
      %v3572 = vld [vmem:[%s3571] sm:$0x8]
      %v3573 = vld [vmem:[%s3571 + $0x4] sm:$0xf]
      %v3574 = vld [vmem:[%s3571 + $0x8] sm:$0x7]
      %v3575 = vld [vmem:[%s3571 + $0x1c] sm:$0x8]
      %v3576 = vld [vmem:[%s3571 + $0x20] sm:$0xf]
      %v3577 = vld [vmem:[%s3571 + $0x24] sm:$0x7]
      %v3578 = vld [vmem:[%s3571 + $0x38] sm:$0x8]
      %v3579 = vld [vmem:[%s3571 + $0x3c] sm:$0xf]
      %v3580 = vld [vmem:[%s3571 + $0x40] sm:$0x7]
      %v3581 = vld [vmem:[%s3571 + $0x54] sm:$0x8]
      %v3582 = vld [vmem:[%s3571 + $0x58] sm:$0xf]
      %v3583 = vld [vmem:[%s3571 + $0x5c] sm:$0x7]
      %v3584 = vld [vmem:[%s3571 + $0x70] sm:$0x8]
      %v3585 = vld [vmem:[%s3571 + $0x74] sm:$0xf]
      %v3586 = vld [vmem:[%s3571 + $0x78] sm:$0x7]
      %v3587 = vld [vmem:[%s3571 + $0x8c] sm:$0x8]
      %v3588 = vld [vmem:[%s3571 + $0x90] sm:$0xf]
      %v3589 = vld [vmem:[%s3571 + $0x94] sm:$0x7]
      %v3590 = vld [vmem:[%s3571 + $0xa8] sm:$0x8]
      %v3591 = vld [vmem:[%s3571 + $0xac] sm:$0xf]
      %v3592 = vld [vmem:[%s3571 + $0xb0] sm:$0x7]
      %v3593 = vld [vmem:[%s3571 + $0xc4] sm:$0x8]
      %v3594 = vld [vmem:[%s3571 + $0xc8] sm:$0xf]
      %v3595 = vld [vmem:[%s3571 + $0xcc] sm:$0x7]
      %vm3620 = vcmask 1040384
      %vm3621 = vcmask 1044484
      %vm3622 = vmor %vm3620, %vm3621
      %v3623 = vrot.slane %v3572, 7
      %v3624 = vrot.slane %v3623, 4
      %v3625 = vrot.slane %v3573, 7
      %v3626 = vsel %vm3622, %v3624, %v3625
      %v3627 = vrot.slane %v3625, 4
      %v3628 = vrot.slane %v3574, 7
      %v3629 = vsel %vm3622, %v3627, %v3628
      %v3630 = vrot.slane %v3575, 7
      %v3631 = vrot.slane %v3630, 4
      %v3632 = vrot.slane %v3576, 7
      %v3633 = vsel %vm3622, %v3631, %v3632
      %v3634 = vrot.slane %v3632, 4
      %v3635 = vrot.slane %v3577, 7
      %v3636 = vsel %vm3622, %v3634, %v3635
      %v3637 = vrot.slane %v3578, 7
      %v3638 = vrot.slane %v3637, 4
      %v3639 = vrot.slane %v3579, 7
      %v3640 = vsel %vm3622, %v3638, %v3639
      %v3641 = vrot.slane %v3639, 4
      %v3642 = vrot.slane %v3580, 7
      %v3643 = vsel %vm3622, %v3641, %v3642
      %v3644 = vrot.slane %v3581, 7
      %v3645 = vrot.slane %v3644, 4
      %v3646 = vrot.slane %v3582, 7
      %v3647 = vsel %vm3622, %v3645, %v3646
      %v3648 = vrot.slane %v3646, 4
      %v3649 = vrot.slane %v3583, 7
      %v3650 = vsel %vm3622, %v3648, %v3649
      %v3651 = vrot.slane %v3584, 7
      %v3652 = vrot.slane %v3651, 4
      %v3653 = vrot.slane %v3585, 7
      %v3654 = vsel %vm3622, %v3652, %v3653
      %v3655 = vrot.slane %v3653, 4
      %v3656 = vrot.slane %v3586, 7
      %v3657 = vsel %vm3622, %v3655, %v3656
      %v3658 = vrot.slane %v3587, 7
      %v3659 = vrot.slane %v3658, 4
      %v3660 = vrot.slane %v3588, 7
      %v3661 = vsel %vm3622, %v3659, %v3660
      %v3662 = vrot.slane %v3660, 4
      %v3663 = vrot.slane %v3589, 7
      %v3664 = vsel %vm3622, %v3662, %v3663
      %v3665 = vrot.slane %v3590, 7
      %v3666 = vrot.slane %v3665, 4
      %v3667 = vrot.slane %v3591, 7
      %v3668 = vsel %vm3622, %v3666, %v3667
      %v3669 = vrot.slane %v3667, 4
      %v3670 = vrot.slane %v3592, 7
      %v3671 = vsel %vm3622, %v3669, %v3670
      %v3672 = vrot.slane %v3593, 7
      %v3673 = vrot.slane %v3672, 4
      %v3674 = vrot.slane %v3594, 7
      %v3675 = vsel %vm3622, %v3673, %v3674
      %v3676 = vrot.slane %v3674, 4
      %v3677 = vrot.slane %v3595, 7
      %v3678 = vsel %vm3622, %v3676, %v3677
      %s3679 = scalar_lea.vmem %s2, 144
      %v3680 = vld [vmem:[%s3679] sm:$0xf]
      %v3681 = vld [vmem:[%s3679 + $0x4] sm:$0xf]
      %v3682 = vld [vmem:[%s3679 + $0x8] sm:$0xf]
      %v3683 = vld [vmem:[%s3679 + $0xc] sm:$0xf]
      %v3684 = vunpack.c.l.b16 %v3626
      %v3685 = vunpack.c.l.b16 %v3629
      %v3686 = vunpack.c.l.b16 %v3633
      %v3687 = vunpack.c.l.b16 %v3636
      %v3688 = vunpack.c.l.b16 %v3640
      %v3689 = vunpack.c.l.b16 %v3643
      %v3690 = vunpack.c.l.b16 %v3647
      %v3691 = vunpack.c.l.b16 %v3650
      %v3692 = vunpack.c.l.b16 %v3654
      %v3693 = vunpack.c.l.b16 %v3657
      %v3694 = vunpack.c.l.b16 %v3661
      %v3695 = vunpack.c.l.b16 %v3664
      %v3696 = vunpack.c.l.b16 %v3668
      %v3697 = vunpack.c.l.b16 %v3671
      %v3698 = vunpack.c.l.b16 %v3675
      %v3699 = vunpack.c.l.b16 %v3678
      %v3700 = vpack.c.b16 %v3685, %v3684
      %v3701 = vpack.c.b16 %v3687, %v3686
      %v3702 = vpack.c.b16 %v3689, %v3688
      %v3703 = vpack.c.b16 %v3691, %v3690
      %v3704 = vpack.c.b16 %v3693, %v3692
      %v3705 = vpack.c.b16 %v3695, %v3694
      %v3706 = vpack.c.b16 %v3697, %v3696
      %v3707 = vpack.c.b16 %v3699, %v3698
      %v3712 = vunpack.c.l.b16 %v3680
      %v3713 = vunpack.c.l.b16 %v3681
      %v3714 = vunpack.c.l.b16 %v3682
      %v3715 = vunpack.c.l.b16 %v3683
      %v3716 = vpack.c.b16 %v3713, %v3712
      %v3717 = vpack.c.b16 %v3715, %v3714
      %v3721 = vsel %vm449, %v3700, 0
      %v3724 = vsel %vm449, %v3701, 0
      %v3727 = vsel %vm449, %v3702, 0
      %v3730 = vsel %vm449, %v3703, 0
      %v3733 = vsel %vm449, %v3704, 0
      %v3736 = vsel %vm449, %v3705, 0
      %v3739 = vsel %vm449, %v3706, 0
      %v3742 = vsel %vm449, %v3707, 0
      %3744 = vmatprep.subr.bf16.mxu0 0
      %3745 = vmatpush1.bf16.msra.mxu0 0
      %3746 = vmatprep.subr.bf16.mxu0 0
      %3747 = vmatpush1.bf16.msra.mxu0 0
      %3748 = vmatprep.subr.bf16.mxu0 0
      %3749 = vmatpush1.bf16.msra.mxu0 0
      %3750 = vmatprep.subr.bf16.mxu0 0
      %3751 = vmatpush1.bf16.msra.mxu0 0
      %3752 = vmatprep.subr.bf16.mxu0 0
      %3753 = vmatpush1.bf16.msra.mxu0 0
      %3754 = vmatprep.subr.bf16.mxu0 0
      %3755 = vmatpush1.bf16.msra.mxu0 0
      %3756 = vmatprep.subr.bf16.mxu0 0
      %3757 = vmatpush1.bf16.msra.mxu0 %v3717
      %3758 = vmatprep.subr.bf16.mxu0 0
      %3759 = vmatpush1.bf16.msra.mxu0 %v3716
      %3760 = vmatprep.subr.bf16.mxu0 0
      %3761 = vmatpush2.bf16.msra.mxu0 0
      %3762 = vmatprep.subr.bf16.mxu0 0
      %3763 = vmatpush2.bf16.msra.mxu0 0
      %3764 = vmatprep.subr.bf16.mxu0 0
      %3765 = vmatpush2.bf16.msra.mxu0 0
      %3766 = vmatprep.subr.bf16.mxu0 0
      %3767 = vmatpush2.bf16.msra.mxu0 0
      %3768 = vmatprep.subr.bf16.mxu0 0
      %3769 = vmatpush2.bf16.msra.mxu0 0
      %3770 = vmatprep.subr.bf16.mxu0 0
      %3771 = vmatpush2.bf16.msra.mxu0 0
      %3772 = vmatprep.subr.bf16.mxu0 0
      %3773 = vmatpush2.bf16.msra.mxu0 0
      %3774 = vmatprep.subr.bf16.mxu0 0
      %3775 = vmatpush2.bf16.msra.mxu0 0
      %3776 = vmatprep.mubr.bf16.mxu0 0
      %3777 = vmatmul.mubr.bf16.gmra.mxu0 %v3721
      %v3778 = vpop.f32.mrf.mxu0
      %v3779 = vadd.f32 0.0, %v3778
      %v3780 = vpop.f32.mrf.mxu0
      %v3781 = vpop.f32.mrf.mxu0
      %v3782 = vadd.f32 0.0, %v3781
      %v3783 = vpop.f32.mrf.mxu0
      %3784 = vmatprep.mubr.bf16.mxu0 0
      %3785 = vmatmul.mubr.bf16.gmra.mxu0 %v3724
      %v3786 = vpop.f32.mrf.mxu0
      %v3787 = vadd.f32 0.0, %v3786
      %v3788 = vpop.f32.mrf.mxu0
      %v3789 = vpop.f32.mrf.mxu0
      %v3790 = vadd.f32 0.0, %v3789
      %v3791 = vpop.f32.mrf.mxu0
      %3792 = vmatprep.mubr.bf16.mxu0 0
      %3793 = vmatmul.mubr.bf16.gmra.mxu0 %v3727
      %v3794 = vpop.f32.mrf.mxu0
      %v3795 = vadd.f32 0.0, %v3794
      %v3796 = vpop.f32.mrf.mxu0
      %v3797 = vpop.f32.mrf.mxu0
      %v3798 = vadd.f32 0.0, %v3797
      %v3799 = vpop.f32.mrf.mxu0
      %3800 = vmatprep.mubr.bf16.mxu0 0
      %3801 = vmatmul.mubr.bf16.gmra.mxu0 %v3730
      %v3802 = vpop.f32.mrf.mxu0
      %v3803 = vadd.f32 0.0, %v3802
      %v3804 = vpop.f32.mrf.mxu0
      %v3805 = vpop.f32.mrf.mxu0
      %v3806 = vadd.f32 0.0, %v3805
      %v3807 = vpop.f32.mrf.mxu0
      %3808 = vmatprep.mubr.bf16.mxu0 0
      %3809 = vmatmul.mubr.bf16.gmra.mxu0 %v3733
      %v3810 = vpop.f32.mrf.mxu0
      %v3811 = vadd.f32 0.0, %v3810
      %v3812 = vpop.f32.mrf.mxu0
      %v3813 = vpop.f32.mrf.mxu0
      %v3814 = vadd.f32 0.0, %v3813
      %v3815 = vpop.f32.mrf.mxu0
      %3816 = vmatprep.mubr.bf16.mxu0 0
      %3817 = vmatmul.mubr.bf16.gmra.mxu0 %v3736
      %v3818 = vpop.f32.mrf.mxu0
      %v3819 = vadd.f32 0.0, %v3818
      %v3820 = vpop.f32.mrf.mxu0
      %v3821 = vpop.f32.mrf.mxu0
      %v3822 = vadd.f32 0.0, %v3821
      %v3823 = vpop.f32.mrf.mxu0
      %3824 = vmatprep.mubr.bf16.mxu0 0
      %3825 = vmatmul.mubr.bf16.gmra.mxu0 %v3739
      %v3826 = vpop.f32.mrf.mxu0
      %v3827 = vadd.f32 0.0, %v3826
      %v3828 = vpop.f32.mrf.mxu0
      %v3829 = vpop.f32.mrf.mxu0
      %v3830 = vadd.f32 0.0, %v3829
      %v3831 = vpop.f32.mrf.mxu0
      %3832 = vmatprep.mubr.bf16.mxu0 0
      %3833 = vmatmul.mubr.bf16.gmra.mxu0 %v3742
      %v3834 = vpop.f32.mrf.mxu0
      %v3835 = vadd.f32 0.0, %v3834
      %v3836 = vpop.f32.mrf.mxu0
      %v3837 = vpop.f32.mrf.mxu0
      %v3838 = vadd.f32 0.0, %v3837
      %v3839 = vpop.f32.mrf.mxu0
      %3840 = vdwg.mxu0
      %3841 = vst.msk [vmem:[#allocation2] sm:$0xff] %vm603, %v3779
      %3842 = vst.msk [vmem:[#allocation2 + $0x8] sm:$0xff] %vm603, %v3782
      %3843 = vst.msk [vmem:[#allocation2 + $0x10] sm:$0xff] %vm603, %v3787
      %3844 = vst.msk [vmem:[#allocation2 + $0x18] sm:$0xff] %vm603, %v3790
      %3845 = vst.msk [vmem:[#allocation2 + $0x20] sm:$0xff] %vm603, %v3795
      %3846 = vst.msk [vmem:[#allocation2 + $0x28] sm:$0xff] %vm603, %v3798
      %3847 = vst.msk [vmem:[#allocation2 + $0x30] sm:$0xff] %vm603, %v3803
      %3848 = vst.msk [vmem:[#allocation2 + $0x38] sm:$0xff] %vm603, %v3806
      %3849 = vst.msk [vmem:[#allocation2 + $0x40] sm:$0xff] %vm603, %v3811
      %3850 = vst.msk [vmem:[#allocation2 + $0x48] sm:$0xff] %vm603, %v3814
      %3851 = vst.msk [vmem:[#allocation2 + $0x50] sm:$0xff] %vm603, %v3819
      %3852 = vst.msk [vmem:[#allocation2 + $0x58] sm:$0xff] %vm603, %v3822
      %3853 = vst.msk [vmem:[#allocation2 + $0x60] sm:$0xff] %vm603, %v3827
      %3854 = vst.msk [vmem:[#allocation2 + $0x68] sm:$0xff] %vm603, %v3830
      %3855 = vst.msk [vmem:[#allocation2 + $0x70] sm:$0xff] %vm603, %v3835
      %3856 = vst.msk [vmem:[#allocation2 + $0x78] sm:$0xff] %vm603, %v3838
      %v3857 = vld [vmem:[%s3571 + $0x8] sm:$0xe]
      %v3858 = vld [vmem:[%s3571 + $0xc] sm:$0xf]
      %v3859 = vld [vmem:[%s3571 + $0x10] sm:$0x1]
      %v3860 = vld [vmem:[%s3571 + $0x24] sm:$0xe]
      %v3861 = vld [vmem:[%s3571 + $0x28] sm:$0xf]
      %v3862 = vld [vmem:[%s3571 + $0x2c] sm:$0x1]
      %v3863 = vld [vmem:[%s3571 + $0x40] sm:$0xe]
      %v3864 = vld [vmem:[%s3571 + $0x44] sm:$0xf]
      %v3865 = vld [vmem:[%s3571 + $0x48] sm:$0x1]
      %v3866 = vld [vmem:[%s3571 + $0x5c] sm:$0xe]
      %v3867 = vld [vmem:[%s3571 + $0x60] sm:$0xf]
      %v3868 = vld [vmem:[%s3571 + $0x64] sm:$0x1]
      %v3869 = vld [vmem:[%s3571 + $0x78] sm:$0xe]
      %v3870 = vld [vmem:[%s3571 + $0x7c] sm:$0xf]
      %v3871 = vld [vmem:[%s3571 + $0x80] sm:$0x1]
      %v3872 = vld [vmem:[%s3571 + $0x94] sm:$0xe]
      %v3873 = vld [vmem:[%s3571 + $0x98] sm:$0xf]
      %v3874 = vld [vmem:[%s3571 + $0x9c] sm:$0x1]
      %v3875 = vld [vmem:[%s3571 + $0xb0] sm:$0xe]
      %v3876 = vld [vmem:[%s3571 + $0xb4] sm:$0xf]
      %v3877 = vld [vmem:[%s3571 + $0xb8] sm:$0x1]
      %v3878 = vld [vmem:[%s3571 + $0xcc] sm:$0xe]
      %v3879 = vld [vmem:[%s3571 + $0xd0] sm:$0xf]
      %v3880 = vld [vmem:[%s3571 + $0xd4] sm:$0x1]
      %v3905 = vrot.slane %v3857, 5
      %v3906 = vrot.slane %v3905, 4
      %v3907 = vrot.slane %v3858, 5
      %v3908 = vsel %vm347, %v3906, %v3907
      %v3909 = vrot.slane %v3907, 4
      %v3910 = vrot.slane %v3859, 5
      %v3911 = vsel %vm347, %v3909, %v3910
      %v3912 = vrot.slane %v3860, 5
      %v3913 = vrot.slane %v3912, 4
      %v3914 = vrot.slane %v3861, 5
      %v3915 = vsel %vm347, %v3913, %v3914
      %v3916 = vrot.slane %v3914, 4
      %v3917 = vrot.slane %v3862, 5
      %v3918 = vsel %vm347, %v3916, %v3917
      %v3919 = vrot.slane %v3863, 5
      %v3920 = vrot.slane %v3919, 4
      %v3921 = vrot.slane %v3864, 5
      %v3922 = vsel %vm347, %v3920, %v3921
      %v3923 = vrot.slane %v3921, 4
      %v3924 = vrot.slane %v3865, 5
      %v3925 = vsel %vm347, %v3923, %v3924
      %v3926 = vrot.slane %v3866, 5
      %v3927 = vrot.slane %v3926, 4
      %v3928 = vrot.slane %v3867, 5
      %v3929 = vsel %vm347, %v3927, %v3928
      %v3930 = vrot.slane %v3928, 4
      %v3931 = vrot.slane %v3868, 5
      %v3932 = vsel %vm347, %v3930, %v3931
      %v3933 = vrot.slane %v3869, 5
      %v3934 = vrot.slane %v3933, 4
      %v3935 = vrot.slane %v3870, 5
      %v3936 = vsel %vm347, %v3934, %v3935
      %v3937 = vrot.slane %v3935, 4
      %v3938 = vrot.slane %v3871, 5
      %v3939 = vsel %vm347, %v3937, %v3938
      %v3940 = vrot.slane %v3872, 5
      %v3941 = vrot.slane %v3940, 4
      %v3942 = vrot.slane %v3873, 5
      %v3943 = vsel %vm347, %v3941, %v3942
      %v3944 = vrot.slane %v3942, 4
      %v3945 = vrot.slane %v3874, 5
      %v3946 = vsel %vm347, %v3944, %v3945
      %v3947 = vrot.slane %v3875, 5
      %v3948 = vrot.slane %v3947, 4
      %v3949 = vrot.slane %v3876, 5
      %v3950 = vsel %vm347, %v3948, %v3949
      %v3951 = vrot.slane %v3949, 4
      %v3952 = vrot.slane %v3877, 5
      %v3953 = vsel %vm347, %v3951, %v3952
      %v3954 = vrot.slane %v3878, 5
      %v3955 = vrot.slane %v3954, 4
      %v3956 = vrot.slane %v3879, 5
      %v3957 = vsel %vm347, %v3955, %v3956
      %v3958 = vrot.slane %v3956, 4
      %v3959 = vrot.slane %v3880, 5
      %v3960 = vsel %vm347, %v3958, %v3959
      %s3961 = scalar_lea.vmem %s2, 160
      %v3962 = vld [vmem:[%s3961] sm:$0xf]
      %v3963 = vld [vmem:[%s3961 + $0x4] sm:$0xf]
      %v3964 = vld [vmem:[%s3961 + $0x8] sm:$0xf]
      %v3965 = vld [vmem:[%s3961 + $0xc] sm:$0xf]
      %v3966 = vunpack.c.l.b16 %v3908
      %v3967 = vunpack.c.l.b16 %v3911
      %v3968 = vunpack.c.l.b16 %v3915
      %v3969 = vunpack.c.l.b16 %v3918
      %v3970 = vunpack.c.l.b16 %v3922
      %v3971 = vunpack.c.l.b16 %v3925
      %v3972 = vunpack.c.l.b16 %v3929
      %v3973 = vunpack.c.l.b16 %v3932
      %v3974 = vunpack.c.l.b16 %v3936
      %v3975 = vunpack.c.l.b16 %v3939
      %v3976 = vunpack.c.l.b16 %v3943
      %v3977 = vunpack.c.l.b16 %v3946
      %v3978 = vunpack.c.l.b16 %v3950
      %v3979 = vunpack.c.l.b16 %v3953
      %v3980 = vunpack.c.l.b16 %v3957
      %v3981 = vunpack.c.l.b16 %v3960
      %v3982 = vpack.c.b16 %v3967, %v3966
      %v3983 = vpack.c.b16 %v3969, %v3968
      %v3984 = vpack.c.b16 %v3971, %v3970
      %v3985 = vpack.c.b16 %v3973, %v3972
      %v3986 = vpack.c.b16 %v3975, %v3974
      %v3987 = vpack.c.b16 %v3977, %v3976
      %v3988 = vpack.c.b16 %v3979, %v3978
      %v3989 = vpack.c.b16 %v3981, %v3980
      %v3994 = vunpack.c.l.b16 %v3962
      %v3995 = vunpack.c.l.b16 %v3963
      %v3996 = vunpack.c.l.b16 %v3964
      %v3997 = vunpack.c.l.b16 %v3965
      %v3998 = vpack.c.b16 %v3995, %v3994
      %v3999 = vpack.c.b16 %v3997, %v3996
      %v4003 = vsel %vm449, %v3982, 0
      %v4006 = vsel %vm449, %v3983, 0
      %v4009 = vsel %vm449, %v3984, 0
      %v4012 = vsel %vm449, %v3985, 0
      %v4015 = vsel %vm449, %v3986, 0
      %v4018 = vsel %vm449, %v3987, 0
      %v4021 = vsel %vm449, %v3988, 0
      %v4024 = vsel %vm449, %v3989, 0
      %4026 = vmatprep.subr.bf16.mxu0 0
      %4027 = vmatpush1.bf16.msra.mxu0 0
      %4028 = vmatprep.subr.bf16.mxu0 0
      %4029 = vmatpush1.bf16.msra.mxu0 0
      %4030 = vmatprep.subr.bf16.mxu0 0
      %4031 = vmatpush1.bf16.msra.mxu0 0
      %4032 = vmatprep.subr.bf16.mxu0 0
      %4033 = vmatpush1.bf16.msra.mxu0 0
      %4034 = vmatprep.subr.bf16.mxu0 0
      %4035 = vmatpush1.bf16.msra.mxu0 0
      %4036 = vmatprep.subr.bf16.mxu0 0
      %4037 = vmatpush1.bf16.msra.mxu0 0
      %4038 = vmatprep.subr.bf16.mxu0 0
      %4039 = vmatpush1.bf16.msra.mxu0 %v3999
      %4040 = vmatprep.subr.bf16.mxu0 0
      %4041 = vmatpush1.bf16.msra.mxu0 %v3998
      %4042 = vmatprep.subr.bf16.mxu0 0
      %4043 = vmatpush2.bf16.msra.mxu0 0
      %4044 = vmatprep.subr.bf16.mxu0 0
      %4045 = vmatpush2.bf16.msra.mxu0 0
      %4046 = vmatprep.subr.bf16.mxu0 0
      %4047 = vmatpush2.bf16.msra.mxu0 0
      %4048 = vmatprep.subr.bf16.mxu0 0
      %4049 = vmatpush2.bf16.msra.mxu0 0
      %4050 = vmatprep.subr.bf16.mxu0 0
      %4051 = vmatpush2.bf16.msra.mxu0 0
      %4052 = vmatprep.subr.bf16.mxu0 0
      %4053 = vmatpush2.bf16.msra.mxu0 0
      %4054 = vmatprep.subr.bf16.mxu0 0
      %4055 = vmatpush2.bf16.msra.mxu0 0
      %4056 = vmatprep.subr.bf16.mxu0 0
      %4057 = vmatpush2.bf16.msra.mxu0 0
      %4058 = vmatprep.mubr.bf16.mxu0 0
      %4059 = vmatmul.mubr.bf16.gmra.mxu0 %v4003
      %v4060 = vpop.f32.mrf.mxu0
      %v4061 = vadd.f32 0.0, %v4060
      %v4062 = vpop.f32.mrf.mxu0
      %v4063 = vpop.f32.mrf.mxu0
      %v4064 = vadd.f32 0.0, %v4063
      %v4065 = vpop.f32.mrf.mxu0
      %4066 = vmatprep.mubr.bf16.mxu0 0
      %4067 = vmatmul.mubr.bf16.gmra.mxu0 %v4006
      %v4068 = vpop.f32.mrf.mxu0
      %v4069 = vadd.f32 0.0, %v4068
      %v4070 = vpop.f32.mrf.mxu0
      %v4071 = vpop.f32.mrf.mxu0
      %v4072 = vadd.f32 0.0, %v4071
      %v4073 = vpop.f32.mrf.mxu0
      %4074 = vmatprep.mubr.bf16.mxu0 0
      %4075 = vmatmul.mubr.bf16.gmra.mxu0 %v4009
      %v4076 = vpop.f32.mrf.mxu0
      %v4077 = vadd.f32 0.0, %v4076
      %v4078 = vpop.f32.mrf.mxu0
      %v4079 = vpop.f32.mrf.mxu0
      %v4080 = vadd.f32 0.0, %v4079
      %v4081 = vpop.f32.mrf.mxu0
      %4082 = vmatprep.mubr.bf16.mxu0 0
      %4083 = vmatmul.mubr.bf16.gmra.mxu0 %v4012
      %v4084 = vpop.f32.mrf.mxu0
      %v4085 = vadd.f32 0.0, %v4084
      %v4086 = vpop.f32.mrf.mxu0
      %v4087 = vpop.f32.mrf.mxu0
      %v4088 = vadd.f32 0.0, %v4087
      %v4089 = vpop.f32.mrf.mxu0
      %4090 = vmatprep.mubr.bf16.mxu0 0
      %4091 = vmatmul.mubr.bf16.gmra.mxu0 %v4015
      %v4092 = vpop.f32.mrf.mxu0
      %v4093 = vadd.f32 0.0, %v4092
      %v4094 = vpop.f32.mrf.mxu0
      %v4095 = vpop.f32.mrf.mxu0
      %v4096 = vadd.f32 0.0, %v4095
      %v4097 = vpop.f32.mrf.mxu0
      %4098 = vmatprep.mubr.bf16.mxu0 0
      %4099 = vmatmul.mubr.bf16.gmra.mxu0 %v4018
      %v4100 = vpop.f32.mrf.mxu0
      %v4101 = vadd.f32 0.0, %v4100
      %v4102 = vpop.f32.mrf.mxu0
      %v4103 = vpop.f32.mrf.mxu0
      %v4104 = vadd.f32 0.0, %v4103
      %v4105 = vpop.f32.mrf.mxu0
      %4106 = vmatprep.mubr.bf16.mxu0 0
      %4107 = vmatmul.mubr.bf16.gmra.mxu0 %v4021
      %v4108 = vpop.f32.mrf.mxu0
      %v4109 = vadd.f32 0.0, %v4108
      %v4110 = vpop.f32.mrf.mxu0
      %v4111 = vpop.f32.mrf.mxu0
      %v4112 = vadd.f32 0.0, %v4111
      %v4113 = vpop.f32.mrf.mxu0
      %4114 = vmatprep.mubr.bf16.mxu0 0
      %4115 = vmatmul.mubr.bf16.gmra.mxu0 %v4024
      %v4116 = vpop.f32.mrf.mxu0
      %v4117 = vadd.f32 0.0, %v4116
      %v4118 = vpop.f32.mrf.mxu0
      %v4119 = vpop.f32.mrf.mxu0
      %v4120 = vadd.f32 0.0, %v4119
      %v4121 = vpop.f32.mrf.mxu0
      %4122 = vdwg.mxu0
      %v4123 = vld [vmem:[#allocation2] sm:$0xff]
      %v4124 = vld [vmem:[#allocation2 + $0x8] sm:$0xff]
      %v4125 = vld [vmem:[#allocation2 + $0x10] sm:$0xff]
      %v4126 = vld [vmem:[#allocation2 + $0x18] sm:$0xff]
      %v4127 = vld [vmem:[#allocation2 + $0x20] sm:$0xff]
      %v4128 = vld [vmem:[#allocation2 + $0x28] sm:$0xff]
      %v4129 = vld [vmem:[#allocation2 + $0x30] sm:$0xff]
      %v4130 = vld [vmem:[#allocation2 + $0x38] sm:$0xff]
      %v4131 = vld [vmem:[#allocation2 + $0x40] sm:$0xff]
      %v4132 = vld [vmem:[#allocation2 + $0x48] sm:$0xff]
      %v4133 = vld [vmem:[#allocation2 + $0x50] sm:$0xff]
      %v4134 = vld [vmem:[#allocation2 + $0x58] sm:$0xff]
      %v4135 = vld [vmem:[#allocation2 + $0x60] sm:$0xff]
      %v4136 = vld [vmem:[#allocation2 + $0x68] sm:$0xff]
      %v4137 = vld [vmem:[#allocation2 + $0x70] sm:$0xff]
      %v4138 = vld [vmem:[#allocation2 + $0x78] sm:$0xff]
      %v4139 = vadd.f32 %v4123, %v4061
      %v4140 = vadd.f32 %v4124, %v4064
      %v4141 = vadd.f32 %v4125, %v4069
      %v4142 = vadd.f32 %v4126, %v4072
      %v4143 = vadd.f32 %v4127, %v4077
      %v4144 = vadd.f32 %v4128, %v4080
      %v4145 = vadd.f32 %v4129, %v4085
      %v4146 = vadd.f32 %v4130, %v4088
      %v4147 = vadd.f32 %v4131, %v4093
      %v4148 = vadd.f32 %v4132, %v4096
      %v4149 = vadd.f32 %v4133, %v4101
      %v4150 = vadd.f32 %v4134, %v4104
      %v4151 = vadd.f32 %v4135, %v4109
      %v4152 = vadd.f32 %v4136, %v4112
      %v4153 = vadd.f32 %v4137, %v4117
      %v4154 = vadd.f32 %v4138, %v4120
      %4155 = vst.msk [vmem:[#allocation2] sm:$0xff] %vm603, %v4139
      %4156 = vst.msk [vmem:[#allocation2 + $0x8] sm:$0xff] %vm603, %v4140
      %4157 = vst.msk [vmem:[#allocation2 + $0x10] sm:$0xff] %vm603, %v4141
      %4158 = vst.msk [vmem:[#allocation2 + $0x18] sm:$0xff] %vm603, %v4142
      %4159 = vst.msk [vmem:[#allocation2 + $0x20] sm:$0xff] %vm603, %v4143
      %4160 = vst.msk [vmem:[#allocation2 + $0x28] sm:$0xff] %vm603, %v4144
      %4161 = vst.msk [vmem:[#allocation2 + $0x30] sm:$0xff] %vm603, %v4145
      %4162 = vst.msk [vmem:[#allocation2 + $0x38] sm:$0xff] %vm603, %v4146
      %4163 = vst.msk [vmem:[#allocation2 + $0x40] sm:$0xff] %vm603, %v4147
      %4164 = vst.msk [vmem:[#allocation2 + $0x48] sm:$0xff] %vm603, %v4148
      %4165 = vst.msk [vmem:[#allocation2 + $0x50] sm:$0xff] %vm603, %v4149
      %4166 = vst.msk [vmem:[#allocation2 + $0x58] sm:$0xff] %vm603, %v4150
      %4167 = vst.msk [vmem:[#allocation2 + $0x60] sm:$0xff] %vm603, %v4151
      %4168 = vst.msk [vmem:[#allocation2 + $0x68] sm:$0xff] %vm603, %v4152
      %4169 = vst.msk [vmem:[#allocation2 + $0x70] sm:$0xff] %vm603, %v4153
      %4170 = vst.msk [vmem:[#allocation2 + $0x78] sm:$0xff] %vm603, %v4154
      %v4171 = vld [vmem:[%s3571 + $0xc] sm:$0x8]
      %v4172 = vld [vmem:[%s3571 + $0x10] sm:$0xf]
      %v4173 = vld [vmem:[%s3571 + $0x14] sm:$0x7]
      %v4174 = vld [vmem:[%s3571 + $0x28] sm:$0x8]
      %v4175 = vld [vmem:[%s3571 + $0x2c] sm:$0xf]
      %v4176 = vld [vmem:[%s3571 + $0x30] sm:$0x7]
      %v4177 = vld [vmem:[%s3571 + $0x44] sm:$0x8]
      %v4178 = vld [vmem:[%s3571 + $0x48] sm:$0xf]
      %v4179 = vld [vmem:[%s3571 + $0x4c] sm:$0x7]
      %v4180 = vld [vmem:[%s3571 + $0x60] sm:$0x8]
      %v4181 = vld [vmem:[%s3571 + $0x64] sm:$0xf]
      %v4182 = vld [vmem:[%s3571 + $0x68] sm:$0x7]
      %v4183 = vld [vmem:[%s3571 + $0x7c] sm:$0x8]
      %v4184 = vld [vmem:[%s3571 + $0x80] sm:$0xf]
      %v4185 = vld [vmem:[%s3571 + $0x84] sm:$0x7]
      %v4186 = vld [vmem:[%s3571 + $0x98] sm:$0x8]
      %v4187 = vld [vmem:[%s3571 + $0x9c] sm:$0xf]
      %v4188 = vld [vmem:[%s3571 + $0xa0] sm:$0x7]
      %v4189 = vld [vmem:[%s3571 + $0xb4] sm:$0x8]
      %v4190 = vld [vmem:[%s3571 + $0xb8] sm:$0xf]
      %v4191 = vld [vmem:[%s3571 + $0xbc] sm:$0x7]
      %v4192 = vld [vmem:[%s3571 + $0xd0] sm:$0x8]
      %v4193 = vld [vmem:[%s3571 + $0xd4] sm:$0xf]
      %v4194 = vld [vmem:[%s3571 + $0xd8] sm:$0x7]
      %v4219 = vrot.slane %v4171, 7
      %v4220 = vrot.slane %v4219, 4
      %v4221 = vrot.slane %v4172, 7
      %v4222 = vsel %vm3622, %v4220, %v4221
      %v4223 = vrot.slane %v4221, 4
      %v4224 = vrot.slane %v4173, 7
      %v4225 = vsel %vm3622, %v4223, %v4224
      %v4226 = vrot.slane %v4174, 7
      %v4227 = vrot.slane %v4226, 4
      %v4228 = vrot.slane %v4175, 7
      %v4229 = vsel %vm3622, %v4227, %v4228
      %v4230 = vrot.slane %v4228, 4
      %v4231 = vrot.slane %v4176, 7
      %v4232 = vsel %vm3622, %v4230, %v4231
      %v4233 = vrot.slane %v4177, 7
      %v4234 = vrot.slane %v4233, 4
      %v4235 = vrot.slane %v4178, 7
      %v4236 = vsel %vm3622, %v4234, %v4235
      %v4237 = vrot.slane %v4235, 4
      %v4238 = vrot.slane %v4179, 7
      %v4239 = vsel %vm3622, %v4237, %v4238
      %v4240 = vrot.slane %v4180, 7
      %v4241 = vrot.slane %v4240, 4
      %v4242 = vrot.slane %v4181, 7
      %v4243 = vsel %vm3622, %v4241, %v4242
      %v4244 = vrot.slane %v4242, 4
      %v4245 = vrot.slane %v4182, 7
      %v4246 = vsel %vm3622, %v4244, %v4245
      %v4247 = vrot.slane %v4183, 7
      %v4248 = vrot.slane %v4247, 4
      %v4249 = vrot.slane %v4184, 7
      %v4250 = vsel %vm3622, %v4248, %v4249
      %v4251 = vrot.slane %v4249, 4
      %v4252 = vrot.slane %v4185, 7
      %v4253 = vsel %vm3622, %v4251, %v4252
      %v4254 = vrot.slane %v4186, 7
      %v4255 = vrot.slane %v4254, 4
      %v4256 = vrot.slane %v4187, 7
      %v4257 = vsel %vm3622, %v4255, %v4256
      %v4258 = vrot.slane %v4256, 4
      %v4259 = vrot.slane %v4188, 7
      %v4260 = vsel %vm3622, %v4258, %v4259
      %v4261 = vrot.slane %v4189, 7
      %v4262 = vrot.slane %v4261, 4
      %v4263 = vrot.slane %v4190, 7
      %v4264 = vsel %vm3622, %v4262, %v4263
      %v4265 = vrot.slane %v4263, 4
      %v4266 = vrot.slane %v4191, 7
      %v4267 = vsel %vm3622, %v4265, %v4266
      %v4268 = vrot.slane %v4192, 7
      %v4269 = vrot.slane %v4268, 4
      %v4270 = vrot.slane %v4193, 7
      %v4271 = vsel %vm3622, %v4269, %v4270
      %v4272 = vrot.slane %v4270, 4
      %v4273 = vrot.slane %v4194, 7
      %v4274 = vsel %vm3622, %v4272, %v4273
      %s4275 = scalar_lea.vmem %s2, 176
      %v4276 = vld [vmem:[%s4275] sm:$0xf]
      %v4277 = vld [vmem:[%s4275 + $0x4] sm:$0xf]
      %v4278 = vld [vmem:[%s4275 + $0x8] sm:$0xf]
      %v4279 = vld [vmem:[%s4275 + $0xc] sm:$0xf]
      %v4280 = vunpack.c.l.b16 %v4222
      %v4281 = vunpack.c.l.b16 %v4225
      %v4282 = vunpack.c.l.b16 %v4229
      %v4283 = vunpack.c.l.b16 %v4232
      %v4284 = vunpack.c.l.b16 %v4236
      %v4285 = vunpack.c.l.b16 %v4239
      %v4286 = vunpack.c.l.b16 %v4243
      %v4287 = vunpack.c.l.b16 %v4246
      %v4288 = vunpack.c.l.b16 %v4250
      %v4289 = vunpack.c.l.b16 %v4253
      %v4290 = vunpack.c.l.b16 %v4257
      %v4291 = vunpack.c.l.b16 %v4260
      %v4292 = vunpack.c.l.b16 %v4264
      %v4293 = vunpack.c.l.b16 %v4267
      %v4294 = vunpack.c.l.b16 %v4271
      %v4295 = vunpack.c.l.b16 %v4274
      %v4296 = vpack.c.b16 %v4281, %v4280
      %v4297 = vpack.c.b16 %v4283, %v4282
      %v4298 = vpack.c.b16 %v4285, %v4284
      %v4299 = vpack.c.b16 %v4287, %v4286
      %v4300 = vpack.c.b16 %v4289, %v4288
      %v4301 = vpack.c.b16 %v4291, %v4290
      %v4302 = vpack.c.b16 %v4293, %v4292
      %v4303 = vpack.c.b16 %v4295, %v4294
      %v4308 = vunpack.c.l.b16 %v4276
      %v4309 = vunpack.c.l.b16 %v4277
      %v4310 = vunpack.c.l.b16 %v4278
      %v4311 = vunpack.c.l.b16 %v4279
      %v4312 = vpack.c.b16 %v4309, %v4308
      %v4313 = vpack.c.b16 %v4311, %v4310
      %v4317 = vsel %vm449, %v4296, 0
      %v4320 = vsel %vm449, %v4297, 0
      %v4323 = vsel %vm449, %v4298, 0
      %v4326 = vsel %vm449, %v4299, 0
      %v4329 = vsel %vm449, %v4300, 0
      %v4332 = vsel %vm449, %v4301, 0
      %v4335 = vsel %vm449, %v4302, 0
      %v4338 = vsel %vm449, %v4303, 0
      %4340 = vmatprep.subr.bf16.mxu0 0
      %4341 = vmatpush1.bf16.msra.mxu0 0
      %4342 = vmatprep.subr.bf16.mxu0 0
      %4343 = vmatpush1.bf16.msra.mxu0 0
      %4344 = vmatprep.subr.bf16.mxu0 0
      %4345 = vmatpush1.bf16.msra.mxu0 0
      %4346 = vmatprep.subr.bf16.mxu0 0
      %4347 = vmatpush1.bf16.msra.mxu0 0
      %4348 = vmatprep.subr.bf16.mxu0 0
      %4349 = vmatpush1.bf16.msra.mxu0 0
      %4350 = vmatprep.subr.bf16.mxu0 0
      %4351 = vmatpush1.bf16.msra.mxu0 0
      %4352 = vmatprep.subr.bf16.mxu0 0
      %4353 = vmatpush1.bf16.msra.mxu0 %v4313
      %4354 = vmatprep.subr.bf16.mxu0 0
      %4355 = vmatpush1.bf16.msra.mxu0 %v4312
      %4356 = vmatprep.subr.bf16.mxu0 0
      %4357 = vmatpush2.bf16.msra.mxu0 0
      %4358 = vmatprep.subr.bf16.mxu0 0
      %4359 = vmatpush2.bf16.msra.mxu0 0
      %4360 = vmatprep.subr.bf16.mxu0 0
      %4361 = vmatpush2.bf16.msra.mxu0 0
      %4362 = vmatprep.subr.bf16.mxu0 0
      %4363 = vmatpush2.bf16.msra.mxu0 0
      %4364 = vmatprep.subr.bf16.mxu0 0
      %4365 = vmatpush2.bf16.msra.mxu0 0
      %4366 = vmatprep.subr.bf16.mxu0 0
      %4367 = vmatpush2.bf16.msra.mxu0 0
      %4368 = vmatprep.subr.bf16.mxu0 0
      %4369 = vmatpush2.bf16.msra.mxu0 0
      %4370 = vmatprep.subr.bf16.mxu0 0
      %4371 = vmatpush2.bf16.msra.mxu0 0
      %4372 = vmatprep.mubr.bf16.mxu0 0
      %4373 = vmatmul.mubr.bf16.gmra.mxu0 %v4317
      %v4374 = vpop.f32.mrf.mxu0
      %v4375 = vadd.f32 0.0, %v4374
      %v4376 = vpop.f32.mrf.mxu0
      %v4377 = vpop.f32.mrf.mxu0
      %v4378 = vadd.f32 0.0, %v4377
      %v4379 = vpop.f32.mrf.mxu0
      %4380 = vmatprep.mubr.bf16.mxu0 0
      %4381 = vmatmul.mubr.bf16.gmra.mxu0 %v4320
      %v4382 = vpop.f32.mrf.mxu0
      %v4383 = vadd.f32 0.0, %v4382
      %v4384 = vpop.f32.mrf.mxu0
      %v4385 = vpop.f32.mrf.mxu0
      %v4386 = vadd.f32 0.0, %v4385
      %v4387 = vpop.f32.mrf.mxu0
      %4388 = vmatprep.mubr.bf16.mxu0 0
      %4389 = vmatmul.mubr.bf16.gmra.mxu0 %v4323
      %v4390 = vpop.f32.mrf.mxu0
      %v4391 = vadd.f32 0.0, %v4390
      %v4392 = vpop.f32.mrf.mxu0
      %v4393 = vpop.f32.mrf.mxu0
      %v4394 = vadd.f32 0.0, %v4393
      %v4395 = vpop.f32.mrf.mxu0
      %4396 = vmatprep.mubr.bf16.mxu0 0
      %4397 = vmatmul.mubr.bf16.gmra.mxu0 %v4326
      %v4398 = vpop.f32.mrf.mxu0
      %v4399 = vadd.f32 0.0, %v4398
      %v4400 = vpop.f32.mrf.mxu0
      %v4401 = vpop.f32.mrf.mxu0
      %v4402 = vadd.f32 0.0, %v4401
      %v4403 = vpop.f32.mrf.mxu0
      %4404 = vmatprep.mubr.bf16.mxu0 0
      %4405 = vmatmul.mubr.bf16.gmra.mxu0 %v4329
      %v4406 = vpop.f32.mrf.mxu0
      %v4407 = vadd.f32 0.0, %v4406
      %v4408 = vpop.f32.mrf.mxu0
      %v4409 = vpop.f32.mrf.mxu0
      %v4410 = vadd.f32 0.0, %v4409
      %v4411 = vpop.f32.mrf.mxu0
      %4412 = vmatprep.mubr.bf16.mxu0 0
      %4413 = vmatmul.mubr.bf16.gmra.mxu0 %v4332
      %v4414 = vpop.f32.mrf.mxu0
      %v4415 = vadd.f32 0.0, %v4414
      %v4416 = vpop.f32.mrf.mxu0
      %v4417 = vpop.f32.mrf.mxu0
      %v4418 = vadd.f32 0.0, %v4417
      %v4419 = vpop.f32.mrf.mxu0
      %4420 = vmatprep.mubr.bf16.mxu0 0
      %4421 = vmatmul.mubr.bf16.gmra.mxu0 %v4335
      %v4422 = vpop.f32.mrf.mxu0
      %v4423 = vadd.f32 0.0, %v4422
      %v4424 = vpop.f32.mrf.mxu0
      %v4425 = vpop.f32.mrf.mxu0
      %v4426 = vadd.f32 0.0, %v4425
      %v4427 = vpop.f32.mrf.mxu0
      %4428 = vmatprep.mubr.bf16.mxu0 0
      %4429 = vmatmul.mubr.bf16.gmra.mxu0 %v4338
      %v4430 = vpop.f32.mrf.mxu0
      %v4431 = vadd.f32 0.0, %v4430
      %v4432 = vpop.f32.mrf.mxu0
      %v4433 = vpop.f32.mrf.mxu0
      %v4434 = vadd.f32 0.0, %v4433
      %v4435 = vpop.f32.mrf.mxu0
      %4436 = vdwg.mxu0
      %v4437 = vld [vmem:[#allocation2] sm:$0xff]
      %v4438 = vld [vmem:[#allocation2 + $0x8] sm:$0xff]
      %v4439 = vld [vmem:[#allocation2 + $0x10] sm:$0xff]
      %v4440 = vld [vmem:[#allocation2 + $0x18] sm:$0xff]
      %v4441 = vld [vmem:[#allocation2 + $0x20] sm:$0xff]
      %v4442 = vld [vmem:[#allocation2 + $0x28] sm:$0xff]
      %v4443 = vld [vmem:[#allocation2 + $0x30] sm:$0xff]
      %v4444 = vld [vmem:[#allocation2 + $0x38] sm:$0xff]
      %v4445 = vld [vmem:[#allocation2 + $0x40] sm:$0xff]
      %v4446 = vld [vmem:[#allocation2 + $0x48] sm:$0xff]
      %v4447 = vld [vmem:[#allocation2 + $0x50] sm:$0xff]
      %v4448 = vld [vmem:[#allocation2 + $0x58] sm:$0xff]
      %v4449 = vld [vmem:[#allocation2 + $0x60] sm:$0xff]
      %v4450 = vld [vmem:[#allocation2 + $0x68] sm:$0xff]
      %v4451 = vld [vmem:[#allocation2 + $0x70] sm:$0xff]
      %v4452 = vld [vmem:[#allocation2 + $0x78] sm:$0xff]
      %v4453 = vadd.f32 %v4437, %v4375
      %v4454 = vadd.f32 %v4438, %v4378
      %v4455 = vadd.f32 %v4439, %v4383
      %v4456 = vadd.f32 %v4440, %v4386
      %v4457 = vadd.f32 %v4441, %v4391
      %v4458 = vadd.f32 %v4442, %v4394
      %v4459 = vadd.f32 %v4443, %v4399
      %v4460 = vadd.f32 %v4444, %v4402
      %v4461 = vadd.f32 %v4445, %v4407
      %v4462 = vadd.f32 %v4446, %v4410
      %v4463 = vadd.f32 %v4447, %v4415
      %v4464 = vadd.f32 %v4448, %v4418
      %v4465 = vadd.f32 %v4449, %v4423
      %v4466 = vadd.f32 %v4450, %v4426
      %v4467 = vadd.f32 %v4451, %v4431
      %v4468 = vadd.f32 %v4452, %v4434
      %4469 = vst.msk [vmem:[#allocation2] sm:$0xff] %vm603, %v4453
      %4470 = vst.msk [vmem:[#allocation2 + $0x8] sm:$0xff] %vm603, %v4454
      %4471 = vst.msk [vmem:[#allocation2 + $0x10] sm:$0xff] %vm603, %v4455
      %4472 = vst.msk [vmem:[#allocation2 + $0x18] sm:$0xff] %vm603, %v4456
      %4473 = vst.msk [vmem:[#allocation2 + $0x20] sm:$0xff] %vm603, %v4457
      %4474 = vst.msk [vmem:[#allocation2 + $0x28] sm:$0xff] %vm603, %v4458
      %4475 = vst.msk [vmem:[#allocation2 + $0x30] sm:$0xff] %vm603, %v4459
      %4476 = vst.msk [vmem:[#allocation2 + $0x38] sm:$0xff] %vm603, %v4460
      %4477 = vst.msk [vmem:[#allocation2 + $0x40] sm:$0xff] %vm603, %v4461
      %4478 = vst.msk [vmem:[#allocation2 + $0x48] sm:$0xff] %vm603, %v4462
      %4479 = vst.msk [vmem:[#allocation2 + $0x50] sm:$0xff] %vm603, %v4463
      %4480 = vst.msk [vmem:[#allocation2 + $0x58] sm:$0xff] %vm603, %v4464
      %4481 = vst.msk [vmem:[#allocation2 + $0x60] sm:$0xff] %vm603, %v4465
      %4482 = vst.msk [vmem:[#allocation2 + $0x68] sm:$0xff] %vm603, %v4466
      %4483 = vst.msk [vmem:[#allocation2 + $0x70] sm:$0xff] %vm603, %v4467
      %4484 = vst.msk [vmem:[#allocation2 + $0x78] sm:$0xff] %vm603, %v4468
      %v4485 = vld [vmem:[%s296] sm:$0x8]
      %v4486 = vld [vmem:[%s296 + $0x4] sm:$0xf]
      %v4487 = vld [vmem:[%s296 + $0x8] sm:$0x7]
      %v4488 = vld [vmem:[%s296 + $0x1c] sm:$0x8]
      %v4489 = vld [vmem:[%s296 + $0x20] sm:$0xf]
      %v4490 = vld [vmem:[%s296 + $0x24] sm:$0x7]
      %v4491 = vld [vmem:[%s296 + $0x38] sm:$0x8]
      %v4492 = vld [vmem:[%s296 + $0x3c] sm:$0xf]
      %v4493 = vld [vmem:[%s296 + $0x40] sm:$0x7]
      %v4494 = vld [vmem:[%s296 + $0x54] sm:$0x8]
      %v4495 = vld [vmem:[%s296 + $0x58] sm:$0xf]
      %v4496 = vld [vmem:[%s296 + $0x5c] sm:$0x7]
      %v4497 = vld [vmem:[%s296 + $0x70] sm:$0x8]
      %v4498 = vld [vmem:[%s296 + $0x74] sm:$0xf]
      %v4499 = vld [vmem:[%s296 + $0x78] sm:$0x7]
      %v4500 = vld [vmem:[%s296 + $0x8c] sm:$0x8]
      %v4501 = vld [vmem:[%s296 + $0x90] sm:$0xf]
      %v4502 = vld [vmem:[%s296 + $0x94] sm:$0x7]
      %v4503 = vld [vmem:[%s296 + $0xa8] sm:$0x8]
      %v4504 = vld [vmem:[%s296 + $0xac] sm:$0xf]
      %v4505 = vld [vmem:[%s296 + $0xb0] sm:$0x7]
      %v4506 = vld [vmem:[%s296 + $0xc4] sm:$0x8]
      %v4507 = vld [vmem:[%s296 + $0xc8] sm:$0xf]
      %v4508 = vld [vmem:[%s296 + $0xcc] sm:$0x7]
      %v4533 = vrot.slane %v4485, 7
      %v4534 = vrot.slane %v4533, 4
      %v4535 = vrot.slane %v4486, 7
      %v4536 = vsel %vm3622, %v4534, %v4535
      %v4537 = vrot.slane %v4535, 4
      %v4538 = vrot.slane %v4487, 7
      %v4539 = vsel %vm3622, %v4537, %v4538
      %v4540 = vrot.slane %v4488, 7
      %v4541 = vrot.slane %v4540, 4
      %v4542 = vrot.slane %v4489, 7
      %v4543 = vsel %vm3622, %v4541, %v4542
      %v4544 = vrot.slane %v4542, 4
      %v4545 = vrot.slane %v4490, 7
      %v4546 = vsel %vm3622, %v4544, %v4545
      %v4547 = vrot.slane %v4491, 7
      %v4548 = vrot.slane %v4547, 4
      %v4549 = vrot.slane %v4492, 7
      %v4550 = vsel %vm3622, %v4548, %v4549
      %v4551 = vrot.slane %v4549, 4
      %v4552 = vrot.slane %v4493, 7
      %v4553 = vsel %vm3622, %v4551, %v4552
      %v4554 = vrot.slane %v4494, 7
      %v4555 = vrot.slane %v4554, 4
      %v4556 = vrot.slane %v4495, 7
      %v4557 = vsel %vm3622, %v4555, %v4556
      %v4558 = vrot.slane %v4556, 4
      %v4559 = vrot.slane %v4496, 7
      %v4560 = vsel %vm3622, %v4558, %v4559
      %v4561 = vrot.slane %v4497, 7
      %v4562 = vrot.slane %v4561, 4
      %v4563 = vrot.slane %v4498, 7
      %v4564 = vsel %vm3622, %v4562, %v4563
      %v4565 = vrot.slane %v4563, 4
      %v4566 = vrot.slane %v4499, 7
      %v4567 = vsel %vm3622, %v4565, %v4566
      %v4568 = vrot.slane %v4500, 7
      %v4569 = vrot.slane %v4568, 4
      %v4570 = vrot.slane %v4501, 7
      %v4571 = vsel %vm3622, %v4569, %v4570
      %v4572 = vrot.slane %v4570, 4
      %v4573 = vrot.slane %v4502, 7
      %v4574 = vsel %vm3622, %v4572, %v4573
      %v4575 = vrot.slane %v4503, 7
      %v4576 = vrot.slane %v4575, 4
      %v4577 = vrot.slane %v4504, 7
      %v4578 = vsel %vm3622, %v4576, %v4577
      %v4579 = vrot.slane %v4577, 4
      %v4580 = vrot.slane %v4505, 7
      %v4581 = vsel %vm3622, %v4579, %v4580
      %v4582 = vrot.slane %v4506, 7
      %v4583 = vrot.slane %v4582, 4
      %v4584 = vrot.slane %v4507, 7
      %v4585 = vsel %vm3622, %v4583, %v4584
      %v4586 = vrot.slane %v4584, 4
      %v4587 = vrot.slane %v4508, 7
      %v4588 = vsel %vm3622, %v4586, %v4587
      %s4589 = scalar_lea.vmem %s2, 192
      %v4590 = vld [vmem:[%s4589] sm:$0xf]
      %v4591 = vld [vmem:[%s4589 + $0x4] sm:$0xf]
      %v4592 = vld [vmem:[%s4589 + $0x8] sm:$0xf]
      %v4593 = vld [vmem:[%s4589 + $0xc] sm:$0xf]
      %v4594 = vunpack.c.l.b16 %v4536
      %v4595 = vunpack.c.l.b16 %v4539
      %v4596 = vunpack.c.l.b16 %v4543
      %v4597 = vunpack.c.l.b16 %v4546
      %v4598 = vunpack.c.l.b16 %v4550
      %v4599 = vunpack.c.l.b16 %v4553
      %v4600 = vunpack.c.l.b16 %v4557
      %v4601 = vunpack.c.l.b16 %v4560
      %v4602 = vunpack.c.l.b16 %v4564
      %v4603 = vunpack.c.l.b16 %v4567
      %v4604 = vunpack.c.l.b16 %v4571
      %v4605 = vunpack.c.l.b16 %v4574
      %v4606 = vunpack.c.l.b16 %v4578
      %v4607 = vunpack.c.l.b16 %v4581
      %v4608 = vunpack.c.l.b16 %v4585
      %v4609 = vunpack.c.l.b16 %v4588
      %v4610 = vpack.c.b16 %v4595, %v4594
      %v4611 = vpack.c.b16 %v4597, %v4596
      %v4612 = vpack.c.b16 %v4599, %v4598
      %v4613 = vpack.c.b16 %v4601, %v4600
      %v4614 = vpack.c.b16 %v4603, %v4602
      %v4615 = vpack.c.b16 %v4605, %v4604
      %v4616 = vpack.c.b16 %v4607, %v4606
      %v4617 = vpack.c.b16 %v4609, %v4608
      %v4622 = vunpack.c.l.b16 %v4590
      %v4623 = vunpack.c.l.b16 %v4591
      %v4624 = vunpack.c.l.b16 %v4592
      %v4625 = vunpack.c.l.b16 %v4593
      %v4626 = vpack.c.b16 %v4623, %v4622
      %v4627 = vpack.c.b16 %v4625, %v4624
      %v4631 = vsel %vm449, %v4610, 0
      %v4634 = vsel %vm449, %v4611, 0
      %v4637 = vsel %vm449, %v4612, 0
      %v4640 = vsel %vm449, %v4613, 0
      %v4643 = vsel %vm449, %v4614, 0
      %v4646 = vsel %vm449, %v4615, 0
      %v4649 = vsel %vm449, %v4616, 0
      %v4652 = vsel %vm449, %v4617, 0
      %4654 = vmatprep.subr.bf16.mxu0 0
      %4655 = vmatpush1.bf16.msra.mxu0 0
      %4656 = vmatprep.subr.bf16.mxu0 0
      %4657 = vmatpush1.bf16.msra.mxu0 0
      %4658 = vmatprep.subr.bf16.mxu0 0
      %4659 = vmatpush1.bf16.msra.mxu0 0
      %4660 = vmatprep.subr.bf16.mxu0 0
      %4661 = vmatpush1.bf16.msra.mxu0 0
      %4662 = vmatprep.subr.bf16.mxu0 0
      %4663 = vmatpush1.bf16.msra.mxu0 0
      %4664 = vmatprep.subr.bf16.mxu0 0
      %4665 = vmatpush1.bf16.msra.mxu0 0
      %4666 = vmatprep.subr.bf16.mxu0 0
      %4667 = vmatpush1.bf16.msra.mxu0 %v4627
      %4668 = vmatprep.subr.bf16.mxu0 0
      %4669 = vmatpush1.bf16.msra.mxu0 %v4626
      %4670 = vmatprep.subr.bf16.mxu0 0
      %4671 = vmatpush2.bf16.msra.mxu0 0
      %4672 = vmatprep.subr.bf16.mxu0 0
      %4673 = vmatpush2.bf16.msra.mxu0 0
      %4674 = vmatprep.subr.bf16.mxu0 0
      %4675 = vmatpush2.bf16.msra.mxu0 0
      %4676 = vmatprep.subr.bf16.mxu0 0
      %4677 = vmatpush2.bf16.msra.mxu0 0
      %4678 = vmatprep.subr.bf16.mxu0 0
      %4679 = vmatpush2.bf16.msra.mxu0 0
      %4680 = vmatprep.subr.bf16.mxu0 0
      %4681 = vmatpush2.bf16.msra.mxu0 0
      %4682 = vmatprep.subr.bf16.mxu0 0
      %4683 = vmatpush2.bf16.msra.mxu0 0
      %4684 = vmatprep.subr.bf16.mxu0 0
      %4685 = vmatpush2.bf16.msra.mxu0 0
      %4686 = vmatprep.mubr.bf16.mxu0 0
      %4687 = vmatmul.mubr.bf16.gmra.mxu0 %v4631
      %v4688 = vpop.f32.mrf.mxu0
      %v4689 = vadd.f32 0.0, %v4688
      %v4690 = vpop.f32.mrf.mxu0
      %v4691 = vpop.f32.mrf.mxu0
      %v4692 = vadd.f32 0.0, %v4691
      %v4693 = vpop.f32.mrf.mxu0
      %4694 = vmatprep.mubr.bf16.mxu0 0
      %4695 = vmatmul.mubr.bf16.gmra.mxu0 %v4634
      %v4696 = vpop.f32.mrf.mxu0
      %v4697 = vadd.f32 0.0, %v4696
      %v4698 = vpop.f32.mrf.mxu0
      %v4699 = vpop.f32.mrf.mxu0
      %v4700 = vadd.f32 0.0, %v4699
      %v4701 = vpop.f32.mrf.mxu0
      %4702 = vmatprep.mubr.bf16.mxu0 0
      %4703 = vmatmul.mubr.bf16.gmra.mxu0 %v4637
      %v4704 = vpop.f32.mrf.mxu0
      %v4705 = vadd.f32 0.0, %v4704
      %v4706 = vpop.f32.mrf.mxu0
      %v4707 = vpop.f32.mrf.mxu0
      %v4708 = vadd.f32 0.0, %v4707
      %v4709 = vpop.f32.mrf.mxu0
      %4710 = vmatprep.mubr.bf16.mxu0 0
      %4711 = vmatmul.mubr.bf16.gmra.mxu0 %v4640
      %v4712 = vpop.f32.mrf.mxu0
      %v4713 = vadd.f32 0.0, %v4712
      %v4714 = vpop.f32.mrf.mxu0
      %v4715 = vpop.f32.mrf.mxu0
      %v4716 = vadd.f32 0.0, %v4715
      %v4717 = vpop.f32.mrf.mxu0
      %4718 = vmatprep.mubr.bf16.mxu0 0
      %4719 = vmatmul.mubr.bf16.gmra.mxu0 %v4643
      %v4720 = vpop.f32.mrf.mxu0
      %v4721 = vadd.f32 0.0, %v4720
      %v4722 = vpop.f32.mrf.mxu0
      %v4723 = vpop.f32.mrf.mxu0
      %v4724 = vadd.f32 0.0, %v4723
      %v4725 = vpop.f32.mrf.mxu0
      %4726 = vmatprep.mubr.bf16.mxu0 0
      %4727 = vmatmul.mubr.bf16.gmra.mxu0 %v4646
      %v4728 = vpop.f32.mrf.mxu0
      %v4729 = vadd.f32 0.0, %v4728
      %v4730 = vpop.f32.mrf.mxu0
      %v4731 = vpop.f32.mrf.mxu0
      %v4732 = vadd.f32 0.0, %v4731
      %v4733 = vpop.f32.mrf.mxu0
      %4734 = vmatprep.mubr.bf16.mxu0 0
      %4735 = vmatmul.mubr.bf16.gmra.mxu0 %v4649
      %v4736 = vpop.f32.mrf.mxu0
      %v4737 = vadd.f32 0.0, %v4736
      %v4738 = vpop.f32.mrf.mxu0
      %v4739 = vpop.f32.mrf.mxu0
      %v4740 = vadd.f32 0.0, %v4739
      %v4741 = vpop.f32.mrf.mxu0
      %4742 = vmatprep.mubr.bf16.mxu0 0
      %4743 = vmatmul.mubr.bf16.gmra.mxu0 %v4652
      %v4744 = vpop.f32.mrf.mxu0
      %v4745 = vadd.f32 0.0, %v4744
      %v4746 = vpop.f32.mrf.mxu0
      %v4747 = vpop.f32.mrf.mxu0
      %v4748 = vadd.f32 0.0, %v4747
      %v4749 = vpop.f32.mrf.mxu0
      %4750 = vdwg.mxu0
      %v4751 = vld [vmem:[#allocation2] sm:$0xff]
      %v4752 = vld [vmem:[#allocation2 + $0x8] sm:$0xff]
      %v4753 = vld [vmem:[#allocation2 + $0x10] sm:$0xff]
      %v4754 = vld [vmem:[#allocation2 + $0x18] sm:$0xff]
      %v4755 = vld [vmem:[#allocation2 + $0x20] sm:$0xff]
      %v4756 = vld [vmem:[#allocation2 + $0x28] sm:$0xff]
      %v4757 = vld [vmem:[#allocation2 + $0x30] sm:$0xff]
      %v4758 = vld [vmem:[#allocation2 + $0x38] sm:$0xff]
      %v4759 = vld [vmem:[#allocation2 + $0x40] sm:$0xff]
      %v4760 = vld [vmem:[#allocation2 + $0x48] sm:$0xff]
      %v4761 = vld [vmem:[#allocation2 + $0x50] sm:$0xff]
      %v4762 = vld [vmem:[#allocation2 + $0x58] sm:$0xff]
      %v4763 = vld [vmem:[#allocation2 + $0x60] sm:$0xff]
      %v4764 = vld [vmem:[#allocation2 + $0x68] sm:$0xff]
      %v4765 = vld [vmem:[#allocation2 + $0x70] sm:$0xff]
      %v4766 = vld [vmem:[#allocation2 + $0x78] sm:$0xff]
      %v4767 = vadd.f32 %v4751, %v4689
      %v4768 = vadd.f32 %v4752, %v4692
      %v4769 = vadd.f32 %v4753, %v4697
      %v4770 = vadd.f32 %v4754, %v4700
      %v4771 = vadd.f32 %v4755, %v4705
      %v4772 = vadd.f32 %v4756, %v4708
      %v4773 = vadd.f32 %v4757, %v4713
      %v4774 = vadd.f32 %v4758, %v4716
      %v4775 = vadd.f32 %v4759, %v4721
      %v4776 = vadd.f32 %v4760, %v4724
      %v4777 = vadd.f32 %v4761, %v4729
      %v4778 = vadd.f32 %v4762, %v4732
      %v4779 = vadd.f32 %v4763, %v4737
      %v4780 = vadd.f32 %v4764, %v4740
      %v4781 = vadd.f32 %v4765, %v4745
      %v4782 = vadd.f32 %v4766, %v4748
      %4783 = vst.msk [vmem:[#allocation2] sm:$0xff] %vm603, %v4767
      %4784 = vst.msk [vmem:[#allocation2 + $0x8] sm:$0xff] %vm603, %v4768
      %4785 = vst.msk [vmem:[#allocation2 + $0x10] sm:$0xff] %vm603, %v4769
      %4786 = vst.msk [vmem:[#allocation2 + $0x18] sm:$0xff] %vm603, %v4770
      %4787 = vst.msk [vmem:[#allocation2 + $0x20] sm:$0xff] %vm603, %v4771
      %4788 = vst.msk [vmem:[#allocation2 + $0x28] sm:$0xff] %vm603, %v4772
      %4789 = vst.msk [vmem:[#allocation2 + $0x30] sm:$0xff] %vm603, %v4773
      %4790 = vst.msk [vmem:[#allocation2 + $0x38] sm:$0xff] %vm603, %v4774
      %4791 = vst.msk [vmem:[#allocation2 + $0x40] sm:$0xff] %vm603, %v4775
      %4792 = vst.msk [vmem:[#allocation2 + $0x48] sm:$0xff] %vm603, %v4776
      %4793 = vst.msk [vmem:[#allocation2 + $0x50] sm:$0xff] %vm603, %v4777
      %4794 = vst.msk [vmem:[#allocation2 + $0x58] sm:$0xff] %vm603, %v4778
      %4795 = vst.msk [vmem:[#allocation2 + $0x60] sm:$0xff] %vm603, %v4779
      %4796 = vst.msk [vmem:[#allocation2 + $0x68] sm:$0xff] %vm603, %v4780
      %4797 = vst.msk [vmem:[#allocation2 + $0x70] sm:$0xff] %vm603, %v4781
      %4798 = vst.msk [vmem:[#allocation2 + $0x78] sm:$0xff] %vm603, %v4782
      %v4799 = vld [vmem:[%s296 + $0x8] sm:$0xe]
      %v4800 = vld [vmem:[%s296 + $0xc] sm:$0xf]
      %v4801 = vld [vmem:[%s296 + $0x10] sm:$0x1]
      %v4802 = vld [vmem:[%s296 + $0x24] sm:$0xe]
      %v4803 = vld [vmem:[%s296 + $0x28] sm:$0xf]
      %v4804 = vld [vmem:[%s296 + $0x2c] sm:$0x1]
      %v4805 = vld [vmem:[%s296 + $0x40] sm:$0xe]
      %v4806 = vld [vmem:[%s296 + $0x44] sm:$0xf]
      %v4807 = vld [vmem:[%s296 + $0x48] sm:$0x1]
      %v4808 = vld [vmem:[%s296 + $0x5c] sm:$0xe]
      %v4809 = vld [vmem:[%s296 + $0x60] sm:$0xf]
      %v4810 = vld [vmem:[%s296 + $0x64] sm:$0x1]
      %v4811 = vld [vmem:[%s296 + $0x78] sm:$0xe]
      %v4812 = vld [vmem:[%s296 + $0x7c] sm:$0xf]
      %v4813 = vld [vmem:[%s296 + $0x80] sm:$0x1]
      %v4814 = vld [vmem:[%s296 + $0x94] sm:$0xe]
      %v4815 = vld [vmem:[%s296 + $0x98] sm:$0xf]
      %v4816 = vld [vmem:[%s296 + $0x9c] sm:$0x1]
      %v4817 = vld [vmem:[%s296 + $0xb0] sm:$0xe]
      %v4818 = vld [vmem:[%s296 + $0xb4] sm:$0xf]
      %v4819 = vld [vmem:[%s296 + $0xb8] sm:$0x1]
      %v4820 = vld [vmem:[%s296 + $0xcc] sm:$0xe]
      %v4821 = vld [vmem:[%s296 + $0xd0] sm:$0xf]
      %v4822 = vld [vmem:[%s296 + $0xd4] sm:$0x1]
      %v4847 = vrot.slane %v4799, 5
      %v4848 = vrot.slane %v4847, 4
      %v4849 = vrot.slane %v4800, 5
      %v4850 = vsel %vm347, %v4848, %v4849
      %v4851 = vrot.slane %v4849, 4
      %v4852 = vrot.slane %v4801, 5
      %v4853 = vsel %vm347, %v4851, %v4852
      %v4854 = vrot.slane %v4802, 5
      %v4855 = vrot.slane %v4854, 4
      %v4856 = vrot.slane %v4803, 5
      %v4857 = vsel %vm347, %v4855, %v4856
      %v4858 = vrot.slane %v4856, 4
      %v4859 = vrot.slane %v4804, 5
      %v4860 = vsel %vm347, %v4858, %v4859
      %v4861 = vrot.slane %v4805, 5
      %v4862 = vrot.slane %v4861, 4
      %v4863 = vrot.slane %v4806, 5
      %v4864 = vsel %vm347, %v4862, %v4863
      %v4865 = vrot.slane %v4863, 4
      %v4866 = vrot.slane %v4807, 5
      %v4867 = vsel %vm347, %v4865, %v4866
      %v4868 = vrot.slane %v4808, 5
      %v4869 = vrot.slane %v4868, 4
      %v4870 = vrot.slane %v4809, 5
      %v4871 = vsel %vm347, %v4869, %v4870
      %v4872 = vrot.slane %v4870, 4
      %v4873 = vrot.slane %v4810, 5
      %v4874 = vsel %vm347, %v4872, %v4873
      %v4875 = vrot.slane %v4811, 5
      %v4876 = vrot.slane %v4875, 4
      %v4877 = vrot.slane %v4812, 5
      %v4878 = vsel %vm347, %v4876, %v4877
      %v4879 = vrot.slane %v4877, 4
      %v4880 = vrot.slane %v4813, 5
      %v4881 = vsel %vm347, %v4879, %v4880
      %v4882 = vrot.slane %v4814, 5
      %v4883 = vrot.slane %v4882, 4
      %v4884 = vrot.slane %v4815, 5
      %v4885 = vsel %vm347, %v4883, %v4884
      %v4886 = vrot.slane %v4884, 4
      %v4887 = vrot.slane %v4816, 5
      %v4888 = vsel %vm347, %v4886, %v4887
      %v4889 = vrot.slane %v4817, 5
      %v4890 = vrot.slane %v4889, 4
      %v4891 = vrot.slane %v4818, 5
      %v4892 = vsel %vm347, %v4890, %v4891
      %v4893 = vrot.slane %v4891, 4
      %v4894 = vrot.slane %v4819, 5
      %v4895 = vsel %vm347, %v4893, %v4894
      %v4896 = vrot.slane %v4820, 5
      %v4897 = vrot.slane %v4896, 4
      %v4898 = vrot.slane %v4821, 5
      %v4899 = vsel %vm347, %v4897, %v4898
      %v4900 = vrot.slane %v4898, 4
      %v4901 = vrot.slane %v4822, 5
      %v4902 = vsel %vm347, %v4900, %v4901
      %s4903 = scalar_lea.vmem %s2, 208
      %v4904 = vld [vmem:[%s4903] sm:$0xf]
      %v4905 = vld [vmem:[%s4903 + $0x4] sm:$0xf]
      %v4906 = vld [vmem:[%s4903 + $0x8] sm:$0xf]
      %v4907 = vld [vmem:[%s4903 + $0xc] sm:$0xf]
      %v4908 = vunpack.c.l.b16 %v4850
      %v4909 = vunpack.c.l.b16 %v4853
      %v4910 = vunpack.c.l.b16 %v4857
      %v4911 = vunpack.c.l.b16 %v4860
      %v4912 = vunpack.c.l.b16 %v4864
      %v4913 = vunpack.c.l.b16 %v4867
      %v4914 = vunpack.c.l.b16 %v4871
      %v4915 = vunpack.c.l.b16 %v4874
      %v4916 = vunpack.c.l.b16 %v4878
      %v4917 = vunpack.c.l.b16 %v4881
      %v4918 = vunpack.c.l.b16 %v4885
      %v4919 = vunpack.c.l.b16 %v4888
      %v4920 = vunpack.c.l.b16 %v4892
      %v4921 = vunpack.c.l.b16 %v4895
      %v4922 = vunpack.c.l.b16 %v4899
      %v4923 = vunpack.c.l.b16 %v4902
      %v4924 = vpack.c.b16 %v4909, %v4908
      %v4925 = vpack.c.b16 %v4911, %v4910
      %v4926 = vpack.c.b16 %v4913, %v4912
      %v4927 = vpack.c.b16 %v4915, %v4914
      %v4928 = vpack.c.b16 %v4917, %v4916
      %v4929 = vpack.c.b16 %v4919, %v4918
      %v4930 = vpack.c.b16 %v4921, %v4920
      %v4931 = vpack.c.b16 %v4923, %v4922
      %v4936 = vunpack.c.l.b16 %v4904
      %v4937 = vunpack.c.l.b16 %v4905
      %v4938 = vunpack.c.l.b16 %v4906
      %v4939 = vunpack.c.l.b16 %v4907
      %v4940 = vpack.c.b16 %v4937, %v4936
      %v4941 = vpack.c.b16 %v4939, %v4938
      %v4945 = vsel %vm449, %v4924, 0
      %v4948 = vsel %vm449, %v4925, 0
      %v4951 = vsel %vm449, %v4926, 0
      %v4954 = vsel %vm449, %v4927, 0
      %v4957 = vsel %vm449, %v4928, 0
      %v4960 = vsel %vm449, %v4929, 0
      %v4963 = vsel %vm449, %v4930, 0
      %v4966 = vsel %vm449, %v4931, 0
      %4968 = vmatprep.subr.bf16.mxu0 0
      %4969 = vmatpush1.bf16.msra.mxu0 0
      %4970 = vmatprep.subr.bf16.mxu0 0
      %4971 = vmatpush1.bf16.msra.mxu0 0
      %4972 = vmatprep.subr.bf16.mxu0 0
      %4973 = vmatpush1.bf16.msra.mxu0 0
      %4974 = vmatprep.subr.bf16.mxu0 0
      %4975 = vmatpush1.bf16.msra.mxu0 0
      %4976 = vmatprep.subr.bf16.mxu0 0
      %4977 = vmatpush1.bf16.msra.mxu0 0
      %4978 = vmatprep.subr.bf16.mxu0 0
      %4979 = vmatpush1.bf16.msra.mxu0 0
      %4980 = vmatprep.subr.bf16.mxu0 0
      %4981 = vmatpush1.bf16.msra.mxu0 %v4941
      %4982 = vmatprep.subr.bf16.mxu0 0
      %4983 = vmatpush1.bf16.msra.mxu0 %v4940
      %4984 = vmatprep.subr.bf16.mxu0 0
      %4985 = vmatpush2.bf16.msra.mxu0 0
      %4986 = vmatprep.subr.bf16.mxu0 0
      %4987 = vmatpush2.bf16.msra.mxu0 0
      %4988 = vmatprep.subr.bf16.mxu0 0
      %4989 = vmatpush2.bf16.msra.mxu0 0
      %4990 = vmatprep.subr.bf16.mxu0 0
      %4991 = vmatpush2.bf16.msra.mxu0 0
      %4992 = vmatprep.subr.bf16.mxu0 0
      %4993 = vmatpush2.bf16.msra.mxu0 0
      %4994 = vmatprep.subr.bf16.mxu0 0
      %4995 = vmatpush2.bf16.msra.mxu0 0
      %4996 = vmatprep.subr.bf16.mxu0 0
      %4997 = vmatpush2.bf16.msra.mxu0 0
      %4998 = vmatprep.subr.bf16.mxu0 0
      %4999 = vmatpush2.bf16.msra.mxu0 0
      %5000 = vmatprep.mubr.bf16.mxu0 0
      %5001 = vmatmul.mubr.bf16.gmra.mxu0 %v4945
      %v5002 = vpop.f32.mrf.mxu0
      %v5003 = vadd.f32 0.0, %v5002
      %v5004 = vpop.f32.mrf.mxu0
      %v5005 = vpop.f32.mrf.mxu0
      %v5006 = vadd.f32 0.0, %v5005
      %v5007 = vpop.f32.mrf.mxu0
      %5008 = vmatprep.mubr.bf16.mxu0 0
      %5009 = vmatmul.mubr.bf16.gmra.mxu0 %v4948
      %v5010 = vpop.f32.mrf.mxu0
      %v5011 = vadd.f32 0.0, %v5010
      %v5012 = vpop.f32.mrf.mxu0
      %v5013 = vpop.f32.mrf.mxu0
      %v5014 = vadd.f32 0.0, %v5013
      %v5015 = vpop.f32.mrf.mxu0
      %5016 = vmatprep.mubr.bf16.mxu0 0
      %5017 = vmatmul.mubr.bf16.gmra.mxu0 %v4951
      %v5018 = vpop.f32.mrf.mxu0
      %v5019 = vadd.f32 0.0, %v5018
      %v5020 = vpop.f32.mrf.mxu0
      %v5021 = vpop.f32.mrf.mxu0
      %v5022 = vadd.f32 0.0, %v5021
      %v5023 = vpop.f32.mrf.mxu0
      %5024 = vmatprep.mubr.bf16.mxu0 0
      %5025 = vmatmul.mubr.bf16.gmra.mxu0 %v4954
      %v5026 = vpop.f32.mrf.mxu0
      %v5027 = vadd.f32 0.0, %v5026
      %v5028 = vpop.f32.mrf.mxu0
      %v5029 = vpop.f32.mrf.mxu0
      %v5030 = vadd.f32 0.0, %v5029
      %v5031 = vpop.f32.mrf.mxu0
      %5032 = vmatprep.mubr.bf16.mxu0 0
      %5033 = vmatmul.mubr.bf16.gmra.mxu0 %v4957
      %v5034 = vpop.f32.mrf.mxu0
      %v5035 = vadd.f32 0.0, %v5034
      %v5036 = vpop.f32.mrf.mxu0
      %v5037 = vpop.f32.mrf.mxu0
      %v5038 = vadd.f32 0.0, %v5037
      %v5039 = vpop.f32.mrf.mxu0
      %5040 = vmatprep.mubr.bf16.mxu0 0
      %5041 = vmatmul.mubr.bf16.gmra.mxu0 %v4960
      %v5042 = vpop.f32.mrf.mxu0
      %v5043 = vadd.f32 0.0, %v5042
      %v5044 = vpop.f32.mrf.mxu0
      %v5045 = vpop.f32.mrf.mxu0
      %v5046 = vadd.f32 0.0, %v5045
      %v5047 = vpop.f32.mrf.mxu0
      %5048 = vmatprep.mubr.bf16.mxu0 0
      %5049 = vmatmul.mubr.bf16.gmra.mxu0 %v4963
      %v5050 = vpop.f32.mrf.mxu0
      %v5051 = vadd.f32 0.0, %v5050
      %v5052 = vpop.f32.mrf.mxu0
      %v5053 = vpop.f32.mrf.mxu0
      %v5054 = vadd.f32 0.0, %v5053
      %v5055 = vpop.f32.mrf.mxu0
      %5056 = vmatprep.mubr.bf16.mxu0 0
      %5057 = vmatmul.mubr.bf16.gmra.mxu0 %v4966
      %v5058 = vpop.f32.mrf.mxu0
      %v5059 = vadd.f32 0.0, %v5058
      %v5060 = vpop.f32.mrf.mxu0
      %v5061 = vpop.f32.mrf.mxu0
      %v5062 = vadd.f32 0.0, %v5061
      %v5063 = vpop.f32.mrf.mxu0
      %5064 = vdwg.mxu0
      %v5065 = vld [vmem:[#allocation2] sm:$0xff]
      %v5066 = vld [vmem:[#allocation2 + $0x8] sm:$0xff]
      %v5067 = vld [vmem:[#allocation2 + $0x10] sm:$0xff]
      %v5068 = vld [vmem:[#allocation2 + $0x18] sm:$0xff]
      %v5069 = vld [vmem:[#allocation2 + $0x20] sm:$0xff]
      %v5070 = vld [vmem:[#allocation2 + $0x28] sm:$0xff]
      %v5071 = vld [vmem:[#allocation2 + $0x30] sm:$0xff]
      %v5072 = vld [vmem:[#allocation2 + $0x38] sm:$0xff]
      %v5073 = vld [vmem:[#allocation2 + $0x40] sm:$0xff]
      %v5074 = vld [vmem:[#allocation2 + $0x48] sm:$0xff]
      %v5075 = vld [vmem:[#allocation2 + $0x50] sm:$0xff]
      %v5076 = vld [vmem:[#allocation2 + $0x58] sm:$0xff]
      %v5077 = vld [vmem:[#allocation2 + $0x60] sm:$0xff]
      %v5078 = vld [vmem:[#allocation2 + $0x68] sm:$0xff]
      %v5079 = vld [vmem:[#allocation2 + $0x70] sm:$0xff]
      %v5080 = vld [vmem:[#allocation2 + $0x78] sm:$0xff]
      %v5081 = vadd.f32 %v5065, %v5003
      %v5082 = vadd.f32 %v5066, %v5006
      %v5083 = vadd.f32 %v5067, %v5011
      %v5084 = vadd.f32 %v5068, %v5014
      %v5085 = vadd.f32 %v5069, %v5019
      %v5086 = vadd.f32 %v5070, %v5022
      %v5087 = vadd.f32 %v5071, %v5027
      %v5088 = vadd.f32 %v5072, %v5030
      %v5089 = vadd.f32 %v5073, %v5035
      %v5090 = vadd.f32 %v5074, %v5038
      %v5091 = vadd.f32 %v5075, %v5043
      %v5092 = vadd.f32 %v5076, %v5046
      %v5093 = vadd.f32 %v5077, %v5051
      %v5094 = vadd.f32 %v5078, %v5054
      %v5095 = vadd.f32 %v5079, %v5059
      %v5096 = vadd.f32 %v5080, %v5062
      %5097 = vst.msk [vmem:[#allocation2] sm:$0xff] %vm603, %v5081
      %5098 = vst.msk [vmem:[#allocation2 + $0x8] sm:$0xff] %vm603, %v5082
      %5099 = vst.msk [vmem:[#allocation2 + $0x10] sm:$0xff] %vm603, %v5083
      %5100 = vst.msk [vmem:[#allocation2 + $0x18] sm:$0xff] %vm603, %v5084
      %5101 = vst.msk [vmem:[#allocation2 + $0x20] sm:$0xff] %vm603, %v5085
      %5102 = vst.msk [vmem:[#allocation2 + $0x28] sm:$0xff] %vm603, %v5086
      %5103 = vst.msk [vmem:[#allocation2 + $0x30] sm:$0xff] %vm603, %v5087
      %5104 = vst.msk [vmem:[#allocation2 + $0x38] sm:$0xff] %vm603, %v5088
      %5105 = vst.msk [vmem:[#allocation2 + $0x40] sm:$0xff] %vm603, %v5089
      %5106 = vst.msk [vmem:[#allocation2 + $0x48] sm:$0xff] %vm603, %v5090
      %5107 = vst.msk [vmem:[#allocation2 + $0x50] sm:$0xff] %vm603, %v5091
      %5108 = vst.msk [vmem:[#allocation2 + $0x58] sm:$0xff] %vm603, %v5092
      %5109 = vst.msk [vmem:[#allocation2 + $0x60] sm:$0xff] %vm603, %v5093
      %5110 = vst.msk [vmem:[#allocation2 + $0x68] sm:$0xff] %vm603, %v5094
      %5111 = vst.msk [vmem:[#allocation2 + $0x70] sm:$0xff] %vm603, %v5095
      %5112 = vst.msk [vmem:[#allocation2 + $0x78] sm:$0xff] %vm603, %v5096
      %v5113 = vld [vmem:[%s296 + $0xc] sm:$0x8]
      %v5114 = vld [vmem:[%s296 + $0x10] sm:$0xf]
      %v5115 = vld [vmem:[%s296 + $0x14] sm:$0x7]
      %v5116 = vld [vmem:[%s296 + $0x28] sm:$0x8]
      %v5117 = vld [vmem:[%s296 + $0x2c] sm:$0xf]
      %v5118 = vld [vmem:[%s296 + $0x30] sm:$0x7]
      %v5119 = vld [vmem:[%s296 + $0x44] sm:$0x8]
      %v5120 = vld [vmem:[%s296 + $0x48] sm:$0xf]
      %v5121 = vld [vmem:[%s296 + $0x4c] sm:$0x7]
      %v5122 = vld [vmem:[%s296 + $0x60] sm:$0x8]
      %v5123 = vld [vmem:[%s296 + $0x64] sm:$0xf]
      %v5124 = vld [vmem:[%s296 + $0x68] sm:$0x7]
      %v5125 = vld [vmem:[%s296 + $0x7c] sm:$0x8]
      %v5126 = vld [vmem:[%s296 + $0x80] sm:$0xf]
      %v5127 = vld [vmem:[%s296 + $0x84] sm:$0x7]
      %v5128 = vld [vmem:[%s296 + $0x98] sm:$0x8]
      %v5129 = vld [vmem:[%s296 + $0x9c] sm:$0xf]
      %v5130 = vld [vmem:[%s296 + $0xa0] sm:$0x7]
      %v5131 = vld [vmem:[%s296 + $0xb4] sm:$0x8]
      %v5132 = vld [vmem:[%s296 + $0xb8] sm:$0xf]
      %v5133 = vld [vmem:[%s296 + $0xbc] sm:$0x7]
      %v5134 = vld [vmem:[%s296 + $0xd0] sm:$0x8]
      %v5135 = vld [vmem:[%s296 + $0xd4] sm:$0xf]
      %v5136 = vld [vmem:[%s296 + $0xd8] sm:$0x7]
      %v5161 = vrot.slane %v5113, 7
      %v5162 = vrot.slane %v5161, 4
      %v5163 = vrot.slane %v5114, 7
      %v5164 = vsel %vm3622, %v5162, %v5163
      %v5165 = vrot.slane %v5163, 4
      %v5166 = vrot.slane %v5115, 7
      %v5167 = vsel %vm3622, %v5165, %v5166
      %v5168 = vrot.slane %v5116, 7
      %v5169 = vrot.slane %v5168, 4
      %v5170 = vrot.slane %v5117, 7
      %v5171 = vsel %vm3622, %v5169, %v5170
      %v5172 = vrot.slane %v5170, 4
      %v5173 = vrot.slane %v5118, 7
      %v5174 = vsel %vm3622, %v5172, %v5173
      %v5175 = vrot.slane %v5119, 7
      %v5176 = vrot.slane %v5175, 4
      %v5177 = vrot.slane %v5120, 7
      %v5178 = vsel %vm3622, %v5176, %v5177
      %v5179 = vrot.slane %v5177, 4
      %v5180 = vrot.slane %v5121, 7
      %v5181 = vsel %vm3622, %v5179, %v5180
      %v5182 = vrot.slane %v5122, 7
      %v5183 = vrot.slane %v5182, 4
      %v5184 = vrot.slane %v5123, 7
      %v5185 = vsel %vm3622, %v5183, %v5184
      %v5186 = vrot.slane %v5184, 4
      %v5187 = vrot.slane %v5124, 7
      %v5188 = vsel %vm3622, %v5186, %v5187
      %v5189 = vrot.slane %v5125, 7
      %v5190 = vrot.slane %v5189, 4
      %v5191 = vrot.slane %v5126, 7
      %v5192 = vsel %vm3622, %v5190, %v5191
      %v5193 = vrot.slane %v5191, 4
      %v5194 = vrot.slane %v5127, 7
      %v5195 = vsel %vm3622, %v5193, %v5194
      %v5196 = vrot.slane %v5128, 7
      %v5197 = vrot.slane %v5196, 4
      %v5198 = vrot.slane %v5129, 7
      %v5199 = vsel %vm3622, %v5197, %v5198
      %v5200 = vrot.slane %v5198, 4
      %v5201 = vrot.slane %v5130, 7
      %v5202 = vsel %vm3622, %v5200, %v5201
      %v5203 = vrot.slane %v5131, 7
      %v5204 = vrot.slane %v5203, 4
      %v5205 = vrot.slane %v5132, 7
      %v5206 = vsel %vm3622, %v5204, %v5205
      %v5207 = vrot.slane %v5205, 4
      %v5208 = vrot.slane %v5133, 7
      %v5209 = vsel %vm3622, %v5207, %v5208
      %v5210 = vrot.slane %v5134, 7
      %v5211 = vrot.slane %v5210, 4
      %v5212 = vrot.slane %v5135, 7
      %v5213 = vsel %vm3622, %v5211, %v5212
      %v5214 = vrot.slane %v5212, 4
      %v5215 = vrot.slane %v5136, 7
      %v5216 = vsel %vm3622, %v5214, %v5215
      %s5217 = scalar_lea.vmem %s2, 224
      %v5218 = vld [vmem:[%s5217] sm:$0xf]
      %v5219 = vld [vmem:[%s5217 + $0x4] sm:$0xf]
      %v5220 = vld [vmem:[%s5217 + $0x8] sm:$0xf]
      %v5221 = vld [vmem:[%s5217 + $0xc] sm:$0xf]
      %v5222 = vunpack.c.l.b16 %v5164
      %v5223 = vunpack.c.l.b16 %v5167
      %v5224 = vunpack.c.l.b16 %v5171
      %v5225 = vunpack.c.l.b16 %v5174
      %v5226 = vunpack.c.l.b16 %v5178
      %v5227 = vunpack.c.l.b16 %v5181
      %v5228 = vunpack.c.l.b16 %v5185
      %v5229 = vunpack.c.l.b16 %v5188
      %v5230 = vunpack.c.l.b16 %v5192
      %v5231 = vunpack.c.l.b16 %v5195
      %v5232 = vunpack.c.l.b16 %v5199
      %v5233 = vunpack.c.l.b16 %v5202
      %v5234 = vunpack.c.l.b16 %v5206
      %v5235 = vunpack.c.l.b16 %v5209
      %v5236 = vunpack.c.l.b16 %v5213
      %v5237 = vunpack.c.l.b16 %v5216
      %v5238 = vpack.c.b16 %v5223, %v5222
      %v5239 = vpack.c.b16 %v5225, %v5224
      %v5240 = vpack.c.b16 %v5227, %v5226
      %v5241 = vpack.c.b16 %v5229, %v5228
      %v5242 = vpack.c.b16 %v5231, %v5230
      %v5243 = vpack.c.b16 %v5233, %v5232
      %v5244 = vpack.c.b16 %v5235, %v5234
      %v5245 = vpack.c.b16 %v5237, %v5236
      %v5250 = vunpack.c.l.b16 %v5218
      %v5251 = vunpack.c.l.b16 %v5219
      %v5252 = vunpack.c.l.b16 %v5220
      %v5253 = vunpack.c.l.b16 %v5221
      %v5254 = vpack.c.b16 %v5251, %v5250
      %v5255 = vpack.c.b16 %v5253, %v5252
      %v5259 = vsel %vm449, %v5238, 0
      %v5262 = vsel %vm449, %v5239, 0
      %v5265 = vsel %vm449, %v5240, 0
      %v5268 = vsel %vm449, %v5241, 0
      %v5271 = vsel %vm449, %v5242, 0
      %v5274 = vsel %vm449, %v5243, 0
      %v5277 = vsel %vm449, %v5244, 0
      %v5280 = vsel %vm449, %v5245, 0
      %5282 = vmatprep.subr.bf16.mxu0 0
      %5283 = vmatpush1.bf16.msra.mxu0 0
      %5284 = vmatprep.subr.bf16.mxu0 0
      %5285 = vmatpush1.bf16.msra.mxu0 0
      %5286 = vmatprep.subr.bf16.mxu0 0
      %5287 = vmatpush1.bf16.msra.mxu0 0
      %5288 = vmatprep.subr.bf16.mxu0 0
      %5289 = vmatpush1.bf16.msra.mxu0 0
      %5290 = vmatprep.subr.bf16.mxu0 0
      %5291 = vmatpush1.bf16.msra.mxu0 0
      %5292 = vmatprep.subr.bf16.mxu0 0
      %5293 = vmatpush1.bf16.msra.mxu0 0
      %5294 = vmatprep.subr.bf16.mxu0 0
      %5295 = vmatpush1.bf16.msra.mxu0 %v5255
      %5296 = vmatprep.subr.bf16.mxu0 0
      %5297 = vmatpush1.bf16.msra.mxu0 %v5254
      %5298 = vmatprep.subr.bf16.mxu0 0
      %5299 = vmatpush2.bf16.msra.mxu0 0
      %5300 = vmatprep.subr.bf16.mxu0 0
      %5301 = vmatpush2.bf16.msra.mxu0 0
      %5302 = vmatprep.subr.bf16.mxu0 0
      %5303 = vmatpush2.bf16.msra.mxu0 0
      %5304 = vmatprep.subr.bf16.mxu0 0
      %5305 = vmatpush2.bf16.msra.mxu0 0
      %5306 = vmatprep.subr.bf16.mxu0 0
      %5307 = vmatpush2.bf16.msra.mxu0 0
      %5308 = vmatprep.subr.bf16.mxu0 0
      %5309 = vmatpush2.bf16.msra.mxu0 0
      %5310 = vmatprep.subr.bf16.mxu0 0
      %5311 = vmatpush2.bf16.msra.mxu0 0
      %5312 = vmatprep.subr.bf16.mxu0 0
      %5313 = vmatpush2.bf16.msra.mxu0 0
      %5314 = vmatprep.mubr.bf16.mxu0 0
      %5315 = vmatmul.mubr.bf16.gmra.mxu0 %v5259
      %v5316 = vpop.f32.mrf.mxu0
      %v5317 = vadd.f32 0.0, %v5316
      %v5318 = vpop.f32.mrf.mxu0
      %v5319 = vpop.f32.mrf.mxu0
      %v5320 = vadd.f32 0.0, %v5319
      %v5321 = vpop.f32.mrf.mxu0
      %5322 = vmatprep.mubr.bf16.mxu0 0
      %5323 = vmatmul.mubr.bf16.gmra.mxu0 %v5262
      %v5324 = vpop.f32.mrf.mxu0
      %v5325 = vadd.f32 0.0, %v5324
      %v5326 = vpop.f32.mrf.mxu0
      %v5327 = vpop.f32.mrf.mxu0
      %v5328 = vadd.f32 0.0, %v5327
      %v5329 = vpop.f32.mrf.mxu0
      %5330 = vmatprep.mubr.bf16.mxu0 0
      %5331 = vmatmul.mubr.bf16.gmra.mxu0 %v5265
      %v5332 = vpop.f32.mrf.mxu0
      %v5333 = vadd.f32 0.0, %v5332
      %v5334 = vpop.f32.mrf.mxu0
      %v5335 = vpop.f32.mrf.mxu0
      %v5336 = vadd.f32 0.0, %v5335
      %v5337 = vpop.f32.mrf.mxu0
      %5338 = vmatprep.mubr.bf16.mxu0 0
      %5339 = vmatmul.mubr.bf16.gmra.mxu0 %v5268
      %v5340 = vpop.f32.mrf.mxu0
      %v5341 = vadd.f32 0.0, %v5340
      %v5342 = vpop.f32.mrf.mxu0
      %v5343 = vpop.f32.mrf.mxu0
      %v5344 = vadd.f32 0.0, %v5343
      %v5345 = vpop.f32.mrf.mxu0
      %5346 = vmatprep.mubr.bf16.mxu0 0
      %5347 = vmatmul.mubr.bf16.gmra.mxu0 %v5271
      %v5348 = vpop.f32.mrf.mxu0
      %v5349 = vadd.f32 0.0, %v5348
      %v5350 = vpop.f32.mrf.mxu0
      %v5351 = vpop.f32.mrf.mxu0
      %v5352 = vadd.f32 0.0, %v5351
      %v5353 = vpop.f32.mrf.mxu0
      %5354 = vmatprep.mubr.bf16.mxu0 0
      %5355 = vmatmul.mubr.bf16.gmra.mxu0 %v5274
      %v5356 = vpop.f32.mrf.mxu0
      %v5357 = vadd.f32 0.0, %v5356
      %v5358 = vpop.f32.mrf.mxu0
      %v5359 = vpop.f32.mrf.mxu0
      %v5360 = vadd.f32 0.0, %v5359
      %v5361 = vpop.f32.mrf.mxu0
      %5362 = vmatprep.mubr.bf16.mxu0 0
      %5363 = vmatmul.mubr.bf16.gmra.mxu0 %v5277
      %v5364 = vpop.f32.mrf.mxu0
      %v5365 = vadd.f32 0.0, %v5364
      %v5366 = vpop.f32.mrf.mxu0
      %v5367 = vpop.f32.mrf.mxu0
      %v5368 = vadd.f32 0.0, %v5367
      %v5369 = vpop.f32.mrf.mxu0
      %5370 = vmatprep.mubr.bf16.mxu0 0
      %5371 = vmatmul.mubr.bf16.gmra.mxu0 %v5280
      %v5372 = vpop.f32.mrf.mxu0
      %v5373 = vadd.f32 0.0, %v5372
      %v5374 = vpop.f32.mrf.mxu0
      %v5375 = vpop.f32.mrf.mxu0
      %v5376 = vadd.f32 0.0, %v5375
      %v5377 = vpop.f32.mrf.mxu0
      %5378 = vdwg.mxu0
      %v5379 = vld [vmem:[#allocation2] sm:$0xff]
      %v5380 = vld [vmem:[#allocation2 + $0x8] sm:$0xff]
      %v5381 = vld [vmem:[#allocation2 + $0x10] sm:$0xff]
      %v5382 = vld [vmem:[#allocation2 + $0x18] sm:$0xff]
      %v5383 = vld [vmem:[#allocation2 + $0x20] sm:$0xff]
      %v5384 = vld [vmem:[#allocation2 + $0x28] sm:$0xff]
      %v5385 = vld [vmem:[#allocation2 + $0x30] sm:$0xff]
      %v5386 = vld [vmem:[#allocation2 + $0x38] sm:$0xff]
      %v5387 = vld [vmem:[#allocation2 + $0x40] sm:$0xff]
      %v5388 = vld [vmem:[#allocation2 + $0x48] sm:$0xff]
      %v5389 = vld [vmem:[#allocation2 + $0x50] sm:$0xff]
      %v5390 = vld [vmem:[#allocation2 + $0x58] sm:$0xff]
      %v5391 = vld [vmem:[#allocation2 + $0x60] sm:$0xff]
      %v5392 = vld [vmem:[#allocation2 + $0x68] sm:$0xff]
      %v5393 = vld [vmem:[#allocation2 + $0x70] sm:$0xff]
      %v5394 = vld [vmem:[#allocation2 + $0x78] sm:$0xff]
      %v5395 = vadd.f32 %v5379, %v5317
      %v5396 = vadd.f32 %v5380, %v5320
      %v5397 = vadd.f32 %v5381, %v5325
      %v5398 = vadd.f32 %v5382, %v5328
      %v5399 = vadd.f32 %v5383, %v5333
      %v5400 = vadd.f32 %v5384, %v5336
      %v5401 = vadd.f32 %v5385, %v5341
      %v5402 = vadd.f32 %v5386, %v5344
      %v5403 = vadd.f32 %v5387, %v5349
      %v5404 = vadd.f32 %v5388, %v5352
      %v5405 = vadd.f32 %v5389, %v5357
      %v5406 = vadd.f32 %v5390, %v5360
      %v5407 = vadd.f32 %v5391, %v5365
      %v5408 = vadd.f32 %v5392, %v5368
      %v5409 = vadd.f32 %v5393, %v5373
      %v5410 = vadd.f32 %v5394, %v5376
      %5411 = vst.msk [vmem:[#allocation2] sm:$0xff] %vm603, %v5395
      %5412 = vst.msk [vmem:[#allocation2 + $0x8] sm:$0xff] %vm603, %v5396
      %5413 = vst.msk [vmem:[#allocation2 + $0x10] sm:$0xff] %vm603, %v5397
      %5414 = vst.msk [vmem:[#allocation2 + $0x18] sm:$0xff] %vm603, %v5398
      %5415 = vst.msk [vmem:[#allocation2 + $0x20] sm:$0xff] %vm603, %v5399
      %5416 = vst.msk [vmem:[#allocation2 + $0x28] sm:$0xff] %vm603, %v5400
      %5417 = vst.msk [vmem:[#allocation2 + $0x30] sm:$0xff] %vm603, %v5401
      %5418 = vst.msk [vmem:[#allocation2 + $0x38] sm:$0xff] %vm603, %v5402
      %5419 = vst.msk [vmem:[#allocation2 + $0x40] sm:$0xff] %vm603, %v5403
      %5420 = vst.msk [vmem:[#allocation2 + $0x48] sm:$0xff] %vm603, %v5404
      %5421 = vst.msk [vmem:[#allocation2 + $0x50] sm:$0xff] %vm603, %v5405
      %5422 = vst.msk [vmem:[#allocation2 + $0x58] sm:$0xff] %vm603, %v5406
      %5423 = vst.msk [vmem:[#allocation2 + $0x60] sm:$0xff] %vm603, %v5407
      %5424 = vst.msk [vmem:[#allocation2 + $0x68] sm:$0xff] %vm603, %v5408
      %5425 = vst.msk [vmem:[#allocation2 + $0x70] sm:$0xff] %vm603, %v5409
      %5426 = vst.msk [vmem:[#allocation2 + $0x78] sm:$0xff] %vm603, %v5410
      %s5427 = sadd.s32 %s292, 30
      %s5428 = smul.u32 %s5427, 7
      %s5429 = smul.addr %s5428, 4
      %s5430 = scalar_lea.vmem %s276, %s5429
      %v5431 = vld [vmem:[%s5430] sm:$0x8]
      %v5432 = vld [vmem:[%s5430 + $0x4] sm:$0xf]
      %v5433 = vld [vmem:[%s5430 + $0x8] sm:$0x7]
      %v5434 = vld [vmem:[%s5430 + $0x1c] sm:$0x8]
      %v5435 = vld [vmem:[%s5430 + $0x20] sm:$0xf]
      %v5436 = vld [vmem:[%s5430 + $0x24] sm:$0x7]
      %v5437 = vld [vmem:[%s5430 + $0x38] sm:$0x8]
      %v5438 = vld [vmem:[%s5430 + $0x3c] sm:$0xf]
      %v5439 = vld [vmem:[%s5430 + $0x40] sm:$0x7]
      %v5440 = vld [vmem:[%s5430 + $0x54] sm:$0x8]
      %v5441 = vld [vmem:[%s5430 + $0x58] sm:$0xf]
      %v5442 = vld [vmem:[%s5430 + $0x5c] sm:$0x7]
      %v5443 = vld [vmem:[%s5430 + $0x70] sm:$0x8]
      %v5444 = vld [vmem:[%s5430 + $0x74] sm:$0xf]
      %v5445 = vld [vmem:[%s5430 + $0x78] sm:$0x7]
      %v5446 = vld [vmem:[%s5430 + $0x8c] sm:$0x8]
      %v5447 = vld [vmem:[%s5430 + $0x90] sm:$0xf]
      %v5448 = vld [vmem:[%s5430 + $0x94] sm:$0x7]
      %v5449 = vld [vmem:[%s5430 + $0xa8] sm:$0x8]
      %v5450 = vld [vmem:[%s5430 + $0xac] sm:$0xf]
      %v5451 = vld [vmem:[%s5430 + $0xb0] sm:$0x7]
      %v5452 = vld [vmem:[%s5430 + $0xc4] sm:$0x8]
      %v5453 = vld [vmem:[%s5430 + $0xc8] sm:$0xf]
      %v5454 = vld [vmem:[%s5430 + $0xcc] sm:$0x7]
      %v5479 = vrot.slane %v5431, 7
      %v5480 = vrot.slane %v5479, 4
      %v5481 = vrot.slane %v5432, 7
      %v5482 = vsel %vm3622, %v5480, %v5481
      %v5483 = vrot.slane %v5481, 4
      %v5484 = vrot.slane %v5433, 7
      %v5485 = vsel %vm3622, %v5483, %v5484
      %v5486 = vrot.slane %v5434, 7
      %v5487 = vrot.slane %v5486, 4
      %v5488 = vrot.slane %v5435, 7
      %v5489 = vsel %vm3622, %v5487, %v5488
      %v5490 = vrot.slane %v5488, 4
      %v5491 = vrot.slane %v5436, 7
      %v5492 = vsel %vm3622, %v5490, %v5491
      %v5493 = vrot.slane %v5437, 7
      %v5494 = vrot.slane %v5493, 4
      %v5495 = vrot.slane %v5438, 7
      %v5496 = vsel %vm3622, %v5494, %v5495
      %v5497 = vrot.slane %v5495, 4
      %v5498 = vrot.slane %v5439, 7
      %v5499 = vsel %vm3622, %v5497, %v5498
      %v5500 = vrot.slane %v5440, 7
      %v5501 = vrot.slane %v5500, 4
      %v5502 = vrot.slane %v5441, 7
      %v5503 = vsel %vm3622, %v5501, %v5502
      %v5504 = vrot.slane %v5502, 4
      %v5505 = vrot.slane %v5442, 7
      %v5506 = vsel %vm3622, %v5504, %v5505
      %v5507 = vrot.slane %v5443, 7
      %v5508 = vrot.slane %v5507, 4
      %v5509 = vrot.slane %v5444, 7
      %v5510 = vsel %vm3622, %v5508, %v5509
      %v5511 = vrot.slane %v5509, 4
      %v5512 = vrot.slane %v5445, 7
      %v5513 = vsel %vm3622, %v5511, %v5512
      %v5514 = vrot.slane %v5446, 7
      %v5515 = vrot.slane %v5514, 4
      %v5516 = vrot.slane %v5447, 7
      %v5517 = vsel %vm3622, %v5515, %v5516
      %v5518 = vrot.slane %v5516, 4
      %v5519 = vrot.slane %v5448, 7
      %v5520 = vsel %vm3622, %v5518, %v5519
      %v5521 = vrot.slane %v5449, 7
      %v5522 = vrot.slane %v5521, 4
      %v5523 = vrot.slane %v5450, 7
      %v5524 = vsel %vm3622, %v5522, %v5523
      %v5525 = vrot.slane %v5523, 4
      %v5526 = vrot.slane %v5451, 7
      %v5527 = vsel %vm3622, %v5525, %v5526
      %v5528 = vrot.slane %v5452, 7
      %v5529 = vrot.slane %v5528, 4
      %v5530 = vrot.slane %v5453, 7
      %v5531 = vsel %vm3622, %v5529, %v5530
      %v5532 = vrot.slane %v5530, 4
      %v5533 = vrot.slane %v5454, 7
      %v5534 = vsel %vm3622, %v5532, %v5533
      %s5535 = scalar_lea.vmem %s2, 240
      %v5536 = vld [vmem:[%s5535] sm:$0xf]
      %v5537 = vld [vmem:[%s5535 + $0x4] sm:$0xf]
      %v5538 = vld [vmem:[%s5535 + $0x8] sm:$0xf]
      %v5539 = vld [vmem:[%s5535 + $0xc] sm:$0xf]
      %v5540 = vunpack.c.l.b16 %v5482
      %v5541 = vunpack.c.l.b16 %v5485
      %v5542 = vunpack.c.l.b16 %v5489
      %v5543 = vunpack.c.l.b16 %v5492
      %v5544 = vunpack.c.l.b16 %v5496
      %v5545 = vunpack.c.l.b16 %v5499
      %v5546 = vunpack.c.l.b16 %v5503
      %v5547 = vunpack.c.l.b16 %v5506
      %v5548 = vunpack.c.l.b16 %v5510
      %v5549 = vunpack.c.l.b16 %v5513
      %v5550 = vunpack.c.l.b16 %v5517
      %v5551 = vunpack.c.l.b16 %v5520
      %v5552 = vunpack.c.l.b16 %v5524
      %v5553 = vunpack.c.l.b16 %v5527
      %v5554 = vunpack.c.l.b16 %v5531
      %v5555 = vunpack.c.l.b16 %v5534
      %v5556 = vpack.c.b16 %v5541, %v5540
      %v5557 = vpack.c.b16 %v5543, %v5542
      %v5558 = vpack.c.b16 %v5545, %v5544
      %v5559 = vpack.c.b16 %v5547, %v5546
      %v5560 = vpack.c.b16 %v5549, %v5548
      %v5561 = vpack.c.b16 %v5551, %v5550
      %v5562 = vpack.c.b16 %v5553, %v5552
      %v5563 = vpack.c.b16 %v5555, %v5554
      %v5568 = vunpack.c.l.b16 %v5536
      %v5569 = vunpack.c.l.b16 %v5537
      %v5570 = vunpack.c.l.b16 %v5538
      %v5571 = vunpack.c.l.b16 %v5539
      %v5572 = vpack.c.b16 %v5569, %v5568
      %v5573 = vpack.c.b16 %v5571, %v5570
      %v5577 = vsel %vm449, %v5556, 0
      %v5580 = vsel %vm449, %v5557, 0
      %v5583 = vsel %vm449, %v5558, 0
      %v5586 = vsel %vm449, %v5559, 0
      %v5589 = vsel %vm449, %v5560, 0
      %v5592 = vsel %vm449, %v5561, 0
      %v5595 = vsel %vm449, %v5562, 0
      %v5598 = vsel %vm449, %v5563, 0
      %5600 = vmatprep.subr.bf16.mxu0 0
      %5601 = vmatpush1.bf16.msra.mxu0 0
      %5602 = vmatprep.subr.bf16.mxu0 0
      %5603 = vmatpush1.bf16.msra.mxu0 0
      %5604 = vmatprep.subr.bf16.mxu0 0
      %5605 = vmatpush1.bf16.msra.mxu0 0
      %5606 = vmatprep.subr.bf16.mxu0 0
      %5607 = vmatpush1.bf16.msra.mxu0 0
      %5608 = vmatprep.subr.bf16.mxu0 0
      %5609 = vmatpush1.bf16.msra.mxu0 0
      %5610 = vmatprep.subr.bf16.mxu0 0
      %5611 = vmatpush1.bf16.msra.mxu0 0
      %5612 = vmatprep.subr.bf16.mxu0 0
      %5613 = vmatpush1.bf16.msra.mxu0 %v5573
      %5614 = vmatprep.subr.bf16.mxu0 0
      %5615 = vmatpush1.bf16.msra.mxu0 %v5572
      %5616 = vmatprep.subr.bf16.mxu0 0
      %5617 = vmatpush2.bf16.msra.mxu0 0
      %5618 = vmatprep.subr.bf16.mxu0 0
      %5619 = vmatpush2.bf16.msra.mxu0 0
      %5620 = vmatprep.subr.bf16.mxu0 0
      %5621 = vmatpush2.bf16.msra.mxu0 0
      %5622 = vmatprep.subr.bf16.mxu0 0
      %5623 = vmatpush2.bf16.msra.mxu0 0
      %5624 = vmatprep.subr.bf16.mxu0 0
      %5625 = vmatpush2.bf16.msra.mxu0 0
      %5626 = vmatprep.subr.bf16.mxu0 0
      %5627 = vmatpush2.bf16.msra.mxu0 0
      %5628 = vmatprep.subr.bf16.mxu0 0
      %5629 = vmatpush2.bf16.msra.mxu0 0
      %5630 = vmatprep.subr.bf16.mxu0 0
      %5631 = vmatpush2.bf16.msra.mxu0 0
      %5632 = vmatprep.mubr.bf16.mxu0 0
      %5633 = vmatmul.mubr.bf16.gmra.mxu0 %v5577
      %v5634 = vpop.f32.mrf.mxu0
      %v5635 = vadd.f32 0.0, %v5634
      %v5636 = vpop.f32.mrf.mxu0
      %v5637 = vpop.f32.mrf.mxu0
      %v5638 = vadd.f32 0.0, %v5637
      %v5639 = vpop.f32.mrf.mxu0
      %5640 = vmatprep.mubr.bf16.mxu0 0
      %5641 = vmatmul.mubr.bf16.gmra.mxu0 %v5580
      %v5642 = vpop.f32.mrf.mxu0
      %v5643 = vadd.f32 0.0, %v5642
      %v5644 = vpop.f32.mrf.mxu0
      %v5645 = vpop.f32.mrf.mxu0
      %v5646 = vadd.f32 0.0, %v5645
      %v5647 = vpop.f32.mrf.mxu0
      %5648 = vmatprep.mubr.bf16.mxu0 0
      %5649 = vmatmul.mubr.bf16.gmra.mxu0 %v5583
      %v5650 = vpop.f32.mrf.mxu0
      %v5651 = vadd.f32 0.0, %v5650
      %v5652 = vpop.f32.mrf.mxu0
      %v5653 = vpop.f32.mrf.mxu0
      %v5654 = vadd.f32 0.0, %v5653
      %v5655 = vpop.f32.mrf.mxu0
      %5656 = vmatprep.mubr.bf16.mxu0 0
      %5657 = vmatmul.mubr.bf16.gmra.mxu0 %v5586
      %v5658 = vpop.f32.mrf.mxu0
      %v5659 = vadd.f32 0.0, %v5658
      %v5660 = vpop.f32.mrf.mxu0
      %v5661 = vpop.f32.mrf.mxu0
      %v5662 = vadd.f32 0.0, %v5661
      %v5663 = vpop.f32.mrf.mxu0
      %5664 = vmatprep.mubr.bf16.mxu0 0
      %5665 = vmatmul.mubr.bf16.gmra.mxu0 %v5589
      %v5666 = vpop.f32.mrf.mxu0
      %v5667 = vadd.f32 0.0, %v5666
      %v5668 = vpop.f32.mrf.mxu0
      %v5669 = vpop.f32.mrf.mxu0
      %v5670 = vadd.f32 0.0, %v5669
      %v5671 = vpop.f32.mrf.mxu0
      %5672 = vmatprep.mubr.bf16.mxu0 0
      %5673 = vmatmul.mubr.bf16.gmra.mxu0 %v5592
      %v5674 = vpop.f32.mrf.mxu0
      %v5675 = vadd.f32 0.0, %v5674
      %v5676 = vpop.f32.mrf.mxu0
      %v5677 = vpop.f32.mrf.mxu0
      %v5678 = vadd.f32 0.0, %v5677
      %v5679 = vpop.f32.mrf.mxu0
      %5680 = vmatprep.mubr.bf16.mxu0 0
      %5681 = vmatmul.mubr.bf16.gmra.mxu0 %v5595
      %v5682 = vpop.f32.mrf.mxu0
      %v5683 = vadd.f32 0.0, %v5682
      %v5684 = vpop.f32.mrf.mxu0
      %v5685 = vpop.f32.mrf.mxu0
      %v5686 = vadd.f32 0.0, %v5685
      %v5687 = vpop.f32.mrf.mxu0
      %5688 = vmatprep.mubr.bf16.mxu0 0
      %5689 = vmatmul.mubr.bf16.gmra.mxu0 %v5598
      %v5690 = vpop.f32.mrf.mxu0
      %v5691 = vadd.f32 0.0, %v5690
      %v5692 = vpop.f32.mrf.mxu0
      %v5693 = vpop.f32.mrf.mxu0
      %v5694 = vadd.f32 0.0, %v5693
      %v5695 = vpop.f32.mrf.mxu0
      %5696 = vdwg.mxu0
      %v5697 = vld [vmem:[#allocation2] sm:$0xff]
      %v5698 = vld [vmem:[#allocation2 + $0x8] sm:$0xff]
      %v5699 = vld [vmem:[#allocation2 + $0x10] sm:$0xff]
      %v5700 = vld [vmem:[#allocation2 + $0x18] sm:$0xff]
      %v5701 = vld [vmem:[#allocation2 + $0x20] sm:$0xff]
      %v5702 = vld [vmem:[#allocation2 + $0x28] sm:$0xff]
      %v5703 = vld [vmem:[#allocation2 + $0x30] sm:$0xff]
      %v5704 = vld [vmem:[#allocation2 + $0x38] sm:$0xff]
      %v5705 = vld [vmem:[#allocation2 + $0x40] sm:$0xff]
      %v5706 = vld [vmem:[#allocation2 + $0x48] sm:$0xff]
      %v5707 = vld [vmem:[#allocation2 + $0x50] sm:$0xff]
      %v5708 = vld [vmem:[#allocation2 + $0x58] sm:$0xff]
      %v5709 = vld [vmem:[#allocation2 + $0x60] sm:$0xff]
      %v5710 = vld [vmem:[#allocation2 + $0x68] sm:$0xff]
      %v5711 = vld [vmem:[#allocation2 + $0x70] sm:$0xff]
      %v5712 = vld [vmem:[#allocation2 + $0x78] sm:$0xff]
      %v5713 = vadd.f32 %v5697, %v5635
      %v5714 = vadd.f32 %v5698, %v5638
      %v5715 = vadd.f32 %v5699, %v5643
      %v5716 = vadd.f32 %v5700, %v5646
      %v5717 = vadd.f32 %v5701, %v5651
      %v5718 = vadd.f32 %v5702, %v5654
      %v5719 = vadd.f32 %v5703, %v5659
      %v5720 = vadd.f32 %v5704, %v5662
      %v5721 = vadd.f32 %v5705, %v5667
      %v5722 = vadd.f32 %v5706, %v5670
      %v5723 = vadd.f32 %v5707, %v5675
      %v5724 = vadd.f32 %v5708, %v5678
      %v5725 = vadd.f32 %v5709, %v5683
      %v5726 = vadd.f32 %v5710, %v5686
      %v5727 = vadd.f32 %v5711, %v5691
      %v5728 = vadd.f32 %v5712, %v5694
      %5729 = vst.msk [vmem:[#allocation2] sm:$0xff] %vm603, %v5713
      %5730 = vst.msk [vmem:[#allocation2 + $0x8] sm:$0xff] %vm603, %v5714
      %5731 = vst.msk [vmem:[#allocation2 + $0x10] sm:$0xff] %vm603, %v5715
      %5732 = vst.msk [vmem:[#allocation2 + $0x18] sm:$0xff] %vm603, %v5716
      %5733 = vst.msk [vmem:[#allocation2 + $0x20] sm:$0xff] %vm603, %v5717
      %5734 = vst.msk [vmem:[#allocation2 + $0x28] sm:$0xff] %vm603, %v5718
      %5735 = vst.msk [vmem:[#allocation2 + $0x30] sm:$0xff] %vm603, %v5719
      %5736 = vst.msk [vmem:[#allocation2 + $0x38] sm:$0xff] %vm603, %v5720
      %5737 = vst.msk [vmem:[#allocation2 + $0x40] sm:$0xff] %vm603, %v5721
      %5738 = vst.msk [vmem:[#allocation2 + $0x48] sm:$0xff] %vm603, %v5722
      %5739 = vst.msk [vmem:[#allocation2 + $0x50] sm:$0xff] %vm603, %v5723
      %5740 = vst.msk [vmem:[#allocation2 + $0x58] sm:$0xff] %vm603, %v5724
      %5741 = vst.msk [vmem:[#allocation2 + $0x60] sm:$0xff] %vm603, %v5725
      %5742 = vst.msk [vmem:[#allocation2 + $0x68] sm:$0xff] %vm603, %v5726
      %5743 = vst.msk [vmem:[#allocation2 + $0x70] sm:$0xff] %vm603, %v5727
      %5744 = vst.msk [vmem:[#allocation2 + $0x78] sm:$0xff] %vm603, %v5728
      %v5745 = vld [vmem:[%s5430 + $0x8] sm:$0xe]
      %v5746 = vld [vmem:[%s5430 + $0xc] sm:$0xf]
      %v5747 = vld [vmem:[%s5430 + $0x10] sm:$0x1]
      %v5748 = vld [vmem:[%s5430 + $0x24] sm:$0xe]
      %v5749 = vld [vmem:[%s5430 + $0x28] sm:$0xf]
      %v5750 = vld [vmem:[%s5430 + $0x2c] sm:$0x1]
      %v5751 = vld [vmem:[%s5430 + $0x40] sm:$0xe]
      %v5752 = vld [vmem:[%s5430 + $0x44] sm:$0xf]
      %v5753 = vld [vmem:[%s5430 + $0x48] sm:$0x1]
      %v5754 = vld [vmem:[%s5430 + $0x5c] sm:$0xe]
      %v5755 = vld [vmem:[%s5430 + $0x60] sm:$0xf]
      %v5756 = vld [vmem:[%s5430 + $0x64] sm:$0x1]
      %v5757 = vld [vmem:[%s5430 + $0x78] sm:$0xe]
      %v5758 = vld [vmem:[%s5430 + $0x7c] sm:$0xf]
      %v5759 = vld [vmem:[%s5430 + $0x80] sm:$0x1]
      %v5760 = vld [vmem:[%s5430 + $0x94] sm:$0xe]
      %v5761 = vld [vmem:[%s5430 + $0x98] sm:$0xf]
      %v5762 = vld [vmem:[%s5430 + $0x9c] sm:$0x1]
      %v5763 = vld [vmem:[%s5430 + $0xb0] sm:$0xe]
      %v5764 = vld [vmem:[%s5430 + $0xb4] sm:$0xf]
      %v5765 = vld [vmem:[%s5430 + $0xb8] sm:$0x1]
      %v5766 = vld [vmem:[%s5430 + $0xcc] sm:$0xe]
      %v5767 = vld [vmem:[%s5430 + $0xd0] sm:$0xf]
      %v5768 = vld [vmem:[%s5430 + $0xd4] sm:$0x1]
      %v5793 = vrot.slane %v5745, 5
      %v5794 = vrot.slane %v5793, 4
      %v5795 = vrot.slane %v5746, 5
      %v5796 = vsel %vm347, %v5794, %v5795
      %v5797 = vrot.slane %v5795, 4
      %v5798 = vrot.slane %v5747, 5
      %v5799 = vsel %vm347, %v5797, %v5798
      %v5800 = vrot.slane %v5748, 5
      %v5801 = vrot.slane %v5800, 4
      %v5802 = vrot.slane %v5749, 5
      %v5803 = vsel %vm347, %v5801, %v5802
      %v5804 = vrot.slane %v5802, 4
      %v5805 = vrot.slane %v5750, 5
      %v5806 = vsel %vm347, %v5804, %v5805
      %v5807 = vrot.slane %v5751, 5
      %v5808 = vrot.slane %v5807, 4
      %v5809 = vrot.slane %v5752, 5
      %v5810 = vsel %vm347, %v5808, %v5809
      %v5811 = vrot.slane %v5809, 4
      %v5812 = vrot.slane %v5753, 5
      %v5813 = vsel %vm347, %v5811, %v5812
      %v5814 = vrot.slane %v5754, 5
      %v5815 = vrot.slane %v5814, 4
      %v5816 = vrot.slane %v5755, 5
      %v5817 = vsel %vm347, %v5815, %v5816
      %v5818 = vrot.slane %v5816, 4
      %v5819 = vrot.slane %v5756, 5
      %v5820 = vsel %vm347, %v5818, %v5819
      %v5821 = vrot.slane %v5757, 5
      %v5822 = vrot.slane %v5821, 4
      %v5823 = vrot.slane %v5758, 5
      %v5824 = vsel %vm347, %v5822, %v5823
      %v5825 = vrot.slane %v5823, 4
      %v5826 = vrot.slane %v5759, 5
      %v5827 = vsel %vm347, %v5825, %v5826
      %v5828 = vrot.slane %v5760, 5
      %v5829 = vrot.slane %v5828, 4
      %v5830 = vrot.slane %v5761, 5
      %v5831 = vsel %vm347, %v5829, %v5830
      %v5832 = vrot.slane %v5830, 4
      %v5833 = vrot.slane %v5762, 5
      %v5834 = vsel %vm347, %v5832, %v5833
      %v5835 = vrot.slane %v5763, 5
      %v5836 = vrot.slane %v5835, 4
      %v5837 = vrot.slane %v5764, 5
      %v5838 = vsel %vm347, %v5836, %v5837
      %v5839 = vrot.slane %v5837, 4
      %v5840 = vrot.slane %v5765, 5
      %v5841 = vsel %vm347, %v5839, %v5840
      %v5842 = vrot.slane %v5766, 5
      %v5843 = vrot.slane %v5842, 4
      %v5844 = vrot.slane %v5767, 5
      %v5845 = vsel %vm347, %v5843, %v5844
      %v5846 = vrot.slane %v5844, 4
      %v5847 = vrot.slane %v5768, 5
      %v5848 = vsel %vm347, %v5846, %v5847
      %s5849 = scalar_lea.vmem %s2, 256
      %v5850 = vld [vmem:[%s5849] sm:$0xf]
      %v5851 = vld [vmem:[%s5849 + $0x4] sm:$0xf]
      %v5852 = vld [vmem:[%s5849 + $0x8] sm:$0xf]
      %v5853 = vld [vmem:[%s5849 + $0xc] sm:$0xf]
      %v5854 = vunpack.c.l.b16 %v5796
      %v5855 = vunpack.c.l.b16 %v5799
      %v5856 = vunpack.c.l.b16 %v5803
      %v5857 = vunpack.c.l.b16 %v5806
      %v5858 = vunpack.c.l.b16 %v5810
      %v5859 = vunpack.c.l.b16 %v5813
      %v5860 = vunpack.c.l.b16 %v5817
      %v5861 = vunpack.c.l.b16 %v5820
      %v5862 = vunpack.c.l.b16 %v5824
      %v5863 = vunpack.c.l.b16 %v5827
      %v5864 = vunpack.c.l.b16 %v5831
      %v5865 = vunpack.c.l.b16 %v5834
      %v5866 = vunpack.c.l.b16 %v5838
      %v5867 = vunpack.c.l.b16 %v5841
      %v5868 = vunpack.c.l.b16 %v5845
      %v5869 = vunpack.c.l.b16 %v5848
      %v5870 = vpack.c.b16 %v5855, %v5854
      %v5871 = vpack.c.b16 %v5857, %v5856
      %v5872 = vpack.c.b16 %v5859, %v5858
      %v5873 = vpack.c.b16 %v5861, %v5860
      %v5874 = vpack.c.b16 %v5863, %v5862
      %v5875 = vpack.c.b16 %v5865, %v5864
      %v5876 = vpack.c.b16 %v5867, %v5866
      %v5877 = vpack.c.b16 %v5869, %v5868
      %v5882 = vunpack.c.l.b16 %v5850
      %v5883 = vunpack.c.l.b16 %v5851
      %v5884 = vunpack.c.l.b16 %v5852
      %v5885 = vunpack.c.l.b16 %v5853
      %v5886 = vpack.c.b16 %v5883, %v5882
      %v5887 = vpack.c.b16 %v5885, %v5884
      %v5891 = vsel %vm449, %v5870, 0
      %v5894 = vsel %vm449, %v5871, 0
      %v5897 = vsel %vm449, %v5872, 0
      %v5900 = vsel %vm449, %v5873, 0
      %v5903 = vsel %vm449, %v5874, 0
      %v5906 = vsel %vm449, %v5875, 0
      %v5909 = vsel %vm449, %v5876, 0
      %v5912 = vsel %vm449, %v5877, 0
      %5914 = vmatprep.subr.bf16.mxu0 0
      %5915 = vmatpush1.bf16.msra.mxu0 0
      %5916 = vmatprep.subr.bf16.mxu0 0
      %5917 = vmatpush1.bf16.msra.mxu0 0
      %5918 = vmatprep.subr.bf16.mxu0 0
      %5919 = vmatpush1.bf16.msra.mxu0 0
      %5920 = vmatprep.subr.bf16.mxu0 0
      %5921 = vmatpush1.bf16.msra.mxu0 0
      %5922 = vmatprep.subr.bf16.mxu0 0
      %5923 = vmatpush1.bf16.msra.mxu0 0
      %5924 = vmatprep.subr.bf16.mxu0 0
      %5925 = vmatpush1.bf16.msra.mxu0 0
      %5926 = vmatprep.subr.bf16.mxu0 0
      %5927 = vmatpush1.bf16.msra.mxu0 %v5887
      %5928 = vmatprep.subr.bf16.mxu0 0
      %5929 = vmatpush1.bf16.msra.mxu0 %v5886
      %5930 = vmatprep.subr.bf16.mxu0 0
      %5931 = vmatpush2.bf16.msra.mxu0 0
      %5932 = vmatprep.subr.bf16.mxu0 0
      %5933 = vmatpush2.bf16.msra.mxu0 0
      %5934 = vmatprep.subr.bf16.mxu0 0
      %5935 = vmatpush2.bf16.msra.mxu0 0
      %5936 = vmatprep.subr.bf16.mxu0 0
      %5937 = vmatpush2.bf16.msra.mxu0 0
      %5938 = vmatprep.subr.bf16.mxu0 0
      %5939 = vmatpush2.bf16.msra.mxu0 0
      %5940 = vmatprep.subr.bf16.mxu0 0
      %5941 = vmatpush2.bf16.msra.mxu0 0
      %5942 = vmatprep.subr.bf16.mxu0 0
      %5943 = vmatpush2.bf16.msra.mxu0 0
      %5944 = vmatprep.subr.bf16.mxu0 0
      %5945 = vmatpush2.bf16.msra.mxu0 0
      %5946 = vmatprep.mubr.bf16.mxu0 0
      %5947 = vmatmul.mubr.bf16.gmra.mxu0 %v5891
      %v5948 = vpop.f32.mrf.mxu0
      %v5949 = vadd.f32 0.0, %v5948
      %v5950 = vpop.f32.mrf.mxu0
      %v5951 = vpop.f32.mrf.mxu0
      %v5952 = vadd.f32 0.0, %v5951
      %v5953 = vpop.f32.mrf.mxu0
      %5954 = vmatprep.mubr.bf16.mxu0 0
      %5955 = vmatmul.mubr.bf16.gmra.mxu0 %v5894
      %v5956 = vpop.f32.mrf.mxu0
      %v5957 = vadd.f32 0.0, %v5956
      %v5958 = vpop.f32.mrf.mxu0
      %v5959 = vpop.f32.mrf.mxu0
      %v5960 = vadd.f32 0.0, %v5959
      %v5961 = vpop.f32.mrf.mxu0
      %5962 = vmatprep.mubr.bf16.mxu0 0
      %5963 = vmatmul.mubr.bf16.gmra.mxu0 %v5897
      %v5964 = vpop.f32.mrf.mxu0
      %v5965 = vadd.f32 0.0, %v5964
      %v5966 = vpop.f32.mrf.mxu0
      %v5967 = vpop.f32.mrf.mxu0
      %v5968 = vadd.f32 0.0, %v5967
      %v5969 = vpop.f32.mrf.mxu0
      %5970 = vmatprep.mubr.bf16.mxu0 0
      %5971 = vmatmul.mubr.bf16.gmra.mxu0 %v5900
      %v5972 = vpop.f32.mrf.mxu0
      %v5973 = vadd.f32 0.0, %v5972
      %v5974 = vpop.f32.mrf.mxu0
      %v5975 = vpop.f32.mrf.mxu0
      %v5976 = vadd.f32 0.0, %v5975
      %v5977 = vpop.f32.mrf.mxu0
      %5978 = vmatprep.mubr.bf16.mxu0 0
      %5979 = vmatmul.mubr.bf16.gmra.mxu0 %v5903
      %v5980 = vpop.f32.mrf.mxu0
      %v5981 = vadd.f32 0.0, %v5980
      %v5982 = vpop.f32.mrf.mxu0
      %v5983 = vpop.f32.mrf.mxu0
      %v5984 = vadd.f32 0.0, %v5983
      %v5985 = vpop.f32.mrf.mxu0
      %5986 = vmatprep.mubr.bf16.mxu0 0
      %5987 = vmatmul.mubr.bf16.gmra.mxu0 %v5906
      %v5988 = vpop.f32.mrf.mxu0
      %v5989 = vadd.f32 0.0, %v5988
      %v5990 = vpop.f32.mrf.mxu0
      %v5991 = vpop.f32.mrf.mxu0
      %v5992 = vadd.f32 0.0, %v5991
      %v5993 = vpop.f32.mrf.mxu0
      %5994 = vmatprep.mubr.bf16.mxu0 0
      %5995 = vmatmul.mubr.bf16.gmra.mxu0 %v5909
      %v5996 = vpop.f32.mrf.mxu0
      %v5997 = vadd.f32 0.0, %v5996
      %v5998 = vpop.f32.mrf.mxu0
      %v5999 = vpop.f32.mrf.mxu0
      %v6000 = vadd.f32 0.0, %v5999
      %v6001 = vpop.f32.mrf.mxu0
      %6002 = vmatprep.mubr.bf16.mxu0 0
      %6003 = vmatmul.mubr.bf16.gmra.mxu0 %v5912
      %v6004 = vpop.f32.mrf.mxu0
      %v6005 = vadd.f32 0.0, %v6004
      %v6006 = vpop.f32.mrf.mxu0
      %v6007 = vpop.f32.mrf.mxu0
      %v6008 = vadd.f32 0.0, %v6007
      %v6009 = vpop.f32.mrf.mxu0
      %6010 = vdwg.mxu0
      %v6011 = vld [vmem:[#allocation2] sm:$0xff]
      %v6012 = vld [vmem:[#allocation2 + $0x8] sm:$0xff]
      %v6013 = vld [vmem:[#allocation2 + $0x10] sm:$0xff]
      %v6014 = vld [vmem:[#allocation2 + $0x18] sm:$0xff]
      %v6015 = vld [vmem:[#allocation2 + $0x20] sm:$0xff]
      %v6016 = vld [vmem:[#allocation2 + $0x28] sm:$0xff]
      %v6017 = vld [vmem:[#allocation2 + $0x30] sm:$0xff]
      %v6018 = vld [vmem:[#allocation2 + $0x38] sm:$0xff]
      %v6019 = vld [vmem:[#allocation2 + $0x40] sm:$0xff]
      %v6020 = vld [vmem:[#allocation2 + $0x48] sm:$0xff]
      %v6021 = vld [vmem:[#allocation2 + $0x50] sm:$0xff]
      %v6022 = vld [vmem:[#allocation2 + $0x58] sm:$0xff]
      %v6023 = vld [vmem:[#allocation2 + $0x60] sm:$0xff]
      %v6024 = vld [vmem:[#allocation2 + $0x68] sm:$0xff]
      %v6025 = vld [vmem:[#allocation2 + $0x70] sm:$0xff]
      %v6026 = vld [vmem:[#allocation2 + $0x78] sm:$0xff]
      %v6027 = vadd.f32 %v6011, %v5949
      %v6028 = vadd.f32 %v6012, %v5952
      %v6029 = vadd.f32 %v6013, %v5957
      %v6030 = vadd.f32 %v6014, %v5960
      %v6031 = vadd.f32 %v6015, %v5965
      %v6032 = vadd.f32 %v6016, %v5968
      %v6033 = vadd.f32 %v6017, %v5973
      %v6034 = vadd.f32 %v6018, %v5976
      %v6035 = vadd.f32 %v6019, %v5981
      %v6036 = vadd.f32 %v6020, %v5984
      %v6037 = vadd.f32 %v6021, %v5989
      %v6038 = vadd.f32 %v6022, %v5992
      %v6039 = vadd.f32 %v6023, %v5997
      %v6040 = vadd.f32 %v6024, %v6000
      %v6041 = vadd.f32 %v6025, %v6005
      %v6042 = vadd.f32 %v6026, %v6008
      %6043 = vst.msk [vmem:[#allocation2] sm:$0xff] %vm603, %v6027
      %6044 = vst.msk [vmem:[#allocation2 + $0x8] sm:$0xff] %vm603, %v6028
      %6045 = vst.msk [vmem:[#allocation2 + $0x10] sm:$0xff] %vm603, %v6029
      %6046 = vst.msk [vmem:[#allocation2 + $0x18] sm:$0xff] %vm603, %v6030
      %6047 = vst.msk [vmem:[#allocation2 + $0x20] sm:$0xff] %vm603, %v6031
      %6048 = vst.msk [vmem:[#allocation2 + $0x28] sm:$0xff] %vm603, %v6032
      %6049 = vst.msk [vmem:[#allocation2 + $0x30] sm:$0xff] %vm603, %v6033
      %6050 = vst.msk [vmem:[#allocation2 + $0x38] sm:$0xff] %vm603, %v6034
      %6051 = vst.msk [vmem:[#allocation2 + $0x40] sm:$0xff] %vm603, %v6035
      %6052 = vst.msk [vmem:[#allocation2 + $0x48] sm:$0xff] %vm603, %v6036
      %6053 = vst.msk [vmem:[#allocation2 + $0x50] sm:$0xff] %vm603, %v6037
      %6054 = vst.msk [vmem:[#allocation2 + $0x58] sm:$0xff] %vm603, %v6038
      %6055 = vst.msk [vmem:[#allocation2 + $0x60] sm:$0xff] %vm603, %v6039
      %6056 = vst.msk [vmem:[#allocation2 + $0x68] sm:$0xff] %vm603, %v6040
      %6057 = vst.msk [vmem:[#allocation2 + $0x70] sm:$0xff] %vm603, %v6041
      %6058 = vst.msk [vmem:[#allocation2 + $0x78] sm:$0xff] %vm603, %v6042
      %v6059 = vld [vmem:[%s5430 + $0xc] sm:$0x8]
      %v6060 = vld [vmem:[%s5430 + $0x10] sm:$0xf]
      %v6061 = vld [vmem:[%s5430 + $0x14] sm:$0x7]
      %v6062 = vld [vmem:[%s5430 + $0x28] sm:$0x8]
      %v6063 = vld [vmem:[%s5430 + $0x2c] sm:$0xf]
      %v6064 = vld [vmem:[%s5430 + $0x30] sm:$0x7]
      %v6065 = vld [vmem:[%s5430 + $0x44] sm:$0x8]
      %v6066 = vld [vmem:[%s5430 + $0x48] sm:$0xf]
      %v6067 = vld [vmem:[%s5430 + $0x4c] sm:$0x7]
      %v6068 = vld [vmem:[%s5430 + $0x60] sm:$0x8]
      %v6069 = vld [vmem:[%s5430 + $0x64] sm:$0xf]
      %v6070 = vld [vmem:[%s5430 + $0x68] sm:$0x7]
      %v6071 = vld [vmem:[%s5430 + $0x7c] sm:$0x8]
      %v6072 = vld [vmem:[%s5430 + $0x80] sm:$0xf]
      %v6073 = vld [vmem:[%s5430 + $0x84] sm:$0x7]
      %v6074 = vld [vmem:[%s5430 + $0x98] sm:$0x8]
      %v6075 = vld [vmem:[%s5430 + $0x9c] sm:$0xf]
      %v6076 = vld [vmem:[%s5430 + $0xa0] sm:$0x7]
      %v6077 = vld [vmem:[%s5430 + $0xb4] sm:$0x8]
      %v6078 = vld [vmem:[%s5430 + $0xb8] sm:$0xf]
      %v6079 = vld [vmem:[%s5430 + $0xbc] sm:$0x7]
      %v6080 = vld [vmem:[%s5430 + $0xd0] sm:$0x8]
      %v6081 = vld [vmem:[%s5430 + $0xd4] sm:$0xf]
      %v6082 = vld [vmem:[%s5430 + $0xd8] sm:$0x7]
      %v6107 = vrot.slane %v6059, 7
      %v6108 = vrot.slane %v6107, 4
      %v6109 = vrot.slane %v6060, 7
      %v6110 = vsel %vm3622, %v6108, %v6109
      %v6111 = vrot.slane %v6109, 4
      %v6112 = vrot.slane %v6061, 7
      %v6113 = vsel %vm3622, %v6111, %v6112
      %v6114 = vrot.slane %v6062, 7
      %v6115 = vrot.slane %v6114, 4
      %v6116 = vrot.slane %v6063, 7
      %v6117 = vsel %vm3622, %v6115, %v6116
      %v6118 = vrot.slane %v6116, 4
      %v6119 = vrot.slane %v6064, 7
      %v6120 = vsel %vm3622, %v6118, %v6119
      %v6121 = vrot.slane %v6065, 7
      %v6122 = vrot.slane %v6121, 4
      %v6123 = vrot.slane %v6066, 7
      %v6124 = vsel %vm3622, %v6122, %v6123
      %v6125 = vrot.slane %v6123, 4
      %v6126 = vrot.slane %v6067, 7
      %v6127 = vsel %vm3622, %v6125, %v6126
      %v6128 = vrot.slane %v6068, 7
      %v6129 = vrot.slane %v6128, 4
      %v6130 = vrot.slane %v6069, 7
      %v6131 = vsel %vm3622, %v6129, %v6130
      %v6132 = vrot.slane %v6130, 4
      %v6133 = vrot.slane %v6070, 7
      %v6134 = vsel %vm3622, %v6132, %v6133
      %v6135 = vrot.slane %v6071, 7
      %v6136 = vrot.slane %v6135, 4
      %v6137 = vrot.slane %v6072, 7
      %v6138 = vsel %vm3622, %v6136, %v6137
      %v6139 = vrot.slane %v6137, 4
      %v6140 = vrot.slane %v6073, 7
      %v6141 = vsel %vm3622, %v6139, %v6140
      %v6142 = vrot.slane %v6074, 7
      %v6143 = vrot.slane %v6142, 4
      %v6144 = vrot.slane %v6075, 7
      %v6145 = vsel %vm3622, %v6143, %v6144
      %v6146 = vrot.slane %v6144, 4
      %v6147 = vrot.slane %v6076, 7
      %v6148 = vsel %vm3622, %v6146, %v6147
      %v6149 = vrot.slane %v6077, 7
      %v6150 = vrot.slane %v6149, 4
      %v6151 = vrot.slane %v6078, 7
      %v6152 = vsel %vm3622, %v6150, %v6151
      %v6153 = vrot.slane %v6151, 4
      %v6154 = vrot.slane %v6079, 7
      %v6155 = vsel %vm3622, %v6153, %v6154
      %v6156 = vrot.slane %v6080, 7
      %v6157 = vrot.slane %v6156, 4
      %v6158 = vrot.slane %v6081, 7
      %v6159 = vsel %vm3622, %v6157, %v6158
      %v6160 = vrot.slane %v6158, 4
      %v6161 = vrot.slane %v6082, 7
      %v6162 = vsel %vm3622, %v6160, %v6161
      %s6163 = scalar_lea.vmem %s2, 272
      %v6164 = vld [vmem:[%s6163] sm:$0xf]
      %v6165 = vld [vmem:[%s6163 + $0x4] sm:$0xf]
      %v6166 = vld [vmem:[%s6163 + $0x8] sm:$0xf]
      %v6167 = vld [vmem:[%s6163 + $0xc] sm:$0xf]
      %v6168 = vunpack.c.l.b16 %v6110
      %v6169 = vunpack.c.l.b16 %v6113
      %v6170 = vunpack.c.l.b16 %v6117
      %v6171 = vunpack.c.l.b16 %v6120
      %v6172 = vunpack.c.l.b16 %v6124
      %v6173 = vunpack.c.l.b16 %v6127
      %v6174 = vunpack.c.l.b16 %v6131
      %v6175 = vunpack.c.l.b16 %v6134
      %v6176 = vunpack.c.l.b16 %v6138
      %v6177 = vunpack.c.l.b16 %v6141
      %v6178 = vunpack.c.l.b16 %v6145
      %v6179 = vunpack.c.l.b16 %v6148
      %v6180 = vunpack.c.l.b16 %v6152
      %v6181 = vunpack.c.l.b16 %v6155
      %v6182 = vunpack.c.l.b16 %v6159
      %v6183 = vunpack.c.l.b16 %v6162
      %v6184 = vpack.c.b16 %v6169, %v6168
      %v6185 = vpack.c.b16 %v6171, %v6170
      %v6186 = vpack.c.b16 %v6173, %v6172
      %v6187 = vpack.c.b16 %v6175, %v6174
      %v6188 = vpack.c.b16 %v6177, %v6176
      %v6189 = vpack.c.b16 %v6179, %v6178
      %v6190 = vpack.c.b16 %v6181, %v6180
      %v6191 = vpack.c.b16 %v6183, %v6182
      %v6196 = vunpack.c.l.b16 %v6164
      %v6197 = vunpack.c.l.b16 %v6165
      %v6198 = vunpack.c.l.b16 %v6166
      %v6199 = vunpack.c.l.b16 %v6167
      %v6200 = vpack.c.b16 %v6197, %v6196
      %v6201 = vpack.c.b16 %v6199, %v6198
      %v6205 = vsel %vm449, %v6184, 0
      %v6208 = vsel %vm449, %v6185, 0
      %v6211 = vsel %vm449, %v6186, 0
      %v6214 = vsel %vm449, %v6187, 0
      %v6217 = vsel %vm449, %v6188, 0
      %v6220 = vsel %vm449, %v6189, 0
      %v6223 = vsel %vm449, %v6190, 0
      %v6226 = vsel %vm449, %v6191, 0
      %6228 = vmatprep.subr.bf16.mxu0 0
      %6229 = vmatpush1.bf16.msra.mxu0 0
      %6230 = vmatprep.subr.bf16.mxu0 0
      %6231 = vmatpush1.bf16.msra.mxu0 0
      %6232 = vmatprep.subr.bf16.mxu0 0
      %6233 = vmatpush1.bf16.msra.mxu0 0
      %6234 = vmatprep.subr.bf16.mxu0 0
      %6235 = vmatpush1.bf16.msra.mxu0 0
      %6236 = vmatprep.subr.bf16.mxu0 0
      %6237 = vmatpush1.bf16.msra.mxu0 0
      %6238 = vmatprep.subr.bf16.mxu0 0
      %6239 = vmatpush1.bf16.msra.mxu0 0
      %6240 = vmatprep.subr.bf16.mxu0 0
      %6241 = vmatpush1.bf16.msra.mxu0 %v6201
      %6242 = vmatprep.subr.bf16.mxu0 0
      %6243 = vmatpush1.bf16.msra.mxu0 %v6200
      %6244 = vmatprep.subr.bf16.mxu0 0
      %6245 = vmatpush2.bf16.msra.mxu0 0
      %6246 = vmatprep.subr.bf16.mxu0 0
      %6247 = vmatpush2.bf16.msra.mxu0 0
      %6248 = vmatprep.subr.bf16.mxu0 0
      %6249 = vmatpush2.bf16.msra.mxu0 0
      %6250 = vmatprep.subr.bf16.mxu0 0
      %6251 = vmatpush2.bf16.msra.mxu0 0
      %6252 = vmatprep.subr.bf16.mxu0 0
      %6253 = vmatpush2.bf16.msra.mxu0 0
      %6254 = vmatprep.subr.bf16.mxu0 0
      %6255 = vmatpush2.bf16.msra.mxu0 0
      %6256 = vmatprep.subr.bf16.mxu0 0
      %6257 = vmatpush2.bf16.msra.mxu0 0
      %6258 = vmatprep.subr.bf16.mxu0 0
      %6259 = vmatpush2.bf16.msra.mxu0 0
      %6260 = vmatprep.mubr.bf16.mxu0 0
      %6261 = vmatmul.mubr.bf16.gmra.mxu0 %v6205
      %v6262 = vpop.f32.mrf.mxu0
      %v6263 = vadd.f32 0.0, %v6262
      %v6264 = vpop.f32.mrf.mxu0
      %v6265 = vpop.f32.mrf.mxu0
      %v6266 = vadd.f32 0.0, %v6265
      %v6267 = vpop.f32.mrf.mxu0
      %6268 = vmatprep.mubr.bf16.mxu0 0
      %6269 = vmatmul.mubr.bf16.gmra.mxu0 %v6208
      %v6270 = vpop.f32.mrf.mxu0
      %v6271 = vadd.f32 0.0, %v6270
      %v6272 = vpop.f32.mrf.mxu0
      %v6273 = vpop.f32.mrf.mxu0
      %v6274 = vadd.f32 0.0, %v6273
      %v6275 = vpop.f32.mrf.mxu0
      %6276 = vmatprep.mubr.bf16.mxu0 0
      %6277 = vmatmul.mubr.bf16.gmra.mxu0 %v6211
      %v6278 = vpop.f32.mrf.mxu0
      %v6279 = vadd.f32 0.0, %v6278
      %v6280 = vpop.f32.mrf.mxu0
      %v6281 = vpop.f32.mrf.mxu0
      %v6282 = vadd.f32 0.0, %v6281
      %v6283 = vpop.f32.mrf.mxu0
      %6284 = vmatprep.mubr.bf16.mxu0 0
      %6285 = vmatmul.mubr.bf16.gmra.mxu0 %v6214
      %v6286 = vpop.f32.mrf.mxu0
      %v6287 = vadd.f32 0.0, %v6286
      %v6288 = vpop.f32.mrf.mxu0
      %v6289 = vpop.f32.mrf.mxu0
      %v6290 = vadd.f32 0.0, %v6289
      %v6291 = vpop.f32.mrf.mxu0
      %6292 = vmatprep.mubr.bf16.mxu0 0
      %6293 = vmatmul.mubr.bf16.gmra.mxu0 %v6217
      %v6294 = vpop.f32.mrf.mxu0
      %v6295 = vadd.f32 0.0, %v6294
      %v6296 = vpop.f32.mrf.mxu0
      %v6297 = vpop.f32.mrf.mxu0
      %v6298 = vadd.f32 0.0, %v6297
      %v6299 = vpop.f32.mrf.mxu0
      %6300 = vmatprep.mubr.bf16.mxu0 0
      %6301 = vmatmul.mubr.bf16.gmra.mxu0 %v6220
      %v6302 = vpop.f32.mrf.mxu0
      %v6303 = vadd.f32 0.0, %v6302
      %v6304 = vpop.f32.mrf.mxu0
      %v6305 = vpop.f32.mrf.mxu0
      %v6306 = vadd.f32 0.0, %v6305
      %v6307 = vpop.f32.mrf.mxu0
      %6308 = vmatprep.mubr.bf16.mxu0 0
      %6309 = vmatmul.mubr.bf16.gmra.mxu0 %v6223
      %v6310 = vpop.f32.mrf.mxu0
      %v6311 = vadd.f32 0.0, %v6310
      %v6312 = vpop.f32.mrf.mxu0
      %v6313 = vpop.f32.mrf.mxu0
      %v6314 = vadd.f32 0.0, %v6313
      %v6315 = vpop.f32.mrf.mxu0
      %6316 = vmatprep.mubr.bf16.mxu0 0
      %6317 = vmatmul.mubr.bf16.gmra.mxu0 %v6226
      %v6318 = vpop.f32.mrf.mxu0
      %v6319 = vadd.f32 0.0, %v6318
      %v6320 = vpop.f32.mrf.mxu0
      %v6321 = vpop.f32.mrf.mxu0
      %v6322 = vadd.f32 0.0, %v6321
      %v6323 = vpop.f32.mrf.mxu0
      %6324 = vdwg.mxu0
      %v6325 = vld [vmem:[#allocation2] sm:$0xff]
      %v6326 = vld [vmem:[#allocation2 + $0x8] sm:$0xff]
      %v6327 = vld [vmem:[#allocation2 + $0x10] sm:$0xff]
      %v6328 = vld [vmem:[#allocation2 + $0x18] sm:$0xff]
      %v6329 = vld [vmem:[#allocation2 + $0x20] sm:$0xff]
      %v6330 = vld [vmem:[#allocation2 + $0x28] sm:$0xff]
      %v6331 = vld [vmem:[#allocation2 + $0x30] sm:$0xff]
      %v6332 = vld [vmem:[#allocation2 + $0x38] sm:$0xff]
      %v6333 = vld [vmem:[#allocation2 + $0x40] sm:$0xff]
      %v6334 = vld [vmem:[#allocation2 + $0x48] sm:$0xff]
      %v6335 = vld [vmem:[#allocation2 + $0x50] sm:$0xff]
      %v6336 = vld [vmem:[#allocation2 + $0x58] sm:$0xff]
      %v6337 = vld [vmem:[#allocation2 + $0x60] sm:$0xff]
      %v6338 = vld [vmem:[#allocation2 + $0x68] sm:$0xff]
      %v6339 = vld [vmem:[#allocation2 + $0x70] sm:$0xff]
      %v6340 = vld [vmem:[#allocation2 + $0x78] sm:$0xff]
      %v6341 = vadd.f32 %v6325, %v6263
      %v6342 = vadd.f32 %v6326, %v6266
      %v6343 = vadd.f32 %v6327, %v6271
      %v6344 = vadd.f32 %v6328, %v6274
      %v6345 = vadd.f32 %v6329, %v6279
      %v6346 = vadd.f32 %v6330, %v6282
      %v6347 = vadd.f32 %v6331, %v6287
      %v6348 = vadd.f32 %v6332, %v6290
      %v6349 = vadd.f32 %v6333, %v6295
      %v6350 = vadd.f32 %v6334, %v6298
      %v6351 = vadd.f32 %v6335, %v6303
      %v6352 = vadd.f32 %v6336, %v6306
      %v6353 = vadd.f32 %v6337, %v6311
      %v6354 = vadd.f32 %v6338, %v6314
      %v6355 = vadd.f32 %v6339, %v6319
      %v6356 = vadd.f32 %v6340, %v6322
      %6357 = vst.msk [vmem:[#allocation2] sm:$0xff] %vm603, %v6341
      %6358 = vst.msk [vmem:[#allocation2 + $0x8] sm:$0xff] %vm603, %v6342
      %6359 = vst.msk [vmem:[#allocation2 + $0x10] sm:$0xff] %vm603, %v6343
      %6360 = vst.msk [vmem:[#allocation2 + $0x18] sm:$0xff] %vm603, %v6344
      %6361 = vst.msk [vmem:[#allocation2 + $0x20] sm:$0xff] %vm603, %v6345
      %6362 = vst.msk [vmem:[#allocation2 + $0x28] sm:$0xff] %vm603, %v6346
      %6363 = vst.msk [vmem:[#allocation2 + $0x30] sm:$0xff] %vm603, %v6347
      %6364 = vst.msk [vmem:[#allocation2 + $0x38] sm:$0xff] %vm603, %v6348
      %6365 = vst.msk [vmem:[#allocation2 + $0x40] sm:$0xff] %vm603, %v6349
      %6366 = vst.msk [vmem:[#allocation2 + $0x48] sm:$0xff] %vm603, %v6350
      %6367 = vst.msk [vmem:[#allocation2 + $0x50] sm:$0xff] %vm603, %v6351
      %6368 = vst.msk [vmem:[#allocation2 + $0x58] sm:$0xff] %vm603, %v6352
      %6369 = vst.msk [vmem:[#allocation2 + $0x60] sm:$0xff] %vm603, %v6353
      %6370 = vst.msk [vmem:[#allocation2 + $0x68] sm:$0xff] %vm603, %v6354
      %6371 = vst.msk [vmem:[#allocation2 + $0x70] sm:$0xff] %vm603, %v6355
      %6372 = vst.msk [vmem:[#allocation2 + $0x78] sm:$0xff] %vm603, %v6356
      %v6373 = vld [vmem:[#allocation2] sm:$0xff]
      %v6374 = vld [vmem:[#allocation2 + $0x8] sm:$0xff]
      %v6375 = vld [vmem:[#allocation2 + $0x10] sm:$0xff]
      %v6376 = vld [vmem:[#allocation2 + $0x18] sm:$0xff]
      %v6377 = vld [vmem:[#allocation2 + $0x20] sm:$0xff]
      %v6378 = vld [vmem:[#allocation2 + $0x28] sm:$0xff]
      %v6379 = vld [vmem:[#allocation2 + $0x30] sm:$0xff]
      %v6380 = vld [vmem:[#allocation2 + $0x38] sm:$0xff]
      %v6381 = vld [vmem:[#allocation2 + $0x40] sm:$0xff]
      %v6382 = vld [vmem:[#allocation2 + $0x48] sm:$0xff]
      %v6383 = vld [vmem:[#allocation2 + $0x50] sm:$0xff]
      %v6384 = vld [vmem:[#allocation2 + $0x58] sm:$0xff]
      %v6385 = vld [vmem:[#allocation2 + $0x60] sm:$0xff]
      %v6386 = vld [vmem:[#allocation2 + $0x68] sm:$0xff]
      %v6387 = vld [vmem:[#allocation2 + $0x70] sm:$0xff]
      %v6388 = vld [vmem:[#allocation2 + $0x78] sm:$0xff]
      %v6389 = vld [vmem:[%s4 + $0x2] sm:$0x1]
      %v6390 = vlaneseq
      %v6391 = vshrl.u32 %v6390, 7
      %v6392 = vsub.s32 0, %v6391
      %v6393 = vrot.slane %v6389, %v6392
      %v6394 = vadd.f32 %v6373, %v6393
      %v6395 = vadd.f32 %v6374, %v6393
      %v6396 = vadd.f32 %v6375, %v6393
      %v6397 = vadd.f32 %v6376, %v6393
      %v6398 = vadd.f32 %v6377, %v6393
      %v6399 = vadd.f32 %v6378, %v6393
      %v6400 = vadd.f32 %v6379, %v6393
      %v6401 = vadd.f32 %v6380, %v6393
      %v6402 = vadd.f32 %v6381, %v6393
      %v6403 = vadd.f32 %v6382, %v6393
      %v6404 = vadd.f32 %v6383, %v6393
      %v6405 = vadd.f32 %v6384, %v6393
      %v6406 = vadd.f32 %v6385, %v6393
      %v6407 = vadd.f32 %v6386, %v6393
      %v6408 = vadd.f32 %v6387, %v6393
      %v6409 = vadd.f32 %v6388, %v6393
      %v6410 = vmax.f32 %v6394, 0.0
      %v6411 = vmax.f32 %v6395, 0.0
      %v6412 = vmax.f32 %v6396, 0.0
      %v6413 = vmax.f32 %v6397, 0.0
      %v6414 = vmax.f32 %v6398, 0.0
      %v6415 = vmax.f32 %v6399, 0.0
      %v6416 = vmax.f32 %v6400, 0.0
      %v6417 = vmax.f32 %v6401, 0.0
      %v6418 = vmax.f32 %v6402, 0.0
      %v6419 = vmax.f32 %v6403, 0.0
      %v6420 = vmax.f32 %v6404, 0.0
      %v6421 = vmax.f32 %v6405, 0.0
      %v6422 = vmax.f32 %v6406, 0.0
      %v6423 = vmax.f32 %v6407, 0.0
      %v6424 = vmax.f32 %v6408, 0.0
      %v6425 = vmax.f32 %v6409, 0.0
      %v6426 = vld [vmem:[#allocation3] sm:$0xff]
      %v6427 = vld [vmem:[#allocation3 + $0x8] sm:$0xff]
      %v6428 = vld [vmem:[#allocation3 + $0x10] sm:$0xff]
      %v6429 = vld [vmem:[#allocation3 + $0x18] sm:$0xff]
      %v6430 = vld [vmem:[#allocation3 + $0x20] sm:$0xff]
      %v6431 = vld [vmem:[#allocation3 + $0x28] sm:$0xff]
      %v6432 = vld [vmem:[#allocation3 + $0x30] sm:$0xff]
      %v6433 = vld [vmem:[#allocation3 + $0x38] sm:$0xff]
      %v6434 = vld [vmem:[#allocation3 + $0x40] sm:$0xff]
      %v6435 = vld [vmem:[#allocation3 + $0x48] sm:$0xff]
      %v6436 = vld [vmem:[#allocation3 + $0x50] sm:$0xff]
      %v6437 = vld [vmem:[#allocation3 + $0x58] sm:$0xff]
      %v6438 = vld [vmem:[#allocation3 + $0x60] sm:$0xff]
      %v6439 = vld [vmem:[#allocation3 + $0x68] sm:$0xff]
      %v6440 = vld [vmem:[#allocation3 + $0x70] sm:$0xff]
      %v6441 = vld [vmem:[#allocation3 + $0x78] sm:$0xff]
      %v6442 = vpack.c.bf16 %v6411, %v6410
      %v6443 = vpack.c.bf16 %v6413, %v6412
      %v6444 = vpack.c.bf16 %v6415, %v6414
      %v6445 = vpack.c.bf16 %v6417, %v6416
      %v6446 = vpack.c.bf16 %v6419, %v6418
      %v6447 = vpack.c.bf16 %v6421, %v6420
      %v6448 = vpack.c.bf16 %v6423, %v6422
      %v6449 = vpack.c.bf16 %v6425, %v6424
      %s6450 = scalar_lea.vmem %s3, 16
      %v6451 = vld [vmem:[%s6450] sm:$0xf]
      %v6452 = vld [vmem:[%s6450 + $0x4] sm:$0xf]
      %v6455 = vunpack.c.l.b16 %v6451
      %v6456 = vunpack.c.l.b16 %v6452
      %v6457 = vpack.c.b16 %v6456, %v6455
      %v6460 = vsel %vm603, %v6442, 0
      %v6463 = vsel %vm603, %v6443, 0
      %v6466 = vsel %vm603, %v6444, 0
      %v6469 = vsel %vm603, %v6445, 0
      %v6472 = vsel %vm603, %v6446, 0
      %v6475 = vsel %vm603, %v6447, 0
      %v6478 = vsel %vm603, %v6448, 0
      %v6481 = vsel %vm603, %v6449, 0
      %6483 = vmatprep.subr.bf16.mxu0 0
      %6484 = vmatpush1.bf16.msra.mxu0 0
      %6485 = vmatprep.subr.bf16.mxu0 0
      %6486 = vmatpush1.bf16.msra.mxu0 0
      %6487 = vmatprep.subr.bf16.mxu0 0
      %6488 = vmatpush1.bf16.msra.mxu0 0
      %6489 = vmatprep.subr.bf16.mxu0 0
      %6490 = vmatpush1.bf16.msra.mxu0 0
      %6491 = vmatprep.subr.bf16.mxu0 0
      %6492 = vmatpush1.bf16.msra.mxu0 0
      %6493 = vmatprep.subr.bf16.mxu0 0
      %6494 = vmatpush1.bf16.msra.mxu0 0
      %6495 = vmatprep.subr.bf16.mxu0 0
      %6496 = vmatpush1.bf16.msra.mxu0 0
      %6497 = vmatprep.subr.bf16.mxu0 0
      %6498 = vmatpush1.bf16.msra.mxu0 %v6457
      %6499 = vmatprep.subr.bf16.mxu0 0
      %6500 = vmatpush2.bf16.msra.mxu0 0
      %6501 = vmatprep.subr.bf16.mxu0 0
      %6502 = vmatpush2.bf16.msra.mxu0 0
      %6503 = vmatprep.subr.bf16.mxu0 0
      %6504 = vmatpush2.bf16.msra.mxu0 0
      %6505 = vmatprep.subr.bf16.mxu0 0
      %6506 = vmatpush2.bf16.msra.mxu0 0
      %6507 = vmatprep.subr.bf16.mxu0 0
      %6508 = vmatpush2.bf16.msra.mxu0 0
      %6509 = vmatprep.subr.bf16.mxu0 0
      %6510 = vmatpush2.bf16.msra.mxu0 0
      %6511 = vmatprep.subr.bf16.mxu0 0
      %6512 = vmatpush2.bf16.msra.mxu0 0
      %6513 = vmatprep.subr.bf16.mxu0 0
      %6514 = vmatpush2.bf16.msra.mxu0 0
      %6515 = vmatprep.mubr.bf16.mxu0 0
      %6516 = vmatmul.mubr.bf16.gmra.mxu0 %v6460
      %v6517 = vpop.f32.mrf.mxu0
      %v6518 = vadd.f32 0.0, %v6517
      %v6519 = vpop.f32.mrf.mxu0
      %v6520 = vpop.f32.mrf.mxu0
      %v6521 = vadd.f32 0.0, %v6520
      %v6522 = vpop.f32.mrf.mxu0
      %6523 = vmatprep.mubr.bf16.mxu0 0
      %6524 = vmatmul.mubr.bf16.gmra.mxu0 %v6463
      %v6525 = vpop.f32.mrf.mxu0
      %v6526 = vadd.f32 0.0, %v6525
      %v6527 = vpop.f32.mrf.mxu0
      %v6528 = vpop.f32.mrf.mxu0
      %v6529 = vadd.f32 0.0, %v6528
      %v6530 = vpop.f32.mrf.mxu0
      %6531 = vmatprep.mubr.bf16.mxu0 0
      %6532 = vmatmul.mubr.bf16.gmra.mxu0 %v6466
      %v6533 = vpop.f32.mrf.mxu0
      %v6534 = vadd.f32 0.0, %v6533
      %v6535 = vpop.f32.mrf.mxu0
      %v6536 = vpop.f32.mrf.mxu0
      %v6537 = vadd.f32 0.0, %v6536
      %v6538 = vpop.f32.mrf.mxu0
      %6539 = vmatprep.mubr.bf16.mxu0 0
      %6540 = vmatmul.mubr.bf16.gmra.mxu0 %v6469
      %v6541 = vpop.f32.mrf.mxu0
      %v6542 = vadd.f32 0.0, %v6541
      %v6543 = vpop.f32.mrf.mxu0
      %v6544 = vpop.f32.mrf.mxu0
      %v6545 = vadd.f32 0.0, %v6544
      %v6546 = vpop.f32.mrf.mxu0
      %6547 = vmatprep.mubr.bf16.mxu0 0
      %6548 = vmatmul.mubr.bf16.gmra.mxu0 %v6472
      %v6549 = vpop.f32.mrf.mxu0
      %v6550 = vadd.f32 0.0, %v6549
      %v6551 = vpop.f32.mrf.mxu0
      %v6552 = vpop.f32.mrf.mxu0
      %v6553 = vadd.f32 0.0, %v6552
      %v6554 = vpop.f32.mrf.mxu0
      %6555 = vmatprep.mubr.bf16.mxu0 0
      %6556 = vmatmul.mubr.bf16.gmra.mxu0 %v6475
      %v6557 = vpop.f32.mrf.mxu0
      %v6558 = vadd.f32 0.0, %v6557
      %v6559 = vpop.f32.mrf.mxu0
      %v6560 = vpop.f32.mrf.mxu0
      %v6561 = vadd.f32 0.0, %v6560
      %v6562 = vpop.f32.mrf.mxu0
      %6563 = vmatprep.mubr.bf16.mxu0 0
      %6564 = vmatmul.mubr.bf16.gmra.mxu0 %v6478
      %v6565 = vpop.f32.mrf.mxu0
      %v6566 = vadd.f32 0.0, %v6565
      %v6567 = vpop.f32.mrf.mxu0
      %v6568 = vpop.f32.mrf.mxu0
      %v6569 = vadd.f32 0.0, %v6568
      %v6570 = vpop.f32.mrf.mxu0
      %6571 = vmatprep.mubr.bf16.mxu0 0
      %6572 = vmatmul.mubr.bf16.gmra.mxu0 %v6481
      %v6573 = vpop.f32.mrf.mxu0
      %v6574 = vadd.f32 0.0, %v6573
      %v6575 = vpop.f32.mrf.mxu0
      %v6576 = vpop.f32.mrf.mxu0
      %v6577 = vadd.f32 0.0, %v6576
      %v6578 = vpop.f32.mrf.mxu0
      %6579 = vdwg.mxu0
      %v6580 = vadd.f32 %v6426, %v6518
      %v6581 = vadd.f32 %v6427, %v6521
      %v6582 = vadd.f32 %v6428, %v6526
      %v6583 = vadd.f32 %v6429, %v6529
      %v6584 = vadd.f32 %v6430, %v6534
      %v6585 = vadd.f32 %v6431, %v6537
      %v6586 = vadd.f32 %v6432, %v6542
      %v6587 = vadd.f32 %v6433, %v6545
      %v6588 = vadd.f32 %v6434, %v6550
      %v6589 = vadd.f32 %v6435, %v6553
      %v6590 = vadd.f32 %v6436, %v6558
      %v6591 = vadd.f32 %v6437, %v6561
      %v6592 = vadd.f32 %v6438, %v6566
      %v6593 = vadd.f32 %v6439, %v6569
      %v6594 = vadd.f32 %v6440, %v6574
      %v6595 = vadd.f32 %v6441, %v6577
      %6596 = vst.msk [vmem:[#allocation3] sm:$0xff] %vm603, %v6580
      %6597 = vst.msk [vmem:[#allocation3 + $0x8] sm:$0xff] %vm603, %v6581
      %6598 = vst.msk [vmem:[#allocation3 + $0x10] sm:$0xff] %vm603, %v6582
      %6599 = vst.msk [vmem:[#allocation3 + $0x18] sm:$0xff] %vm603, %v6583
      %6600 = vst.msk [vmem:[#allocation3 + $0x20] sm:$0xff] %vm603, %v6584
      %6601 = vst.msk [vmem:[#allocation3 + $0x28] sm:$0xff] %vm603, %v6585
      %6602 = vst.msk [vmem:[#allocation3 + $0x30] sm:$0xff] %vm603, %v6586
      %6603 = vst.msk [vmem:[#allocation3 + $0x38] sm:$0xff] %vm603, %v6587
      %6604 = vst.msk [vmem:[#allocation3 + $0x40] sm:$0xff] %vm603, %v6588
      %6605 = vst.msk [vmem:[#allocation3 + $0x48] sm:$0xff] %vm603, %v6589
      %6606 = vst.msk [vmem:[#allocation3 + $0x50] sm:$0xff] %vm603, %v6590
      %6607 = vst.msk [vmem:[#allocation3 + $0x58] sm:$0xff] %vm603, %v6591
      %6608 = vst.msk [vmem:[#allocation3 + $0x60] sm:$0xff] %vm603, %v6592
      %6609 = vst.msk [vmem:[#allocation3 + $0x68] sm:$0xff] %vm603, %v6593
      %6610 = vst.msk [vmem:[#allocation3 + $0x70] sm:$0xff] %vm603, %v6594
      %6611 = vst.msk [vmem:[#allocation3 + $0x78] sm:$0xff] %vm603, %v6595
      %s6612 = smul.u32 %s292, 7
      %s6613 = smul.addr %s6612, 4
      %s6614 = scalar_lea.vmem %s276, %s6613
      %v6615 = vld [vmem:[%s6614] sm:$0xf]
      %v6616 = vld [vmem:[%s6614 + $0x4] sm:$0xf]
      %v6617 = vld [vmem:[%s6614 + $0x1c] sm:$0xf]
      %v6618 = vld [vmem:[%s6614 + $0x20] sm:$0xf]
      %v6619 = vld [vmem:[%s6614 + $0x38] sm:$0xf]
      %v6620 = vld [vmem:[%s6614 + $0x3c] sm:$0xf]
      %v6621 = vld [vmem:[%s6614 + $0x54] sm:$0xf]
      %v6622 = vld [vmem:[%s6614 + $0x58] sm:$0xf]
      %v6623 = vld [vmem:[%s6614 + $0x70] sm:$0xf]
      %v6624 = vld [vmem:[%s6614 + $0x74] sm:$0xf]
      %v6625 = vld [vmem:[%s6614 + $0x8c] sm:$0xf]
      %v6626 = vld [vmem:[%s6614 + $0x90] sm:$0xf]
      %v6627 = vld [vmem:[%s6614 + $0xa8] sm:$0xf]
      %v6628 = vld [vmem:[%s6614 + $0xac] sm:$0xf]
      %v6629 = vld [vmem:[%s6614 + $0xc4] sm:$0xf]
      %v6630 = vld [vmem:[%s6614 + $0xc8] sm:$0xf]
      %s6631 = scalar_lea.vmem %s2, 288
      %v6632 = vld [vmem:[%s6631] sm:$0xf]
      %v6633 = vld [vmem:[%s6631 + $0x4] sm:$0xf]
      %v6634 = vld [vmem:[%s6631 + $0x8] sm:$0xf]
      %v6635 = vld [vmem:[%s6631 + $0xc] sm:$0xf]
      %v6652 = vunpack.c.l.b16 %v6615
      %v6653 = vunpack.c.l.b16 %v6616
      %v6654 = vunpack.c.l.b16 %v6617
      %v6655 = vunpack.c.l.b16 %v6618
      %v6656 = vunpack.c.l.b16 %v6619
      %v6657 = vunpack.c.l.b16 %v6620
      %v6658 = vunpack.c.l.b16 %v6621
      %v6659 = vunpack.c.l.b16 %v6622
      %v6660 = vunpack.c.l.b16 %v6623
      %v6661 = vunpack.c.l.b16 %v6624
      %v6662 = vunpack.c.l.b16 %v6625
      %v6663 = vunpack.c.l.b16 %v6626
      %v6664 = vunpack.c.l.b16 %v6627
      %v6665 = vunpack.c.l.b16 %v6628
      %v6666 = vunpack.c.l.b16 %v6629
      %v6667 = vunpack.c.l.b16 %v6630
      %v6668 = vpack.c.b16 %v6653, %v6652
      %v6669 = vpack.c.b16 %v6655, %v6654
      %v6670 = vpack.c.b16 %v6657, %v6656
      %v6671 = vpack.c.b16 %v6659, %v6658
      %v6672 = vpack.c.b16 %v6661, %v6660
      %v6673 = vpack.c.b16 %v6663, %v6662
      %v6674 = vpack.c.b16 %v6665, %v6664
      %v6675 = vpack.c.b16 %v6667, %v6666
      %v6680 = vunpack.c.l.b16 %v6632
      %v6681 = vunpack.c.l.b16 %v6633
      %v6682 = vunpack.c.l.b16 %v6634
      %v6683 = vunpack.c.l.b16 %v6635
      %v6684 = vpack.c.b16 %v6681, %v6680
      %v6685 = vpack.c.b16 %v6683, %v6682
      %v6689 = vsel %vm449, %v6668, 0
      %v6692 = vsel %vm449, %v6669, 0
      %v6695 = vsel %vm449, %v6670, 0
      %v6698 = vsel %vm449, %v6671, 0
      %v6701 = vsel %vm449, %v6672, 0
      %v6704 = vsel %vm449, %v6673, 0
      %v6707 = vsel %vm449, %v6674, 0
      %v6710 = vsel %vm449, %v6675, 0
      %6712 = vmatprep.subr.bf16.mxu0 0
      %6713 = vmatpush1.bf16.msra.mxu0 0
      %6714 = vmatprep.subr.bf16.mxu0 0
      %6715 = vmatpush1.bf16.msra.mxu0 0
      %6716 = vmatprep.subr.bf16.mxu0 0
      %6717 = vmatpush1.bf16.msra.mxu0 0
      %6718 = vmatprep.subr.bf16.mxu0 0
      %6719 = vmatpush1.bf16.msra.mxu0 0
      %6720 = vmatprep.subr.bf16.mxu0 0
      %6721 = vmatpush1.bf16.msra.mxu0 0
      %6722 = vmatprep.subr.bf16.mxu0 0
      %6723 = vmatpush1.bf16.msra.mxu0 0
      %6724 = vmatprep.subr.bf16.mxu0 0
      %6725 = vmatpush1.bf16.msra.mxu0 %v6685
      %6726 = vmatprep.subr.bf16.mxu0 0
      %6727 = vmatpush1.bf16.msra.mxu0 %v6684
      %6728 = vmatprep.subr.bf16.mxu0 0
      %6729 = vmatpush2.bf16.msra.mxu0 0
      %6730 = vmatprep.subr.bf16.mxu0 0
      %6731 = vmatpush2.bf16.msra.mxu0 0
      %6732 = vmatprep.subr.bf16.mxu0 0
      %6733 = vmatpush2.bf16.msra.mxu0 0
      %6734 = vmatprep.subr.bf16.mxu0 0
      %6735 = vmatpush2.bf16.msra.mxu0 0
      %6736 = vmatprep.subr.bf16.mxu0 0
      %6737 = vmatpush2.bf16.msra.mxu0 0
      %6738 = vmatprep.subr.bf16.mxu0 0
      %6739 = vmatpush2.bf16.msra.mxu0 0
      %6740 = vmatprep.subr.bf16.mxu0 0
      %6741 = vmatpush2.bf16.msra.mxu0 0
      %6742 = vmatprep.subr.bf16.mxu0 0
      %6743 = vmatpush2.bf16.msra.mxu0 0
      %6744 = vmatprep.mubr.bf16.mxu0 0
      %6745 = vmatmul.mubr.bf16.gmra.mxu0 %v6689
      %v6746 = vpop.f32.mrf.mxu0
      %v6747 = vadd.f32 0.0, %v6746
      %v6748 = vpop.f32.mrf.mxu0
      %v6749 = vpop.f32.mrf.mxu0
      %v6750 = vadd.f32 0.0, %v6749
      %v6751 = vpop.f32.mrf.mxu0
      %6752 = vmatprep.mubr.bf16.mxu0 0
      %6753 = vmatmul.mubr.bf16.gmra.mxu0 %v6692
      %v6754 = vpop.f32.mrf.mxu0
      %v6755 = vadd.f32 0.0, %v6754
      %v6756 = vpop.f32.mrf.mxu0
      %v6757 = vpop.f32.mrf.mxu0
      %v6758 = vadd.f32 0.0, %v6757
      %v6759 = vpop.f32.mrf.mxu0
      %6760 = vmatprep.mubr.bf16.mxu0 0
      %6761 = vmatmul.mubr.bf16.gmra.mxu0 %v6695
      %v6762 = vpop.f32.mrf.mxu0
      %v6763 = vadd.f32 0.0, %v6762
      %v6764 = vpop.f32.mrf.mxu0
      %v6765 = vpop.f32.mrf.mxu0
      %v6766 = vadd.f32 0.0, %v6765
      %v6767 = vpop.f32.mrf.mxu0
      %6768 = vmatprep.mubr.bf16.mxu0 0
      %6769 = vmatmul.mubr.bf16.gmra.mxu0 %v6698
      %v6770 = vpop.f32.mrf.mxu0
      %v6771 = vadd.f32 0.0, %v6770
      %v6772 = vpop.f32.mrf.mxu0
      %v6773 = vpop.f32.mrf.mxu0
      %v6774 = vadd.f32 0.0, %v6773
      %v6775 = vpop.f32.mrf.mxu0
      %6776 = vmatprep.mubr.bf16.mxu0 0
      %6777 = vmatmul.mubr.bf16.gmra.mxu0 %v6701
      %v6778 = vpop.f32.mrf.mxu0
      %v6779 = vadd.f32 0.0, %v6778
      %v6780 = vpop.f32.mrf.mxu0
      %v6781 = vpop.f32.mrf.mxu0
      %v6782 = vadd.f32 0.0, %v6781
      %v6783 = vpop.f32.mrf.mxu0
      %6784 = vmatprep.mubr.bf16.mxu0 0
      %6785 = vmatmul.mubr.bf16.gmra.mxu0 %v6704
      %v6786 = vpop.f32.mrf.mxu0
      %v6787 = vadd.f32 0.0, %v6786
      %v6788 = vpop.f32.mrf.mxu0
      %v6789 = vpop.f32.mrf.mxu0
      %v6790 = vadd.f32 0.0, %v6789
      %v6791 = vpop.f32.mrf.mxu0
      %6792 = vmatprep.mubr.bf16.mxu0 0
      %6793 = vmatmul.mubr.bf16.gmra.mxu0 %v6707
      %v6794 = vpop.f32.mrf.mxu0
      %v6795 = vadd.f32 0.0, %v6794
      %v6796 = vpop.f32.mrf.mxu0
      %v6797 = vpop.f32.mrf.mxu0
      %v6798 = vadd.f32 0.0, %v6797
      %v6799 = vpop.f32.mrf.mxu0
      %6800 = vmatprep.mubr.bf16.mxu0 0
      %6801 = vmatmul.mubr.bf16.gmra.mxu0 %v6710
      %v6802 = vpop.f32.mrf.mxu0
      %v6803 = vadd.f32 0.0, %v6802
      %v6804 = vpop.f32.mrf.mxu0
      %v6805 = vpop.f32.mrf.mxu0
      %v6806 = vadd.f32 0.0, %v6805
      %v6807 = vpop.f32.mrf.mxu0
      %6808 = vdwg.mxu0
      %6809 = vst.msk [vmem:[#allocation2] sm:$0xff] %vm603, %v6747
      %6810 = vst.msk [vmem:[#allocation2 + $0x8] sm:$0xff] %vm603, %v6750
      %6811 = vst.msk [vmem:[#allocation2 + $0x10] sm:$0xff] %vm603, %v6755
      %6812 = vst.msk [vmem:[#allocation2 + $0x18] sm:$0xff] %vm603, %v6758
      %6813 = vst.msk [vmem:[#allocation2 + $0x20] sm:$0xff] %vm603, %v6763
      %6814 = vst.msk [vmem:[#allocation2 + $0x28] sm:$0xff] %vm603, %v6766
      %6815 = vst.msk [vmem:[#allocation2 + $0x30] sm:$0xff] %vm603, %v6771
      %6816 = vst.msk [vmem:[#allocation2 + $0x38] sm:$0xff] %vm603, %v6774
      %6817 = vst.msk [vmem:[#allocation2 + $0x40] sm:$0xff] %vm603, %v6779
      %6818 = vst.msk [vmem:[#allocation2 + $0x48] sm:$0xff] %vm603, %v6782
      %6819 = vst.msk [vmem:[#allocation2 + $0x50] sm:$0xff] %vm603, %v6787
      %6820 = vst.msk [vmem:[#allocation2 + $0x58] sm:$0xff] %vm603, %v6790
      %6821 = vst.msk [vmem:[#allocation2 + $0x60] sm:$0xff] %vm603, %v6795
      %6822 = vst.msk [vmem:[#allocation2 + $0x68] sm:$0xff] %vm603, %v6798
      %6823 = vst.msk [vmem:[#allocation2 + $0x70] sm:$0xff] %vm603, %v6803
      %6824 = vst.msk [vmem:[#allocation2 + $0x78] sm:$0xff] %vm603, %v6806
      %v6825 = vld [vmem:[%s6614 + $0x8] sm:$0xe]
      %v6826 = vld [vmem:[%s6614 + $0xc] sm:$0xf]
      %v6827 = vld [vmem:[%s6614 + $0x10] sm:$0x1]
      %v6828 = vld [vmem:[%s6614 + $0x24] sm:$0xe]
      %v6829 = vld [vmem:[%s6614 + $0x28] sm:$0xf]
      %v6830 = vld [vmem:[%s6614 + $0x2c] sm:$0x1]
      %v6831 = vld [vmem:[%s6614 + $0x40] sm:$0xe]
      %v6832 = vld [vmem:[%s6614 + $0x44] sm:$0xf]
      %v6833 = vld [vmem:[%s6614 + $0x48] sm:$0x1]
      %v6834 = vld [vmem:[%s6614 + $0x5c] sm:$0xe]
      %v6835 = vld [vmem:[%s6614 + $0x60] sm:$0xf]
      %v6836 = vld [vmem:[%s6614 + $0x64] sm:$0x1]
      %v6837 = vld [vmem:[%s6614 + $0x78] sm:$0xe]
      %v6838 = vld [vmem:[%s6614 + $0x7c] sm:$0xf]
      %v6839 = vld [vmem:[%s6614 + $0x80] sm:$0x1]
      %v6840 = vld [vmem:[%s6614 + $0x94] sm:$0xe]
      %v6841 = vld [vmem:[%s6614 + $0x98] sm:$0xf]
      %v6842 = vld [vmem:[%s6614 + $0x9c] sm:$0x1]
      %v6843 = vld [vmem:[%s6614 + $0xb0] sm:$0xe]
      %v6844 = vld [vmem:[%s6614 + $0xb4] sm:$0xf]
      %v6845 = vld [vmem:[%s6614 + $0xb8] sm:$0x1]
      %v6846 = vld [vmem:[%s6614 + $0xcc] sm:$0xe]
      %v6847 = vld [vmem:[%s6614 + $0xd0] sm:$0xf]
      %v6848 = vld [vmem:[%s6614 + $0xd4] sm:$0x1]
      %v6873 = vrot.slane %v6825, 5
      %v6874 = vrot.slane %v6873, 4
      %v6875 = vrot.slane %v6826, 5
      %v6876 = vsel %vm347, %v6874, %v6875
      %v6877 = vrot.slane %v6875, 4
      %v6878 = vrot.slane %v6827, 5
      %v6879 = vsel %vm347, %v6877, %v6878
      %v6880 = vrot.slane %v6828, 5
      %v6881 = vrot.slane %v6880, 4
      %v6882 = vrot.slane %v6829, 5
      %v6883 = vsel %vm347, %v6881, %v6882
      %v6884 = vrot.slane %v6882, 4
      %v6885 = vrot.slane %v6830, 5
      %v6886 = vsel %vm347, %v6884, %v6885
      %v6887 = vrot.slane %v6831, 5
      %v6888 = vrot.slane %v6887, 4
      %v6889 = vrot.slane %v6832, 5
      %v6890 = vsel %vm347, %v6888, %v6889
      %v6891 = vrot.slane %v6889, 4
      %v6892 = vrot.slane %v6833, 5
      %v6893 = vsel %vm347, %v6891, %v6892
      %v6894 = vrot.slane %v6834, 5
      %v6895 = vrot.slane %v6894, 4
      %v6896 = vrot.slane %v6835, 5
      %v6897 = vsel %vm347, %v6895, %v6896
      %v6898 = vrot.slane %v6896, 4
      %v6899 = vrot.slane %v6836, 5
      %v6900 = vsel %vm347, %v6898, %v6899
      %v6901 = vrot.slane %v6837, 5
      %v6902 = vrot.slane %v6901, 4
      %v6903 = vrot.slane %v6838, 5
      %v6904 = vsel %vm347, %v6902, %v6903
      %v6905 = vrot.slane %v6903, 4
      %v6906 = vrot.slane %v6839, 5
      %v6907 = vsel %vm347, %v6905, %v6906
      %v6908 = vrot.slane %v6840, 5
      %v6909 = vrot.slane %v6908, 4
      %v6910 = vrot.slane %v6841, 5
      %v6911 = vsel %vm347, %v6909, %v6910
      %v6912 = vrot.slane %v6910, 4
      %v6913 = vrot.slane %v6842, 5
      %v6914 = vsel %vm347, %v6912, %v6913
      %v6915 = vrot.slane %v6843, 5
      %v6916 = vrot.slane %v6915, 4
      %v6917 = vrot.slane %v6844, 5
      %v6918 = vsel %vm347, %v6916, %v6917
      %v6919 = vrot.slane %v6917, 4
      %v6920 = vrot.slane %v6845, 5
      %v6921 = vsel %vm347, %v6919, %v6920
      %v6922 = vrot.slane %v6846, 5
      %v6923 = vrot.slane %v6922, 4
      %v6924 = vrot.slane %v6847, 5
      %v6925 = vsel %vm347, %v6923, %v6924
      %v6926 = vrot.slane %v6924, 4
      %v6927 = vrot.slane %v6848, 5
      %v6928 = vsel %vm347, %v6926, %v6927
      %s6929 = scalar_lea.vmem %s2, 304
      %v6930 = vld [vmem:[%s6929] sm:$0xf]
      %v6931 = vld [vmem:[%s6929 + $0x4] sm:$0xf]
      %v6932 = vld [vmem:[%s6929 + $0x8] sm:$0xf]
      %v6933 = vld [vmem:[%s6929 + $0xc] sm:$0xf]
      %v6934 = vunpack.c.l.b16 %v6876
      %v6935 = vunpack.c.l.b16 %v6879
      %v6936 = vunpack.c.l.b16 %v6883
      %v6937 = vunpack.c.l.b16 %v6886
      %v6938 = vunpack.c.l.b16 %v6890
      %v6939 = vunpack.c.l.b16 %v6893
      %v6940 = vunpack.c.l.b16 %v6897
      %v6941 = vunpack.c.l.b16 %v6900
      %v6942 = vunpack.c.l.b16 %v6904
      %v6943 = vunpack.c.l.b16 %v6907
      %v6944 = vunpack.c.l.b16 %v6911
      %v6945 = vunpack.c.l.b16 %v6914
      %v6946 = vunpack.c.l.b16 %v6918
      %v6947 = vunpack.c.l.b16 %v6921
      %v6948 = vunpack.c.l.b16 %v6925
      %v6949 = vunpack.c.l.b16 %v6928
      %v6950 = vpack.c.b16 %v6935, %v6934
      %v6951 = vpack.c.b16 %v6937, %v6936
      %v6952 = vpack.c.b16 %v6939, %v6938
      %v6953 = vpack.c.b16 %v6941, %v6940
      %v6954 = vpack.c.b16 %v6943, %v6942
      %v6955 = vpack.c.b16 %v6945, %v6944
      %v6956 = vpack.c.b16 %v6947, %v6946
      %v6957 = vpack.c.b16 %v6949, %v6948
      %v6962 = vunpack.c.l.b16 %v6930
      %v6963 = vunpack.c.l.b16 %v6931
      %v6964 = vunpack.c.l.b16 %v6932
      %v6965 = vunpack.c.l.b16 %v6933
      %v6966 = vpack.c.b16 %v6963, %v6962
      %v6967 = vpack.c.b16 %v6965, %v6964
      %v6971 = vsel %vm449, %v6950, 0
      %v6974 = vsel %vm449, %v6951, 0
      %v6977 = vsel %vm449, %v6952, 0
      %v6980 = vsel %vm449, %v6953, 0
      %v6983 = vsel %vm449, %v6954, 0
      %v6986 = vsel %vm449, %v6955, 0
      %v6989 = vsel %vm449, %v6956, 0
      %v6992 = vsel %vm449, %v6957, 0
      %6994 = vmatprep.subr.bf16.mxu0 0
      %6995 = vmatpush1.bf16.msra.mxu0 0
      %6996 = vmatprep.subr.bf16.mxu0 0
      %6997 = vmatpush1.bf16.msra.mxu0 0
      %6998 = vmatprep.subr.bf16.mxu0 0
      %6999 = vmatpush1.bf16.msra.mxu0 0
      %7000 = vmatprep.subr.bf16.mxu0 0
      %7001 = vmatpush1.bf16.msra.mxu0 0
      %7002 = vmatprep.subr.bf16.mxu0 0
      %7003 = vmatpush1.bf16.msra.mxu0 0
      %7004 = vmatprep.subr.bf16.mxu0 0
      %7005 = vmatpush1.bf16.msra.mxu0 0
      %7006 = vmatprep.subr.bf16.mxu0 0
      %7007 = vmatpush1.bf16.msra.mxu0 %v6967
      %7008 = vmatprep.subr.bf16.mxu0 0
      %7009 = vmatpush1.bf16.msra.mxu0 %v6966
      %7010 = vmatprep.subr.bf16.mxu0 0
      %7011 = vmatpush2.bf16.msra.mxu0 0
      %7012 = vmatprep.subr.bf16.mxu0 0
      %7013 = vmatpush2.bf16.msra.mxu0 0
      %7014 = vmatprep.subr.bf16.mxu0 0
      %7015 = vmatpush2.bf16.msra.mxu0 0
      %7016 = vmatprep.subr.bf16.mxu0 0
      %7017 = vmatpush2.bf16.msra.mxu0 0
      %7018 = vmatprep.subr.bf16.mxu0 0
      %7019 = vmatpush2.bf16.msra.mxu0 0
      %7020 = vmatprep.subr.bf16.mxu0 0
      %7021 = vmatpush2.bf16.msra.mxu0 0
      %7022 = vmatprep.subr.bf16.mxu0 0
      %7023 = vmatpush2.bf16.msra.mxu0 0
      %7024 = vmatprep.subr.bf16.mxu0 0
      %7025 = vmatpush2.bf16.msra.mxu0 0
      %7026 = vmatprep.mubr.bf16.mxu0 0
      %7027 = vmatmul.mubr.bf16.gmra.mxu0 %v6971
      %v7028 = vpop.f32.mrf.mxu0
      %v7029 = vadd.f32 0.0, %v7028
      %v7030 = vpop.f32.mrf.mxu0
      %v7031 = vpop.f32.mrf.mxu0
      %v7032 = vadd.f32 0.0, %v7031
      %v7033 = vpop.f32.mrf.mxu0
      %7034 = vmatprep.mubr.bf16.mxu0 0
      %7035 = vmatmul.mubr.bf16.gmra.mxu0 %v6974
      %v7036 = vpop.f32.mrf.mxu0
      %v7037 = vadd.f32 0.0, %v7036
      %v7038 = vpop.f32.mrf.mxu0
      %v7039 = vpop.f32.mrf.mxu0
      %v7040 = vadd.f32 0.0, %v7039
      %v7041 = vpop.f32.mrf.mxu0
      %7042 = vmatprep.mubr.bf16.mxu0 0
      %7043 = vmatmul.mubr.bf16.gmra.mxu0 %v6977
      %v7044 = vpop.f32.mrf.mxu0
      %v7045 = vadd.f32 0.0, %v7044
      %v7046 = vpop.f32.mrf.mxu0
      %v7047 = vpop.f32.mrf.mxu0
      %v7048 = vadd.f32 0.0, %v7047
      %v7049 = vpop.f32.mrf.mxu0
      %7050 = vmatprep.mubr.bf16.mxu0 0
      %7051 = vmatmul.mubr.bf16.gmra.mxu0 %v6980
      %v7052 = vpop.f32.mrf.mxu0
      %v7053 = vadd.f32 0.0, %v7052
      %v7054 = vpop.f32.mrf.mxu0
      %v7055 = vpop.f32.mrf.mxu0
      %v7056 = vadd.f32 0.0, %v7055
      %v7057 = vpop.f32.mrf.mxu0
      %7058 = vmatprep.mubr.bf16.mxu0 0
      %7059 = vmatmul.mubr.bf16.gmra.mxu0 %v6983
      %v7060 = vpop.f32.mrf.mxu0
      %v7061 = vadd.f32 0.0, %v7060
      %v7062 = vpop.f32.mrf.mxu0
      %v7063 = vpop.f32.mrf.mxu0
      %v7064 = vadd.f32 0.0, %v7063
      %v7065 = vpop.f32.mrf.mxu0
      %7066 = vmatprep.mubr.bf16.mxu0 0
      %7067 = vmatmul.mubr.bf16.gmra.mxu0 %v6986
      %v7068 = vpop.f32.mrf.mxu0
      %v7069 = vadd.f32 0.0, %v7068
      %v7070 = vpop.f32.mrf.mxu0
      %v7071 = vpop.f32.mrf.mxu0
      %v7072 = vadd.f32 0.0, %v7071
      %v7073 = vpop.f32.mrf.mxu0
      %7074 = vmatprep.mubr.bf16.mxu0 0
      %7075 = vmatmul.mubr.bf16.gmra.mxu0 %v6989
      %v7076 = vpop.f32.mrf.mxu0
      %v7077 = vadd.f32 0.0, %v7076
      %v7078 = vpop.f32.mrf.mxu0
      %v7079 = vpop.f32.mrf.mxu0
      %v7080 = vadd.f32 0.0, %v7079
      %v7081 = vpop.f32.mrf.mxu0
      %7082 = vmatprep.mubr.bf16.mxu0 0
      %7083 = vmatmul.mubr.bf16.gmra.mxu0 %v6992
      %v7084 = vpop.f32.mrf.mxu0
      %v7085 = vadd.f32 0.0, %v7084
      %v7086 = vpop.f32.mrf.mxu0
      %v7087 = vpop.f32.mrf.mxu0
      %v7088 = vadd.f32 0.0, %v7087
      %v7089 = vpop.f32.mrf.mxu0
      %7090 = vdwg.mxu0
      %v7091 = vld [vmem:[#allocation2] sm:$0xff]
      %v7092 = vld [vmem:[#allocation2 + $0x8] sm:$0xff]
      %v7093 = vld [vmem:[#allocation2 + $0x10] sm:$0xff]
      %v7094 = vld [vmem:[#allocation2 + $0x18] sm:$0xff]
      %v7095 = vld [vmem:[#allocation2 + $0x20] sm:$0xff]
      %v7096 = vld [vmem:[#allocation2 + $0x28] sm:$0xff]
      %v7097 = vld [vmem:[#allocation2 + $0x30] sm:$0xff]
      %v7098 = vld [vmem:[#allocation2 + $0x38] sm:$0xff]
      %v7099 = vld [vmem:[#allocation2 + $0x40] sm:$0xff]
      %v7100 = vld [vmem:[#allocation2 + $0x48] sm:$0xff]
      %v7101 = vld [vmem:[#allocation2 + $0x50] sm:$0xff]
      %v7102 = vld [vmem:[#allocation2 + $0x58] sm:$0xff]
      %v7103 = vld [vmem:[#allocation2 + $0x60] sm:$0xff]
      %v7104 = vld [vmem:[#allocation2 + $0x68] sm:$0xff]
      %v7105 = vld [vmem:[#allocation2 + $0x70] sm:$0xff]
      %v7106 = vld [vmem:[#allocation2 + $0x78] sm:$0xff]
      %v7107 = vadd.f32 %v7091, %v7029
      %v7108 = vadd.f32 %v7092, %v7032
      %v7109 = vadd.f32 %v7093, %v7037
      %v7110 = vadd.f32 %v7094, %v7040
      %v7111 = vadd.f32 %v7095, %v7045
      %v7112 = vadd.f32 %v7096, %v7048
      %v7113 = vadd.f32 %v7097, %v7053
      %v7114 = vadd.f32 %v7098, %v7056
      %v7115 = vadd.f32 %v7099, %v7061
      %v7116 = vadd.f32 %v7100, %v7064
      %v7117 = vadd.f32 %v7101, %v7069
      %v7118 = vadd.f32 %v7102, %v7072
      %v7119 = vadd.f32 %v7103, %v7077
      %v7120 = vadd.f32 %v7104, %v7080
      %v7121 = vadd.f32 %v7105, %v7085
      %v7122 = vadd.f32 %v7106, %v7088
      %7123 = vst.msk [vmem:[#allocation2] sm:$0xff] %vm603, %v7107
      %7124 = vst.msk [vmem:[#allocation2 + $0x8] sm:$0xff] %vm603, %v7108
      %7125 = vst.msk [vmem:[#allocation2 + $0x10] sm:$0xff] %vm603, %v7109
      %7126 = vst.msk [vmem:[#allocation2 + $0x18] sm:$0xff] %vm603, %v7110
      %7127 = vst.msk [vmem:[#allocation2 + $0x20] sm:$0xff] %vm603, %v7111
      %7128 = vst.msk [vmem:[#allocation2 + $0x28] sm:$0xff] %vm603, %v7112
      %7129 = vst.msk [vmem:[#allocation2 + $0x30] sm:$0xff] %vm603, %v7113
      %7130 = vst.msk [vmem:[#allocation2 + $0x38] sm:$0xff] %vm603, %v7114
      %7131 = vst.msk [vmem:[#allocation2 + $0x40] sm:$0xff] %vm603, %v7115
      %7132 = vst.msk [vmem:[#allocation2 + $0x48] sm:$0xff] %vm603, %v7116
      %7133 = vst.msk [vmem:[#allocation2 + $0x50] sm:$0xff] %vm603, %v7117
      %7134 = vst.msk [vmem:[#allocation2 + $0x58] sm:$0xff] %vm603, %v7118
      %7135 = vst.msk [vmem:[#allocation2 + $0x60] sm:$0xff] %vm603, %v7119
      %7136 = vst.msk [vmem:[#allocation2 + $0x68] sm:$0xff] %vm603, %v7120
      %7137 = vst.msk [vmem:[#allocation2 + $0x70] sm:$0xff] %vm603, %v7121
      %7138 = vst.msk [vmem:[#allocation2 + $0x78] sm:$0xff] %vm603, %v7122
      %v7139 = vld [vmem:[%s6614 + $0x10] sm:$0xc]
      %v7140 = vld [vmem:[%s6614 + $0x14] sm:$0xf]
      %v7141 = vld [vmem:[%s6614 + $0x18] sm:$0x3]
      %v7142 = vld [vmem:[%s6614 + $0x2c] sm:$0xc]
      %v7143 = vld [vmem:[%s6614 + $0x30] sm:$0xf]
      %v7144 = vld [vmem:[%s6614 + $0x34] sm:$0x3]
      %v7145 = vld [vmem:[%s6614 + $0x48] sm:$0xc]
      %v7146 = vld [vmem:[%s6614 + $0x4c] sm:$0xf]
      %v7147 = vld [vmem:[%s6614 + $0x50] sm:$0x3]
      %v7148 = vld [vmem:[%s6614 + $0x64] sm:$0xc]
      %v7149 = vld [vmem:[%s6614 + $0x68] sm:$0xf]
      %v7150 = vld [vmem:[%s6614 + $0x6c] sm:$0x3]
      %v7151 = vld [vmem:[%s6614 + $0x80] sm:$0xc]
      %v7152 = vld [vmem:[%s6614 + $0x84] sm:$0xf]
      %v7153 = vld [vmem:[%s6614 + $0x88] sm:$0x3]
      %v7154 = vld [vmem:[%s6614 + $0x9c] sm:$0xc]
      %v7155 = vld [vmem:[%s6614 + $0xa0] sm:$0xf]
      %v7156 = vld [vmem:[%s6614 + $0xa4] sm:$0x3]
      %v7157 = vld [vmem:[%s6614 + $0xb8] sm:$0xc]
      %v7158 = vld [vmem:[%s6614 + $0xbc] sm:$0xf]
      %v7159 = vld [vmem:[%s6614 + $0xc0] sm:$0x3]
      %v7160 = vld [vmem:[%s6614 + $0xd4] sm:$0xc]
      %v7161 = vld [vmem:[%s6614 + $0xd8] sm:$0xf]
      %v7162 = vld [vmem:[%s6614 + $0xdc] sm:$0x3]
      %v7187 = vrot.slane %v7139, 6
      %v7188 = vrot.slane %v7187, 4
      %v7189 = vrot.slane %v7140, 6
      %v7190 = vsel %vm795, %v7188, %v7189
      %v7191 = vrot.slane %v7189, 4
      %v7192 = vrot.slane %v7141, 6
      %v7193 = vsel %vm795, %v7191, %v7192
      %v7194 = vrot.slane %v7142, 6
      %v7195 = vrot.slane %v7194, 4
      %v7196 = vrot.slane %v7143, 6
      %v7197 = vsel %vm795, %v7195, %v7196
      %v7198 = vrot.slane %v7196, 4
      %v7199 = vrot.slane %v7144, 6
      %v7200 = vsel %vm795, %v7198, %v7199
      %v7201 = vrot.slane %v7145, 6
      %v7202 = vrot.slane %v7201, 4
      %v7203 = vrot.slane %v7146, 6
      %v7204 = vsel %vm795, %v7202, %v7203
      %v7205 = vrot.slane %v7203, 4
      %v7206 = vrot.slane %v7147, 6
      %v7207 = vsel %vm795, %v7205, %v7206
      %v7208 = vrot.slane %v7148, 6
      %v7209 = vrot.slane %v7208, 4
      %v7210 = vrot.slane %v7149, 6
      %v7211 = vsel %vm795, %v7209, %v7210
      %v7212 = vrot.slane %v7210, 4
      %v7213 = vrot.slane %v7150, 6
      %v7214 = vsel %vm795, %v7212, %v7213
      %v7215 = vrot.slane %v7151, 6
      %v7216 = vrot.slane %v7215, 4
      %v7217 = vrot.slane %v7152, 6
      %v7218 = vsel %vm795, %v7216, %v7217
      %v7219 = vrot.slane %v7217, 4
      %v7220 = vrot.slane %v7153, 6
      %v7221 = vsel %vm795, %v7219, %v7220
      %v7222 = vrot.slane %v7154, 6
      %v7223 = vrot.slane %v7222, 4
      %v7224 = vrot.slane %v7155, 6
      %v7225 = vsel %vm795, %v7223, %v7224
      %v7226 = vrot.slane %v7224, 4
      %v7227 = vrot.slane %v7156, 6
      %v7228 = vsel %vm795, %v7226, %v7227
      %v7229 = vrot.slane %v7157, 6
      %v7230 = vrot.slane %v7229, 4
      %v7231 = vrot.slane %v7158, 6
      %v7232 = vsel %vm795, %v7230, %v7231
      %v7233 = vrot.slane %v7231, 4
      %v7234 = vrot.slane %v7159, 6
      %v7235 = vsel %vm795, %v7233, %v7234
      %v7236 = vrot.slane %v7160, 6
      %v7237 = vrot.slane %v7236, 4
      %v7238 = vrot.slane %v7161, 6
      %v7239 = vsel %vm795, %v7237, %v7238
      %v7240 = vrot.slane %v7238, 4
      %v7241 = vrot.slane %v7162, 6
      %v7242 = vsel %vm795, %v7240, %v7241
      %s7243 = scalar_lea.vmem %s2, 320
      %v7244 = vld [vmem:[%s7243] sm:$0xf]
      %v7245 = vld [vmem:[%s7243 + $0x4] sm:$0xf]
      %v7246 = vld [vmem:[%s7243 + $0x8] sm:$0xf]
      %v7247 = vld [vmem:[%s7243 + $0xc] sm:$0xf]
      %v7248 = vunpack.c.l.b16 %v7190
      %v7249 = vunpack.c.l.b16 %v7193
      %v7250 = vunpack.c.l.b16 %v7197
      %v7251 = vunpack.c.l.b16 %v7200
      %v7252 = vunpack.c.l.b16 %v7204
      %v7253 = vunpack.c.l.b16 %v7207
      %v7254 = vunpack.c.l.b16 %v7211
      %v7255 = vunpack.c.l.b16 %v7214
      %v7256 = vunpack.c.l.b16 %v7218
      %v7257 = vunpack.c.l.b16 %v7221
      %v7258 = vunpack.c.l.b16 %v7225
      %v7259 = vunpack.c.l.b16 %v7228
      %v7260 = vunpack.c.l.b16 %v7232
      %v7261 = vunpack.c.l.b16 %v7235
      %v7262 = vunpack.c.l.b16 %v7239
      %v7263 = vunpack.c.l.b16 %v7242
      %v7264 = vpack.c.b16 %v7249, %v7248
      %v7265 = vpack.c.b16 %v7251, %v7250
      %v7266 = vpack.c.b16 %v7253, %v7252
      %v7267 = vpack.c.b16 %v7255, %v7254
      %v7268 = vpack.c.b16 %v7257, %v7256
      %v7269 = vpack.c.b16 %v7259, %v7258
      %v7270 = vpack.c.b16 %v7261, %v7260
      %v7271 = vpack.c.b16 %v7263, %v7262
      %v7276 = vunpack.c.l.b16 %v7244
      %v7277 = vunpack.c.l.b16 %v7245
      %v7278 = vunpack.c.l.b16 %v7246
      %v7279 = vunpack.c.l.b16 %v7247
      %v7280 = vpack.c.b16 %v7277, %v7276
      %v7281 = vpack.c.b16 %v7279, %v7278
      %v7285 = vsel %vm449, %v7264, 0
      %v7288 = vsel %vm449, %v7265, 0
      %v7291 = vsel %vm449, %v7266, 0
      %v7294 = vsel %vm449, %v7267, 0
      %v7297 = vsel %vm449, %v7268, 0
      %v7300 = vsel %vm449, %v7269, 0
      %v7303 = vsel %vm449, %v7270, 0
      %v7306 = vsel %vm449, %v7271, 0
      %7308 = vmatprep.subr.bf16.mxu0 0
      %7309 = vmatpush1.bf16.msra.mxu0 0
      %7310 = vmatprep.subr.bf16.mxu0 0
      %7311 = vmatpush1.bf16.msra.mxu0 0
      %7312 = vmatprep.subr.bf16.mxu0 0
      %7313 = vmatpush1.bf16.msra.mxu0 0
      %7314 = vmatprep.subr.bf16.mxu0 0
      %7315 = vmatpush1.bf16.msra.mxu0 0
      %7316 = vmatprep.subr.bf16.mxu0 0
      %7317 = vmatpush1.bf16.msra.mxu0 0
      %7318 = vmatprep.subr.bf16.mxu0 0
      %7319 = vmatpush1.bf16.msra.mxu0 0
      %7320 = vmatprep.subr.bf16.mxu0 0
      %7321 = vmatpush1.bf16.msra.mxu0 %v7281
      %7322 = vmatprep.subr.bf16.mxu0 0
      %7323 = vmatpush1.bf16.msra.mxu0 %v7280
      %7324 = vmatprep.subr.bf16.mxu0 0
      %7325 = vmatpush2.bf16.msra.mxu0 0
      %7326 = vmatprep.subr.bf16.mxu0 0
      %7327 = vmatpush2.bf16.msra.mxu0 0
      %7328 = vmatprep.subr.bf16.mxu0 0
      %7329 = vmatpush2.bf16.msra.mxu0 0
      %7330 = vmatprep.subr.bf16.mxu0 0
      %7331 = vmatpush2.bf16.msra.mxu0 0
      %7332 = vmatprep.subr.bf16.mxu0 0
      %7333 = vmatpush2.bf16.msra.mxu0 0
      %7334 = vmatprep.subr.bf16.mxu0 0
      %7335 = vmatpush2.bf16.msra.mxu0 0
      %7336 = vmatprep.subr.bf16.mxu0 0
      %7337 = vmatpush2.bf16.msra.mxu0 0
      %7338 = vmatprep.subr.bf16.mxu0 0
      %7339 = vmatpush2.bf16.msra.mxu0 0
      %7340 = vmatprep.mubr.bf16.mxu0 0
      %7341 = vmatmul.mubr.bf16.gmra.mxu0 %v7285
      %v7342 = vpop.f32.mrf.mxu0
      %v7343 = vadd.f32 0.0, %v7342
      %v7344 = vpop.f32.mrf.mxu0
      %v7345 = vpop.f32.mrf.mxu0
      %v7346 = vadd.f32 0.0, %v7345
      %v7347 = vpop.f32.mrf.mxu0
      %7348 = vmatprep.mubr.bf16.mxu0 0
      %7349 = vmatmul.mubr.bf16.gmra.mxu0 %v7288
      %v7350 = vpop.f32.mrf.mxu0
      %v7351 = vadd.f32 0.0, %v7350
      %v7352 = vpop.f32.mrf.mxu0
      %v7353 = vpop.f32.mrf.mxu0
      %v7354 = vadd.f32 0.0, %v7353
      %v7355 = vpop.f32.mrf.mxu0
      %7356 = vmatprep.mubr.bf16.mxu0 0
      %7357 = vmatmul.mubr.bf16.gmra.mxu0 %v7291
      %v7358 = vpop.f32.mrf.mxu0
      %v7359 = vadd.f32 0.0, %v7358
      %v7360 = vpop.f32.mrf.mxu0
      %v7361 = vpop.f32.mrf.mxu0
      %v7362 = vadd.f32 0.0, %v7361
      %v7363 = vpop.f32.mrf.mxu0
      %7364 = vmatprep.mubr.bf16.mxu0 0
      %7365 = vmatmul.mubr.bf16.gmra.mxu0 %v7294
      %v7366 = vpop.f32.mrf.mxu0
      %v7367 = vadd.f32 0.0, %v7366
      %v7368 = vpop.f32.mrf.mxu0
      %v7369 = vpop.f32.mrf.mxu0
      %v7370 = vadd.f32 0.0, %v7369
      %v7371 = vpop.f32.mrf.mxu0
      %7372 = vmatprep.mubr.bf16.mxu0 0
      %7373 = vmatmul.mubr.bf16.gmra.mxu0 %v7297
      %v7374 = vpop.f32.mrf.mxu0
      %v7375 = vadd.f32 0.0, %v7374
      %v7376 = vpop.f32.mrf.mxu0
      %v7377 = vpop.f32.mrf.mxu0
      %v7378 = vadd.f32 0.0, %v7377
      %v7379 = vpop.f32.mrf.mxu0
      %7380 = vmatprep.mubr.bf16.mxu0 0
      %7381 = vmatmul.mubr.bf16.gmra.mxu0 %v7300
      %v7382 = vpop.f32.mrf.mxu0
      %v7383 = vadd.f32 0.0, %v7382
      %v7384 = vpop.f32.mrf.mxu0
      %v7385 = vpop.f32.mrf.mxu0
      %v7386 = vadd.f32 0.0, %v7385
      %v7387 = vpop.f32.mrf.mxu0
      %7388 = vmatprep.mubr.bf16.mxu0 0
      %7389 = vmatmul.mubr.bf16.gmra.mxu0 %v7303
      %v7390 = vpop.f32.mrf.mxu0
      %v7391 = vadd.f32 0.0, %v7390
      %v7392 = vpop.f32.mrf.mxu0
      %v7393 = vpop.f32.mrf.mxu0
      %v7394 = vadd.f32 0.0, %v7393
      %v7395 = vpop.f32.mrf.mxu0
      %7396 = vmatprep.mubr.bf16.mxu0 0
      %7397 = vmatmul.mubr.bf16.gmra.mxu0 %v7306
      %v7398 = vpop.f32.mrf.mxu0
      %v7399 = vadd.f32 0.0, %v7398
      %v7400 = vpop.f32.mrf.mxu0
      %v7401 = vpop.f32.mrf.mxu0
      %v7402 = vadd.f32 0.0, %v7401
      %v7403 = vpop.f32.mrf.mxu0
      %7404 = vdwg.mxu0
      %v7405 = vld [vmem:[#allocation2] sm:$0xff]
      %v7406 = vld [vmem:[#allocation2 + $0x8] sm:$0xff]
      %v7407 = vld [vmem:[#allocation2 + $0x10] sm:$0xff]
      %v7408 = vld [vmem:[#allocation2 + $0x18] sm:$0xff]
      %v7409 = vld [vmem:[#allocation2 + $0x20] sm:$0xff]
      %v7410 = vld [vmem:[#allocation2 + $0x28] sm:$0xff]
      %v7411 = vld [vmem:[#allocation2 + $0x30] sm:$0xff]
      %v7412 = vld [vmem:[#allocation2 + $0x38] sm:$0xff]
      %v7413 = vld [vmem:[#allocation2 + $0x40] sm:$0xff]
      %v7414 = vld [vmem:[#allocation2 + $0x48] sm:$0xff]
      %v7415 = vld [vmem:[#allocation2 + $0x50] sm:$0xff]
      %v7416 = vld [vmem:[#allocation2 + $0x58] sm:$0xff]
      %v7417 = vld [vmem:[#allocation2 + $0x60] sm:$0xff]
      %v7418 = vld [vmem:[#allocation2 + $0x68] sm:$0xff]
      %v7419 = vld [vmem:[#allocation2 + $0x70] sm:$0xff]
      %v7420 = vld [vmem:[#allocation2 + $0x78] sm:$0xff]
      %v7421 = vadd.f32 %v7405, %v7343
      %v7422 = vadd.f32 %v7406, %v7346
      %v7423 = vadd.f32 %v7407, %v7351
      %v7424 = vadd.f32 %v7408, %v7354
      %v7425 = vadd.f32 %v7409, %v7359
      %v7426 = vadd.f32 %v7410, %v7362
      %v7427 = vadd.f32 %v7411, %v7367
      %v7428 = vadd.f32 %v7412, %v7370
      %v7429 = vadd.f32 %v7413, %v7375
      %v7430 = vadd.f32 %v7414, %v7378
      %v7431 = vadd.f32 %v7415, %v7383
      %v7432 = vadd.f32 %v7416, %v7386
      %v7433 = vadd.f32 %v7417, %v7391
      %v7434 = vadd.f32 %v7418, %v7394
      %v7435 = vadd.f32 %v7419, %v7399
      %v7436 = vadd.f32 %v7420, %v7402
      %7437 = vst.msk [vmem:[#allocation2] sm:$0xff] %vm603, %v7421
      %7438 = vst.msk [vmem:[#allocation2 + $0x8] sm:$0xff] %vm603, %v7422
      %7439 = vst.msk [vmem:[#allocation2 + $0x10] sm:$0xff] %vm603, %v7423
      %7440 = vst.msk [vmem:[#allocation2 + $0x18] sm:$0xff] %vm603, %v7424
      %7441 = vst.msk [vmem:[#allocation2 + $0x20] sm:$0xff] %vm603, %v7425
      %7442 = vst.msk [vmem:[#allocation2 + $0x28] sm:$0xff] %vm603, %v7426
      %7443 = vst.msk [vmem:[#allocation2 + $0x30] sm:$0xff] %vm603, %v7427
      %7444 = vst.msk [vmem:[#allocation2 + $0x38] sm:$0xff] %vm603, %v7428
      %7445 = vst.msk [vmem:[#allocation2 + $0x40] sm:$0xff] %vm603, %v7429
      %7446 = vst.msk [vmem:[#allocation2 + $0x48] sm:$0xff] %vm603, %v7430
      %7447 = vst.msk [vmem:[#allocation2 + $0x50] sm:$0xff] %vm603, %v7431
      %7448 = vst.msk [vmem:[#allocation2 + $0x58] sm:$0xff] %vm603, %v7432
      %7449 = vst.msk [vmem:[#allocation2 + $0x60] sm:$0xff] %vm603, %v7433
      %7450 = vst.msk [vmem:[#allocation2 + $0x68] sm:$0xff] %vm603, %v7434
      %7451 = vst.msk [vmem:[#allocation2 + $0x70] sm:$0xff] %vm603, %v7435
      %7452 = vst.msk [vmem:[#allocation2 + $0x78] sm:$0xff] %vm603, %v7436
      %v7453 = vld [vmem:[%s296] sm:$0xf]
      %v7454 = vld [vmem:[%s296 + $0x4] sm:$0xf]
      %v7455 = vld [vmem:[%s296 + $0x1c] sm:$0xf]
      %v7456 = vld [vmem:[%s296 + $0x20] sm:$0xf]
      %v7457 = vld [vmem:[%s296 + $0x38] sm:$0xf]
      %v7458 = vld [vmem:[%s296 + $0x3c] sm:$0xf]
      %v7459 = vld [vmem:[%s296 + $0x54] sm:$0xf]
      %v7460 = vld [vmem:[%s296 + $0x58] sm:$0xf]
      %v7461 = vld [vmem:[%s296 + $0x70] sm:$0xf]
      %v7462 = vld [vmem:[%s296 + $0x74] sm:$0xf]
      %v7463 = vld [vmem:[%s296 + $0x8c] sm:$0xf]
      %v7464 = vld [vmem:[%s296 + $0x90] sm:$0xf]
      %v7465 = vld [vmem:[%s296 + $0xa8] sm:$0xf]
      %v7466 = vld [vmem:[%s296 + $0xac] sm:$0xf]
      %v7467 = vld [vmem:[%s296 + $0xc4] sm:$0xf]
      %v7468 = vld [vmem:[%s296 + $0xc8] sm:$0xf]
      %s7469 = scalar_lea.vmem %s2, 336
      %v7470 = vld [vmem:[%s7469] sm:$0xf]
      %v7471 = vld [vmem:[%s7469 + $0x4] sm:$0xf]
      %v7472 = vld [vmem:[%s7469 + $0x8] sm:$0xf]
      %v7473 = vld [vmem:[%s7469 + $0xc] sm:$0xf]
      %v7490 = vunpack.c.l.b16 %v7453
      %v7491 = vunpack.c.l.b16 %v7454
      %v7492 = vunpack.c.l.b16 %v7455
      %v7493 = vunpack.c.l.b16 %v7456
      %v7494 = vunpack.c.l.b16 %v7457
      %v7495 = vunpack.c.l.b16 %v7458
      %v7496 = vunpack.c.l.b16 %v7459
      %v7497 = vunpack.c.l.b16 %v7460
      %v7498 = vunpack.c.l.b16 %v7461
      %v7499 = vunpack.c.l.b16 %v7462
      %v7500 = vunpack.c.l.b16 %v7463
      %v7501 = vunpack.c.l.b16 %v7464
      %v7502 = vunpack.c.l.b16 %v7465
      %v7503 = vunpack.c.l.b16 %v7466
      %v7504 = vunpack.c.l.b16 %v7467
      %v7505 = vunpack.c.l.b16 %v7468
      %v7506 = vpack.c.b16 %v7491, %v7490
      %v7507 = vpack.c.b16 %v7493, %v7492
      %v7508 = vpack.c.b16 %v7495, %v7494
      %v7509 = vpack.c.b16 %v7497, %v7496
      %v7510 = vpack.c.b16 %v7499, %v7498
      %v7511 = vpack.c.b16 %v7501, %v7500
      %v7512 = vpack.c.b16 %v7503, %v7502
      %v7513 = vpack.c.b16 %v7505, %v7504
      %v7518 = vunpack.c.l.b16 %v7470
      %v7519 = vunpack.c.l.b16 %v7471
      %v7520 = vunpack.c.l.b16 %v7472
      %v7521 = vunpack.c.l.b16 %v7473
      %v7522 = vpack.c.b16 %v7519, %v7518
      %v7523 = vpack.c.b16 %v7521, %v7520
      %v7527 = vsel %vm449, %v7506, 0
      %v7530 = vsel %vm449, %v7507, 0
      %v7533 = vsel %vm449, %v7508, 0
      %v7536 = vsel %vm449, %v7509, 0
      %v7539 = vsel %vm449, %v7510, 0
      %v7542 = vsel %vm449, %v7511, 0
      %v7545 = vsel %vm449, %v7512, 0
      %v7548 = vsel %vm449, %v7513, 0
      %7550 = vmatprep.subr.bf16.mxu0 0
      %7551 = vmatpush1.bf16.msra.mxu0 0
      %7552 = vmatprep.subr.bf16.mxu0 0
      %7553 = vmatpush1.bf16.msra.mxu0 0
      %7554 = vmatprep.subr.bf16.mxu0 0
      %7555 = vmatpush1.bf16.msra.mxu0 0
      %7556 = vmatprep.subr.bf16.mxu0 0
      %7557 = vmatpush1.bf16.msra.mxu0 0
      %7558 = vmatprep.subr.bf16.mxu0 0
      %7559 = vmatpush1.bf16.msra.mxu0 0
      %7560 = vmatprep.subr.bf16.mxu0 0
      %7561 = vmatpush1.bf16.msra.mxu0 0
      %7562 = vmatprep.subr.bf16.mxu0 0
      %7563 = vmatpush1.bf16.msra.mxu0 %v7523
      %7564 = vmatprep.subr.bf16.mxu0 0
      %7565 = vmatpush1.bf16.msra.mxu0 %v7522
      %7566 = vmatprep.subr.bf16.mxu0 0
      %7567 = vmatpush2.bf16.msra.mxu0 0
      %7568 = vmatprep.subr.bf16.mxu0 0
      %7569 = vmatpush2.bf16.msra.mxu0 0
      %7570 = vmatprep.subr.bf16.mxu0 0
      %7571 = vmatpush2.bf16.msra.mxu0 0
      %7572 = vmatprep.subr.bf16.mxu0 0
      %7573 = vmatpush2.bf16.msra.mxu0 0
      %7574 = vmatprep.subr.bf16.mxu0 0
      %7575 = vmatpush2.bf16.msra.mxu0 0
      %7576 = vmatprep.subr.bf16.mxu0 0
      %7577 = vmatpush2.bf16.msra.mxu0 0
      %7578 = vmatprep.subr.bf16.mxu0 0
      %7579 = vmatpush2.bf16.msra.mxu0 0
      %7580 = vmatprep.subr.bf16.mxu0 0
      %7581 = vmatpush2.bf16.msra.mxu0 0
      %7582 = vmatprep.mubr.bf16.mxu0 0
      %7583 = vmatmul.mubr.bf16.gmra.mxu0 %v7527
      %v7584 = vpop.f32.mrf.mxu0
      %v7585 = vadd.f32 0.0, %v7584
      %v7586 = vpop.f32.mrf.mxu0
      %v7587 = vpop.f32.mrf.mxu0
      %v7588 = vadd.f32 0.0, %v7587
      %v7589 = vpop.f32.mrf.mxu0
      %7590 = vmatprep.mubr.bf16.mxu0 0
      %7591 = vmatmul.mubr.bf16.gmra.mxu0 %v7530
      %v7592 = vpop.f32.mrf.mxu0
      %v7593 = vadd.f32 0.0, %v7592
      %v7594 = vpop.f32.mrf.mxu0
      %v7595 = vpop.f32.mrf.mxu0
      %v7596 = vadd.f32 0.0, %v7595
      %v7597 = vpop.f32.mrf.mxu0
      %7598 = vmatprep.mubr.bf16.mxu0 0
      %7599 = vmatmul.mubr.bf16.gmra.mxu0 %v7533
      %v7600 = vpop.f32.mrf.mxu0
      %v7601 = vadd.f32 0.0, %v7600
      %v7602 = vpop.f32.mrf.mxu0
      %v7603 = vpop.f32.mrf.mxu0
      %v7604 = vadd.f32 0.0, %v7603
      %v7605 = vpop.f32.mrf.mxu0
      %7606 = vmatprep.mubr.bf16.mxu0 0
      %7607 = vmatmul.mubr.bf16.gmra.mxu0 %v7536
      %v7608 = vpop.f32.mrf.mxu0
      %v7609 = vadd.f32 0.0, %v7608
      %v7610 = vpop.f32.mrf.mxu0
      %v7611 = vpop.f32.mrf.mxu0
      %v7612 = vadd.f32 0.0, %v7611
      %v7613 = vpop.f32.mrf.mxu0
      %7614 = vmatprep.mubr.bf16.mxu0 0
      %7615 = vmatmul.mubr.bf16.gmra.mxu0 %v7539
      %v7616 = vpop.f32.mrf.mxu0
      %v7617 = vadd.f32 0.0, %v7616
      %v7618 = vpop.f32.mrf.mxu0
      %v7619 = vpop.f32.mrf.mxu0
      %v7620 = vadd.f32 0.0, %v7619
      %v7621 = vpop.f32.mrf.mxu0
      %7622 = vmatprep.mubr.bf16.mxu0 0
      %7623 = vmatmul.mubr.bf16.gmra.mxu0 %v7542
      %v7624 = vpop.f32.mrf.mxu0
      %v7625 = vadd.f32 0.0, %v7624
      %v7626 = vpop.f32.mrf.mxu0
      %v7627 = vpop.f32.mrf.mxu0
      %v7628 = vadd.f32 0.0, %v7627
      %v7629 = vpop.f32.mrf.mxu0
      %7630 = vmatprep.mubr.bf16.mxu0 0
      %7631 = vmatmul.mubr.bf16.gmra.mxu0 %v7545
      %v7632 = vpop.f32.mrf.mxu0
      %v7633 = vadd.f32 0.0, %v7632
      %v7634 = vpop.f32.mrf.mxu0
      %v7635 = vpop.f32.mrf.mxu0
      %v7636 = vadd.f32 0.0, %v7635
      %v7637 = vpop.f32.mrf.mxu0
      %7638 = vmatprep.mubr.bf16.mxu0 0
      %7639 = vmatmul.mubr.bf16.gmra.mxu0 %v7548
      %v7640 = vpop.f32.mrf.mxu0
      %v7641 = vadd.f32 0.0, %v7640
      %v7642 = vpop.f32.mrf.mxu0
      %v7643 = vpop.f32.mrf.mxu0
      %v7644 = vadd.f32 0.0, %v7643
      %v7645 = vpop.f32.mrf.mxu0
      %7646 = vdwg.mxu0
      %v7647 = vld [vmem:[#allocation2] sm:$0xff]
      %v7648 = vld [vmem:[#allocation2 + $0x8] sm:$0xff]
      %v7649 = vld [vmem:[#allocation2 + $0x10] sm:$0xff]
      %v7650 = vld [vmem:[#allocation2 + $0x18] sm:$0xff]
      %v7651 = vld [vmem:[#allocation2 + $0x20] sm:$0xff]
      %v7652 = vld [vmem:[#allocation2 + $0x28] sm:$0xff]
      %v7653 = vld [vmem:[#allocation2 + $0x30] sm:$0xff]
      %v7654 = vld [vmem:[#allocation2 + $0x38] sm:$0xff]
      %v7655 = vld [vmem:[#allocation2 + $0x40] sm:$0xff]
      %v7656 = vld [vmem:[#allocation2 + $0x48] sm:$0xff]
      %v7657 = vld [vmem:[#allocation2 + $0x50] sm:$0xff]
      %v7658 = vld [vmem:[#allocation2 + $0x58] sm:$0xff]
      %v7659 = vld [vmem:[#allocation2 + $0x60] sm:$0xff]
      %v7660 = vld [vmem:[#allocation2 + $0x68] sm:$0xff]
      %v7661 = vld [vmem:[#allocation2 + $0x70] sm:$0xff]
      %v7662 = vld [vmem:[#allocation2 + $0x78] sm:$0xff]
      %v7663 = vadd.f32 %v7647, %v7585
      %v7664 = vadd.f32 %v7648, %v7588
      %v7665 = vadd.f32 %v7649, %v7593
      %v7666 = vadd.f32 %v7650, %v7596
      %v7667 = vadd.f32 %v7651, %v7601
      %v7668 = vadd.f32 %v7652, %v7604
      %v7669 = vadd.f32 %v7653, %v7609
      %v7670 = vadd.f32 %v7654, %v7612
      %v7671 = vadd.f32 %v7655, %v7617
      %v7672 = vadd.f32 %v7656, %v7620
      %v7673 = vadd.f32 %v7657, %v7625
      %v7674 = vadd.f32 %v7658, %v7628
      %v7675 = vadd.f32 %v7659, %v7633
      %v7676 = vadd.f32 %v7660, %v7636
      %v7677 = vadd.f32 %v7661, %v7641
      %v7678 = vadd.f32 %v7662, %v7644
      %7679 = vst.msk [vmem:[#allocation2] sm:$0xff] %vm603, %v7663
      %7680 = vst.msk [vmem:[#allocation2 + $0x8] sm:$0xff] %vm603, %v7664
      %7681 = vst.msk [vmem:[#allocation2 + $0x10] sm:$0xff] %vm603, %v7665
      %7682 = vst.msk [vmem:[#allocation2 + $0x18] sm:$0xff] %vm603, %v7666
      %7683 = vst.msk [vmem:[#allocation2 + $0x20] sm:$0xff] %vm603, %v7667
      %7684 = vst.msk [vmem:[#allocation2 + $0x28] sm:$0xff] %vm603, %v7668
      %7685 = vst.msk [vmem:[#allocation2 + $0x30] sm:$0xff] %vm603, %v7669
      %7686 = vst.msk [vmem:[#allocation2 + $0x38] sm:$0xff] %vm603, %v7670
      %7687 = vst.msk [vmem:[#allocation2 + $0x40] sm:$0xff] %vm603, %v7671
      %7688 = vst.msk [vmem:[#allocation2 + $0x48] sm:$0xff] %vm603, %v7672
      %7689 = vst.msk [vmem:[#allocation2 + $0x50] sm:$0xff] %vm603, %v7673
      %7690 = vst.msk [vmem:[#allocation2 + $0x58] sm:$0xff] %vm603, %v7674
      %7691 = vst.msk [vmem:[#allocation2 + $0x60] sm:$0xff] %vm603, %v7675
      %7692 = vst.msk [vmem:[#allocation2 + $0x68] sm:$0xff] %vm603, %v7676
      %7693 = vst.msk [vmem:[#allocation2 + $0x70] sm:$0xff] %vm603, %v7677
      %7694 = vst.msk [vmem:[#allocation2 + $0x78] sm:$0xff] %vm603, %v7678
      %v7695 = vld [vmem:[%s296 + $0x8] sm:$0xe]
      %v7696 = vld [vmem:[%s296 + $0xc] sm:$0xf]
      %v7697 = vld [vmem:[%s296 + $0x10] sm:$0x1]
      %v7698 = vld [vmem:[%s296 + $0x24] sm:$0xe]
      %v7699 = vld [vmem:[%s296 + $0x28] sm:$0xf]
      %v7700 = vld [vmem:[%s296 + $0x2c] sm:$0x1]
      %v7701 = vld [vmem:[%s296 + $0x40] sm:$0xe]
      %v7702 = vld [vmem:[%s296 + $0x44] sm:$0xf]
      %v7703 = vld [vmem:[%s296 + $0x48] sm:$0x1]
      %v7704 = vld [vmem:[%s296 + $0x5c] sm:$0xe]
      %v7705 = vld [vmem:[%s296 + $0x60] sm:$0xf]
      %v7706 = vld [vmem:[%s296 + $0x64] sm:$0x1]
      %v7707 = vld [vmem:[%s296 + $0x78] sm:$0xe]
      %v7708 = vld [vmem:[%s296 + $0x7c] sm:$0xf]
      %v7709 = vld [vmem:[%s296 + $0x80] sm:$0x1]
      %v7710 = vld [vmem:[%s296 + $0x94] sm:$0xe]
      %v7711 = vld [vmem:[%s296 + $0x98] sm:$0xf]
      %v7712 = vld [vmem:[%s296 + $0x9c] sm:$0x1]
      %v7713 = vld [vmem:[%s296 + $0xb0] sm:$0xe]
      %v7714 = vld [vmem:[%s296 + $0xb4] sm:$0xf]
      %v7715 = vld [vmem:[%s296 + $0xb8] sm:$0x1]
      %v7716 = vld [vmem:[%s296 + $0xcc] sm:$0xe]
      %v7717 = vld [vmem:[%s296 + $0xd0] sm:$0xf]
      %v7718 = vld [vmem:[%s296 + $0xd4] sm:$0x1]
      %v7743 = vrot.slane %v7695, 5
      %v7744 = vrot.slane %v7743, 4
      %v7745 = vrot.slane %v7696, 5
      %v7746 = vsel %vm347, %v7744, %v7745
      %v7747 = vrot.slane %v7745, 4
      %v7748 = vrot.slane %v7697, 5
      %v7749 = vsel %vm347, %v7747, %v7748
      %v7750 = vrot.slane %v7698, 5
      %v7751 = vrot.slane %v7750, 4
      %v7752 = vrot.slane %v7699, 5
      %v7753 = vsel %vm347, %v7751, %v7752
      %v7754 = vrot.slane %v7752, 4
      %v7755 = vrot.slane %v7700, 5
      %v7756 = vsel %vm347, %v7754, %v7755
      %v7757 = vrot.slane %v7701, 5
      %v7758 = vrot.slane %v7757, 4
      %v7759 = vrot.slane %v7702, 5
      %v7760 = vsel %vm347, %v7758, %v7759
      %v7761 = vrot.slane %v7759, 4
      %v7762 = vrot.slane %v7703, 5
      %v7763 = vsel %vm347, %v7761, %v7762
      %v7764 = vrot.slane %v7704, 5
      %v7765 = vrot.slane %v7764, 4
      %v7766 = vrot.slane %v7705, 5
      %v7767 = vsel %vm347, %v7765, %v7766
      %v7768 = vrot.slane %v7766, 4
      %v7769 = vrot.slane %v7706, 5
      %v7770 = vsel %vm347, %v7768, %v7769
      %v7771 = vrot.slane %v7707, 5
      %v7772 = vrot.slane %v7771, 4
      %v7773 = vrot.slane %v7708, 5
      %v7774 = vsel %vm347, %v7772, %v7773
      %v7775 = vrot.slane %v7773, 4
      %v7776 = vrot.slane %v7709, 5
      %v7777 = vsel %vm347, %v7775, %v7776
      %v7778 = vrot.slane %v7710, 5
      %v7779 = vrot.slane %v7778, 4
      %v7780 = vrot.slane %v7711, 5
      %v7781 = vsel %vm347, %v7779, %v7780
      %v7782 = vrot.slane %v7780, 4
      %v7783 = vrot.slane %v7712, 5
      %v7784 = vsel %vm347, %v7782, %v7783
      %v7785 = vrot.slane %v7713, 5
      %v7786 = vrot.slane %v7785, 4
      %v7787 = vrot.slane %v7714, 5
      %v7788 = vsel %vm347, %v7786, %v7787
      %v7789 = vrot.slane %v7787, 4
      %v7790 = vrot.slane %v7715, 5
      %v7791 = vsel %vm347, %v7789, %v7790
      %v7792 = vrot.slane %v7716, 5
      %v7793 = vrot.slane %v7792, 4
      %v7794 = vrot.slane %v7717, 5
      %v7795 = vsel %vm347, %v7793, %v7794
      %v7796 = vrot.slane %v7794, 4
      %v7797 = vrot.slane %v7718, 5
      %v7798 = vsel %vm347, %v7796, %v7797
      %s7799 = scalar_lea.vmem %s2, 352
      %v7800 = vld [vmem:[%s7799] sm:$0xf]
      %v7801 = vld [vmem:[%s7799 + $0x4] sm:$0xf]
      %v7802 = vld [vmem:[%s7799 + $0x8] sm:$0xf]
      %v7803 = vld [vmem:[%s7799 + $0xc] sm:$0xf]
      %v7804 = vunpack.c.l.b16 %v7746
      %v7805 = vunpack.c.l.b16 %v7749
      %v7806 = vunpack.c.l.b16 %v7753
      %v7807 = vunpack.c.l.b16 %v7756
      %v7808 = vunpack.c.l.b16 %v7760
      %v7809 = vunpack.c.l.b16 %v7763
      %v7810 = vunpack.c.l.b16 %v7767
      %v7811 = vunpack.c.l.b16 %v7770
      %v7812 = vunpack.c.l.b16 %v7774
      %v7813 = vunpack.c.l.b16 %v7777
      %v7814 = vunpack.c.l.b16 %v7781
      %v7815 = vunpack.c.l.b16 %v7784
      %v7816 = vunpack.c.l.b16 %v7788
      %v7817 = vunpack.c.l.b16 %v7791
      %v7818 = vunpack.c.l.b16 %v7795
      %v7819 = vunpack.c.l.b16 %v7798
      %v7820 = vpack.c.b16 %v7805, %v7804
      %v7821 = vpack.c.b16 %v7807, %v7806
      %v7822 = vpack.c.b16 %v7809, %v7808
      %v7823 = vpack.c.b16 %v7811, %v7810
      %v7824 = vpack.c.b16 %v7813, %v7812
      %v7825 = vpack.c.b16 %v7815, %v7814
      %v7826 = vpack.c.b16 %v7817, %v7816
      %v7827 = vpack.c.b16 %v7819, %v7818
      %v7832 = vunpack.c.l.b16 %v7800
      %v7833 = vunpack.c.l.b16 %v7801
      %v7834 = vunpack.c.l.b16 %v7802
      %v7835 = vunpack.c.l.b16 %v7803
      %v7836 = vpack.c.b16 %v7833, %v7832
      %v7837 = vpack.c.b16 %v7835, %v7834
      %v7841 = vsel %vm449, %v7820, 0
      %v7844 = vsel %vm449, %v7821, 0
      %v7847 = vsel %vm449, %v7822, 0
      %v7850 = vsel %vm449, %v7823, 0
      %v7853 = vsel %vm449, %v7824, 0
      %v7856 = vsel %vm449, %v7825, 0
      %v7859 = vsel %vm449, %v7826, 0
      %v7862 = vsel %vm449, %v7827, 0
      %7864 = vmatprep.subr.bf16.mxu0 0
      %7865 = vmatpush1.bf16.msra.mxu0 0
      %7866 = vmatprep.subr.bf16.mxu0 0
      %7867 = vmatpush1.bf16.msra.mxu0 0
      %7868 = vmatprep.subr.bf16.mxu0 0
      %7869 = vmatpush1.bf16.msra.mxu0 0
      %7870 = vmatprep.subr.bf16.mxu0 0
      %7871 = vmatpush1.bf16.msra.mxu0 0
      %7872 = vmatprep.subr.bf16.mxu0 0
      %7873 = vmatpush1.bf16.msra.mxu0 0
      %7874 = vmatprep.subr.bf16.mxu0 0
      %7875 = vmatpush1.bf16.msra.mxu0 0
      %7876 = vmatprep.subr.bf16.mxu0 0
      %7877 = vmatpush1.bf16.msra.mxu0 %v7837
      %7878 = vmatprep.subr.bf16.mxu0 0
      %7879 = vmatpush1.bf16.msra.mxu0 %v7836
      %7880 = vmatprep.subr.bf16.mxu0 0
      %7881 = vmatpush2.bf16.msra.mxu0 0
      %7882 = vmatprep.subr.bf16.mxu0 0
      %7883 = vmatpush2.bf16.msra.mxu0 0
      %7884 = vmatprep.subr.bf16.mxu0 0
      %7885 = vmatpush2.bf16.msra.mxu0 0
      %7886 = vmatprep.subr.bf16.mxu0 0
      %7887 = vmatpush2.bf16.msra.mxu0 0
      %7888 = vmatprep.subr.bf16.mxu0 0
      %7889 = vmatpush2.bf16.msra.mxu0 0
      %7890 = vmatprep.subr.bf16.mxu0 0
      %7891 = vmatpush2.bf16.msra.mxu0 0
      %7892 = vmatprep.subr.bf16.mxu0 0
      %7893 = vmatpush2.bf16.msra.mxu0 0
      %7894 = vmatprep.subr.bf16.mxu0 0
      %7895 = vmatpush2.bf16.msra.mxu0 0
      %7896 = vmatprep.mubr.bf16.mxu0 0
      %7897 = vmatmul.mubr.bf16.gmra.mxu0 %v7841
      %v7898 = vpop.f32.mrf.mxu0
      %v7899 = vadd.f32 0.0, %v7898
      %v7900 = vpop.f32.mrf.mxu0
      %v7901 = vpop.f32.mrf.mxu0
      %v7902 = vadd.f32 0.0, %v7901
      %v7903 = vpop.f32.mrf.mxu0
      %7904 = vmatprep.mubr.bf16.mxu0 0
      %7905 = vmatmul.mubr.bf16.gmra.mxu0 %v7844
      %v7906 = vpop.f32.mrf.mxu0
      %v7907 = vadd.f32 0.0, %v7906
      %v7908 = vpop.f32.mrf.mxu0
      %v7909 = vpop.f32.mrf.mxu0
      %v7910 = vadd.f32 0.0, %v7909
      %v7911 = vpop.f32.mrf.mxu0
      %7912 = vmatprep.mubr.bf16.mxu0 0
      %7913 = vmatmul.mubr.bf16.gmra.mxu0 %v7847
      %v7914 = vpop.f32.mrf.mxu0
      %v7915 = vadd.f32 0.0, %v7914
      %v7916 = vpop.f32.mrf.mxu0
      %v7917 = vpop.f32.mrf.mxu0
      %v7918 = vadd.f32 0.0, %v7917
      %v7919 = vpop.f32.mrf.mxu0
      %7920 = vmatprep.mubr.bf16.mxu0 0
      %7921 = vmatmul.mubr.bf16.gmra.mxu0 %v7850
      %v7922 = vpop.f32.mrf.mxu0
      %v7923 = vadd.f32 0.0, %v7922
      %v7924 = vpop.f32.mrf.mxu0
      %v7925 = vpop.f32.mrf.mxu0
      %v7926 = vadd.f32 0.0, %v7925
      %v7927 = vpop.f32.mrf.mxu0
      %7928 = vmatprep.mubr.bf16.mxu0 0
      %7929 = vmatmul.mubr.bf16.gmra.mxu0 %v7853
      %v7930 = vpop.f32.mrf.mxu0
      %v7931 = vadd.f32 0.0, %v7930
      %v7932 = vpop.f32.mrf.mxu0
      %v7933 = vpop.f32.mrf.mxu0
      %v7934 = vadd.f32 0.0, %v7933
      %v7935 = vpop.f32.mrf.mxu0
      %7936 = vmatprep.mubr.bf16.mxu0 0
      %7937 = vmatmul.mubr.bf16.gmra.mxu0 %v7856
      %v7938 = vpop.f32.mrf.mxu0
      %v7939 = vadd.f32 0.0, %v7938
      %v7940 = vpop.f32.mrf.mxu0
      %v7941 = vpop.f32.mrf.mxu0
      %v7942 = vadd.f32 0.0, %v7941
      %v7943 = vpop.f32.mrf.mxu0
      %7944 = vmatprep.mubr.bf16.mxu0 0
      %7945 = vmatmul.mubr.bf16.gmra.mxu0 %v7859
      %v7946 = vpop.f32.mrf.mxu0
      %v7947 = vadd.f32 0.0, %v7946
      %v7948 = vpop.f32.mrf.mxu0
      %v7949 = vpop.f32.mrf.mxu0
      %v7950 = vadd.f32 0.0, %v7949
      %v7951 = vpop.f32.mrf.mxu0
      %7952 = vmatprep.mubr.bf16.mxu0 0
      %7953 = vmatmul.mubr.bf16.gmra.mxu0 %v7862
      %v7954 = vpop.f32.mrf.mxu0
      %v7955 = vadd.f32 0.0, %v7954
      %v7956 = vpop.f32.mrf.mxu0
      %v7957 = vpop.f32.mrf.mxu0
      %v7958 = vadd.f32 0.0, %v7957
      %v7959 = vpop.f32.mrf.mxu0
      %7960 = vdwg.mxu0
      %v7961 = vld [vmem:[#allocation2] sm:$0xff]
      %v7962 = vld [vmem:[#allocation2 + $0x8] sm:$0xff]
      %v7963 = vld [vmem:[#allocation2 + $0x10] sm:$0xff]
      %v7964 = vld [vmem:[#allocation2 + $0x18] sm:$0xff]
      %v7965 = vld [vmem:[#allocation2 + $0x20] sm:$0xff]
      %v7966 = vld [vmem:[#allocation2 + $0x28] sm:$0xff]
      %v7967 = vld [vmem:[#allocation2 + $0x30] sm:$0xff]
      %v7968 = vld [vmem:[#allocation2 + $0x38] sm:$0xff]
      %v7969 = vld [vmem:[#allocation2 + $0x40] sm:$0xff]
      %v7970 = vld [vmem:[#allocation2 + $0x48] sm:$0xff]
      %v7971 = vld [vmem:[#allocation2 + $0x50] sm:$0xff]
      %v7972 = vld [vmem:[#allocation2 + $0x58] sm:$0xff]
      %v7973 = vld [vmem:[#allocation2 + $0x60] sm:$0xff]
      %v7974 = vld [vmem:[#allocation2 + $0x68] sm:$0xff]
      %v7975 = vld [vmem:[#allocation2 + $0x70] sm:$0xff]
      %v7976 = vld [vmem:[#allocation2 + $0x78] sm:$0xff]
      %v7977 = vadd.f32 %v7961, %v7899
      %v7978 = vadd.f32 %v7962, %v7902
      %v7979 = vadd.f32 %v7963, %v7907
      %v7980 = vadd.f32 %v7964, %v7910
      %v7981 = vadd.f32 %v7965, %v7915
      %v7982 = vadd.f32 %v7966, %v7918
      %v7983 = vadd.f32 %v7967, %v7923
      %v7984 = vadd.f32 %v7968, %v7926
      %v7985 = vadd.f32 %v7969, %v7931
      %v7986 = vadd.f32 %v7970, %v7934
      %v7987 = vadd.f32 %v7971, %v7939
      %v7988 = vadd.f32 %v7972, %v7942
      %v7989 = vadd.f32 %v7973, %v7947
      %v7990 = vadd.f32 %v7974, %v7950
      %v7991 = vadd.f32 %v7975, %v7955
      %v7992 = vadd.f32 %v7976, %v7958
      %7993 = vst.msk [vmem:[#allocation2] sm:$0xff] %vm603, %v7977
      %7994 = vst.msk [vmem:[#allocation2 + $0x8] sm:$0xff] %vm603, %v7978
      %7995 = vst.msk [vmem:[#allocation2 + $0x10] sm:$0xff] %vm603, %v7979
      %7996 = vst.msk [vmem:[#allocation2 + $0x18] sm:$0xff] %vm603, %v7980
      %7997 = vst.msk [vmem:[#allocation2 + $0x20] sm:$0xff] %vm603, %v7981
      %7998 = vst.msk [vmem:[#allocation2 + $0x28] sm:$0xff] %vm603, %v7982
      %7999 = vst.msk [vmem:[#allocation2 + $0x30] sm:$0xff] %vm603, %v7983
      %8000 = vst.msk [vmem:[#allocation2 + $0x38] sm:$0xff] %vm603, %v7984
      %8001 = vst.msk [vmem:[#allocation2 + $0x40] sm:$0xff] %vm603, %v7985
      %8002 = vst.msk [vmem:[#allocation2 + $0x48] sm:$0xff] %vm603, %v7986
      %8003 = vst.msk [vmem:[#allocation2 + $0x50] sm:$0xff] %vm603, %v7987
      %8004 = vst.msk [vmem:[#allocation2 + $0x58] sm:$0xff] %vm603, %v7988
      %8005 = vst.msk [vmem:[#allocation2 + $0x60] sm:$0xff] %vm603, %v7989
      %8006 = vst.msk [vmem:[#allocation2 + $0x68] sm:$0xff] %vm603, %v7990
      %8007 = vst.msk [vmem:[#allocation2 + $0x70] sm:$0xff] %vm603, %v7991
      %8008 = vst.msk [vmem:[#allocation2 + $0x78] sm:$0xff] %vm603, %v7992
      %v8009 = vld [vmem:[%s296 + $0x10] sm:$0xc]
      %v8010 = vld [vmem:[%s296 + $0x14] sm:$0xf]
      %v8011 = vld [vmem:[%s296 + $0x18] sm:$0x3]
      %v8012 = vld [vmem:[%s296 + $0x2c] sm:$0xc]
      %v8013 = vld [vmem:[%s296 + $0x30] sm:$0xf]
      %v8014 = vld [vmem:[%s296 + $0x34] sm:$0x3]
      %v8015 = vld [vmem:[%s296 + $0x48] sm:$0xc]
      %v8016 = vld [vmem:[%s296 + $0x4c] sm:$0xf]
      %v8017 = vld [vmem:[%s296 + $0x50] sm:$0x3]
      %v8018 = vld [vmem:[%s296 + $0x64] sm:$0xc]
      %v8019 = vld [vmem:[%s296 + $0x68] sm:$0xf]
      %v8020 = vld [vmem:[%s296 + $0x6c] sm:$0x3]
      %v8021 = vld [vmem:[%s296 + $0x80] sm:$0xc]
      %v8022 = vld [vmem:[%s296 + $0x84] sm:$0xf]
      %v8023 = vld [vmem:[%s296 + $0x88] sm:$0x3]
      %v8024 = vld [vmem:[%s296 + $0x9c] sm:$0xc]
      %v8025 = vld [vmem:[%s296 + $0xa0] sm:$0xf]
      %v8026 = vld [vmem:[%s296 + $0xa4] sm:$0x3]
      %v8027 = vld [vmem:[%s296 + $0xb8] sm:$0xc]
      %v8028 = vld [vmem:[%s296 + $0xbc] sm:$0xf]
      %v8029 = vld [vmem:[%s296 + $0xc0] sm:$0x3]
      %v8030 = vld [vmem:[%s296 + $0xd4] sm:$0xc]
      %v8031 = vld [vmem:[%s296 + $0xd8] sm:$0xf]
      %v8032 = vld [vmem:[%s296 + $0xdc] sm:$0x3]
      %v8057 = vrot.slane %v8009, 6
      %v8058 = vrot.slane %v8057, 4
      %v8059 = vrot.slane %v8010, 6
      %v8060 = vsel %vm795, %v8058, %v8059
      %v8061 = vrot.slane %v8059, 4
      %v8062 = vrot.slane %v8011, 6
      %v8063 = vsel %vm795, %v8061, %v8062
      %v8064 = vrot.slane %v8012, 6
      %v8065 = vrot.slane %v8064, 4
      %v8066 = vrot.slane %v8013, 6
      %v8067 = vsel %vm795, %v8065, %v8066
      %v8068 = vrot.slane %v8066, 4
      %v8069 = vrot.slane %v8014, 6
      %v8070 = vsel %vm795, %v8068, %v8069
      %v8071 = vrot.slane %v8015, 6
      %v8072 = vrot.slane %v8071, 4
      %v8073 = vrot.slane %v8016, 6
      %v8074 = vsel %vm795, %v8072, %v8073
      %v8075 = vrot.slane %v8073, 4
      %v8076 = vrot.slane %v8017, 6
      %v8077 = vsel %vm795, %v8075, %v8076
      %v8078 = vrot.slane %v8018, 6
      %v8079 = vrot.slane %v8078, 4
      %v8080 = vrot.slane %v8019, 6
      %v8081 = vsel %vm795, %v8079, %v8080
      %v8082 = vrot.slane %v8080, 4
      %v8083 = vrot.slane %v8020, 6
      %v8084 = vsel %vm795, %v8082, %v8083
      %v8085 = vrot.slane %v8021, 6
      %v8086 = vrot.slane %v8085, 4
      %v8087 = vrot.slane %v8022, 6
      %v8088 = vsel %vm795, %v8086, %v8087
      %v8089 = vrot.slane %v8087, 4
      %v8090 = vrot.slane %v8023, 6
      %v8091 = vsel %vm795, %v8089, %v8090
      %v8092 = vrot.slane %v8024, 6
      %v8093 = vrot.slane %v8092, 4
      %v8094 = vrot.slane %v8025, 6
      %v8095 = vsel %vm795, %v8093, %v8094
      %v8096 = vrot.slane %v8094, 4
      %v8097 = vrot.slane %v8026, 6
      %v8098 = vsel %vm795, %v8096, %v8097
      %v8099 = vrot.slane %v8027, 6
      %v8100 = vrot.slane %v8099, 4
      %v8101 = vrot.slane %v8028, 6
      %v8102 = vsel %vm795, %v8100, %v8101
      %v8103 = vrot.slane %v8101, 4
      %v8104 = vrot.slane %v8029, 6
      %v8105 = vsel %vm795, %v8103, %v8104
      %v8106 = vrot.slane %v8030, 6
      %v8107 = vrot.slane %v8106, 4
      %v8108 = vrot.slane %v8031, 6
      %v8109 = vsel %vm795, %v8107, %v8108
      %v8110 = vrot.slane %v8108, 4
      %v8111 = vrot.slane %v8032, 6
      %v8112 = vsel %vm795, %v8110, %v8111
      %s8113 = scalar_lea.vmem %s2, 368
      %v8114 = vld [vmem:[%s8113] sm:$0xf]
      %v8115 = vld [vmem:[%s8113 + $0x4] sm:$0xf]
      %v8116 = vld [vmem:[%s8113 + $0x8] sm:$0xf]
      %v8117 = vld [vmem:[%s8113 + $0xc] sm:$0xf]
      %v8118 = vunpack.c.l.b16 %v8060
      %v8119 = vunpack.c.l.b16 %v8063
      %v8120 = vunpack.c.l.b16 %v8067
      %v8121 = vunpack.c.l.b16 %v8070
      %v8122 = vunpack.c.l.b16 %v8074
      %v8123 = vunpack.c.l.b16 %v8077
      %v8124 = vunpack.c.l.b16 %v8081
      %v8125 = vunpack.c.l.b16 %v8084
      %v8126 = vunpack.c.l.b16 %v8088
      %v8127 = vunpack.c.l.b16 %v8091
      %v8128 = vunpack.c.l.b16 %v8095
      %v8129 = vunpack.c.l.b16 %v8098
      %v8130 = vunpack.c.l.b16 %v8102
      %v8131 = vunpack.c.l.b16 %v8105
      %v8132 = vunpack.c.l.b16 %v8109
      %v8133 = vunpack.c.l.b16 %v8112
      %v8134 = vpack.c.b16 %v8119, %v8118
      %v8135 = vpack.c.b16 %v8121, %v8120
      %v8136 = vpack.c.b16 %v8123, %v8122
      %v8137 = vpack.c.b16 %v8125, %v8124
      %v8138 = vpack.c.b16 %v8127, %v8126
      %v8139 = vpack.c.b16 %v8129, %v8128
      %v8140 = vpack.c.b16 %v8131, %v8130
      %v8141 = vpack.c.b16 %v8133, %v8132
      %v8146 = vunpack.c.l.b16 %v8114
      %v8147 = vunpack.c.l.b16 %v8115
      %v8148 = vunpack.c.l.b16 %v8116
      %v8149 = vunpack.c.l.b16 %v8117
      %v8150 = vpack.c.b16 %v8147, %v8146
      %v8151 = vpack.c.b16 %v8149, %v8148
      %v8155 = vsel %vm449, %v8134, 0
      %v8158 = vsel %vm449, %v8135, 0
      %v8161 = vsel %vm449, %v8136, 0
      %v8164 = vsel %vm449, %v8137, 0
      %v8167 = vsel %vm449, %v8138, 0
      %v8170 = vsel %vm449, %v8139, 0
      %v8173 = vsel %vm449, %v8140, 0
      %v8176 = vsel %vm449, %v8141, 0
      %8178 = vmatprep.subr.bf16.mxu0 0
      %8179 = vmatpush1.bf16.msra.mxu0 0
      %8180 = vmatprep.subr.bf16.mxu0 0
      %8181 = vmatpush1.bf16.msra.mxu0 0
      %8182 = vmatprep.subr.bf16.mxu0 0
      %8183 = vmatpush1.bf16.msra.mxu0 0
      %8184 = vmatprep.subr.bf16.mxu0 0
      %8185 = vmatpush1.bf16.msra.mxu0 0
      %8186 = vmatprep.subr.bf16.mxu0 0
      %8187 = vmatpush1.bf16.msra.mxu0 0
      %8188 = vmatprep.subr.bf16.mxu0 0
      %8189 = vmatpush1.bf16.msra.mxu0 0
      %8190 = vmatprep.subr.bf16.mxu0 0
      %8191 = vmatpush1.bf16.msra.mxu0 %v8151
      %8192 = vmatprep.subr.bf16.mxu0 0
      %8193 = vmatpush1.bf16.msra.mxu0 %v8150
      %8194 = vmatprep.subr.bf16.mxu0 0
      %8195 = vmatpush2.bf16.msra.mxu0 0
      %8196 = vmatprep.subr.bf16.mxu0 0
      %8197 = vmatpush2.bf16.msra.mxu0 0
      %8198 = vmatprep.subr.bf16.mxu0 0
      %8199 = vmatpush2.bf16.msra.mxu0 0
      %8200 = vmatprep.subr.bf16.mxu0 0
      %8201 = vmatpush2.bf16.msra.mxu0 0
      %8202 = vmatprep.subr.bf16.mxu0 0
      %8203 = vmatpush2.bf16.msra.mxu0 0
      %8204 = vmatprep.subr.bf16.mxu0 0
      %8205 = vmatpush2.bf16.msra.mxu0 0
      %8206 = vmatprep.subr.bf16.mxu0 0
      %8207 = vmatpush2.bf16.msra.mxu0 0
      %8208 = vmatprep.subr.bf16.mxu0 0
      %8209 = vmatpush2.bf16.msra.mxu0 0
      %8210 = vmatprep.mubr.bf16.mxu0 0
      %8211 = vmatmul.mubr.bf16.gmra.mxu0 %v8155
      %v8212 = vpop.f32.mrf.mxu0
      %v8213 = vadd.f32 0.0, %v8212
      %v8214 = vpop.f32.mrf.mxu0
      %v8215 = vpop.f32.mrf.mxu0
      %v8216 = vadd.f32 0.0, %v8215
      %v8217 = vpop.f32.mrf.mxu0
      %8218 = vmatprep.mubr.bf16.mxu0 0
      %8219 = vmatmul.mubr.bf16.gmra.mxu0 %v8158
      %v8220 = vpop.f32.mrf.mxu0
      %v8221 = vadd.f32 0.0, %v8220
      %v8222 = vpop.f32.mrf.mxu0
      %v8223 = vpop.f32.mrf.mxu0
      %v8224 = vadd.f32 0.0, %v8223
      %v8225 = vpop.f32.mrf.mxu0
      %8226 = vmatprep.mubr.bf16.mxu0 0
      %8227 = vmatmul.mubr.bf16.gmra.mxu0 %v8161
      %v8228 = vpop.f32.mrf.mxu0
      %v8229 = vadd.f32 0.0, %v8228
      %v8230 = vpop.f32.mrf.mxu0
      %v8231 = vpop.f32.mrf.mxu0
      %v8232 = vadd.f32 0.0, %v8231
      %v8233 = vpop.f32.mrf.mxu0
      %8234 = vmatprep.mubr.bf16.mxu0 0
      %8235 = vmatmul.mubr.bf16.gmra.mxu0 %v8164
      %v8236 = vpop.f32.mrf.mxu0
      %v8237 = vadd.f32 0.0, %v8236
      %v8238 = vpop.f32.mrf.mxu0
      %v8239 = vpop.f32.mrf.mxu0
      %v8240 = vadd.f32 0.0, %v8239
      %v8241 = vpop.f32.mrf.mxu0
      %8242 = vmatprep.mubr.bf16.mxu0 0
      %8243 = vmatmul.mubr.bf16.gmra.mxu0 %v8167
      %v8244 = vpop.f32.mrf.mxu0
      %v8245 = vadd.f32 0.0, %v8244
      %v8246 = vpop.f32.mrf.mxu0
      %v8247 = vpop.f32.mrf.mxu0
      %v8248 = vadd.f32 0.0, %v8247
      %v8249 = vpop.f32.mrf.mxu0
      %8250 = vmatprep.mubr.bf16.mxu0 0
      %8251 = vmatmul.mubr.bf16.gmra.mxu0 %v8170
      %v8252 = vpop.f32.mrf.mxu0
      %v8253 = vadd.f32 0.0, %v8252
      %v8254 = vpop.f32.mrf.mxu0
      %v8255 = vpop.f32.mrf.mxu0
      %v8256 = vadd.f32 0.0, %v8255
      %v8257 = vpop.f32.mrf.mxu0
      %8258 = vmatprep.mubr.bf16.mxu0 0
      %8259 = vmatmul.mubr.bf16.gmra.mxu0 %v8173
      %v8260 = vpop.f32.mrf.mxu0
      %v8261 = vadd.f32 0.0, %v8260
      %v8262 = vpop.f32.mrf.mxu0
      %v8263 = vpop.f32.mrf.mxu0
      %v8264 = vadd.f32 0.0, %v8263
      %v8265 = vpop.f32.mrf.mxu0
      %8266 = vmatprep.mubr.bf16.mxu0 0
      %8267 = vmatmul.mubr.bf16.gmra.mxu0 %v8176
      %v8268 = vpop.f32.mrf.mxu0
      %v8269 = vadd.f32 0.0, %v8268
      %v8270 = vpop.f32.mrf.mxu0
      %v8271 = vpop.f32.mrf.mxu0
      %v8272 = vadd.f32 0.0, %v8271
      %v8273 = vpop.f32.mrf.mxu0
      %8274 = vdwg.mxu0
      %v8275 = vld [vmem:[#allocation2] sm:$0xff]
      %v8276 = vld [vmem:[#allocation2 + $0x8] sm:$0xff]
      %v8277 = vld [vmem:[#allocation2 + $0x10] sm:$0xff]
      %v8278 = vld [vmem:[#allocation2 + $0x18] sm:$0xff]
      %v8279 = vld [vmem:[#allocation2 + $0x20] sm:$0xff]
      %v8280 = vld [vmem:[#allocation2 + $0x28] sm:$0xff]
      %v8281 = vld [vmem:[#allocation2 + $0x30] sm:$0xff]
      %v8282 = vld [vmem:[#allocation2 + $0x38] sm:$0xff]
      %v8283 = vld [vmem:[#allocation2 + $0x40] sm:$0xff]
      %v8284 = vld [vmem:[#allocation2 + $0x48] sm:$0xff]
      %v8285 = vld [vmem:[#allocation2 + $0x50] sm:$0xff]
      %v8286 = vld [vmem:[#allocation2 + $0x58] sm:$0xff]
      %v8287 = vld [vmem:[#allocation2 + $0x60] sm:$0xff]
      %v8288 = vld [vmem:[#allocation2 + $0x68] sm:$0xff]
      %v8289 = vld [vmem:[#allocation2 + $0x70] sm:$0xff]
      %v8290 = vld [vmem:[#allocation2 + $0x78] sm:$0xff]
      %v8291 = vadd.f32 %v8275, %v8213
      %v8292 = vadd.f32 %v8276, %v8216
      %v8293 = vadd.f32 %v8277, %v8221
      %v8294 = vadd.f32 %v8278, %v8224
      %v8295 = vadd.f32 %v8279, %v8229
      %v8296 = vadd.f32 %v8280, %v8232
      %v8297 = vadd.f32 %v8281, %v8237
      %v8298 = vadd.f32 %v8282, %v8240
      %v8299 = vadd.f32 %v8283, %v8245
      %v8300 = vadd.f32 %v8284, %v8248
      %v8301 = vadd.f32 %v8285, %v8253
      %v8302 = vadd.f32 %v8286, %v8256
      %v8303 = vadd.f32 %v8287, %v8261
      %v8304 = vadd.f32 %v8288, %v8264
      %v8305 = vadd.f32 %v8289, %v8269
      %v8306 = vadd.f32 %v8290, %v8272
      %8307 = vst.msk [vmem:[#allocation2] sm:$0xff] %vm603, %v8291
      %8308 = vst.msk [vmem:[#allocation2 + $0x8] sm:$0xff] %vm603, %v8292
      %8309 = vst.msk [vmem:[#allocation2 + $0x10] sm:$0xff] %vm603, %v8293
      %8310 = vst.msk [vmem:[#allocation2 + $0x18] sm:$0xff] %vm603, %v8294
      %8311 = vst.msk [vmem:[#allocation2 + $0x20] sm:$0xff] %vm603, %v8295
      %8312 = vst.msk [vmem:[#allocation2 + $0x28] sm:$0xff] %vm603, %v8296
      %8313 = vst.msk [vmem:[#allocation2 + $0x30] sm:$0xff] %vm603, %v8297
      %8314 = vst.msk [vmem:[#allocation2 + $0x38] sm:$0xff] %vm603, %v8298
      %8315 = vst.msk [vmem:[#allocation2 + $0x40] sm:$0xff] %vm603, %v8299
      %8316 = vst.msk [vmem:[#allocation2 + $0x48] sm:$0xff] %vm603, %v8300
      %8317 = vst.msk [vmem:[#allocation2 + $0x50] sm:$0xff] %vm603, %v8301
      %8318 = vst.msk [vmem:[#allocation2 + $0x58] sm:$0xff] %vm603, %v8302
      %8319 = vst.msk [vmem:[#allocation2 + $0x60] sm:$0xff] %vm603, %v8303
      %8320 = vst.msk [vmem:[#allocation2 + $0x68] sm:$0xff] %vm603, %v8304
      %8321 = vst.msk [vmem:[#allocation2 + $0x70] sm:$0xff] %vm603, %v8305
      %8322 = vst.msk [vmem:[#allocation2 + $0x78] sm:$0xff] %vm603, %v8306
      %s8323 = sadd.s32 %s292, 36
      %s8324 = smul.u32 %s8323, 7
      %s8325 = smul.addr %s8324, 4
      %s8326 = scalar_lea.vmem %s276, %s8325
      %v8327 = vld [vmem:[%s8326] sm:$0xf]
      %v8328 = vld [vmem:[%s8326 + $0x4] sm:$0xf]
      %v8329 = vld [vmem:[%s8326 + $0x1c] sm:$0xf]
      %v8330 = vld [vmem:[%s8326 + $0x20] sm:$0xf]
      %v8331 = vld [vmem:[%s8326 + $0x38] sm:$0xf]
      %v8332 = vld [vmem:[%s8326 + $0x3c] sm:$0xf]
      %v8333 = vld [vmem:[%s8326 + $0x54] sm:$0xf]
      %v8334 = vld [vmem:[%s8326 + $0x58] sm:$0xf]
      %v8335 = vld [vmem:[%s8326 + $0x70] sm:$0xf]
      %v8336 = vld [vmem:[%s8326 + $0x74] sm:$0xf]
      %v8337 = vld [vmem:[%s8326 + $0x8c] sm:$0xf]
      %v8338 = vld [vmem:[%s8326 + $0x90] sm:$0xf]
      %v8339 = vld [vmem:[%s8326 + $0xa8] sm:$0xf]
      %v8340 = vld [vmem:[%s8326 + $0xac] sm:$0xf]
      %v8341 = vld [vmem:[%s8326 + $0xc4] sm:$0xf]
      %v8342 = vld [vmem:[%s8326 + $0xc8] sm:$0xf]
      %s8343 = scalar_lea.vmem %s2, 384
      %v8344 = vld [vmem:[%s8343] sm:$0xf]
      %v8345 = vld [vmem:[%s8343 + $0x4] sm:$0xf]
      %v8346 = vld [vmem:[%s8343 + $0x8] sm:$0xf]
      %v8347 = vld [vmem:[%s8343 + $0xc] sm:$0xf]
      %v8364 = vunpack.c.l.b16 %v8327
      %v8365 = vunpack.c.l.b16 %v8328
      %v8366 = vunpack.c.l.b16 %v8329
      %v8367 = vunpack.c.l.b16 %v8330
      %v8368 = vunpack.c.l.b16 %v8331
      %v8369 = vunpack.c.l.b16 %v8332
      %v8370 = vunpack.c.l.b16 %v8333
      %v8371 = vunpack.c.l.b16 %v8334
      %v8372 = vunpack.c.l.b16 %v8335
      %v8373 = vunpack.c.l.b16 %v8336
      %v8374 = vunpack.c.l.b16 %v8337
      %v8375 = vunpack.c.l.b16 %v8338
      %v8376 = vunpack.c.l.b16 %v8339
      %v8377 = vunpack.c.l.b16 %v8340
      %v8378 = vunpack.c.l.b16 %v8341
      %v8379 = vunpack.c.l.b16 %v8342
      %v8380 = vpack.c.b16 %v8365, %v8364
      %v8381 = vpack.c.b16 %v8367, %v8366
      %v8382 = vpack.c.b16 %v8369, %v8368
      %v8383 = vpack.c.b16 %v8371, %v8370
      %v8384 = vpack.c.b16 %v8373, %v8372
      %v8385 = vpack.c.b16 %v8375, %v8374
      %v8386 = vpack.c.b16 %v8377, %v8376
      %v8387 = vpack.c.b16 %v8379, %v8378
      %v8392 = vunpack.c.l.b16 %v8344
      %v8393 = vunpack.c.l.b16 %v8345
      %v8394 = vunpack.c.l.b16 %v8346
      %v8395 = vunpack.c.l.b16 %v8347
      %v8396 = vpack.c.b16 %v8393, %v8392
      %v8397 = vpack.c.b16 %v8395, %v8394
      %v8401 = vsel %vm449, %v8380, 0
      %v8404 = vsel %vm449, %v8381, 0
      %v8407 = vsel %vm449, %v8382, 0
      %v8410 = vsel %vm449, %v8383, 0
      %v8413 = vsel %vm449, %v8384, 0
      %v8416 = vsel %vm449, %v8385, 0
      %v8419 = vsel %vm449, %v8386, 0
      %v8422 = vsel %vm449, %v8387, 0
      %8424 = vmatprep.subr.bf16.mxu0 0
      %8425 = vmatpush1.bf16.msra.mxu0 0
      %8426 = vmatprep.subr.bf16.mxu0 0
      %8427 = vmatpush1.bf16.msra.mxu0 0
      %8428 = vmatprep.subr.bf16.mxu0 0
      %8429 = vmatpush1.bf16.msra.mxu0 0
      %8430 = vmatprep.subr.bf16.mxu0 0
      %8431 = vmatpush1.bf16.msra.mxu0 0
      %8432 = vmatprep.subr.bf16.mxu0 0
      %8433 = vmatpush1.bf16.msra.mxu0 0
      %8434 = vmatprep.subr.bf16.mxu0 0
      %8435 = vmatpush1.bf16.msra.mxu0 0
      %8436 = vmatprep.subr.bf16.mxu0 0
      %8437 = vmatpush1.bf16.msra.mxu0 %v8397
      %8438 = vmatprep.subr.bf16.mxu0 0
      %8439 = vmatpush1.bf16.msra.mxu0 %v8396
      %8440 = vmatprep.subr.bf16.mxu0 0
      %8441 = vmatpush2.bf16.msra.mxu0 0
      %8442 = vmatprep.subr.bf16.mxu0 0
      %8443 = vmatpush2.bf16.msra.mxu0 0
      %8444 = vmatprep.subr.bf16.mxu0 0
      %8445 = vmatpush2.bf16.msra.mxu0 0
      %8446 = vmatprep.subr.bf16.mxu0 0
      %8447 = vmatpush2.bf16.msra.mxu0 0
      %8448 = vmatprep.subr.bf16.mxu0 0
      %8449 = vmatpush2.bf16.msra.mxu0 0
      %8450 = vmatprep.subr.bf16.mxu0 0
      %8451 = vmatpush2.bf16.msra.mxu0 0
      %8452 = vmatprep.subr.bf16.mxu0 0
      %8453 = vmatpush2.bf16.msra.mxu0 0
      %8454 = vmatprep.subr.bf16.mxu0 0
      %8455 = vmatpush2.bf16.msra.mxu0 0
      %8456 = vmatprep.mubr.bf16.mxu0 0
      %8457 = vmatmul.mubr.bf16.gmra.mxu0 %v8401
      %v8458 = vpop.f32.mrf.mxu0
      %v8459 = vadd.f32 0.0, %v8458
      %v8460 = vpop.f32.mrf.mxu0
      %v8461 = vpop.f32.mrf.mxu0
      %v8462 = vadd.f32 0.0, %v8461
      %v8463 = vpop.f32.mrf.mxu0
      %8464 = vmatprep.mubr.bf16.mxu0 0
      %8465 = vmatmul.mubr.bf16.gmra.mxu0 %v8404
      %v8466 = vpop.f32.mrf.mxu0
      %v8467 = vadd.f32 0.0, %v8466
      %v8468 = vpop.f32.mrf.mxu0
      %v8469 = vpop.f32.mrf.mxu0
      %v8470 = vadd.f32 0.0, %v8469
      %v8471 = vpop.f32.mrf.mxu0
      %8472 = vmatprep.mubr.bf16.mxu0 0
      %8473 = vmatmul.mubr.bf16.gmra.mxu0 %v8407
      %v8474 = vpop.f32.mrf.mxu0
      %v8475 = vadd.f32 0.0, %v8474
      %v8476 = vpop.f32.mrf.mxu0
      %v8477 = vpop.f32.mrf.mxu0
      %v8478 = vadd.f32 0.0, %v8477
      %v8479 = vpop.f32.mrf.mxu0
      %8480 = vmatprep.mubr.bf16.mxu0 0
      %8481 = vmatmul.mubr.bf16.gmra.mxu0 %v8410
      %v8482 = vpop.f32.mrf.mxu0
      %v8483 = vadd.f32 0.0, %v8482
      %v8484 = vpop.f32.mrf.mxu0
      %v8485 = vpop.f32.mrf.mxu0
      %v8486 = vadd.f32 0.0, %v8485
      %v8487 = vpop.f32.mrf.mxu0
      %8488 = vmatprep.mubr.bf16.mxu0 0
      %8489 = vmatmul.mubr.bf16.gmra.mxu0 %v8413
      %v8490 = vpop.f32.mrf.mxu0
      %v8491 = vadd.f32 0.0, %v8490
      %v8492 = vpop.f32.mrf.mxu0
      %v8493 = vpop.f32.mrf.mxu0
      %v8494 = vadd.f32 0.0, %v8493
      %v8495 = vpop.f32.mrf.mxu0
      %8496 = vmatprep.mubr.bf16.mxu0 0
      %8497 = vmatmul.mubr.bf16.gmra.mxu0 %v8416
      %v8498 = vpop.f32.mrf.mxu0
      %v8499 = vadd.f32 0.0, %v8498
      %v8500 = vpop.f32.mrf.mxu0
      %v8501 = vpop.f32.mrf.mxu0
      %v8502 = vadd.f32 0.0, %v8501
      %v8503 = vpop.f32.mrf.mxu0
      %8504 = vmatprep.mubr.bf16.mxu0 0
      %8505 = vmatmul.mubr.bf16.gmra.mxu0 %v8419
      %v8506 = vpop.f32.mrf.mxu0
      %v8507 = vadd.f32 0.0, %v8506
      %v8508 = vpop.f32.mrf.mxu0
      %v8509 = vpop.f32.mrf.mxu0
      %v8510 = vadd.f32 0.0, %v8509
      %v8511 = vpop.f32.mrf.mxu0
      %8512 = vmatprep.mubr.bf16.mxu0 0
      %8513 = vmatmul.mubr.bf16.gmra.mxu0 %v8422
      %v8514 = vpop.f32.mrf.mxu0
      %v8515 = vadd.f32 0.0, %v8514
      %v8516 = vpop.f32.mrf.mxu0
      %v8517 = vpop.f32.mrf.mxu0
      %v8518 = vadd.f32 0.0, %v8517
      %v8519 = vpop.f32.mrf.mxu0
      %8520 = vdwg.mxu0
      %v8521 = vld [vmem:[#allocation2] sm:$0xff]
      %v8522 = vld [vmem:[#allocation2 + $0x8] sm:$0xff]
      %v8523 = vld [vmem:[#allocation2 + $0x10] sm:$0xff]
      %v8524 = vld [vmem:[#allocation2 + $0x18] sm:$0xff]
      %v8525 = vld [vmem:[#allocation2 + $0x20] sm:$0xff]
      %v8526 = vld [vmem:[#allocation2 + $0x28] sm:$0xff]
      %v8527 = vld [vmem:[#allocation2 + $0x30] sm:$0xff]
      %v8528 = vld [vmem:[#allocation2 + $0x38] sm:$0xff]
      %v8529 = vld [vmem:[#allocation2 + $0x40] sm:$0xff]
      %v8530 = vld [vmem:[#allocation2 + $0x48] sm:$0xff]
      %v8531 = vld [vmem:[#allocation2 + $0x50] sm:$0xff]
      %v8532 = vld [vmem:[#allocation2 + $0x58] sm:$0xff]
      %v8533 = vld [vmem:[#allocation2 + $0x60] sm:$0xff]
      %v8534 = vld [vmem:[#allocation2 + $0x68] sm:$0xff]
      %v8535 = vld [vmem:[#allocation2 + $0x70] sm:$0xff]
      %v8536 = vld [vmem:[#allocation2 + $0x78] sm:$0xff]
      %v8537 = vadd.f32 %v8521, %v8459
      %v8538 = vadd.f32 %v8522, %v8462
      %v8539 = vadd.f32 %v8523, %v8467
      %v8540 = vadd.f32 %v8524, %v8470
      %v8541 = vadd.f32 %v8525, %v8475
      %v8542 = vadd.f32 %v8526, %v8478
      %v8543 = vadd.f32 %v8527, %v8483
      %v8544 = vadd.f32 %v8528, %v8486
      %v8545 = vadd.f32 %v8529, %v8491
      %v8546 = vadd.f32 %v8530, %v8494
      %v8547 = vadd.f32 %v8531, %v8499
      %v8548 = vadd.f32 %v8532, %v8502
      %v8549 = vadd.f32 %v8533, %v8507
      %v8550 = vadd.f32 %v8534, %v8510
      %v8551 = vadd.f32 %v8535, %v8515
      %v8552 = vadd.f32 %v8536, %v8518
      %8553 = vst.msk [vmem:[#allocation2] sm:$0xff] %vm603, %v8537
      %8554 = vst.msk [vmem:[#allocation2 + $0x8] sm:$0xff] %vm603, %v8538
      %8555 = vst.msk [vmem:[#allocation2 + $0x10] sm:$0xff] %vm603, %v8539
      %8556 = vst.msk [vmem:[#allocation2 + $0x18] sm:$0xff] %vm603, %v8540
      %8557 = vst.msk [vmem:[#allocation2 + $0x20] sm:$0xff] %vm603, %v8541
      %8558 = vst.msk [vmem:[#allocation2 + $0x28] sm:$0xff] %vm603, %v8542
      %8559 = vst.msk [vmem:[#allocation2 + $0x30] sm:$0xff] %vm603, %v8543
      %8560 = vst.msk [vmem:[#allocation2 + $0x38] sm:$0xff] %vm603, %v8544
      %8561 = vst.msk [vmem:[#allocation2 + $0x40] sm:$0xff] %vm603, %v8545
      %8562 = vst.msk [vmem:[#allocation2 + $0x48] sm:$0xff] %vm603, %v8546
      %8563 = vst.msk [vmem:[#allocation2 + $0x50] sm:$0xff] %vm603, %v8547
      %8564 = vst.msk [vmem:[#allocation2 + $0x58] sm:$0xff] %vm603, %v8548
      %8565 = vst.msk [vmem:[#allocation2 + $0x60] sm:$0xff] %vm603, %v8549
      %8566 = vst.msk [vmem:[#allocation2 + $0x68] sm:$0xff] %vm603, %v8550
      %8567 = vst.msk [vmem:[#allocation2 + $0x70] sm:$0xff] %vm603, %v8551
      %8568 = vst.msk [vmem:[#allocation2 + $0x78] sm:$0xff] %vm603, %v8552
      %v8569 = vld [vmem:[%s8326 + $0x8] sm:$0xe]
      %v8570 = vld [vmem:[%s8326 + $0xc] sm:$0xf]
      %v8571 = vld [vmem:[%s8326 + $0x10] sm:$0x1]
      %v8572 = vld [vmem:[%s8326 + $0x24] sm:$0xe]
      %v8573 = vld [vmem:[%s8326 + $0x28] sm:$0xf]
      %v8574 = vld [vmem:[%s8326 + $0x2c] sm:$0x1]
      %v8575 = vld [vmem:[%s8326 + $0x40] sm:$0xe]
      %v8576 = vld [vmem:[%s8326 + $0x44] sm:$0xf]
      %v8577 = vld [vmem:[%s8326 + $0x48] sm:$0x1]
      %v8578 = vld [vmem:[%s8326 + $0x5c] sm:$0xe]
      %v8579 = vld [vmem:[%s8326 + $0x60] sm:$0xf]
      %v8580 = vld [vmem:[%s8326 + $0x64] sm:$0x1]
      %v8581 = vld [vmem:[%s8326 + $0x78] sm:$0xe]
      %v8582 = vld [vmem:[%s8326 + $0x7c] sm:$0xf]
      %v8583 = vld [vmem:[%s8326 + $0x80] sm:$0x1]
      %v8584 = vld [vmem:[%s8326 + $0x94] sm:$0xe]
      %v8585 = vld [vmem:[%s8326 + $0x98] sm:$0xf]
      %v8586 = vld [vmem:[%s8326 + $0x9c] sm:$0x1]
      %v8587 = vld [vmem:[%s8326 + $0xb0] sm:$0xe]
      %v8588 = vld [vmem:[%s8326 + $0xb4] sm:$0xf]
      %v8589 = vld [vmem:[%s8326 + $0xb8] sm:$0x1]
      %v8590 = vld [vmem:[%s8326 + $0xcc] sm:$0xe]
      %v8591 = vld [vmem:[%s8326 + $0xd0] sm:$0xf]
      %v8592 = vld [vmem:[%s8326 + $0xd4] sm:$0x1]
      %v8617 = vrot.slane %v8569, 5
      %v8618 = vrot.slane %v8617, 4
      %v8619 = vrot.slane %v8570, 5
      %v8620 = vsel %vm347, %v8618, %v8619
      %v8621 = vrot.slane %v8619, 4
      %v8622 = vrot.slane %v8571, 5
      %v8623 = vsel %vm347, %v8621, %v8622
      %v8624 = vrot.slane %v8572, 5
      %v8625 = vrot.slane %v8624, 4
      %v8626 = vrot.slane %v8573, 5
      %v8627 = vsel %vm347, %v8625, %v8626
      %v8628 = vrot.slane %v8626, 4
      %v8629 = vrot.slane %v8574, 5
      %v8630 = vsel %vm347, %v8628, %v8629
      %v8631 = vrot.slane %v8575, 5
      %v8632 = vrot.slane %v8631, 4
      %v8633 = vrot.slane %v8576, 5
      %v8634 = vsel %vm347, %v8632, %v8633
      %v8635 = vrot.slane %v8633, 4
      %v8636 = vrot.slane %v8577, 5
      %v8637 = vsel %vm347, %v8635, %v8636
      %v8638 = vrot.slane %v8578, 5
      %v8639 = vrot.slane %v8638, 4
      %v8640 = vrot.slane %v8579, 5
      %v8641 = vsel %vm347, %v8639, %v8640
      %v8642 = vrot.slane %v8640, 4
      %v8643 = vrot.slane %v8580, 5
      %v8644 = vsel %vm347, %v8642, %v8643
      %v8645 = vrot.slane %v8581, 5
      %v8646 = vrot.slane %v8645, 4
      %v8647 = vrot.slane %v8582, 5
      %v8648 = vsel %vm347, %v8646, %v8647
      %v8649 = vrot.slane %v8647, 4
      %v8650 = vrot.slane %v8583, 5
      %v8651 = vsel %vm347, %v8649, %v8650
      %v8652 = vrot.slane %v8584, 5
      %v8653 = vrot.slane %v8652, 4
      %v8654 = vrot.slane %v8585, 5
      %v8655 = vsel %vm347, %v8653, %v8654
      %v8656 = vrot.slane %v8654, 4
      %v8657 = vrot.slane %v8586, 5
      %v8658 = vsel %vm347, %v8656, %v8657
      %v8659 = vrot.slane %v8587, 5
      %v8660 = vrot.slane %v8659, 4
      %v8661 = vrot.slane %v8588, 5
      %v8662 = vsel %vm347, %v8660, %v8661
      %v8663 = vrot.slane %v8661, 4
      %v8664 = vrot.slane %v8589, 5
      %v8665 = vsel %vm347, %v8663, %v8664
      %v8666 = vrot.slane %v8590, 5
      %v8667 = vrot.slane %v8666, 4
      %v8668 = vrot.slane %v8591, 5
      %v8669 = vsel %vm347, %v8667, %v8668
      %v8670 = vrot.slane %v8668, 4
      %v8671 = vrot.slane %v8592, 5
      %v8672 = vsel %vm347, %v8670, %v8671
      %s8673 = scalar_lea.vmem %s2, 400
      %v8674 = vld [vmem:[%s8673] sm:$0xf]
      %v8675 = vld [vmem:[%s8673 + $0x4] sm:$0xf]
      %v8676 = vld [vmem:[%s8673 + $0x8] sm:$0xf]
      %v8677 = vld [vmem:[%s8673 + $0xc] sm:$0xf]
      %v8678 = vunpack.c.l.b16 %v8620
      %v8679 = vunpack.c.l.b16 %v8623
      %v8680 = vunpack.c.l.b16 %v8627
      %v8681 = vunpack.c.l.b16 %v8630
      %v8682 = vunpack.c.l.b16 %v8634
      %v8683 = vunpack.c.l.b16 %v8637
      %v8684 = vunpack.c.l.b16 %v8641
      %v8685 = vunpack.c.l.b16 %v8644
      %v8686 = vunpack.c.l.b16 %v8648
      %v8687 = vunpack.c.l.b16 %v8651
      %v8688 = vunpack.c.l.b16 %v8655
      %v8689 = vunpack.c.l.b16 %v8658
      %v8690 = vunpack.c.l.b16 %v8662
      %v8691 = vunpack.c.l.b16 %v8665
      %v8692 = vunpack.c.l.b16 %v8669
      %v8693 = vunpack.c.l.b16 %v8672
      %v8694 = vpack.c.b16 %v8679, %v8678
      %v8695 = vpack.c.b16 %v8681, %v8680
      %v8696 = vpack.c.b16 %v8683, %v8682
      %v8697 = vpack.c.b16 %v8685, %v8684
      %v8698 = vpack.c.b16 %v8687, %v8686
      %v8699 = vpack.c.b16 %v8689, %v8688
      %v8700 = vpack.c.b16 %v8691, %v8690
      %v8701 = vpack.c.b16 %v8693, %v8692
      %v8706 = vunpack.c.l.b16 %v8674
      %v8707 = vunpack.c.l.b16 %v8675
      %v8708 = vunpack.c.l.b16 %v8676
      %v8709 = vunpack.c.l.b16 %v8677
      %v8710 = vpack.c.b16 %v8707, %v8706
      %v8711 = vpack.c.b16 %v8709, %v8708
      %v8715 = vsel %vm449, %v8694, 0
      %v8718 = vsel %vm449, %v8695, 0
      %v8721 = vsel %vm449, %v8696, 0
      %v8724 = vsel %vm449, %v8697, 0
      %v8727 = vsel %vm449, %v8698, 0
      %v8730 = vsel %vm449, %v8699, 0
      %v8733 = vsel %vm449, %v8700, 0
      %v8736 = vsel %vm449, %v8701, 0
      %8738 = vmatprep.subr.bf16.mxu0 0
      %8739 = vmatpush1.bf16.msra.mxu0 0
      %8740 = vmatprep.subr.bf16.mxu0 0
      %8741 = vmatpush1.bf16.msra.mxu0 0
      %8742 = vmatprep.subr.bf16.mxu0 0
      %8743 = vmatpush1.bf16.msra.mxu0 0
      %8744 = vmatprep.subr.bf16.mxu0 0
      %8745 = vmatpush1.bf16.msra.mxu0 0
      %8746 = vmatprep.subr.bf16.mxu0 0
      %8747 = vmatpush1.bf16.msra.mxu0 0
      %8748 = vmatprep.subr.bf16.mxu0 0
      %8749 = vmatpush1.bf16.msra.mxu0 0
      %8750 = vmatprep.subr.bf16.mxu0 0
      %8751 = vmatpush1.bf16.msra.mxu0 %v8711
      %8752 = vmatprep.subr.bf16.mxu0 0
      %8753 = vmatpush1.bf16.msra.mxu0 %v8710
      %8754 = vmatprep.subr.bf16.mxu0 0
      %8755 = vmatpush2.bf16.msra.mxu0 0
      %8756 = vmatprep.subr.bf16.mxu0 0
      %8757 = vmatpush2.bf16.msra.mxu0 0
      %8758 = vmatprep.subr.bf16.mxu0 0
      %8759 = vmatpush2.bf16.msra.mxu0 0
      %8760 = vmatprep.subr.bf16.mxu0 0
      %8761 = vmatpush2.bf16.msra.mxu0 0
      %8762 = vmatprep.subr.bf16.mxu0 0
      %8763 = vmatpush2.bf16.msra.mxu0 0
      %8764 = vmatprep.subr.bf16.mxu0 0
      %8765 = vmatpush2.bf16.msra.mxu0 0
      %8766 = vmatprep.subr.bf16.mxu0 0
      %8767 = vmatpush2.bf16.msra.mxu0 0
      %8768 = vmatprep.subr.bf16.mxu0 0
      %8769 = vmatpush2.bf16.msra.mxu0 0
      %8770 = vmatprep.mubr.bf16.mxu0 0
      %8771 = vmatmul.mubr.bf16.gmra.mxu0 %v8715
      %v8772 = vpop.f32.mrf.mxu0
      %v8773 = vadd.f32 0.0, %v8772
      %v8774 = vpop.f32.mrf.mxu0
      %v8775 = vpop.f32.mrf.mxu0
      %v8776 = vadd.f32 0.0, %v8775
      %v8777 = vpop.f32.mrf.mxu0
      %8778 = vmatprep.mubr.bf16.mxu0 0
      %8779 = vmatmul.mubr.bf16.gmra.mxu0 %v8718
      %v8780 = vpop.f32.mrf.mxu0
      %v8781 = vadd.f32 0.0, %v8780
      %v8782 = vpop.f32.mrf.mxu0
      %v8783 = vpop.f32.mrf.mxu0
      %v8784 = vadd.f32 0.0, %v8783
      %v8785 = vpop.f32.mrf.mxu0
      %8786 = vmatprep.mubr.bf16.mxu0 0
      %8787 = vmatmul.mubr.bf16.gmra.mxu0 %v8721
      %v8788 = vpop.f32.mrf.mxu0
      %v8789 = vadd.f32 0.0, %v8788
      %v8790 = vpop.f32.mrf.mxu0
      %v8791 = vpop.f32.mrf.mxu0
      %v8792 = vadd.f32 0.0, %v8791
      %v8793 = vpop.f32.mrf.mxu0
      %8794 = vmatprep.mubr.bf16.mxu0 0
      %8795 = vmatmul.mubr.bf16.gmra.mxu0 %v8724
      %v8796 = vpop.f32.mrf.mxu0
      %v8797 = vadd.f32 0.0, %v8796
      %v8798 = vpop.f32.mrf.mxu0
      %v8799 = vpop.f32.mrf.mxu0
      %v8800 = vadd.f32 0.0, %v8799
      %v8801 = vpop.f32.mrf.mxu0
      %8802 = vmatprep.mubr.bf16.mxu0 0
      %8803 = vmatmul.mubr.bf16.gmra.mxu0 %v8727
      %v8804 = vpop.f32.mrf.mxu0
      %v8805 = vadd.f32 0.0, %v8804
      %v8806 = vpop.f32.mrf.mxu0
      %v8807 = vpop.f32.mrf.mxu0
      %v8808 = vadd.f32 0.0, %v8807
      %v8809 = vpop.f32.mrf.mxu0
      %8810 = vmatprep.mubr.bf16.mxu0 0
      %8811 = vmatmul.mubr.bf16.gmra.mxu0 %v8730
      %v8812 = vpop.f32.mrf.mxu0
      %v8813 = vadd.f32 0.0, %v8812
      %v8814 = vpop.f32.mrf.mxu0
      %v8815 = vpop.f32.mrf.mxu0
      %v8816 = vadd.f32 0.0, %v8815
      %v8817 = vpop.f32.mrf.mxu0
      %8818 = vmatprep.mubr.bf16.mxu0 0
      %8819 = vmatmul.mubr.bf16.gmra.mxu0 %v8733
      %v8820 = vpop.f32.mrf.mxu0
      %v8821 = vadd.f32 0.0, %v8820
      %v8822 = vpop.f32.mrf.mxu0
      %v8823 = vpop.f32.mrf.mxu0
      %v8824 = vadd.f32 0.0, %v8823
      %v8825 = vpop.f32.mrf.mxu0
      %8826 = vmatprep.mubr.bf16.mxu0 0
      %8827 = vmatmul.mubr.bf16.gmra.mxu0 %v8736
      %v8828 = vpop.f32.mrf.mxu0
      %v8829 = vadd.f32 0.0, %v8828
      %v8830 = vpop.f32.mrf.mxu0
      %v8831 = vpop.f32.mrf.mxu0
      %v8832 = vadd.f32 0.0, %v8831
      %v8833 = vpop.f32.mrf.mxu0
      %8834 = vdwg.mxu0
      %v8835 = vld [vmem:[#allocation2] sm:$0xff]
      %v8836 = vld [vmem:[#allocation2 + $0x8] sm:$0xff]
      %v8837 = vld [vmem:[#allocation2 + $0x10] sm:$0xff]
      %v8838 = vld [vmem:[#allocation2 + $0x18] sm:$0xff]
      %v8839 = vld [vmem:[#allocation2 + $0x20] sm:$0xff]
      %v8840 = vld [vmem:[#allocation2 + $0x28] sm:$0xff]
      %v8841 = vld [vmem:[#allocation2 + $0x30] sm:$0xff]
      %v8842 = vld [vmem:[#allocation2 + $0x38] sm:$0xff]
      %v8843 = vld [vmem:[#allocation2 + $0x40] sm:$0xff]
      %v8844 = vld [vmem:[#allocation2 + $0x48] sm:$0xff]
      %v8845 = vld [vmem:[#allocation2 + $0x50] sm:$0xff]
      %v8846 = vld [vmem:[#allocation2 + $0x58] sm:$0xff]
      %v8847 = vld [vmem:[#allocation2 + $0x60] sm:$0xff]
      %v8848 = vld [vmem:[#allocation2 + $0x68] sm:$0xff]
      %v8849 = vld [vmem:[#allocation2 + $0x70] sm:$0xff]
      %v8850 = vld [vmem:[#allocation2 + $0x78] sm:$0xff]
      %v8851 = vadd.f32 %v8835, %v8773
      %v8852 = vadd.f32 %v8836, %v8776
      %v8853 = vadd.f32 %v8837, %v8781
      %v8854 = vadd.f32 %v8838, %v8784
      %v8855 = vadd.f32 %v8839, %v8789
      %v8856 = vadd.f32 %v8840, %v8792
      %v8857 = vadd.f32 %v8841, %v8797
      %v8858 = vadd.f32 %v8842, %v8800
      %v8859 = vadd.f32 %v8843, %v8805
      %v8860 = vadd.f32 %v8844, %v8808
      %v8861 = vadd.f32 %v8845, %v8813
      %v8862 = vadd.f32 %v8846, %v8816
      %v8863 = vadd.f32 %v8847, %v8821
      %v8864 = vadd.f32 %v8848, %v8824
      %v8865 = vadd.f32 %v8849, %v8829
      %v8866 = vadd.f32 %v8850, %v8832
      %8867 = vst.msk [vmem:[#allocation2] sm:$0xff] %vm603, %v8851
      %8868 = vst.msk [vmem:[#allocation2 + $0x8] sm:$0xff] %vm603, %v8852
      %8869 = vst.msk [vmem:[#allocation2 + $0x10] sm:$0xff] %vm603, %v8853
      %8870 = vst.msk [vmem:[#allocation2 + $0x18] sm:$0xff] %vm603, %v8854
      %8871 = vst.msk [vmem:[#allocation2 + $0x20] sm:$0xff] %vm603, %v8855
      %8872 = vst.msk [vmem:[#allocation2 + $0x28] sm:$0xff] %vm603, %v8856
      %8873 = vst.msk [vmem:[#allocation2 + $0x30] sm:$0xff] %vm603, %v8857
      %8874 = vst.msk [vmem:[#allocation2 + $0x38] sm:$0xff] %vm603, %v8858
      %8875 = vst.msk [vmem:[#allocation2 + $0x40] sm:$0xff] %vm603, %v8859
      %8876 = vst.msk [vmem:[#allocation2 + $0x48] sm:$0xff] %vm603, %v8860
      %8877 = vst.msk [vmem:[#allocation2 + $0x50] sm:$0xff] %vm603, %v8861
      %8878 = vst.msk [vmem:[#allocation2 + $0x58] sm:$0xff] %vm603, %v8862
      %8879 = vst.msk [vmem:[#allocation2 + $0x60] sm:$0xff] %vm603, %v8863
      %8880 = vst.msk [vmem:[#allocation2 + $0x68] sm:$0xff] %vm603, %v8864
      %8881 = vst.msk [vmem:[#allocation2 + $0x70] sm:$0xff] %vm603, %v8865
      %8882 = vst.msk [vmem:[#allocation2 + $0x78] sm:$0xff] %vm603, %v8866
      %v8883 = vld [vmem:[%s8326 + $0x10] sm:$0xc]
      %v8884 = vld [vmem:[%s8326 + $0x14] sm:$0xf]
      %v8885 = vld [vmem:[%s8326 + $0x18] sm:$0x3]
      %v8886 = vld [vmem:[%s8326 + $0x2c] sm:$0xc]
      %v8887 = vld [vmem:[%s8326 + $0x30] sm:$0xf]
      %v8888 = vld [vmem:[%s8326 + $0x34] sm:$0x3]
      %v8889 = vld [vmem:[%s8326 + $0x48] sm:$0xc]
      %v8890 = vld [vmem:[%s8326 + $0x4c] sm:$0xf]
      %v8891 = vld [vmem:[%s8326 + $0x50] sm:$0x3]
      %v8892 = vld [vmem:[%s8326 + $0x64] sm:$0xc]
      %v8893 = vld [vmem:[%s8326 + $0x68] sm:$0xf]
      %v8894 = vld [vmem:[%s8326 + $0x6c] sm:$0x3]
      %v8895 = vld [vmem:[%s8326 + $0x80] sm:$0xc]
      %v8896 = vld [vmem:[%s8326 + $0x84] sm:$0xf]
      %v8897 = vld [vmem:[%s8326 + $0x88] sm:$0x3]
      %v8898 = vld [vmem:[%s8326 + $0x9c] sm:$0xc]
      %v8899 = vld [vmem:[%s8326 + $0xa0] sm:$0xf]
      %v8900 = vld [vmem:[%s8326 + $0xa4] sm:$0x3]
      %v8901 = vld [vmem:[%s8326 + $0xb8] sm:$0xc]
      %v8902 = vld [vmem:[%s8326 + $0xbc] sm:$0xf]
      %v8903 = vld [vmem:[%s8326 + $0xc0] sm:$0x3]
      %v8904 = vld [vmem:[%s8326 + $0xd4] sm:$0xc]
      %v8905 = vld [vmem:[%s8326 + $0xd8] sm:$0xf]
      %v8906 = vld [vmem:[%s8326 + $0xdc] sm:$0x3]
      %v8931 = vrot.slane %v8883, 6
      %v8932 = vrot.slane %v8931, 4
      %v8933 = vrot.slane %v8884, 6
      %v8934 = vsel %vm795, %v8932, %v8933
      %v8935 = vrot.slane %v8933, 4
      %v8936 = vrot.slane %v8885, 6
      %v8937 = vsel %vm795, %v8935, %v8936
      %v8938 = vrot.slane %v8886, 6
      %v8939 = vrot.slane %v8938, 4
      %v8940 = vrot.slane %v8887, 6
      %v8941 = vsel %vm795, %v8939, %v8940
      %v8942 = vrot.slane %v8940, 4
      %v8943 = vrot.slane %v8888, 6
      %v8944 = vsel %vm795, %v8942, %v8943
      %v8945 = vrot.slane %v8889, 6
      %v8946 = vrot.slane %v8945, 4
      %v8947 = vrot.slane %v8890, 6
      %v8948 = vsel %vm795, %v8946, %v8947
      %v8949 = vrot.slane %v8947, 4
      %v8950 = vrot.slane %v8891, 6
      %v8951 = vsel %vm795, %v8949, %v8950
      %v8952 = vrot.slane %v8892, 6
      %v8953 = vrot.slane %v8952, 4
      %v8954 = vrot.slane %v8893, 6
      %v8955 = vsel %vm795, %v8953, %v8954
      %v8956 = vrot.slane %v8954, 4
      %v8957 = vrot.slane %v8894, 6
      %v8958 = vsel %vm795, %v8956, %v8957
      %v8959 = vrot.slane %v8895, 6
      %v8960 = vrot.slane %v8959, 4
      %v8961 = vrot.slane %v8896, 6
      %v8962 = vsel %vm795, %v8960, %v8961
      %v8963 = vrot.slane %v8961, 4
      %v8964 = vrot.slane %v8897, 6
      %v8965 = vsel %vm795, %v8963, %v8964
      %v8966 = vrot.slane %v8898, 6
      %v8967 = vrot.slane %v8966, 4
      %v8968 = vrot.slane %v8899, 6
      %v8969 = vsel %vm795, %v8967, %v8968
      %v8970 = vrot.slane %v8968, 4
      %v8971 = vrot.slane %v8900, 6
      %v8972 = vsel %vm795, %v8970, %v8971
      %v8973 = vrot.slane %v8901, 6
      %v8974 = vrot.slane %v8973, 4
      %v8975 = vrot.slane %v8902, 6
      %v8976 = vsel %vm795, %v8974, %v8975
      %v8977 = vrot.slane %v8975, 4
      %v8978 = vrot.slane %v8903, 6
      %v8979 = vsel %vm795, %v8977, %v8978
      %v8980 = vrot.slane %v8904, 6
      %v8981 = vrot.slane %v8980, 4
      %v8982 = vrot.slane %v8905, 6
      %v8983 = vsel %vm795, %v8981, %v8982
      %v8984 = vrot.slane %v8982, 4
      %v8985 = vrot.slane %v8906, 6
      %v8986 = vsel %vm795, %v8984, %v8985
      %s8987 = scalar_lea.vmem %s2, 416
      %v8988 = vld [vmem:[%s8987] sm:$0xf]
      %v8989 = vld [vmem:[%s8987 + $0x4] sm:$0xf]
      %v8990 = vld [vmem:[%s8987 + $0x8] sm:$0xf]
      %v8991 = vld [vmem:[%s8987 + $0xc] sm:$0xf]
      %v8992 = vunpack.c.l.b16 %v8934
      %v8993 = vunpack.c.l.b16 %v8937
      %v8994 = vunpack.c.l.b16 %v8941
      %v8995 = vunpack.c.l.b16 %v8944
      %v8996 = vunpack.c.l.b16 %v8948
      %v8997 = vunpack.c.l.b16 %v8951
      %v8998 = vunpack.c.l.b16 %v8955
      %v8999 = vunpack.c.l.b16 %v8958
      %v9000 = vunpack.c.l.b16 %v8962
      %v9001 = vunpack.c.l.b16 %v8965
      %v9002 = vunpack.c.l.b16 %v8969
      %v9003 = vunpack.c.l.b16 %v8972
      %v9004 = vunpack.c.l.b16 %v8976
      %v9005 = vunpack.c.l.b16 %v8979
      %v9006 = vunpack.c.l.b16 %v8983
      %v9007 = vunpack.c.l.b16 %v8986
      %v9008 = vpack.c.b16 %v8993, %v8992
      %v9009 = vpack.c.b16 %v8995, %v8994
      %v9010 = vpack.c.b16 %v8997, %v8996
      %v9011 = vpack.c.b16 %v8999, %v8998
      %v9012 = vpack.c.b16 %v9001, %v9000
      %v9013 = vpack.c.b16 %v9003, %v9002
      %v9014 = vpack.c.b16 %v9005, %v9004
      %v9015 = vpack.c.b16 %v9007, %v9006
      %v9020 = vunpack.c.l.b16 %v8988
      %v9021 = vunpack.c.l.b16 %v8989
      %v9022 = vunpack.c.l.b16 %v8990
      %v9023 = vunpack.c.l.b16 %v8991
      %v9024 = vpack.c.b16 %v9021, %v9020
      %v9025 = vpack.c.b16 %v9023, %v9022
      %v9029 = vsel %vm449, %v9008, 0
      %v9032 = vsel %vm449, %v9009, 0
      %v9035 = vsel %vm449, %v9010, 0
      %v9038 = vsel %vm449, %v9011, 0
      %v9041 = vsel %vm449, %v9012, 0
      %v9044 = vsel %vm449, %v9013, 0
      %v9047 = vsel %vm449, %v9014, 0
      %v9050 = vsel %vm449, %v9015, 0
      %9052 = vmatprep.subr.bf16.mxu0 0
      %9053 = vmatpush1.bf16.msra.mxu0 0
      %9054 = vmatprep.subr.bf16.mxu0 0
      %9055 = vmatpush1.bf16.msra.mxu0 0
      %9056 = vmatprep.subr.bf16.mxu0 0
      %9057 = vmatpush1.bf16.msra.mxu0 0
      %9058 = vmatprep.subr.bf16.mxu0 0
      %9059 = vmatpush1.bf16.msra.mxu0 0
      %9060 = vmatprep.subr.bf16.mxu0 0
      %9061 = vmatpush1.bf16.msra.mxu0 0
      %9062 = vmatprep.subr.bf16.mxu0 0
      %9063 = vmatpush1.bf16.msra.mxu0 0
      %9064 = vmatprep.subr.bf16.mxu0 0
      %9065 = vmatpush1.bf16.msra.mxu0 %v9025
      %9066 = vmatprep.subr.bf16.mxu0 0
      %9067 = vmatpush1.bf16.msra.mxu0 %v9024
      %9068 = vmatprep.subr.bf16.mxu0 0
      %9069 = vmatpush2.bf16.msra.mxu0 0
      %9070 = vmatprep.subr.bf16.mxu0 0
      %9071 = vmatpush2.bf16.msra.mxu0 0
      %9072 = vmatprep.subr.bf16.mxu0 0
      %9073 = vmatpush2.bf16.msra.mxu0 0
      %9074 = vmatprep.subr.bf16.mxu0 0
      %9075 = vmatpush2.bf16.msra.mxu0 0
      %9076 = vmatprep.subr.bf16.mxu0 0
      %9077 = vmatpush2.bf16.msra.mxu0 0
      %9078 = vmatprep.subr.bf16.mxu0 0
      %9079 = vmatpush2.bf16.msra.mxu0 0
      %9080 = vmatprep.subr.bf16.mxu0 0
      %9081 = vmatpush2.bf16.msra.mxu0 0
      %9082 = vmatprep.subr.bf16.mxu0 0
      %9083 = vmatpush2.bf16.msra.mxu0 0
      %9084 = vmatprep.mubr.bf16.mxu0 0
      %9085 = vmatmul.mubr.bf16.gmra.mxu0 %v9029
      %v9086 = vpop.f32.mrf.mxu0
      %v9087 = vadd.f32 0.0, %v9086
      %v9088 = vpop.f32.mrf.mxu0
      %v9089 = vpop.f32.mrf.mxu0
      %v9090 = vadd.f32 0.0, %v9089
      %v9091 = vpop.f32.mrf.mxu0
      %9092 = vmatprep.mubr.bf16.mxu0 0
      %9093 = vmatmul.mubr.bf16.gmra.mxu0 %v9032
      %v9094 = vpop.f32.mrf.mxu0
      %v9095 = vadd.f32 0.0, %v9094
      %v9096 = vpop.f32.mrf.mxu0
      %v9097 = vpop.f32.mrf.mxu0
      %v9098 = vadd.f32 0.0, %v9097
      %v9099 = vpop.f32.mrf.mxu0
      %9100 = vmatprep.mubr.bf16.mxu0 0
      %9101 = vmatmul.mubr.bf16.gmra.mxu0 %v9035
      %v9102 = vpop.f32.mrf.mxu0
      %v9103 = vadd.f32 0.0, %v9102
      %v9104 = vpop.f32.mrf.mxu0
      %v9105 = vpop.f32.mrf.mxu0
      %v9106 = vadd.f32 0.0, %v9105
      %v9107 = vpop.f32.mrf.mxu0
      %9108 = vmatprep.mubr.bf16.mxu0 0
      %9109 = vmatmul.mubr.bf16.gmra.mxu0 %v9038
      %v9110 = vpop.f32.mrf.mxu0
      %v9111 = vadd.f32 0.0, %v9110
      %v9112 = vpop.f32.mrf.mxu0
      %v9113 = vpop.f32.mrf.mxu0
      %v9114 = vadd.f32 0.0, %v9113
      %v9115 = vpop.f32.mrf.mxu0
      %9116 = vmatprep.mubr.bf16.mxu0 0
      %9117 = vmatmul.mubr.bf16.gmra.mxu0 %v9041
      %v9118 = vpop.f32.mrf.mxu0
      %v9119 = vadd.f32 0.0, %v9118
      %v9120 = vpop.f32.mrf.mxu0
      %v9121 = vpop.f32.mrf.mxu0
      %v9122 = vadd.f32 0.0, %v9121
      %v9123 = vpop.f32.mrf.mxu0
      %9124 = vmatprep.mubr.bf16.mxu0 0
      %9125 = vmatmul.mubr.bf16.gmra.mxu0 %v9044
      %v9126 = vpop.f32.mrf.mxu0
      %v9127 = vadd.f32 0.0, %v9126
      %v9128 = vpop.f32.mrf.mxu0
      %v9129 = vpop.f32.mrf.mxu0
      %v9130 = vadd.f32 0.0, %v9129
      %v9131 = vpop.f32.mrf.mxu0
      %9132 = vmatprep.mubr.bf16.mxu0 0
      %9133 = vmatmul.mubr.bf16.gmra.mxu0 %v9047
      %v9134 = vpop.f32.mrf.mxu0
      %v9135 = vadd.f32 0.0, %v9134
      %v9136 = vpop.f32.mrf.mxu0
      %v9137 = vpop.f32.mrf.mxu0
      %v9138 = vadd.f32 0.0, %v9137
      %v9139 = vpop.f32.mrf.mxu0
      %9140 = vmatprep.mubr.bf16.mxu0 0
      %9141 = vmatmul.mubr.bf16.gmra.mxu0 %v9050
      %v9142 = vpop.f32.mrf.mxu0
      %v9143 = vadd.f32 0.0, %v9142
      %v9144 = vpop.f32.mrf.mxu0
      %v9145 = vpop.f32.mrf.mxu0
      %v9146 = vadd.f32 0.0, %v9145
      %v9147 = vpop.f32.mrf.mxu0
      %9148 = vdwg.mxu0
      %v9149 = vld [vmem:[#allocation2] sm:$0xff]
      %v9150 = vld [vmem:[#allocation2 + $0x8] sm:$0xff]
      %v9151 = vld [vmem:[#allocation2 + $0x10] sm:$0xff]
      %v9152 = vld [vmem:[#allocation2 + $0x18] sm:$0xff]
      %v9153 = vld [vmem:[#allocation2 + $0x20] sm:$0xff]
      %v9154 = vld [vmem:[#allocation2 + $0x28] sm:$0xff]
      %v9155 = vld [vmem:[#allocation2 + $0x30] sm:$0xff]
      %v9156 = vld [vmem:[#allocation2 + $0x38] sm:$0xff]
      %v9157 = vld [vmem:[#allocation2 + $0x40] sm:$0xff]
      %v9158 = vld [vmem:[#allocation2 + $0x48] sm:$0xff]
      %v9159 = vld [vmem:[#allocation2 + $0x50] sm:$0xff]
      %v9160 = vld [vmem:[#allocation2 + $0x58] sm:$0xff]
      %v9161 = vld [vmem:[#allocation2 + $0x60] sm:$0xff]
      %v9162 = vld [vmem:[#allocation2 + $0x68] sm:$0xff]
      %v9163 = vld [vmem:[#allocation2 + $0x70] sm:$0xff]
      %v9164 = vld [vmem:[#allocation2 + $0x78] sm:$0xff]
      %v9165 = vadd.f32 %v9149, %v9087
      %v9166 = vadd.f32 %v9150, %v9090
      %v9167 = vadd.f32 %v9151, %v9095
      %v9168 = vadd.f32 %v9152, %v9098
      %v9169 = vadd.f32 %v9153, %v9103
      %v9170 = vadd.f32 %v9154, %v9106
      %v9171 = vadd.f32 %v9155, %v9111
      %v9172 = vadd.f32 %v9156, %v9114
      %v9173 = vadd.f32 %v9157, %v9119
      %v9174 = vadd.f32 %v9158, %v9122
      %v9175 = vadd.f32 %v9159, %v9127
      %v9176 = vadd.f32 %v9160, %v9130
      %v9177 = vadd.f32 %v9161, %v9135
      %v9178 = vadd.f32 %v9162, %v9138
      %v9179 = vadd.f32 %v9163, %v9143
      %v9180 = vadd.f32 %v9164, %v9146
      %9181 = vst.msk [vmem:[#allocation2] sm:$0xff] %vm603, %v9165
      %9182 = vst.msk [vmem:[#allocation2 + $0x8] sm:$0xff] %vm603, %v9166
      %9183 = vst.msk [vmem:[#allocation2 + $0x10] sm:$0xff] %vm603, %v9167
      %9184 = vst.msk [vmem:[#allocation2 + $0x18] sm:$0xff] %vm603, %v9168
      %9185 = vst.msk [vmem:[#allocation2 + $0x20] sm:$0xff] %vm603, %v9169
      %9186 = vst.msk [vmem:[#allocation2 + $0x28] sm:$0xff] %vm603, %v9170
      %9187 = vst.msk [vmem:[#allocation2 + $0x30] sm:$0xff] %vm603, %v9171
      %9188 = vst.msk [vmem:[#allocation2 + $0x38] sm:$0xff] %vm603, %v9172
      %9189 = vst.msk [vmem:[#allocation2 + $0x40] sm:$0xff] %vm603, %v9173
      %9190 = vst.msk [vmem:[#allocation2 + $0x48] sm:$0xff] %vm603, %v9174
      %9191 = vst.msk [vmem:[#allocation2 + $0x50] sm:$0xff] %vm603, %v9175
      %9192 = vst.msk [vmem:[#allocation2 + $0x58] sm:$0xff] %vm603, %v9176
      %9193 = vst.msk [vmem:[#allocation2 + $0x60] sm:$0xff] %vm603, %v9177
      %9194 = vst.msk [vmem:[#allocation2 + $0x68] sm:$0xff] %vm603, %v9178
      %9195 = vst.msk [vmem:[#allocation2 + $0x70] sm:$0xff] %vm603, %v9179
      %9196 = vst.msk [vmem:[#allocation2 + $0x78] sm:$0xff] %vm603, %v9180
      %v9197 = vld [vmem:[#allocation2] sm:$0xff]
      %v9198 = vld [vmem:[#allocation2 + $0x8] sm:$0xff]
      %v9199 = vld [vmem:[#allocation2 + $0x10] sm:$0xff]
      %v9200 = vld [vmem:[#allocation2 + $0x18] sm:$0xff]
      %v9201 = vld [vmem:[#allocation2 + $0x20] sm:$0xff]
      %v9202 = vld [vmem:[#allocation2 + $0x28] sm:$0xff]
      %v9203 = vld [vmem:[#allocation2 + $0x30] sm:$0xff]
      %v9204 = vld [vmem:[#allocation2 + $0x38] sm:$0xff]
      %v9205 = vld [vmem:[#allocation2 + $0x40] sm:$0xff]
      %v9206 = vld [vmem:[#allocation2 + $0x48] sm:$0xff]
      %v9207 = vld [vmem:[#allocation2 + $0x50] sm:$0xff]
      %v9208 = vld [vmem:[#allocation2 + $0x58] sm:$0xff]
      %v9209 = vld [vmem:[#allocation2 + $0x60] sm:$0xff]
      %v9210 = vld [vmem:[#allocation2 + $0x68] sm:$0xff]
      %v9211 = vld [vmem:[#allocation2 + $0x70] sm:$0xff]
      %v9212 = vld [vmem:[#allocation2 + $0x78] sm:$0xff]
      %v9213 = vld [vmem:[%s4 + $0x3] sm:$0x1]
      %v9214 = vlaneseq
      %v9215 = vshrl.u32 %v9214, 7
      %v9216 = vsub.s32 0, %v9215
      %v9217 = vrot.slane %v9213, %v9216
      %v9218 = vadd.f32 %v9197, %v9217
      %v9219 = vadd.f32 %v9198, %v9217
      %v9220 = vadd.f32 %v9199, %v9217
      %v9221 = vadd.f32 %v9200, %v9217
      %v9222 = vadd.f32 %v9201, %v9217
      %v9223 = vadd.f32 %v9202, %v9217
      %v9224 = vadd.f32 %v9203, %v9217
      %v9225 = vadd.f32 %v9204, %v9217
      %v9226 = vadd.f32 %v9205, %v9217
      %v9227 = vadd.f32 %v9206, %v9217
      %v9228 = vadd.f32 %v9207, %v9217
      %v9229 = vadd.f32 %v9208, %v9217
      %v9230 = vadd.f32 %v9209, %v9217
      %v9231 = vadd.f32 %v9210, %v9217
      %v9232 = vadd.f32 %v9211, %v9217
      %v9233 = vadd.f32 %v9212, %v9217
      %v9234 = vmax.f32 %v9218, 0.0
      %v9235 = vmax.f32 %v9219, 0.0
      %v9236 = vmax.f32 %v9220, 0.0
      %v9237 = vmax.f32 %v9221, 0.0
      %v9238 = vmax.f32 %v9222, 0.0
      %v9239 = vmax.f32 %v9223, 0.0
      %v9240 = vmax.f32 %v9224, 0.0
      %v9241 = vmax.f32 %v9225, 0.0
      %v9242 = vmax.f32 %v9226, 0.0
      %v9243 = vmax.f32 %v9227, 0.0
      %v9244 = vmax.f32 %v9228, 0.0
      %v9245 = vmax.f32 %v9229, 0.0
      %v9246 = vmax.f32 %v9230, 0.0
      %v9247 = vmax.f32 %v9231, 0.0
      %v9248 = vmax.f32 %v9232, 0.0
      %v9249 = vmax.f32 %v9233, 0.0
      %v9250 = vld [vmem:[#allocation3] sm:$0xff]
      %v9251 = vld [vmem:[#allocation3 + $0x8] sm:$0xff]
      %v9252 = vld [vmem:[#allocation3 + $0x10] sm:$0xff]
      %v9253 = vld [vmem:[#allocation3 + $0x18] sm:$0xff]
      %v9254 = vld [vmem:[#allocation3 + $0x20] sm:$0xff]
      %v9255 = vld [vmem:[#allocation3 + $0x28] sm:$0xff]
      %v9256 = vld [vmem:[#allocation3 + $0x30] sm:$0xff]
      %v9257 = vld [vmem:[#allocation3 + $0x38] sm:$0xff]
      %v9258 = vld [vmem:[#allocation3 + $0x40] sm:$0xff]
      %v9259 = vld [vmem:[#allocation3 + $0x48] sm:$0xff]
      %v9260 = vld [vmem:[#allocation3 + $0x50] sm:$0xff]
      %v9261 = vld [vmem:[#allocation3 + $0x58] sm:$0xff]
      %v9262 = vld [vmem:[#allocation3 + $0x60] sm:$0xff]
      %v9263 = vld [vmem:[#allocation3 + $0x68] sm:$0xff]
      %v9264 = vld [vmem:[#allocation3 + $0x70] sm:$0xff]
      %v9265 = vld [vmem:[#allocation3 + $0x78] sm:$0xff]
      %v9266 = vpack.c.bf16 %v9235, %v9234
      %v9267 = vpack.c.bf16 %v9237, %v9236
      %v9268 = vpack.c.bf16 %v9239, %v9238
      %v9269 = vpack.c.bf16 %v9241, %v9240
      %v9270 = vpack.c.bf16 %v9243, %v9242
      %v9271 = vpack.c.bf16 %v9245, %v9244
      %v9272 = vpack.c.bf16 %v9247, %v9246
      %v9273 = vpack.c.bf16 %v9249, %v9248
      %s9274 = scalar_lea.vmem %s3, 24
      %v9275 = vld [vmem:[%s9274] sm:$0xf]
      %v9276 = vld [vmem:[%s9274 + $0x4] sm:$0xf]
      %v9279 = vunpack.c.l.b16 %v9275
      %v9280 = vunpack.c.l.b16 %v9276
      %v9281 = vpack.c.b16 %v9280, %v9279
      %v9284 = vsel %vm603, %v9266, 0
      %v9287 = vsel %vm603, %v9267, 0
      %v9290 = vsel %vm603, %v9268, 0
      %v9293 = vsel %vm603, %v9269, 0
      %v9296 = vsel %vm603, %v9270, 0
      %v9299 = vsel %vm603, %v9271, 0
      %v9302 = vsel %vm603, %v9272, 0
      %v9305 = vsel %vm603, %v9273, 0
      %9307 = vmatprep.subr.bf16.mxu0 0
      %9308 = vmatpush1.bf16.msra.mxu0 0
      %9309 = vmatprep.subr.bf16.mxu0 0
      %9310 = vmatpush1.bf16.msra.mxu0 0
      %9311 = vmatprep.subr.bf16.mxu0 0
      %9312 = vmatpush1.bf16.msra.mxu0 0
      %9313 = vmatprep.subr.bf16.mxu0 0
      %9314 = vmatpush1.bf16.msra.mxu0 0
      %9315 = vmatprep.subr.bf16.mxu0 0
      %9316 = vmatpush1.bf16.msra.mxu0 0
      %9317 = vmatprep.subr.bf16.mxu0 0
      %9318 = vmatpush1.bf16.msra.mxu0 0
      %9319 = vmatprep.subr.bf16.mxu0 0
      %9320 = vmatpush1.bf16.msra.mxu0 0
      %9321 = vmatprep.subr.bf16.mxu0 0
      %9322 = vmatpush1.bf16.msra.mxu0 %v9281
      %9323 = vmatprep.subr.bf16.mxu0 0
      %9324 = vmatpush2.bf16.msra.mxu0 0
      %9325 = vmatprep.subr.bf16.mxu0 0
      %9326 = vmatpush2.bf16.msra.mxu0 0
      %9327 = vmatprep.subr.bf16.mxu0 0
      %9328 = vmatpush2.bf16.msra.mxu0 0
      %9329 = vmatprep.subr.bf16.mxu0 0
      %9330 = vmatpush2.bf16.msra.mxu0 0
      %9331 = vmatprep.subr.bf16.mxu0 0
      %9332 = vmatpush2.bf16.msra.mxu0 0
      %9333 = vmatprep.subr.bf16.mxu0 0
      %9334 = vmatpush2.bf16.msra.mxu0 0
      %9335 = vmatprep.subr.bf16.mxu0 0
      %9336 = vmatpush2.bf16.msra.mxu0 0
      %9337 = vmatprep.subr.bf16.mxu0 0
      %9338 = vmatpush2.bf16.msra.mxu0 0
      %9339 = vmatprep.mubr.bf16.mxu0 0
      %9340 = vmatmul.mubr.bf16.gmra.mxu0 %v9284
      %v9341 = vpop.f32.mrf.mxu0
      %v9342 = vadd.f32 0.0, %v9341
      %v9343 = vpop.f32.mrf.mxu0
      %v9344 = vpop.f32.mrf.mxu0
      %v9345 = vadd.f32 0.0, %v9344
      %v9346 = vpop.f32.mrf.mxu0
      %9347 = vmatprep.mubr.bf16.mxu0 0
      %9348 = vmatmul.mubr.bf16.gmra.mxu0 %v9287
      %v9349 = vpop.f32.mrf.mxu0
      %v9350 = vadd.f32 0.0, %v9349
      %v9351 = vpop.f32.mrf.mxu0
      %v9352 = vpop.f32.mrf.mxu0
      %v9353 = vadd.f32 0.0, %v9352
      %v9354 = vpop.f32.mrf.mxu0
      %9355 = vmatprep.mubr.bf16.mxu0 0
      %9356 = vmatmul.mubr.bf16.gmra.mxu0 %v9290
      %v9357 = vpop.f32.mrf.mxu0
      %v9358 = vadd.f32 0.0, %v9357
      %v9359 = vpop.f32.mrf.mxu0
      %v9360 = vpop.f32.mrf.mxu0
      %v9361 = vadd.f32 0.0, %v9360
      %v9362 = vpop.f32.mrf.mxu0
      %9363 = vmatprep.mubr.bf16.mxu0 0
      %9364 = vmatmul.mubr.bf16.gmra.mxu0 %v9293
      %v9365 = vpop.f32.mrf.mxu0
      %v9366 = vadd.f32 0.0, %v9365
      %v9367 = vpop.f32.mrf.mxu0
      %v9368 = vpop.f32.mrf.mxu0
      %v9369 = vadd.f32 0.0, %v9368
      %v9370 = vpop.f32.mrf.mxu0
      %9371 = vmatprep.mubr.bf16.mxu0 0
      %9372 = vmatmul.mubr.bf16.gmra.mxu0 %v9296
      %v9373 = vpop.f32.mrf.mxu0
      %v9374 = vadd.f32 0.0, %v9373
      %v9375 = vpop.f32.mrf.mxu0
      %v9376 = vpop.f32.mrf.mxu0
      %v9377 = vadd.f32 0.0, %v9376
      %v9378 = vpop.f32.mrf.mxu0
      %9379 = vmatprep.mubr.bf16.mxu0 0
      %9380 = vmatmul.mubr.bf16.gmra.mxu0 %v9299
      %v9381 = vpop.f32.mrf.mxu0
      %v9382 = vadd.f32 0.0, %v9381
      %v9383 = vpop.f32.mrf.mxu0
      %v9384 = vpop.f32.mrf.mxu0
      %v9385 = vadd.f32 0.0, %v9384
      %v9386 = vpop.f32.mrf.mxu0
      %9387 = vmatprep.mubr.bf16.mxu0 0
      %9388 = vmatmul.mubr.bf16.gmra.mxu0 %v9302
      %v9389 = vpop.f32.mrf.mxu0
      %v9390 = vadd.f32 0.0, %v9389
      %v9391 = vpop.f32.mrf.mxu0
      %v9392 = vpop.f32.mrf.mxu0
      %v9393 = vadd.f32 0.0, %v9392
      %v9394 = vpop.f32.mrf.mxu0
      %9395 = vmatprep.mubr.bf16.mxu0 0
      %9396 = vmatmul.mubr.bf16.gmra.mxu0 %v9305
      %v9397 = vpop.f32.mrf.mxu0
      %v9398 = vadd.f32 0.0, %v9397
      %v9399 = vpop.f32.mrf.mxu0
      %v9400 = vpop.f32.mrf.mxu0
      %v9401 = vadd.f32 0.0, %v9400
      %v9402 = vpop.f32.mrf.mxu0
      %9403 = vdwg.mxu0
      %v9404 = vadd.f32 %v9250, %v9342
      %v9405 = vadd.f32 %v9251, %v9345
      %v9406 = vadd.f32 %v9252, %v9350
      %v9407 = vadd.f32 %v9253, %v9353
      %v9408 = vadd.f32 %v9254, %v9358
      %v9409 = vadd.f32 %v9255, %v9361
      %v9410 = vadd.f32 %v9256, %v9366
      %v9411 = vadd.f32 %v9257, %v9369
      %v9412 = vadd.f32 %v9258, %v9374
      %v9413 = vadd.f32 %v9259, %v9377
      %v9414 = vadd.f32 %v9260, %v9382
      %v9415 = vadd.f32 %v9261, %v9385
      %v9416 = vadd.f32 %v9262, %v9390
      %v9417 = vadd.f32 %v9263, %v9393
      %v9418 = vadd.f32 %v9264, %v9398
      %v9419 = vadd.f32 %v9265, %v9401
      %9420 = vst.msk [vmem:[#allocation3] sm:$0xff] %vm603, %v9404
      %9421 = vst.msk [vmem:[#allocation3 + $0x8] sm:$0xff] %vm603, %v9405
      %9422 = vst.msk [vmem:[#allocation3 + $0x10] sm:$0xff] %vm603, %v9406
      %9423 = vst.msk [vmem:[#allocation3 + $0x18] sm:$0xff] %vm603, %v9407
      %9424 = vst.msk [vmem:[#allocation3 + $0x20] sm:$0xff] %vm603, %v9408
      %9425 = vst.msk [vmem:[#allocation3 + $0x28] sm:$0xff] %vm603, %v9409
      %9426 = vst.msk [vmem:[#allocation3 + $0x30] sm:$0xff] %vm603, %v9410
      %9427 = vst.msk [vmem:[#allocation3 + $0x38] sm:$0xff] %vm603, %v9411
      %9428 = vst.msk [vmem:[#allocation3 + $0x40] sm:$0xff] %vm603, %v9412
      %9429 = vst.msk [vmem:[#allocation3 + $0x48] sm:$0xff] %vm603, %v9413
      %9430 = vst.msk [vmem:[#allocation3 + $0x50] sm:$0xff] %vm603, %v9414
      %9431 = vst.msk [vmem:[#allocation3 + $0x58] sm:$0xff] %vm603, %v9415
      %9432 = vst.msk [vmem:[#allocation3 + $0x60] sm:$0xff] %vm603, %v9416
      %9433 = vst.msk [vmem:[#allocation3 + $0x68] sm:$0xff] %vm603, %v9417
      %9434 = vst.msk [vmem:[#allocation3 + $0x70] sm:$0xff] %vm603, %v9418
      %9435 = vst.msk [vmem:[#allocation3 + $0x78] sm:$0xff] %vm603, %v9419
      %v9436 = vld [vmem:[#allocation3] sm:$0xff]
      %v9437 = vld [vmem:[#allocation3 + $0x8] sm:$0xff]
      %v9438 = vld [vmem:[#allocation3 + $0x10] sm:$0xff]
      %v9439 = vld [vmem:[#allocation3 + $0x18] sm:$0xff]
      %v9440 = vld [vmem:[#allocation3 + $0x20] sm:$0xff]
      %v9441 = vld [vmem:[#allocation3 + $0x28] sm:$0xff]
      %v9442 = vld [vmem:[#allocation3 + $0x30] sm:$0xff]
      %v9443 = vld [vmem:[#allocation3 + $0x38] sm:$0xff]
      %v9444 = vld [vmem:[#allocation3 + $0x40] sm:$0xff]
      %v9445 = vld [vmem:[#allocation3 + $0x48] sm:$0xff]
      %v9446 = vld [vmem:[#allocation3 + $0x50] sm:$0xff]
      %v9447 = vld [vmem:[#allocation3 + $0x58] sm:$0xff]
      %v9448 = vld [vmem:[#allocation3 + $0x60] sm:$0xff]
      %v9449 = vld [vmem:[#allocation3 + $0x68] sm:$0xff]
      %v9450 = vld [vmem:[#allocation3 + $0x70] sm:$0xff]
      %v9451 = vld [vmem:[#allocation3 + $0x78] sm:$0xff]
      %v9452 = vld [vmem:[%s279] sm:$0x1]
      %v9454 = vlaneseq
      %v9455 = vshrl.u32 %v9454, 7
      %v9456 = vsub.s32 0, %v9455
      %v9457 = vrot.slane %v9452, %v9456
      %v9459 = vadd.f32 %v9436, %v9457
      %v9460 = vadd.f32 %v9437, %v9457
      %v9461 = vadd.f32 %v9438, %v9457
      %v9462 = vadd.f32 %v9439, %v9457
      %v9463 = vadd.f32 %v9440, %v9457
      %v9464 = vadd.f32 %v9441, %v9457
      %v9465 = vadd.f32 %v9442, %v9457
      %v9466 = vadd.f32 %v9443, %v9457
      %v9467 = vadd.f32 %v9444, %v9457
      %v9468 = vadd.f32 %v9445, %v9457
      %v9469 = vadd.f32 %v9446, %v9457
      %v9470 = vadd.f32 %v9447, %v9457
      %v9471 = vadd.f32 %v9448, %v9457
      %v9472 = vadd.f32 %v9449, %v9457
      %v9473 = vadd.f32 %v9450, %v9457
      %v9474 = vadd.f32 %v9451, %v9457
      %v9475 = vmax.f32 %v9459, 0.0
      %v9476 = vmax.f32 %v9460, 0.0
      %v9477 = vmax.f32 %v9461, 0.0
      %v9478 = vmax.f32 %v9462, 0.0
      %v9479 = vmax.f32 %v9463, 0.0
      %v9480 = vmax.f32 %v9464, 0.0
      %v9481 = vmax.f32 %v9465, 0.0
      %v9482 = vmax.f32 %v9466, 0.0
      %v9483 = vmax.f32 %v9467, 0.0
      %v9484 = vmax.f32 %v9468, 0.0
      %v9485 = vmax.f32 %v9469, 0.0
      %v9486 = vmax.f32 %v9470, 0.0
      %v9487 = vmax.f32 %v9471, 0.0
      %v9488 = vmax.f32 %v9472, 0.0
      %v9489 = vmax.f32 %v9473, 0.0
      %v9490 = vmax.f32 %v9474, 0.0
      %9491 = vst.msk [vmem:[%s289] sm:$0xff] %vm603, %v9475
      %9492 = vst.msk [vmem:[%s289 + $0x8] sm:$0xff] %vm603, %v9476
      %9493 = vst.msk [vmem:[%s289 + $0x10] sm:$0xff] %vm603, %v9477
      %9494 = vst.msk [vmem:[%s289 + $0x18] sm:$0xff] %vm603, %v9478
      %9495 = vst.msk [vmem:[%s289 + $0x20] sm:$0xff] %vm603, %v9479
      %9496 = vst.msk [vmem:[%s289 + $0x28] sm:$0xff] %vm603, %v9480
      %9497 = vst.msk [vmem:[%s289 + $0x30] sm:$0xff] %vm603, %v9481
      %9498 = vst.msk [vmem:[%s289 + $0x38] sm:$0xff] %vm603, %v9482
      %9499 = vst.msk [vmem:[%s289 + $0x40] sm:$0xff] %vm603, %v9483
      %9500 = vst.msk [vmem:[%s289 + $0x48] sm:$0xff] %vm603, %v9484
      %9501 = vst.msk [vmem:[%s289 + $0x50] sm:$0xff] %vm603, %v9485
      %9502 = vst.msk [vmem:[%s289 + $0x58] sm:$0xff] %vm603, %v9486
      %9503 = vst.msk [vmem:[%s289 + $0x60] sm:$0xff] %vm603, %v9487
      %9504 = vst.msk [vmem:[%s289 + $0x68] sm:$0xff] %vm603, %v9488
      %9505 = vst.msk [vmem:[%s289 + $0x70] sm:$0xff] %vm603, %v9489
      %9506 = vst.msk [vmem:[%s289 + $0x78] sm:$0xff] %vm603, %v9490
      %s9507 = smul.u32 8, %s22
      %p9508 = scmp.lt.s32.totalorder %s21, 1
      %s9509 = scalar_select %p9508, %s21, 1
      %p9510 = scmp.lt.s32.totalorder %s9507, 15
      %s9511 = scalar_select %p9510, %s9507, 15
      %s9512 = smul.addr %s9511, 2
      %s9513 = smul.addr %s9509, 32
      %s9514 = sadd.s32 %s9512, %s9513
      %s9515 = smul.addr %s9514, 8
      %s9516 = scalar_lea.vmem %s6, %s9515
      // Predicated region
      $region45: #{aspp_forward.1} parent=43 // pred_check
        %p9517 = pneg %p185
      $region46: #{aspp_forward.1} parent=43 // pred_check_branch
        %9519 = sbr.rel (%p9517) target = $region48
      $region47: #{aspp_forward.1} parent=43 // pred_region
        %s9520 = smul.u32 8, %s22
      $region48: #{aspp_forward.1} parent=43 // pred_fallthru
        _
    $region44: #{aspp_forward.1} parent=5 // pred_fallthru
      _
    %p9521 = scmp.le.s32.totalorder 2, %s12
    // Predicated region
    $region49: #{aspp_forward.1} parent=5 // pred_check
      %p9522 = pneg %p9521
    $region50: #{aspp_forward.1} parent=5 // pred_check_branch
      %9524 = sbr.rel (%p9522) target = $region52
    $region51: #{aspp_forward.1} parent=5 // pred_region
      %s9525 = ssub.s32 %s12, 2
      // Predicated region
      $region53: #{aspp_forward.1} parent=51 // pred_check
        %p9526 = pneg %p191
      $region54: #{aspp_forward.1} parent=51 // pred_check_branch
        %9528 = sbr.rel (%p9526) target = $region56
      $region55: #{aspp_forward.1} parent=51 // pred_region
        %s9529 = smul.u32 8, %s24
        %p9530 = scmp.lt.s32.totalorder %s23, 1
        %s9531 = scalar_select %p9530, %s23, 1
        %p9532 = scmp.lt.s32.totalorder %s9529, 15
        %s9533 = scalar_select %p9532, %s9529, 15
        %s9534 = smul.addr %s9533, 2
        %s9535 = smul.addr %s9531, 32
        %s9536 = sadd.s32 %s9534, %s9535
        %s9537 = smul.addr %s9536, 8
        %s9538 = scalar_lea.vmem %s6, %s9537
      $region56: #{aspp_forward.1} parent=51 // pred_fallthru
        _
    $region52: #{aspp_forward.1} parent=5 // pred_fallthru
      _
  $region6: #{aspp_forward.1} parent=0 // loop_footer
    %s16 = sadd.s32 1, %s12
  $region7: #{aspp_forward.1} parent=0 // loop_footer_branch
    %11 = sbr.rel target = $region3
  $region8: #{aspp_forward.1} parent=0 // loop_exit
    _

</llo_original>
